<compile_context>
chip_gen: v7x
topology: tpu7x:2x2x1
jax: 0.10.0
libtpu: 0.0.40
codegen_flags: <defaults>
</compile_context>

<pallas_src>
import jax
import jax.numpy as jnp
from jax.experimental import pallas as pl
from jax.experimental.pallas import tpu as pltpu

N_MFCC = 16
HIDDEN = 40          # true LSTM hidden size (PyTorch nn.LSTM(n_mfcc, 40, 4))
HP = 128             # lane-padded hidden size (one full vreg lane width)
NUM_LAYERS = 4

# PyTorch packs LSTM gates as (i, f, g, o); the kernel uses (i, f, o, g) so that a
# single tanh-sigmoid covers columns [0:3*HP] and a single tanh covers [3*HP:4*HP].
_PT_TO_KERNEL_GATE = (0, 1, 3, 2)


def _sigmoid_via_tanh(x):
    # sigmoid(x) == 0.5 * (1 + tanh(0.5 * x)); tanh is a single EUP pass.
    return jnp.tanh(x * 0.5) * 0.5 + 0.5


def rnn_kernel(x_ref, wih_ref, whh_ref, b_ref, wfc_ref, bfc_ref, out_ref, seq_ref):
    """Full forward pass for one batch block.

    x_ref   : (T, Bb, HP)   bf16 input sequence, time-major, feature-padded to HP
    wih_ref : (L, HP, 4*HP) bf16 input->gates weights (gate order i,f,o,g; zero-padded)
    whh_ref : (L, HP, 4*HP) bf16 hidden->gates weights
    b_ref   : (L, 1, 4*HP)  f32 combined gate bias (b_ih + b_hh)
    wfc_ref : (HP, HP)      f32 final linear weight, real part in [:HIDDEN, :1]
    bfc_ref : (1, HP)       f32 final linear bias,   real part in [:, :1]
    out_ref : (Bb, HP)      f32 sigmoid(logits), lane-dense; column 0 is the real output
    seq_ref : (T, Bb, HP)   bf16 VMEM scratch holding the previous layer's h_t sequence
    """
    T, Bb, _ = x_ref.shape

    acc = jnp.zeros((Bb, HP), jnp.float32)        # temporal-mean accumulator (last layer)

    for layer in range(NUM_LAYERS):
        wih = wih_ref[layer]                      # (HP, 4*HP) bf16
        whh = whh_ref[layer]                      # (HP, 4*HP) bf16
        bias = b_ref[layer]                       # (1, 4*HP)  f32

        # Layer input: raw x for layer 0, previous layer's h sequence (scratch) after.
        if layer == 0:
            seq = x_ref[...].reshape(T * Bb, HP)      # bf16
        else:
            seq = seq_ref[...].reshape(T * Bb, HP)    # bf16 (written by previous layer)

        # Hoisted input projection for the whole sequence: one big bf16 MXU matmul
        # (M = T*Bb, f32 accumulate) instead of T tiny ones inside the recurrence.
        gx = jnp.dot(seq, wih, preferred_element_type=jnp.float32) + bias
        gx = gx.reshape(T, Bb, 4 * HP)            # leading-axis time indexing

        h = jnp.zeros((Bb, HP), jnp.float32)
        c = jnp.zeros((Bb, HP), jnp.float32)
        last = layer == NUM_LAYERS - 1

        # T is a small static shape dim -> full unroll so the LLO scheduler can
        # overlap consecutive steps' MXU / EUP work.  (Switch to lax.fori_loop with
        # modest unroll if T grows beyond a few tens.)
        for t in range(T):
            gates = gx[t] + jnp.dot(h.astype(jnp.bfloat16), whh,
                                    preferred_element_type=jnp.float32)
            sig = _sigmoid_via_tanh(gates[:, : 3 * HP])       # i | f | o, one EUP launch
            i_g = sig[:, 0 * HP:1 * HP]
            f_g = sig[:, 1 * HP:2 * HP]
            o_g = sig[:, 2 * HP:3 * HP]
            g_g = jnp.tanh(gates[:, 3 * HP:4 * HP])
            c = f_g * c + i_g * g_g
            h = o_g * jnp.tanh(c)
            if last:
                acc = acc + h                      # in-loop mean-pool accumulation
            else:
                seq_ref[t] = h.astype(jnp.bfloat16)  # feeds next layer's projection

    # AdaptiveAvgPool1d(1) over time, then fc1 + sigmoid (lane-dense output).
    pooled = acc * jnp.float32(1.0 / T)            # (Bb, HP); padded lanes are exactly 0
    logits = jnp.dot(pooled, wfc_ref[...], preferred_element_type=jnp.float32) + bfc_ref[...]
    out_ref[...] = _sigmoid_via_tanh(logits)


def _round_up(a, b):
    return ((a + b - 1) // b) * b


@jax.jit
def rnn_forward(x, wih_p, whh_p, b_p, wfc_p, bfc_p):
    """x: (B, T, n_mfcc) float32 -> (B, 1) sigmoid output."""
    B, T, F = x.shape

    # Pad batch to a multiple of 8 (full (8,128) vregs throughout the recurrence),
    # cap the batch block at 128 to bound vreg pressure, then pad to a block multiple.
    B_pad = _round_up(B, 8)
    BB = min(B_pad, 128)
    B_pad = _round_up(B_pad, BB)

    x_pad = jnp.pad(x.astype(jnp.float32), ((0, B_pad - B), (0, 0), (0, HP - F)))
    x_tbh = jnp.transpose(x_pad, (1, 0, 2)).astype(jnp.bfloat16)   # (T, B_pad, HP) bf16

    grid = (pl.cdiv(B_pad, BB),)

    out_padded = pl.pallas_call(
        rnn_kernel,
        out_shape=jax.ShapeDtypeStruct((B_pad, HP), jnp.float32),
        grid=grid,
        in_specs=[
            pl.BlockSpec((T, BB, HP), lambda i: (0, i, 0)),
            pl.BlockSpec((NUM_LAYERS, HP, 4 * HP), lambda i: (0, 0, 0)),
            pl.BlockSpec((NUM_LAYERS, HP, 4 * HP), lambda i: (0, 0, 0)),
            pl.BlockSpec((NUM_LAYERS, 1, 4 * HP), lambda i: (0, 0, 0)),
            pl.BlockSpec((HP, HP), lambda i: (0, 0)),
            pl.BlockSpec((1, HP), lambda i: (0, 0)),
        ],
        out_specs=pl.BlockSpec((BB, HP), lambda i: (i, 0)),
        scratch_shapes=[pltpu.VMEM((T, BB, HP), jnp.bfloat16)],    # inter-layer h sequence
        compiler_params=pltpu.CompilerParams(
            dimension_semantics=("parallel",),     # megacore-shard the batch grid on v7x
        ),
    )(x_tbh, wih_p, whh_p, b_p, wfc_p, bfc_p)

    return out_padded[:B, :1]                      # (B, 1)


# ----------------------------------------------------------------------------- params

def init_params(key):
    """PyTorch-style init: uniform(-k, k), k = 1/sqrt(hidden). Unpadded, gate order (i,f,g,o)."""
    k = 1.0 / jnp.sqrt(jnp.float32(HIDDEN))
    keys = jax.random.split(key, 3 * NUM_LAYERS + 2)
    wih, whh, b = [], [], []
    for l in range(NUM_LAYERS):
        in_dim = N_MFCC if l == 0 else HIDDEN
        wih.append(jax.random.uniform(keys[3 * l + 0], (in_dim, 4 * HIDDEN), jnp.float32, -k, k))
        whh.append(jax.random.uniform(keys[3 * l + 1], (HIDDEN, 4 * HIDDEN), jnp.float32, -k, k))
        b.append(jax.random.uniform(keys[3 * l + 2], (1, 4 * HIDDEN), jnp.float32, -k, k))
    wfc = jax.random.uniform(keys[-2], (HIDDEN, 1), jnp.float32, -k, k)
    bfc = jax.random.uniform(keys[-1], (1, 1), jnp.float32, -k, k)
    return wih, whh, b, wfc, bfc


def _pack_gate_matrix(w, in_dim):
    """(in_dim, 4*HIDDEN) pytorch order (i,f,g,o) -> (HP, 4*HP) kernel order (i,f,o,g), zero-padded."""
    blocks = []
    for g in _PT_TO_KERNEL_GATE:
        blk = w[:, g * HIDDEN:(g + 1) * HIDDEN]
        blocks.append(jnp.pad(blk, ((0, HP - in_dim), (0, HP - HIDDEN))))
    return jnp.concatenate(blocks, axis=1)


def _pack_gate_bias(bias):
    blocks = []
    for g in _PT_TO_KERNEL_GATE:
        blk = bias[:, g * HIDDEN:(g + 1) * HIDDEN]
        blocks.append(jnp.pad(blk, ((0, 0), (0, HP - HIDDEN))))
    return jnp.concatenate(blocks, axis=1)


def pack_params(wih, whh, b, wfc, bfc):
    # Gate matrices stored bf16 (single-pass MXU); bias/fc stay f32 (added post-accumulate).
    wih_p = jnp.stack([_pack_gate_matrix(wih[l], wih[l].shape[0])
                       for l in range(NUM_LAYERS)]).astype(jnp.bfloat16)
    whh_p = jnp.stack([_pack_gate_matrix(whh[l], HIDDEN)
                       for l in range(NUM_LAYERS)]).astype(jnp.bfloat16)
    b_p = jnp.stack([_pack_gate_bias(b[l]) for l in range(NUM_LAYERS)])
    wfc_p = jnp.pad(wfc, ((0, HP - HIDDEN), (0, HP - 1)))   # (HP, HP) lane-dense fc weight
    bfc_p = jnp.pad(bfc, ((0, 0), (0, HP - 1)))             # (1, HP)
    return wih_p, whh_p, b_p, wfc_p, bfc_p


# ----------------------------------------------------------------------------- reference

def reference_forward(x, wih, whh, b, wfc, bfc):
    """Pure-JAX f32 reference mirroring torch.nn.LSTM + AdaptiveAvgPool1d(1) + Linear + Sigmoid."""
    B, T, _ = x.shape
    seq = x.astype(jnp.float32)
    for l in range(NUM_LAYERS):
        h = jnp.zeros((B, HIDDEN), jnp.float32)
        c = jnp.zeros((B, HIDDEN), jnp.float32)
        outs = []
        for t in range(T):
            gates = seq[:, t, :] @ wih[l] + h @ whh[l] + b[l]
            i_g = jax.nn.sigmoid(gates[:, 0 * HIDDEN:1 * HIDDEN])
            f_g = jax.nn.sigmoid(gates[:, 1 * HIDDEN:2 * HIDDEN])
            g_g = jnp.tanh(gates[:, 2 * HIDDEN:3 * HIDDEN])
            o_g = jax.nn.sigmoid(gates[:, 3 * HIDDEN:4 * HIDDEN])
            c = f_g * c + i_g * g_g
            h = o_g * jnp.tanh(c)
            outs.append(h)
        seq = jnp.stack(outs, axis=1)
    pooled = jnp.mean(seq, axis=1)
    return jax.nn.sigmoid(pooled @ wfc + bfc)


if __name__ == "__main__":
    B, T = 2, 8
    key = jax.random.PRNGKey(0)
    k_x, k_p = jax.random.split(key)
    x = jax.random.normal(k_x, (B, T, N_MFCC), jnp.float32)

    params = init_params(k_p)
    packed = pack_params(*params)

    out = rnn_forward(x, *packed)
    jax.block_until_ready(out)

    ref = reference_forward(x, *params)
    assert out.shape == (B, 1), out.shape
    # bf16 matmul inputs (f32 accumulate) vs the f32 reference: allow small drift.
    assert jnp.allclose(out, ref, atol=2e-2, rtol=2e-2), (out, ref)

    print("KERNEL_OK")
</pallas_src>

<mosaic_0001>
module attributes {stable_mosaic.version = 11 : i64} {
  func.func @rnn_kernel(%arg0: i32, %arg1: memref<8x8x128xbf16, #tpu.memory_space<vmem>>, %arg2: memref<4x128x512xbf16, #tpu.memory_space<vmem>>, %arg3: memref<4x128x512xbf16, #tpu.memory_space<vmem>>, %arg4: memref<4x1x512xf32, #tpu.memory_space<vmem>>, %arg5: memref<128x128xf32, #tpu.memory_space<vmem>>, %arg6: memref<1x128xf32, #tpu.memory_space<vmem>>, %arg7: memref<8x128xf32, #tpu.memory_space<vmem>>, %arg8: memref<8x8x128xbf16, #tpu.memory_space<vmem>>) attributes {dimension_semantics = [#tpu.dimension_semantics<parallel>], iteration_bounds = array<i64: 1>, scalar_prefetch = 0 : i64, scratch_operands = 1 : i64, tpu.core_type = #tpu.core_type<tc>, window_params = [{transform_indices = @transform_0, window_bounds = array<i64: 8, 8, 128>}, {pipeline_mode = #tpu.pipeline_mode<synchronous>, transform_indices = @transform_1, window_bounds = array<i64: 4, 128, 512>}, {pipeline_mode = #tpu.pipeline_mode<synchronous>, transform_indices = @transform_2, window_bounds = array<i64: 4, 128, 512>}, {pipeline_mode = #tpu.pipeline_mode<synchronous>, transform_indices = @transform_3, window_bounds = array<i64: 4, 1, 512>}, {pipeline_mode = #tpu.pipeline_mode<synchronous>, transform_indices = @transform_4, window_bounds = array<i64: 128, 128>}, {pipeline_mode = #tpu.pipeline_mode<synchronous>, transform_indices = @transform_5, window_bounds = array<i64: 1, 128>}, {transform_indices = @transform_6, window_bounds = array<i64: 8, 128>}]} {
    %cst = arith.constant 0.000000e+00 : f32
    %0 = vector.broadcast %cst : f32 to vector<8x128xf32>
    %c0 = arith.constant 0 : index
    %c0_0 = arith.constant 0 : index
    %c0_1 = arith.constant 0 : index
    %1 = vector.load %arg2[%c0, %c0_0, %c0_1] : memref<4x128x512xbf16, #tpu.memory_space<vmem>>, vector<1x128x512xbf16>
    %2 = vector.shape_cast %1 : vector<1x128x512xbf16> to vector<128x512xbf16>
    %c0_2 = arith.constant 0 : index
    %c0_3 = arith.constant 0 : index
    %c0_4 = arith.constant 0 : index
    %3 = vector.load %arg3[%c0_2, %c0_3, %c0_4] : memref<4x128x512xbf16, #tpu.memory_space<vmem>>, vector<1x128x512xbf16>
    %4 = vector.shape_cast %3 : vector<1x128x512xbf16> to vector<128x512xbf16>
    %c0_5 = arith.constant 0 : index
    %c0_6 = arith.constant 0 : index
    %c0_7 = arith.constant 0 : index
    %5 = vector.load %arg4[%c0_5, %c0_6, %c0_7] : memref<4x1x512xf32, #tpu.memory_space<vmem>>, vector<1x1x512xf32>
    %6 = vector.shape_cast %5 : vector<1x1x512xf32> to vector<1x512xf32>
    %c0_8 = arith.constant 0 : index
    %c0_9 = arith.constant 0 : index
    %c0_10 = arith.constant 0 : index
    %7 = vector.load %arg1[%c0_8, %c0_9, %c0_10] : memref<8x8x128xbf16, #tpu.memory_space<vmem>>, vector<8x8x128xbf16>
    %8 = vector.shape_cast %7 : vector<8x8x128xbf16> to vector<64x128xbf16>
    %cst_11 = arith.constant dense<0.000000e+00> : vector<64x512xf32>
    %9 = tpu.matmul %8, %2, %cst_11 {dimension_numbers = #tpu.dot_dimension_numbers<[1], [0], [0], [1], [0, 0, 1, 1], [], []>} : vector<64x128xbf16>, vector<128x512xbf16>, vector<64x512xf32> -> vector<64x512xf32>
    %10 = vector.broadcast %6 : vector<1x512xf32> to vector<64x512xf32>
    %11 = arith.addf %9, %10 : vector<64x512xf32>
    %12 = vector.shape_cast %11 : vector<64x512xf32> to vector<8x8x512xf32>
    %cst_12 = arith.constant 0.000000e+00 : f32
    %13 = vector.broadcast %cst_12 : f32 to vector<8x128xf32>
    %cst_13 = arith.constant 0.000000e+00 : f32
    %14 = vector.broadcast %cst_13 : f32 to vector<8x128xf32>
    %15 = vector.extract_strided_slice %12 {offsets = [0, 0, 0], sizes = [1, 8, 512], strides = [1, 1, 1]} : vector<8x8x512xf32> to vector<1x8x512xf32>
    %16 = vector.shape_cast %15 : vector<1x8x512xf32> to vector<8x512xf32>
    %17 = arith.truncf %13 : vector<8x128xf32> to vector<8x128xbf16>
    %cst_14 = arith.constant dense<0.000000e+00> : vector<8x512xf32>
    %18 = tpu.matmul %17, %4, %cst_14 {dimension_numbers = #tpu.dot_dimension_numbers<[1], [0], [0], [1], [0, 0, 1, 1], [], []>} : vector<8x128xbf16>, vector<128x512xbf16>, vector<8x512xf32> -> vector<8x512xf32>
    %19 = arith.addf %16, %18 : vector<8x512xf32>
    %20 = vector.extract_strided_slice %19 {offsets = [0, 0], sizes = [8, 384], strides = [1, 1]} : vector<8x512xf32> to vector<8x384xf32>
    %cst_15 = arith.constant 5.000000e-01 : f32
    %21 = vector.broadcast %cst_15 : f32 to vector<8x384xf32>
    %22 = arith.mulf %20, %21 : vector<8x384xf32>
    %23 = math.tanh %22 : vector<8x384xf32>
    %cst_16 = arith.constant 5.000000e-01 : f32
    %24 = vector.broadcast %cst_16 : f32 to vector<8x384xf32>
    %25 = arith.mulf %23, %24 : vector<8x384xf32>
    %cst_17 = arith.constant 5.000000e-01 : f32
    %26 = vector.broadcast %cst_17 : f32 to vector<8x384xf32>
    %27 = arith.addf %25, %26 : vector<8x384xf32>
    %28 = vector.extract_strided_slice %27 {offsets = [0, 0], sizes = [8, 128], strides = [1, 1]} : vector<8x384xf32> to vector<8x128xf32>
    %29 = vector.extract_strided_slice %27 {offsets = [0, 128], sizes = [8, 128], strides = [1, 1]} : vector<8x384xf32> to vector<8x128xf32>
    %30 = vector.extract_strided_slice %27 {offsets = [0, 256], sizes = [8, 128], strides = [1, 1]} : vector<8x384xf32> to vector<8x128xf32>
    %31 = vector.extract_strided_slice %19 {offsets = [0, 384], sizes = [8, 128], strides = [1, 1]} : vector<8x512xf32> to vector<8x128xf32>
    %32 = math.tanh %31 : vector<8x128xf32>
    %33 = arith.mulf %29, %14 : vector<8x128xf32>
    %34 = arith.mulf %28, %32 : vector<8x128xf32>
    %35 = arith.addf %33, %34 : vector<8x128xf32>
    %36 = math.tanh %35 : vector<8x128xf32>
    %37 = arith.mulf %30, %36 : vector<8x128xf32>
    %38 = arith.truncf %37 : vector<8x128xf32> to vector<8x128xbf16>
    %c0_18 = arith.constant 0 : index
    %c0_19 = arith.constant 0 : index
    %c0_20 = arith.constant 0 : index
    %39 = vector.load %arg8[%c0_18, %c0_19, %c0_20] : memref<8x8x128xbf16, #tpu.memory_space<vmem>>, vector<1x8x128xbf16>
    %40 = vector.shape_cast %39 : vector<1x8x128xbf16> to vector<8x128xbf16>
    %41 = vector.shape_cast %38 : vector<8x128xbf16> to vector<1x8x128xbf16>
    tpu.vector_store %arg8[%c0_18, %c0_19, %c0_20], %41 {strides = array<i32>} : memref<8x8x128xbf16, #tpu.memory_space<vmem>>, vector<1x8x128xbf16>,
    %42 = vector.extract_strided_slice %12 {offsets = [1, 0, 0], sizes = [1, 8, 512], strides = [1, 1, 1]} : vector<8x8x512xf32> to vector<1x8x512xf32>
    %43 = vector.shape_cast %42 : vector<1x8x512xf32> to vector<8x512xf32>
    %44 = arith.truncf %37 : vector<8x128xf32> to vector<8x128xbf16>
    %cst_21 = arith.constant dense<0.000000e+00> : vector<8x512xf32>
    %45 = tpu.matmul %44, %4, %cst_21 {dimension_numbers = #tpu.dot_dimension_numbers<[1], [0], [0], [1], [0, 0, 1, 1], [], []>} : vector<8x128xbf16>, vector<128x512xbf16>, vector<8x512xf32> -> vector<8x512xf32>
    %46 = arith.addf %43, %45 : vector<8x512xf32>
    %47 = vector.extract_strided_slice %46 {offsets = [0, 0], sizes = [8, 384], strides = [1, 1]} : vector<8x512xf32> to vector<8x384xf32>
    %cst_22 = arith.constant 5.000000e-01 : f32
    %48 = vector.broadcast %cst_22 : f32 to vector<8x384xf32>
    %49 = arith.mulf %47, %48 : vector<8x384xf32>
    %50 = math.tanh %49 : vector<8x384xf32>
    %cst_23 = arith.constant 5.000000e-01 : f32
    %51 = vector.broadcast %cst_23 : f32 to vector<8x384xf32>
    %52 = arith.mulf %50, %51 : vector<8x384xf32>
    %cst_24 = arith.constant 5.000000e-01 : f32
    %53 = vector.broadcast %cst_24 : f32 to vector<8x384xf32>
    %54 = arith.addf %52, %53 : vector<8x384xf32>
    %55 = vector.extract_strided_slice %54 {offsets = [0, 0], sizes = [8, 128], strides = [1, 1]} : vector<8x384xf32> to vector<8x128xf32>
    %56 = vector.extract_strided_slice %54 {offsets = [0, 128], sizes = [8, 128], strides = [1, 1]} : vector<8x384xf32> to vector<8x128xf32>
    %57 = vector.extract_strided_slice %54 {offsets = [0, 256], sizes = [8, 128], strides = [1, 1]} : vector<8x384xf32> to vector<8x128xf32>
    %58 = vector.extract_strided_slice %46 {offsets = [0, 384], sizes = [8, 128], strides = [1, 1]} : vector<8x512xf32> to vector<8x128xf32>
    %59 = math.tanh %58 : vector<8x128xf32>
    %60 = arith.mulf %56, %35 : vector<8x128xf32>
    %61 = arith.mulf %55, %59 : vector<8x128xf32>
    %62 = arith.addf %60, %61 : vector<8x128xf32>
    %63 = math.tanh %62 : vector<8x128xf32>
    %64 = arith.mulf %57, %63 : vector<8x128xf32>
    %65 = arith.truncf %64 : vector<8x128xf32> to vector<8x128xbf16>
    %c1 = arith.constant 1 : index
    %c0_25 = arith.constant 0 : index
    %c0_26 = arith.constant 0 : index
    %66 = vector.load %arg8[%c1, %c0_25, %c0_26] : memref<8x8x128xbf16, #tpu.memory_space<vmem>>, vector<1x8x128xbf16>
    %67 = vector.shape_cast %66 : vector<1x8x128xbf16> to vector<8x128xbf16>
    %68 = vector.shape_cast %65 : vector<8x128xbf16> to vector<1x8x128xbf16>
    tpu.vector_store %arg8[%c1, %c0_25, %c0_26], %68 {strides = array<i32>} : memref<8x8x128xbf16, #tpu.memory_space<vmem>>, vector<1x8x128xbf16>,
    %69 = vector.extract_strided_slice %12 {offsets = [2, 0, 0], sizes = [1, 8, 512], strides = [1, 1, 1]} : vector<8x8x512xf32> to vector<1x8x512xf32>
    %70 = vector.shape_cast %69 : vector<1x8x512xf32> to vector<8x512xf32>
    %71 = arith.truncf %64 : vector<8x128xf32> to vector<8x128xbf16>
    %cst_27 = arith.constant dense<0.000000e+00> : vector<8x512xf32>
    %72 = tpu.matmul %71, %4, %cst_27 {dimension_numbers = #tpu.dot_dimension_numbers<[1], [0], [0], [1], [0, 0, 1, 1], [], []>} : vector<8x128xbf16>, vector<128x512xbf16>, vector<8x512xf32> -> vector<8x512xf32>
    %73 = arith.addf %70, %72 : vector<8x512xf32>
    %74 = vector.extract_strided_slice %73 {offsets = [0, 0], sizes = [8, 384], strides = [1, 1]} : vector<8x512xf32> to vector<8x384xf32>
    %cst_28 = arith.constant 5.000000e-01 : f32
    %75 = vector.broadcast %cst_28 : f32 to vector<8x384xf32>
    %76 = arith.mulf %74, %75 : vector<8x384xf32>
    %77 = math.tanh %76 : vector<8x384xf32>
    %cst_29 = arith.constant 5.000000e-01 : f32
    %78 = vector.broadcast %cst_29 : f32 to vector<8x384xf32>
    %79 = arith.mulf %77, %78 : vector<8x384xf32>
    %cst_30 = arith.constant 5.000000e-01 : f32
    %80 = vector.broadcast %cst_30 : f32 to vector<8x384xf32>
    %81 = arith.addf %79, %80 : vector<8x384xf32>
    %82 = vector.extract_strided_slice %81 {offsets = [0, 0], sizes = [8, 128], strides = [1, 1]} : vector<8x384xf32> to vector<8x128xf32>
    %83 = vector.extract_strided_slice %81 {offsets = [0, 128], sizes = [8, 128], strides = [1, 1]} : vector<8x384xf32> to vector<8x128xf32>
    %84 = vector.extract_strided_slice %81 {offsets = [0, 256], sizes = [8, 128], strides = [1, 1]} : vector<8x384xf32> to vector<8x128xf32>
    %85 = vector.extract_strided_slice %73 {offsets = [0, 384], sizes = [8, 128], strides = [1, 1]} : vector<8x512xf32> to vector<8x128xf32>
    %86 = math.tanh %85 : vector<8x128xf32>
    %87 = arith.mulf %83, %62 : vector<8x128xf32>
    %88 = arith.mulf %82, %86 : vector<8x128xf32>
    %89 = arith.addf %87, %88 : vector<8x128xf32>
    %90 = math.tanh %89 : vector<8x128xf32>
    %91 = arith.mulf %84, %90 : vector<8x128xf32>
    %92 = arith.truncf %91 : vector<8x128xf32> to vector<8x128xbf16>
    %c2 = arith.constant 2 : index
    %c0_31 = arith.constant 0 : index
    %c0_32 = arith.constant 0 : index
    %93 = vector.load %arg8[%c2, %c0_31, %c0_32] : memref<8x8x128xbf16, #tpu.memory_space<vmem>>, vector<1x8x128xbf16>
    %94 = vector.shape_cast %93 : vector<1x8x128xbf16> to vector<8x128xbf16>
    %95 = vector.shape_cast %92 : vector<8x128xbf16> to vector<1x8x128xbf16>
    tpu.vector_store %arg8[%c2, %c0_31, %c0_32], %95 {strides = array<i32>} : memref<8x8x128xbf16, #tpu.memory_space<vmem>>, vector<1x8x128xbf16>,
    %96 = vector.extract_strided_slice %12 {offsets = [3, 0, 0], sizes = [1, 8, 512], strides = [1, 1, 1]} : vector<8x8x512xf32> to vector<1x8x512xf32>
    %97 = vector.shape_cast %96 : vector<1x8x512xf32> to vector<8x512xf32>
    %98 = arith.truncf %91 : vector<8x128xf32> to vector<8x128xbf16>
    %cst_33 = arith.constant dense<0.000000e+00> : vector<8x512xf32>
    %99 = tpu.matmul %98, %4, %cst_33 {dimension_numbers = #tpu.dot_dimension_numbers<[1], [0], [0], [1], [0, 0, 1, 1], [], []>} : vector<8x128xbf16>, vector<128x512xbf16>, vector<8x512xf32> -> vector<8x512xf32>
    %100 = arith.addf %97, %99 : vector<8x512xf32>
    %101 = vector.extract_strided_slice %100 {offsets = [0, 0], sizes = [8, 384], strides = [1, 1]} : vector<8x512xf32> to vector<8x384xf32>
    %cst_34 = arith.constant 5.000000e-01 : f32
    %102 = vector.broadcast %cst_34 : f32 to vector<8x384xf32>
    %103 = arith.mulf %101, %102 : vector<8x384xf32>
    %104 = math.tanh %103 : vector<8x384xf32>
    %cst_35 = arith.constant 5.000000e-01 : f32
    %105 = vector.broadcast %cst_35 : f32 to vector<8x384xf32>
    %106 = arith.mulf %104, %105 : vector<8x384xf32>
    %cst_36 = arith.constant 5.000000e-01 : f32
    %107 = vector.broadcast %cst_36 : f32 to vector<8x384xf32>
    %108 = arith.addf %106, %107 : vector<8x384xf32>
    %109 = vector.extract_strided_slice %108 {offsets = [0, 0], sizes = [8, 128], strides = [1, 1]} : vector<8x384xf32> to vector<8x128xf32>
    %110 = vector.extract_strided_slice %108 {offsets = [0, 128], sizes = [8, 128], strides = [1, 1]} : vector<8x384xf32> to vector<8x128xf32>
    %111 = vector.extract_strided_slice %108 {offsets = [0, 256], sizes = [8, 128], strides = [1, 1]} : vector<8x384xf32> to vector<8x128xf32>
    %112 = vector.extract_strided_slice %100 {offsets = [0, 384], sizes = [8, 128], strides = [1, 1]} : vector<8x512xf32> to vector<8x128xf32>
    %113 = math.tanh %112 : vector<8x128xf32>
    %114 = arith.mulf %110, %89 : vector<8x128xf32>
    %115 = arith.mulf %109, %113 : vector<8x128xf32>
    %116 = arith.addf %114, %115 : vector<8x128xf32>
    %117 = math.tanh %116 : vector<8x128xf32>
    %118 = arith.mulf %111, %117 : vector<8x128xf32>
    %119 = arith.truncf %118 : vector<8x128xf32> to vector<8x128xbf16>
    %c3 = arith.constant 3 : index
    %c0_37 = arith.constant 0 : index
    %c0_38 = arith.constant 0 : index
    %120 = vector.load %arg8[%c3, %c0_37, %c0_38] : memref<8x8x128xbf16, #tpu.memory_space<vmem>>, vector<1x8x128xbf16>
    %121 = vector.shape_cast %120 : vector<1x8x128xbf16> to vector<8x128xbf16>
    %122 = vector.shape_cast %119 : vector<8x128xbf16> to vector<1x8x128xbf16>
    tpu.vector_store %arg8[%c3, %c0_37, %c0_38], %122 {strides = array<i32>} : memref<8x8x128xbf16, #tpu.memory_space<vmem>>, vector<1x8x128xbf16>,
    %123 = vector.extract_strided_slice %12 {offsets = [4, 0, 0], sizes = [1, 8, 512], strides = [1, 1, 1]} : vector<8x8x512xf32> to vector<1x8x512xf32>
    %124 = vector.shape_cast %123 : vector<1x8x512xf32> to vector<8x512xf32>
    %125 = arith.truncf %118 : vector<8x128xf32> to vector<8x128xbf16>
    %cst_39 = arith.constant dense<0.000000e+00> : vector<8x512xf32>
    %126 = tpu.matmul %125, %4, %cst_39 {dimension_numbers = #tpu.dot_dimension_numbers<[1], [0], [0], [1], [0, 0, 1, 1], [], []>} : vector<8x128xbf16>, vector<128x512xbf16>, vector<8x512xf32> -> vector<8x512xf32>
    %127 = arith.addf %124, %126 : vector<8x512xf32>
    %128 = vector.extract_strided_slice %127 {offsets = [0, 0], sizes = [8, 384], strides = [1, 1]} : vector<8x512xf32> to vector<8x384xf32>
    %cst_40 = arith.constant 5.000000e-01 : f32
    %129 = vector.broadcast %cst_40 : f32 to vector<8x384xf32>
    %130 = arith.mulf %128, %129 : vector<8x384xf32>
    %131 = math.tanh %130 : vector<8x384xf32>
    %cst_41 = arith.constant 5.000000e-01 : f32
    %132 = vector.broadcast %cst_41 : f32 to vector<8x384xf32>
    %133 = arith.mulf %131, %132 : vector<8x384xf32>
    %cst_42 = arith.constant 5.000000e-01 : f32
    %134 = vector.broadcast %cst_42 : f32 to vector<8x384xf32>
    %135 = arith.addf %133, %134 : vector<8x384xf32>
    %136 = vector.extract_strided_slice %135 {offsets = [0, 0], sizes = [8, 128], strides = [1, 1]} : vector<8x384xf32> to vector<8x128xf32>
    %137 = vector.extract_strided_slice %135 {offsets = [0, 128], sizes = [8, 128], strides = [1, 1]} : vector<8x384xf32> to vector<8x128xf32>
    %138 = vector.extract_strided_slice %135 {offsets = [0, 256], sizes = [8, 128], strides = [1, 1]} : vector<8x384xf32> to vector<8x128xf32>
    %139 = vector.extract_strided_slice %127 {offsets = [0, 384], sizes = [8, 128], strides = [1, 1]} : vector<8x512xf32> to vector<8x128xf32>
    %140 = math.tanh %139 : vector<8x128xf32>
    %141 = arith.mulf %137, %116 : vector<8x128xf32>
    %142 = arith.mulf %136, %140 : vector<8x128xf32>
    %143 = arith.addf %141, %142 : vector<8x128xf32>
    %144 = math.tanh %143 : vector<8x128xf32>
    %145 = arith.mulf %138, %144 : vector<8x128xf32>
    %146 = arith.truncf %145 : vector<8x128xf32> to vector<8x128xbf16>
    %c4 = arith.constant 4 : index
    %c0_43 = arith.constant 0 : index
    %c0_44 = arith.constant 0 : index
    %147 = vector.load %arg8[%c4, %c0_43, %c0_44] : memref<8x8x128xbf16, #tpu.memory_space<vmem>>, vector<1x8x128xbf16>
    %148 = vector.shape_cast %147 : vector<1x8x128xbf16> to vector<8x128xbf16>
    %149 = vector.shape_cast %146 : vector<8x128xbf16> to vector<1x8x128xbf16>
    tpu.vector_store %arg8[%c4, %c0_43, %c0_44], %149 {strides = array<i32>} : memref<8x8x128xbf16, #tpu.memory_space<vmem>>, vector<1x8x128xbf16>,
    %150 = vector.extract_strided_slice %12 {offsets = [5, 0, 0], sizes = [1, 8, 512], strides = [1, 1, 1]} : vector<8x8x512xf32> to vector<1x8x512xf32>
    %151 = vector.shape_cast %150 : vector<1x8x512xf32> to vector<8x512xf32>
    %152 = arith.truncf %145 : vector<8x128xf32> to vector<8x128xbf16>
    %cst_45 = arith.constant dense<0.000000e+00> : vector<8x512xf32>
    %153 = tpu.matmul %152, %4, %cst_45 {dimension_numbers = #tpu.dot_dimension_numbers<[1], [0], [0], [1], [0, 0, 1, 1], [], []>} : vector<8x128xbf16>, vector<128x512xbf16>, vector<8x512xf32> -> vector<8x512xf32>
    %154 = arith.addf %151, %153 : vector<8x512xf32>
    %155 = vector.extract_strided_slice %154 {offsets = [0, 0], sizes = [8, 384], strides = [1, 1]} : vector<8x512xf32> to vector<8x384xf32>
    %cst_46 = arith.constant 5.000000e-01 : f32
    %156 = vector.broadcast %cst_46 : f32 to vector<8x384xf32>
    %157 = arith.mulf %155, %156 : vector<8x384xf32>
    %158 = math.tanh %157 : vector<8x384xf32>
    %cst_47 = arith.constant 5.000000e-01 : f32
    %159 = vector.broadcast %cst_47 : f32 to vector<8x384xf32>
    %160 = arith.mulf %158, %159 : vector<8x384xf32>
    %cst_48 = arith.constant 5.000000e-01 : f32
    %161 = vector.broadcast %cst_48 : f32 to vector<8x384xf32>
    %162 = arith.addf %160, %161 : vector<8x384xf32>
    %163 = vector.extract_strided_slice %162 {offsets = [0, 0], sizes = [8, 128], strides = [1, 1]} : vector<8x384xf32> to vector<8x128xf32>
    %164 = vector.extract_strided_slice %162 {offsets = [0, 128], sizes = [8, 128], strides = [1, 1]} : vector<8x384xf32> to vector<8x128xf32>
    %165 = vector.extract_strided_slice %162 {offsets = [0, 256], sizes = [8, 128], strides = [1, 1]} : vector<8x384xf32> to vector<8x128xf32>
    %166 = vector.extract_strided_slice %154 {offsets = [0, 384], sizes = [8, 128], strides = [1, 1]} : vector<8x512xf32> to vector<8x128xf32>
    %167 = math.tanh %166 : vector<8x128xf32>
    %168 = arith.mulf %164, %143 : vector<8x128xf32>
    %169 = arith.mulf %163, %167 : vector<8x128xf32>
    %170 = arith.addf %168, %169 : vector<8x128xf32>
    %171 = math.tanh %170 : vector<8x128xf32>
    %172 = arith.mulf %165, %171 : vector<8x128xf32>
    %173 = arith.truncf %172 : vector<8x128xf32> to vector<8x128xbf16>
    %c5 = arith.constant 5 : index
    %c0_49 = arith.constant 0 : index
    %c0_50 = arith.constant 0 : index
    %174 = vector.load %arg8[%c5, %c0_49, %c0_50] : memref<8x8x128xbf16, #tpu.memory_space<vmem>>, vector<1x8x128xbf16>
    %175 = vector.shape_cast %174 : vector<1x8x128xbf16> to vector<8x128xbf16>
    %176 = vector.shape_cast %173 : vector<8x128xbf16> to vector<1x8x128xbf16>
    tpu.vector_store %arg8[%c5, %c0_49, %c0_50], %176 {strides = array<i32>} : memref<8x8x128xbf16, #tpu.memory_space<vmem>>, vector<1x8x128xbf16>,
    %177 = vector.extract_strided_slice %12 {offsets = [6, 0, 0], sizes = [1, 8, 512], strides = [1, 1, 1]} : vector<8x8x512xf32> to vector<1x8x512xf32>
    %178 = vector.shape_cast %177 : vector<1x8x512xf32> to vector<8x512xf32>
    %179 = arith.truncf %172 : vector<8x128xf32> to vector<8x128xbf16>
    %cst_51 = arith.constant dense<0.000000e+00> : vector<8x512xf32>
    %180 = tpu.matmul %179, %4, %cst_51 {dimension_numbers = #tpu.dot_dimension_numbers<[1], [0], [0], [1], [0, 0, 1, 1], [], []>} : vector<8x128xbf16>, vector<128x512xbf16>, vector<8x512xf32> -> vector<8x512xf32>
    %181 = arith.addf %178, %180 : vector<8x512xf32>
    %182 = vector.extract_strided_slice %181 {offsets = [0, 0], sizes = [8, 384], strides = [1, 1]} : vector<8x512xf32> to vector<8x384xf32>
    %cst_52 = arith.constant 5.000000e-01 : f32
    %183 = vector.broadcast %cst_52 : f32 to vector<8x384xf32>
    %184 = arith.mulf %182, %183 : vector<8x384xf32>
    %185 = math.tanh %184 : vector<8x384xf32>
    %cst_53 = arith.constant 5.000000e-01 : f32
    %186 = vector.broadcast %cst_53 : f32 to vector<8x384xf32>
    %187 = arith.mulf %185, %186 : vector<8x384xf32>
    %cst_54 = arith.constant 5.000000e-01 : f32
    %188 = vector.broadcast %cst_54 : f32 to vector<8x384xf32>
    %189 = arith.addf %187, %188 : vector<8x384xf32>
    %190 = vector.extract_strided_slice %189 {offsets = [0, 0], sizes = [8, 128], strides = [1, 1]} : vector<8x384xf32> to vector<8x128xf32>
    %191 = vector.extract_strided_slice %189 {offsets = [0, 128], sizes = [8, 128], strides = [1, 1]} : vector<8x384xf32> to vector<8x128xf32>
    %192 = vector.extract_strided_slice %189 {offsets = [0, 256], sizes = [8, 128], strides = [1, 1]} : vector<8x384xf32> to vector<8x128xf32>
    %193 = vector.extract_strided_slice %181 {offsets = [0, 384], sizes = [8, 128], strides = [1, 1]} : vector<8x512xf32> to vector<8x128xf32>
    %194 = math.tanh %193 : vector<8x128xf32>
    %195 = arith.mulf %191, %170 : vector<8x128xf32>
    %196 = arith.mulf %190, %194 : vector<8x128xf32>
    %197 = arith.addf %195, %196 : vector<8x128xf32>
    %198 = math.tanh %197 : vector<8x128xf32>
    %199 = arith.mulf %192, %198 : vector<8x128xf32>
    %200 = arith.truncf %199 : vector<8x128xf32> to vector<8x128xbf16>
    %c6 = arith.constant 6 : index
    %c0_55 = arith.constant 0 : index
    %c0_56 = arith.constant 0 : index
    %201 = vector.load %arg8[%c6, %c0_55, %c0_56] : memref<8x8x128xbf16, #tpu.memory_space<vmem>>, vector<1x8x128xbf16>
    %202 = vector.shape_cast %201 : vector<1x8x128xbf16> to vector<8x128xbf16>
    %203 = vector.shape_cast %200 : vector<8x128xbf16> to vector<1x8x128xbf16>
    tpu.vector_store %arg8[%c6, %c0_55, %c0_56], %203 {strides = array<i32>} : memref<8x8x128xbf16, #tpu.memory_space<vmem>>, vector<1x8x128xbf16>,
    %204 = vector.extract_strided_slice %12 {offsets = [7, 0, 0], sizes = [1, 8, 512], strides = [1, 1, 1]} : vector<8x8x512xf32> to vector<1x8x512xf32>
    %205 = vector.shape_cast %204 : vector<1x8x512xf32> to vector<8x512xf32>
    %206 = arith.truncf %199 : vector<8x128xf32> to vector<8x128xbf16>
    %cst_57 = arith.constant dense<0.000000e+00> : vector<8x512xf32>
    %207 = tpu.matmul %206, %4, %cst_57 {dimension_numbers = #tpu.dot_dimension_numbers<[1], [0], [0], [1], [0, 0, 1, 1], [], []>} : vector<8x128xbf16>, vector<128x512xbf16>, vector<8x512xf32> -> vector<8x512xf32>
    %208 = arith.addf %205, %207 : vector<8x512xf32>
    %209 = vector.extract_strided_slice %208 {offsets = [0, 0], sizes = [8, 384], strides = [1, 1]} : vector<8x512xf32> to vector<8x384xf32>
    %cst_58 = arith.constant 5.000000e-01 : f32
    %210 = vector.broadcast %cst_58 : f32 to vector<8x384xf32>
    %211 = arith.mulf %209, %210 : vector<8x384xf32>
    %212 = math.tanh %211 : vector<8x384xf32>
    %cst_59 = arith.constant 5.000000e-01 : f32
    %213 = vector.broadcast %cst_59 : f32 to vector<8x384xf32>
    %214 = arith.mulf %212, %213 : vector<8x384xf32>
    %cst_60 = arith.constant 5.000000e-01 : f32
    %215 = vector.broadcast %cst_60 : f32 to vector<8x384xf32>
    %216 = arith.addf %214, %215 : vector<8x384xf32>
    %217 = vector.extract_strided_slice %216 {offsets = [0, 0], sizes = [8, 128], strides = [1, 1]} : vector<8x384xf32> to vector<8x128xf32>
    %218 = vector.extract_strided_slice %216 {offsets = [0, 128], sizes = [8, 128], strides = [1, 1]} : vector<8x384xf32> to vector<8x128xf32>
    %219 = vector.extract_strided_slice %216 {offsets = [0, 256], sizes = [8, 128], strides = [1, 1]} : vector<8x384xf32> to vector<8x128xf32>
    %220 = vector.extract_strided_slice %208 {offsets = [0, 384], sizes = [8, 128], strides = [1, 1]} : vector<8x512xf32> to vector<8x128xf32>
    %221 = math.tanh %220 : vector<8x128xf32>
    %222 = arith.mulf %218, %197 : vector<8x128xf32>
    %223 = arith.mulf %217, %221 : vector<8x128xf32>
    %224 = arith.addf %222, %223 : vector<8x128xf32>
    %225 = math.tanh %224 : vector<8x128xf32>
    %226 = arith.mulf %219, %225 : vector<8x128xf32>
    %227 = arith.truncf %226 : vector<8x128xf32> to vector<8x128xbf16>
    %c7 = arith.constant 7 : index
    %c0_61 = arith.constant 0 : index
    %c0_62 = arith.constant 0 : index
    %228 = vector.load %arg8[%c7, %c0_61, %c0_62] : memref<8x8x128xbf16, #tpu.memory_space<vmem>>, vector<1x8x128xbf16>
    %229 = vector.shape_cast %228 : vector<1x8x128xbf16> to vector<8x128xbf16>
    %230 = vector.shape_cast %227 : vector<8x128xbf16> to vector<1x8x128xbf16>
    tpu.vector_store %arg8[%c7, %c0_61, %c0_62], %230 {strides = array<i32>} : memref<8x8x128xbf16, #tpu.memory_space<vmem>>, vector<1x8x128xbf16>,
    %c1_63 = arith.constant 1 : index
    %c0_64 = arith.constant 0 : index
    %c0_65 = arith.constant 0 : index
    %231 = vector.load %arg2[%c1_63, %c0_64, %c0_65] : memref<4x128x512xbf16, #tpu.memory_space<vmem>>, vector<1x128x512xbf16>
    %232 = vector.shape_cast %231 : vector<1x128x512xbf16> to vector<128x512xbf16>
    %c1_66 = arith.constant 1 : index
    %c0_67 = arith.constant 0 : index
    %c0_68 = arith.constant 0 : index
    %233 = vector.load %arg3[%c1_66, %c0_67, %c0_68] : memref<4x128x512xbf16, #tpu.memory_space<vmem>>, vector<1x128x512xbf16>
    %234 = vector.shape_cast %233 : vector<1x128x512xbf16> to vector<128x512xbf16>
    %c1_69 = arith.constant 1 : index
    %c0_70 = arith.constant 0 : index
    %c0_71 = arith.constant 0 : index
    %235 = vector.load %arg4[%c1_69, %c0_70, %c0_71] : memref<4x1x512xf32, #tpu.memory_space<vmem>>, vector<1x1x512xf32>
    %236 = vector.shape_cast %235 : vector<1x1x512xf32> to vector<1x512xf32>
    %c0_72 = arith.constant 0 : index
    %c0_73 = arith.constant 0 : index
    %c0_74 = arith.constant 0 : index
    %237 = vector.load %arg8[%c0_72, %c0_73, %c0_74] : memref<8x8x128xbf16, #tpu.memory_space<vmem>>, vector<8x8x128xbf16>
    %238 = vector.shape_cast %237 : vector<8x8x128xbf16> to vector<64x128xbf16>
    %cst_75 = arith.constant dense<0.000000e+00> : vector<64x512xf32>
    %239 = tpu.matmul %238, %232, %cst_75 {dimension_numbers = #tpu.dot_dimension_numbers<[1], [0], [0], [1], [0, 0, 1, 1], [], []>} : vector<64x128xbf16>, vector<128x512xbf16>, vector<64x512xf32> -> vector<64x512xf32>
    %240 = vector.broadcast %236 : vector<1x512xf32> to vector<64x512xf32>
    %241 = arith.addf %239, %240 : vector<64x512xf32>
    %242 = vector.shape_cast %241 : vector<64x512xf32> to vector<8x8x512xf32>
    %cst_76 = arith.constant 0.000000e+00 : f32
    %243 = vector.broadcast %cst_76 : f32 to vector<8x128xf32>
    %cst_77 = arith.constant 0.000000e+00 : f32
    %244 = vector.broadcast %cst_77 : f32 to vector<8x128xf32>
    %245 = vector.extract_strided_slice %242 {offsets = [0, 0, 0], sizes = [1, 8, 512], strides = [1, 1, 1]} : vector<8x8x512xf32> to vector<1x8x512xf32>
    %246 = vector.shape_cast %245 : vector<1x8x512xf32> to vector<8x512xf32>
    %247 = arith.truncf %243 : vector<8x128xf32> to vector<8x128xbf16>
    %cst_78 = arith.constant dense<0.000000e+00> : vector<8x512xf32>
    %248 = tpu.matmul %247, %234, %cst_78 {dimension_numbers = #tpu.dot_dimension_numbers<[1], [0], [0], [1], [0, 0, 1, 1], [], []>} : vector<8x128xbf16>, vector<128x512xbf16>, vector<8x512xf32> -> vector<8x512xf32>
    %249 = arith.addf %246, %248 : vector<8x512xf32>
    %250 = vector.extract_strided_slice %249 {offsets = [0, 0], sizes = [8, 384], strides = [1, 1]} : vector<8x512xf32> to vector<8x384xf32>
    %cst_79 = arith.constant 5.000000e-01 : f32
    %251 = vector.broadcast %cst_79 : f32 to vector<8x384xf32>
    %252 = arith.mulf %250, %251 : vector<8x384xf32>
    %253 = math.tanh %252 : vector<8x384xf32>
    %cst_80 = arith.constant 5.000000e-01 : f32
    %254 = vector.broadcast %cst_80 : f32 to vector<8x384xf32>
    %255 = arith.mulf %253, %254 : vector<8x384xf32>
    %cst_81 = arith.constant 5.000000e-01 : f32
    %256 = vector.broadcast %cst_81 : f32 to vector<8x384xf32>
    %257 = arith.addf %255, %256 : vector<8x384xf32>
    %258 = vector.extract_strided_slice %257 {offsets = [0, 0], sizes = [8, 128], strides = [1, 1]} : vector<8x384xf32> to vector<8x128xf32>
    %259 = vector.extract_strided_slice %257 {offsets = [0, 128], sizes = [8, 128], strides = [1, 1]} : vector<8x384xf32> to vector<8x128xf32>
    %260 = vector.extract_strided_slice %257 {offsets = [0, 256], sizes = [8, 128], strides = [1, 1]} : vector<8x384xf32> to vector<8x128xf32>
    %261 = vector.extract_strided_slice %249 {offsets = [0, 384], sizes = [8, 128], strides = [1, 1]} : vector<8x512xf32> to vector<8x128xf32>
    %262 = math.tanh %261 : vector<8x128xf32>
    %263 = arith.mulf %259, %244 : vector<8x128xf32>
    %264 = arith.mulf %258, %262 : vector<8x128xf32>
    %265 = arith.addf %263, %264 : vector<8x128xf32>
    %266 = math.tanh %265 : vector<8x128xf32>
    %267 = arith.mulf %260, %266 : vector<8x128xf32>
    %268 = arith.truncf %267 : vector<8x128xf32> to vector<8x128xbf16>
    %c0_82 = arith.constant 0 : index
    %c0_83 = arith.constant 0 : index
    %c0_84 = arith.constant 0 : index
    %269 = vector.load %arg8[%c0_82, %c0_83, %c0_84] : memref<8x8x128xbf16, #tpu.memory_space<vmem>>, vector<1x8x128xbf16>
    %270 = vector.shape_cast %269 : vector<1x8x128xbf16> to vector<8x128xbf16>
    %271 = vector.shape_cast %268 : vector<8x128xbf16> to vector<1x8x128xbf16>
    tpu.vector_store %arg8[%c0_82, %c0_83, %c0_84], %271 {strides = array<i32>} : memref<8x8x128xbf16, #tpu.memory_space<vmem>>, vector<1x8x128xbf16>,
    %272 = vector.extract_strided_slice %242 {offsets = [1, 0, 0], sizes = [1, 8, 512], strides = [1, 1, 1]} : vector<8x8x512xf32> to vector<1x8x512xf32>
    %273 = vector.shape_cast %272 : vector<1x8x512xf32> to vector<8x512xf32>
    %274 = arith.truncf %267 : vector<8x128xf32> to vector<8x128xbf16>
    %cst_85 = arith.constant dense<0.000000e+00> : vector<8x512xf32>
    %275 = tpu.matmul %274, %234, %cst_85 {dimension_numbers = #tpu.dot_dimension_numbers<[1], [0], [0], [1], [0, 0, 1, 1], [], []>} : vector<8x128xbf16>, vector<128x512xbf16>, vector<8x512xf32> -> vector<8x512xf32>
    %276 = arith.addf %273, %275 : vector<8x512xf32>
    %277 = vector.extract_strided_slice %276 {offsets = [0, 0], sizes = [8, 384], strides = [1, 1]} : vector<8x512xf32> to vector<8x384xf32>
    %cst_86 = arith.constant 5.000000e-01 : f32
    %278 = vector.broadcast %cst_86 : f32 to vector<8x384xf32>
    %279 = arith.mulf %277, %278 : vector<8x384xf32>
    %280 = math.tanh %279 : vector<8x384xf32>
    %cst_87 = arith.constant 5.000000e-01 : f32
    %281 = vector.broadcast %cst_87 : f32 to vector<8x384xf32>
    %282 = arith.mulf %280, %281 : vector<8x384xf32>
    %cst_88 = arith.constant 5.000000e-01 : f32
    %283 = vector.broadcast %cst_88 : f32 to vector<8x384xf32>
    %284 = arith.addf %282, %283 : vector<8x384xf32>
    %285 = vector.extract_strided_slice %284 {offsets = [0, 0], sizes = [8, 128], strides = [1, 1]} : vector<8x384xf32> to vector<8x128xf32>
    %286 = vector.extract_strided_slice %284 {offsets = [0, 128], sizes = [8, 128], strides = [1, 1]} : vector<8x384xf32> to vector<8x128xf32>
    %287 = vector.extract_strided_slice %284 {offsets = [0, 256], sizes = [8, 128], strides = [1, 1]} : vector<8x384xf32> to vector<8x128xf32>
    %288 = vector.extract_strided_slice %276 {offsets = [0, 384], sizes = [8, 128], strides = [1, 1]} : vector<8x512xf32> to vector<8x128xf32>
    %289 = math.tanh %288 : vector<8x128xf32>
    %290 = arith.mulf %286, %265 : vector<8x128xf32>
    %291 = arith.mulf %285, %289 : vector<8x128xf32>
    %292 = arith.addf %290, %291 : vector<8x128xf32>
    %293 = math.tanh %292 : vector<8x128xf32>
    %294 = arith.mulf %287, %293 : vector<8x128xf32>
    %295 = arith.truncf %294 : vector<8x128xf32> to vector<8x128xbf16>
    %c1_89 = arith.constant 1 : index
    %c0_90 = arith.constant 0 : index
    %c0_91 = arith.constant 0 : index
    %296 = vector.load %arg8[%c1_89, %c0_90, %c0_91] : memref<8x8x128xbf16, #tpu.memory_space<vmem>>, vector<1x8x128xbf16>
    %297 = vector.shape_cast %296 : vector<1x8x128xbf16> to vector<8x128xbf16>
    %298 = vector.shape_cast %295 : vector<8x128xbf16> to vector<1x8x128xbf16>
    tpu.vector_store %arg8[%c1_89, %c0_90, %c0_91], %298 {strides = array<i32>} : memref<8x8x128xbf16, #tpu.memory_space<vmem>>, vector<1x8x128xbf16>,
    %299 = vector.extract_strided_slice %242 {offsets = [2, 0, 0], sizes = [1, 8, 512], strides = [1, 1, 1]} : vector<8x8x512xf32> to vector<1x8x512xf32>
    %300 = vector.shape_cast %299 : vector<1x8x512xf32> to vector<8x512xf32>
    %301 = arith.truncf %294 : vector<8x128xf32> to vector<8x128xbf16>
    %cst_92 = arith.constant dense<0.000000e+00> : vector<8x512xf32>
    %302 = tpu.matmul %301, %234, %cst_92 {dimension_numbers = #tpu.dot_dimension_numbers<[1], [0], [0], [1], [0, 0, 1, 1], [], []>} : vector<8x128xbf16>, vector<128x512xbf16>, vector<8x512xf32> -> vector<8x512xf32>
    %303 = arith.addf %300, %302 : vector<8x512xf32>
    %304 = vector.extract_strided_slice %303 {offsets = [0, 0], sizes = [8, 384], strides = [1, 1]} : vector<8x512xf32> to vector<8x384xf32>
    %cst_93 = arith.constant 5.000000e-01 : f32
    %305 = vector.broadcast %cst_93 : f32 to vector<8x384xf32>
    %306 = arith.mulf %304, %305 : vector<8x384xf32>
    %307 = math.tanh %306 : vector<8x384xf32>
    %cst_94 = arith.constant 5.000000e-01 : f32
    %308 = vector.broadcast %cst_94 : f32 to vector<8x384xf32>
    %309 = arith.mulf %307, %308 : vector<8x384xf32>
    %cst_95 = arith.constant 5.000000e-01 : f32
    %310 = vector.broadcast %cst_95 : f32 to vector<8x384xf32>
    %311 = arith.addf %309, %310 : vector<8x384xf32>
    %312 = vector.extract_strided_slice %311 {offsets = [0, 0], sizes = [8, 128], strides = [1, 1]} : vector<8x384xf32> to vector<8x128xf32>
    %313 = vector.extract_strided_slice %311 {offsets = [0, 128], sizes = [8, 128], strides = [1, 1]} : vector<8x384xf32> to vector<8x128xf32>
    %314 = vector.extract_strided_slice %311 {offsets = [0, 256], sizes = [8, 128], strides = [1, 1]} : vector<8x384xf32> to vector<8x128xf32>
    %315 = vector.extract_strided_slice %303 {offsets = [0, 384], sizes = [8, 128], strides = [1, 1]} : vector<8x512xf32> to vector<8x128xf32>
    %316 = math.tanh %315 : vector<8x128xf32>
    %317 = arith.mulf %313, %292 : vector<8x128xf32>
    %318 = arith.mulf %312, %316 : vector<8x128xf32>
    %319 = arith.addf %317, %318 : vector<8x128xf32>
    %320 = math.tanh %319 : vector<8x128xf32>
    %321 = arith.mulf %314, %320 : vector<8x128xf32>
    %322 = arith.truncf %321 : vector<8x128xf32> to vector<8x128xbf16>
    %c2_96 = arith.constant 2 : index
    %c0_97 = arith.constant 0 : index
    %c0_98 = arith.constant 0 : index
    %323 = vector.load %arg8[%c2_96, %c0_97, %c0_98] : memref<8x8x128xbf16, #tpu.memory_space<vmem>>, vector<1x8x128xbf16>
    %324 = vector.shape_cast %323 : vector<1x8x128xbf16> to vector<8x128xbf16>
    %325 = vector.shape_cast %322 : vector<8x128xbf16> to vector<1x8x128xbf16>
    tpu.vector_store %arg8[%c2_96, %c0_97, %c0_98], %325 {strides = array<i32>} : memref<8x8x128xbf16, #tpu.memory_space<vmem>>, vector<1x8x128xbf16>,
    %326 = vector.extract_strided_slice %242 {offsets = [3, 0, 0], sizes = [1, 8, 512], strides = [1, 1, 1]} : vector<8x8x512xf32> to vector<1x8x512xf32>
    %327 = vector.shape_cast %326 : vector<1x8x512xf32> to vector<8x512xf32>
    %328 = arith.truncf %321 : vector<8x128xf32> to vector<8x128xbf16>
    %cst_99 = arith.constant dense<0.000000e+00> : vector<8x512xf32>
    %329 = tpu.matmul %328, %234, %cst_99 {dimension_numbers = #tpu.dot_dimension_numbers<[1], [0], [0], [1], [0, 0, 1, 1], [], []>} : vector<8x128xbf16>, vector<128x512xbf16>, vector<8x512xf32> -> vector<8x512xf32>
    %330 = arith.addf %327, %329 : vector<8x512xf32>
    %331 = vector.extract_strided_slice %330 {offsets = [0, 0], sizes = [8, 384], strides = [1, 1]} : vector<8x512xf32> to vector<8x384xf32>
    %cst_100 = arith.constant 5.000000e-01 : f32
    %332 = vector.broadcast %cst_100 : f32 to vector<8x384xf32>
    %333 = arith.mulf %331, %332 : vector<8x384xf32>
    %334 = math.tanh %333 : vector<8x384xf32>
    %cst_101 = arith.constant 5.000000e-01 : f32
    %335 = vector.broadcast %cst_101 : f32 to vector<8x384xf32>
    %336 = arith.mulf %334, %335 : vector<8x384xf32>
    %cst_102 = arith.constant 5.000000e-01 : f32
    %337 = vector.broadcast %cst_102 : f32 to vector<8x384xf32>
    %338 = arith.addf %336, %337 : vector<8x384xf32>
    %339 = vector.extract_strided_slice %338 {offsets = [0, 0], sizes = [8, 128], strides = [1, 1]} : vector<8x384xf32> to vector<8x128xf32>
    %340 = vector.extract_strided_slice %338 {offsets = [0, 128], sizes = [8, 128], strides = [1, 1]} : vector<8x384xf32> to vector<8x128xf32>
    %341 = vector.extract_strided_slice %338 {offsets = [0, 256], sizes = [8, 128], strides = [1, 1]} : vector<8x384xf32> to vector<8x128xf32>
    %342 = vector.extract_strided_slice %330 {offsets = [0, 384], sizes = [8, 128], strides = [1, 1]} : vector<8x512xf32> to vector<8x128xf32>
    %343 = math.tanh %342 : vector<8x128xf32>
    %344 = arith.mulf %340, %319 : vector<8x128xf32>
    %345 = arith.mulf %339, %343 : vector<8x128xf32>
    %346 = arith.addf %344, %345 : vector<8x128xf32>
    %347 = math.tanh %346 : vector<8x128xf32>
    %348 = arith.mulf %341, %347 : vector<8x128xf32>
    %349 = arith.truncf %348 : vector<8x128xf32> to vector<8x128xbf16>
    %c3_103 = arith.constant 3 : index
    %c0_104 = arith.constant 0 : index
    %c0_105 = arith.constant 0 : index
    %350 = vector.load %arg8[%c3_103, %c0_104, %c0_105] : memref<8x8x128xbf16, #tpu.memory_space<vmem>>, vector<1x8x128xbf16>
    %351 = vector.shape_cast %350 : vector<1x8x128xbf16> to vector<8x128xbf16>
    %352 = vector.shape_cast %349 : vector<8x128xbf16> to vector<1x8x128xbf16>
    tpu.vector_store %arg8[%c3_103, %c0_104, %c0_105], %352 {strides = array<i32>} : memref<8x8x128xbf16, #tpu.memory_space<vmem>>, vector<1x8x128xbf16>,
    %353 = vector.extract_strided_slice %242 {offsets = [4, 0, 0], sizes = [1, 8, 512], strides = [1, 1, 1]} : vector<8x8x512xf32> to vector<1x8x512xf32>
    %354 = vector.shape_cast %353 : vector<1x8x512xf32> to vector<8x512xf32>
    %355 = arith.truncf %348 : vector<8x128xf32> to vector<8x128xbf16>
    %cst_106 = arith.constant dense<0.000000e+00> : vector<8x512xf32>
    %356 = tpu.matmul %355, %234, %cst_106 {dimension_numbers = #tpu.dot_dimension_numbers<[1], [0], [0], [1], [0, 0, 1, 1], [], []>} : vector<8x128xbf16>, vector<128x512xbf16>, vector<8x512xf32> -> vector<8x512xf32>
    %357 = arith.addf %354, %356 : vector<8x512xf32>
    %358 = vector.extract_strided_slice %357 {offsets = [0, 0], sizes = [8, 384], strides = [1, 1]} : vector<8x512xf32> to vector<8x384xf32>
    %cst_107 = arith.constant 5.000000e-01 : f32
    %359 = vector.broadcast %cst_107 : f32 to vector<8x384xf32>
    %360 = arith.mulf %358, %359 : vector<8x384xf32>
    %361 = math.tanh %360 : vector<8x384xf32>
    %cst_108 = arith.constant 5.000000e-01 : f32
    %362 = vector.broadcast %cst_108 : f32 to vector<8x384xf32>
    %363 = arith.mulf %361, %362 : vector<8x384xf32>
    %cst_109 = arith.constant 5.000000e-01 : f32
    %364 = vector.broadcast %cst_109 : f32 to vector<8x384xf32>
    %365 = arith.addf %363, %364 : vector<8x384xf32>
    %366 = vector.extract_strided_slice %365 {offsets = [0, 0], sizes = [8, 128], strides = [1, 1]} : vector<8x384xf32> to vector<8x128xf32>
    %367 = vector.extract_strided_slice %365 {offsets = [0, 128], sizes = [8, 128], strides = [1, 1]} : vector<8x384xf32> to vector<8x128xf32>
    %368 = vector.extract_strided_slice %365 {offsets = [0, 256], sizes = [8, 128], strides = [1, 1]} : vector<8x384xf32> to vector<8x128xf32>
    %369 = vector.extract_strided_slice %357 {offsets = [0, 384], sizes = [8, 128], strides = [1, 1]} : vector<8x512xf32> to vector<8x128xf32>
    %370 = math.tanh %369 : vector<8x128xf32>
    %371 = arith.mulf %367, %346 : vector<8x128xf32>
    %372 = arith.mulf %366, %370 : vector<8x128xf32>
    %373 = arith.addf %371, %372 : vector<8x128xf32>
    %374 = math.tanh %373 : vector<8x128xf32>
    %375 = arith.mulf %368, %374 : vector<8x128xf32>
    %376 = arith.truncf %375 : vector<8x128xf32> to vector<8x128xbf16>
    %c4_110 = arith.constant 4 : index
    %c0_111 = arith.constant 0 : index
    %c0_112 = arith.constant 0 : index
    %377 = vector.load %arg8[%c4_110, %c0_111, %c0_112] : memref<8x8x128xbf16, #tpu.memory_space<vmem>>, vector<1x8x128xbf16>
    %378 = vector.shape_cast %377 : vector<1x8x128xbf16> to vector<8x128xbf16>
    %379 = vector.shape_cast %376 : vector<8x128xbf16> to vector<1x8x128xbf16>
    tpu.vector_store %arg8[%c4_110, %c0_111, %c0_112], %379 {strides = array<i32>} : memref<8x8x128xbf16, #tpu.memory_space<vmem>>, vector<1x8x128xbf16>,
    %380 = vector.extract_strided_slice %242 {offsets = [5, 0, 0], sizes = [1, 8, 512], strides = [1, 1, 1]} : vector<8x8x512xf32> to vector<1x8x512xf32>
    %381 = vector.shape_cast %380 : vector<1x8x512xf32> to vector<8x512xf32>
    %382 = arith.truncf %375 : vector<8x128xf32> to vector<8x128xbf16>
    %cst_113 = arith.constant dense<0.000000e+00> : vector<8x512xf32>
    %383 = tpu.matmul %382, %234, %cst_113 {dimension_numbers = #tpu.dot_dimension_numbers<[1], [0], [0], [1], [0, 0, 1, 1], [], []>} : vector<8x128xbf16>, vector<128x512xbf16>, vector<8x512xf32> -> vector<8x512xf32>
    %384 = arith.addf %381, %383 : vector<8x512xf32>
    %385 = vector.extract_strided_slice %384 {offsets = [0, 0], sizes = [8, 384], strides = [1, 1]} : vector<8x512xf32> to vector<8x384xf32>
    %cst_114 = arith.constant 5.000000e-01 : f32
    %386 = vector.broadcast %cst_114 : f32 to vector<8x384xf32>
    %387 = arith.mulf %385, %386 : vector<8x384xf32>
    %388 = math.tanh %387 : vector<8x384xf32>
    %cst_115 = arith.constant 5.000000e-01 : f32
    %389 = vector.broadcast %cst_115 : f32 to vector<8x384xf32>
    %390 = arith.mulf %388, %389 : vector<8x384xf32>
    %cst_116 = arith.constant 5.000000e-01 : f32
    %391 = vector.broadcast %cst_116 : f32 to vector<8x384xf32>
    %392 = arith.addf %390, %391 : vector<8x384xf32>
    %393 = vector.extract_strided_slice %392 {offsets = [0, 0], sizes = [8, 128], strides = [1, 1]} : vector<8x384xf32> to vector<8x128xf32>
    %394 = vector.extract_strided_slice %392 {offsets = [0, 128], sizes = [8, 128], strides = [1, 1]} : vector<8x384xf32> to vector<8x128xf32>
    %395 = vector.extract_strided_slice %392 {offsets = [0, 256], sizes = [8, 128], strides = [1, 1]} : vector<8x384xf32> to vector<8x128xf32>
    %396 = vector.extract_strided_slice %384 {offsets = [0, 384], sizes = [8, 128], strides = [1, 1]} : vector<8x512xf32> to vector<8x128xf32>
    %397 = math.tanh %396 : vector<8x128xf32>
    %398 = arith.mulf %394, %373 : vector<8x128xf32>
    %399 = arith.mulf %393, %397 : vector<8x128xf32>
    %400 = arith.addf %398, %399 : vector<8x128xf32>
    %401 = math.tanh %400 : vector<8x128xf32>
    %402 = arith.mulf %395, %401 : vector<8x128xf32>
    %403 = arith.truncf %402 : vector<8x128xf32> to vector<8x128xbf16>
    %c5_117 = arith.constant 5 : index
    %c0_118 = arith.constant 0 : index
    %c0_119 = arith.constant 0 : index
    %404 = vector.load %arg8[%c5_117, %c0_118, %c0_119] : memref<8x8x128xbf16, #tpu.memory_space<vmem>>, vector<1x8x128xbf16>
    %405 = vector.shape_cast %404 : vector<1x8x128xbf16> to vector<8x128xbf16>
    %406 = vector.shape_cast %403 : vector<8x128xbf16> to vector<1x8x128xbf16>
    tpu.vector_store %arg8[%c5_117, %c0_118, %c0_119], %406 {strides = array<i32>} : memref<8x8x128xbf16, #tpu.memory_space<vmem>>, vector<1x8x128xbf16>,
    %407 = vector.extract_strided_slice %242 {offsets = [6, 0, 0], sizes = [1, 8, 512], strides = [1, 1, 1]} : vector<8x8x512xf32> to vector<1x8x512xf32>
    %408 = vector.shape_cast %407 : vector<1x8x512xf32> to vector<8x512xf32>
    %409 = arith.truncf %402 : vector<8x128xf32> to vector<8x128xbf16>
    %cst_120 = arith.constant dense<0.000000e+00> : vector<8x512xf32>
    %410 = tpu.matmul %409, %234, %cst_120 {dimension_numbers = #tpu.dot_dimension_numbers<[1], [0], [0], [1], [0, 0, 1, 1], [], []>} : vector<8x128xbf16>, vector<128x512xbf16>, vector<8x512xf32> -> vector<8x512xf32>
    %411 = arith.addf %408, %410 : vector<8x512xf32>
    %412 = vector.extract_strided_slice %411 {offsets = [0, 0], sizes = [8, 384], strides = [1, 1]} : vector<8x512xf32> to vector<8x384xf32>
    %cst_121 = arith.constant 5.000000e-01 : f32
    %413 = vector.broadcast %cst_121 : f32 to vector<8x384xf32>
    %414 = arith.mulf %412, %413 : vector<8x384xf32>
    %415 = math.tanh %414 : vector<8x384xf32>
    %cst_122 = arith.constant 5.000000e-01 : f32
    %416 = vector.broadcast %cst_122 : f32 to vector<8x384xf32>
    %417 = arith.mulf %415, %416 : vector<8x384xf32>
    %cst_123 = arith.constant 5.000000e-01 : f32
    %418 = vector.broadcast %cst_123 : f32 to vector<8x384xf32>
    %419 = arith.addf %417, %418 : vector<8x384xf32>
    %420 = vector.extract_strided_slice %419 {offsets = [0, 0], sizes = [8, 128], strides = [1, 1]} : vector<8x384xf32> to vector<8x128xf32>
    %421 = vector.extract_strided_slice %419 {offsets = [0, 128], sizes = [8, 128], strides = [1, 1]} : vector<8x384xf32> to vector<8x128xf32>
    %422 = vector.extract_strided_slice %419 {offsets = [0, 256], sizes = [8, 128], strides = [1, 1]} : vector<8x384xf32> to vector<8x128xf32>
    %423 = vector.extract_strided_slice %411 {offsets = [0, 384], sizes = [8, 128], strides = [1, 1]} : vector<8x512xf32> to vector<8x128xf32>
    %424 = math.tanh %423 : vector<8x128xf32>
    %425 = arith.mulf %421, %400 : vector<8x128xf32>
    %426 = arith.mulf %420, %424 : vector<8x128xf32>
    %427 = arith.addf %425, %426 : vector<8x128xf32>
    %428 = math.tanh %427 : vector<8x128xf32>
    %429 = arith.mulf %422, %428 : vector<8x128xf32>
    %430 = arith.truncf %429 : vector<8x128xf32> to vector<8x128xbf16>
    %c6_124 = arith.constant 6 : index
    %c0_125 = arith.constant 0 : index
    %c0_126 = arith.constant 0 : index
    %431 = vector.load %arg8[%c6_124, %c0_125, %c0_126] : memref<8x8x128xbf16, #tpu.memory_space<vmem>>, vector<1x8x128xbf16>
    %432 = vector.shape_cast %431 : vector<1x8x128xbf16> to vector<8x128xbf16>
    %433 = vector.shape_cast %430 : vector<8x128xbf16> to vector<1x8x128xbf16>
    tpu.vector_store %arg8[%c6_124, %c0_125, %c0_126], %433 {strides = array<i32>} : memref<8x8x128xbf16, #tpu.memory_space<vmem>>, vector<1x8x128xbf16>,
    %434 = vector.extract_strided_slice %242 {offsets = [7, 0, 0], sizes = [1, 8, 512], strides = [1, 1, 1]} : vector<8x8x512xf32> to vector<1x8x512xf32>
    %435 = vector.shape_cast %434 : vector<1x8x512xf32> to vector<8x512xf32>
    %436 = arith.truncf %429 : vector<8x128xf32> to vector<8x128xbf16>
    %cst_127 = arith.constant dense<0.000000e+00> : vector<8x512xf32>
    %437 = tpu.matmul %436, %234, %cst_127 {dimension_numbers = #tpu.dot_dimension_numbers<[1], [0], [0], [1], [0, 0, 1, 1], [], []>} : vector<8x128xbf16>, vector<128x512xbf16>, vector<8x512xf32> -> vector<8x512xf32>
    %438 = arith.addf %435, %437 : vector<8x512xf32>
    %439 = vector.extract_strided_slice %438 {offsets = [0, 0], sizes = [8, 384], strides = [1, 1]} : vector<8x512xf32> to vector<8x384xf32>
    %cst_128 = arith.constant 5.000000e-01 : f32
    %440 = vector.broadcast %cst_128 : f32 to vector<8x384xf32>
    %441 = arith.mulf %439, %440 : vector<8x384xf32>
    %442 = math.tanh %441 : vector<8x384xf32>
    %cst_129 = arith.constant 5.000000e-01 : f32
    %443 = vector.broadcast %cst_129 : f32 to vector<8x384xf32>
    %444 = arith.mulf %442, %443 : vector<8x384xf32>
    %cst_130 = arith.constant 5.000000e-01 : f32
    %445 = vector.broadcast %cst_130 : f32 to vector<8x384xf32>
    %446 = arith.addf %444, %445 : vector<8x384xf32>
    %447 = vector.extract_strided_slice %446 {offsets = [0, 0], sizes = [8, 128], strides = [1, 1]} : vector<8x384xf32> to vector<8x128xf32>
    %448 = vector.extract_strided_slice %446 {offsets = [0, 128], sizes = [8, 128], strides = [1, 1]} : vector<8x384xf32> to vector<8x128xf32>
    %449 = vector.extract_strided_slice %446 {offsets = [0, 256], sizes = [8, 128], strides = [1, 1]} : vector<8x384xf32> to vector<8x128xf32>
    %450 = vector.extract_strided_slice %438 {offsets = [0, 384], sizes = [8, 128], strides = [1, 1]} : vector<8x512xf32> to vector<8x128xf32>
    %451 = math.tanh %450 : vector<8x128xf32>
    %452 = arith.mulf %448, %427 : vector<8x128xf32>
    %453 = arith.mulf %447, %451 : vector<8x128xf32>
    %454 = arith.addf %452, %453 : vector<8x128xf32>
    %455 = math.tanh %454 : vector<8x128xf32>
    %456 = arith.mulf %449, %455 : vector<8x128xf32>
    %457 = arith.truncf %456 : vector<8x128xf32> to vector<8x128xbf16>
    %c7_131 = arith.constant 7 : index
    %c0_132 = arith.constant 0 : index
    %c0_133 = arith.constant 0 : index
    %458 = vector.load %arg8[%c7_131, %c0_132, %c0_133] : memref<8x8x128xbf16, #tpu.memory_space<vmem>>, vector<1x8x128xbf16>
    %459 = vector.shape_cast %458 : vector<1x8x128xbf16> to vector<8x128xbf16>
    %460 = vector.shape_cast %457 : vector<8x128xbf16> to vector<1x8x128xbf16>
    tpu.vector_store %arg8[%c7_131, %c0_132, %c0_133], %460 {strides = array<i32>} : memref<8x8x128xbf16, #tpu.memory_space<vmem>>, vector<1x8x128xbf16>,
    %c2_134 = arith.constant 2 : index
    %c0_135 = arith.constant 0 : index
    %c0_136 = arith.constant 0 : index
    %461 = vector.load %arg2[%c2_134, %c0_135, %c0_136] : memref<4x128x512xbf16, #tpu.memory_space<vmem>>, vector<1x128x512xbf16>
    %462 = vector.shape_cast %461 : vector<1x128x512xbf16> to vector<128x512xbf16>
    %c2_137 = arith.constant 2 : index
    %c0_138 = arith.constant 0 : index
    %c0_139 = arith.constant 0 : index
    %463 = vector.load %arg3[%c2_137, %c0_138, %c0_139] : memref<4x128x512xbf16, #tpu.memory_space<vmem>>, vector<1x128x512xbf16>
    %464 = vector.shape_cast %463 : vector<1x128x512xbf16> to vector<128x512xbf16>
    %c2_140 = arith.constant 2 : index
    %c0_141 = arith.constant 0 : index
    %c0_142 = arith.constant 0 : index
    %465 = vector.load %arg4[%c2_140, %c0_141, %c0_142] : memref<4x1x512xf32, #tpu.memory_space<vmem>>, vector<1x1x512xf32>
    %466 = vector.shape_cast %465 : vector<1x1x512xf32> to vector<1x512xf32>
    %c0_143 = arith.constant 0 : index
    %c0_144 = arith.constant 0 : index
    %c0_145 = arith.constant 0 : index
    %467 = vector.load %arg8[%c0_143, %c0_144, %c0_145] : memref<8x8x128xbf16, #tpu.memory_space<vmem>>, vector<8x8x128xbf16>
    %468 = vector.shape_cast %467 : vector<8x8x128xbf16> to vector<64x128xbf16>
    %cst_146 = arith.constant dense<0.000000e+00> : vector<64x512xf32>
    %469 = tpu.matmul %468, %462, %cst_146 {dimension_numbers = #tpu.dot_dimension_numbers<[1], [0], [0], [1], [0, 0, 1, 1], [], []>} : vector<64x128xbf16>, vector<128x512xbf16>, vector<64x512xf32> -> vector<64x512xf32>
    %470 = vector.broadcast %466 : vector<1x512xf32> to vector<64x512xf32>
    %471 = arith.addf %469, %470 : vector<64x512xf32>
    %472 = vector.shape_cast %471 : vector<64x512xf32> to vector<8x8x512xf32>
    %cst_147 = arith.constant 0.000000e+00 : f32
    %473 = vector.broadcast %cst_147 : f32 to vector<8x128xf32>
    %cst_148 = arith.constant 0.000000e+00 : f32
    %474 = vector.broadcast %cst_148 : f32 to vector<8x128xf32>
    %475 = vector.extract_strided_slice %472 {offsets = [0, 0, 0], sizes = [1, 8, 512], strides = [1, 1, 1]} : vector<8x8x512xf32> to vector<1x8x512xf32>
    %476 = vector.shape_cast %475 : vector<1x8x512xf32> to vector<8x512xf32>
    %477 = arith.truncf %473 : vector<8x128xf32> to vector<8x128xbf16>
    %cst_149 = arith.constant dense<0.000000e+00> : vector<8x512xf32>
    %478 = tpu.matmul %477, %464, %cst_149 {dimension_numbers = #tpu.dot_dimension_numbers<[1], [0], [0], [1], [0, 0, 1, 1], [], []>} : vector<8x128xbf16>, vector<128x512xbf16>, vector<8x512xf32> -> vector<8x512xf32>
    %479 = arith.addf %476, %478 : vector<8x512xf32>
    %480 = vector.extract_strided_slice %479 {offsets = [0, 0], sizes = [8, 384], strides = [1, 1]} : vector<8x512xf32> to vector<8x384xf32>
    %cst_150 = arith.constant 5.000000e-01 : f32
    %481 = vector.broadcast %cst_150 : f32 to vector<8x384xf32>
    %482 = arith.mulf %480, %481 : vector<8x384xf32>
    %483 = math.tanh %482 : vector<8x384xf32>
    %cst_151 = arith.constant 5.000000e-01 : f32
    %484 = vector.broadcast %cst_151 : f32 to vector<8x384xf32>
    %485 = arith.mulf %483, %484 : vector<8x384xf32>
    %cst_152 = arith.constant 5.000000e-01 : f32
    %486 = vector.broadcast %cst_152 : f32 to vector<8x384xf32>
    %487 = arith.addf %485, %486 : vector<8x384xf32>
    %488 = vector.extract_strided_slice %487 {offsets = [0, 0], sizes = [8, 128], strides = [1, 1]} : vector<8x384xf32> to vector<8x128xf32>
    %489 = vector.extract_strided_slice %487 {offsets = [0, 128], sizes = [8, 128], strides = [1, 1]} : vector<8x384xf32> to vector<8x128xf32>
    %490 = vector.extract_strided_slice %487 {offsets = [0, 256], sizes = [8, 128], strides = [1, 1]} : vector<8x384xf32> to vector<8x128xf32>
    %491 = vector.extract_strided_slice %479 {offsets = [0, 384], sizes = [8, 128], strides = [1, 1]} : vector<8x512xf32> to vector<8x128xf32>
    %492 = math.tanh %491 : vector<8x128xf32>
    %493 = arith.mulf %489, %474 : vector<8x128xf32>
    %494 = arith.mulf %488, %492 : vector<8x128xf32>
    %495 = arith.addf %493, %494 : vector<8x128xf32>
    %496 = math.tanh %495 : vector<8x128xf32>
    %497 = arith.mulf %490, %496 : vector<8x128xf32>
    %498 = arith.truncf %497 : vector<8x128xf32> to vector<8x128xbf16>
    %c0_153 = arith.constant 0 : index
    %c0_154 = arith.constant 0 : index
    %c0_155 = arith.constant 0 : index
    %499 = vector.load %arg8[%c0_153, %c0_154, %c0_155] : memref<8x8x128xbf16, #tpu.memory_space<vmem>>, vector<1x8x128xbf16>
    %500 = vector.shape_cast %499 : vector<1x8x128xbf16> to vector<8x128xbf16>
    %501 = vector.shape_cast %498 : vector<8x128xbf16> to vector<1x8x128xbf16>
    tpu.vector_store %arg8[%c0_153, %c0_154, %c0_155], %501 {strides = array<i32>} : memref<8x8x128xbf16, #tpu.memory_space<vmem>>, vector<1x8x128xbf16>,
    %502 = vector.extract_strided_slice %472 {offsets = [1, 0, 0], sizes = [1, 8, 512], strides = [1, 1, 1]} : vector<8x8x512xf32> to vector<1x8x512xf32>
    %503 = vector.shape_cast %502 : vector<1x8x512xf32> to vector<8x512xf32>
    %504 = arith.truncf %497 : vector<8x128xf32> to vector<8x128xbf16>
    %cst_156 = arith.constant dense<0.000000e+00> : vector<8x512xf32>
    %505 = tpu.matmul %504, %464, %cst_156 {dimension_numbers = #tpu.dot_dimension_numbers<[1], [0], [0], [1], [0, 0, 1, 1], [], []>} : vector<8x128xbf16>, vector<128x512xbf16>, vector<8x512xf32> -> vector<8x512xf32>
    %506 = arith.addf %503, %505 : vector<8x512xf32>
    %507 = vector.extract_strided_slice %506 {offsets = [0, 0], sizes = [8, 384], strides = [1, 1]} : vector<8x512xf32> to vector<8x384xf32>
    %cst_157 = arith.constant 5.000000e-01 : f32
    %508 = vector.broadcast %cst_157 : f32 to vector<8x384xf32>
    %509 = arith.mulf %507, %508 : vector<8x384xf32>
    %510 = math.tanh %509 : vector<8x384xf32>
    %cst_158 = arith.constant 5.000000e-01 : f32
    %511 = vector.broadcast %cst_158 : f32 to vector<8x384xf32>
    %512 = arith.mulf %510, %511 : vector<8x384xf32>
    %cst_159 = arith.constant 5.000000e-01 : f32
    %513 = vector.broadcast %cst_159 : f32 to vector<8x384xf32>
    %514 = arith.addf %512, %513 : vector<8x384xf32>
    %515 = vector.extract_strided_slice %514 {offsets = [0, 0], sizes = [8, 128], strides = [1, 1]} : vector<8x384xf32> to vector<8x128xf32>
    %516 = vector.extract_strided_slice %514 {offsets = [0, 128], sizes = [8, 128], strides = [1, 1]} : vector<8x384xf32> to vector<8x128xf32>
    %517 = vector.extract_strided_slice %514 {offsets = [0, 256], sizes = [8, 128], strides = [1, 1]} : vector<8x384xf32> to vector<8x128xf32>
    %518 = vector.extract_strided_slice %506 {offsets = [0, 384], sizes = [8, 128], strides = [1, 1]} : vector<8x512xf32> to vector<8x128xf32>
    %519 = math.tanh %518 : vector<8x128xf32>
    %520 = arith.mulf %516, %495 : vector<8x128xf32>
    %521 = arith.mulf %515, %519 : vector<8x128xf32>
    %522 = arith.addf %520, %521 : vector<8x128xf32>
    %523 = math.tanh %522 : vector<8x128xf32>
    %524 = arith.mulf %517, %523 : vector<8x128xf32>
    %525 = arith.truncf %524 : vector<8x128xf32> to vector<8x128xbf16>
    %c1_160 = arith.constant 1 : index
    %c0_161 = arith.constant 0 : index
    %c0_162 = arith.constant 0 : index
    %526 = vector.load %arg8[%c1_160, %c0_161, %c0_162] : memref<8x8x128xbf16, #tpu.memory_space<vmem>>, vector<1x8x128xbf16>
    %527 = vector.shape_cast %526 : vector<1x8x128xbf16> to vector<8x128xbf16>
    %528 = vector.shape_cast %525 : vector<8x128xbf16> to vector<1x8x128xbf16>
    tpu.vector_store %arg8[%c1_160, %c0_161, %c0_162], %528 {strides = array<i32>} : memref<8x8x128xbf16, #tpu.memory_space<vmem>>, vector<1x8x128xbf16>,
    %529 = vector.extract_strided_slice %472 {offsets = [2, 0, 0], sizes = [1, 8, 512], strides = [1, 1, 1]} : vector<8x8x512xf32> to vector<1x8x512xf32>
    %530 = vector.shape_cast %529 : vector<1x8x512xf32> to vector<8x512xf32>
    %531 = arith.truncf %524 : vector<8x128xf32> to vector<8x128xbf16>
    %cst_163 = arith.constant dense<0.000000e+00> : vector<8x512xf32>
    %532 = tpu.matmul %531, %464, %cst_163 {dimension_numbers = #tpu.dot_dimension_numbers<[1], [0], [0], [1], [0, 0, 1, 1], [], []>} : vector<8x128xbf16>, vector<128x512xbf16>, vector<8x512xf32> -> vector<8x512xf32>
    %533 = arith.addf %530, %532 : vector<8x512xf32>
    %534 = vector.extract_strided_slice %533 {offsets = [0, 0], sizes = [8, 384], strides = [1, 1]} : vector<8x512xf32> to vector<8x384xf32>
    %cst_164 = arith.constant 5.000000e-01 : f32
    %535 = vector.broadcast %cst_164 : f32 to vector<8x384xf32>
    %536 = arith.mulf %534, %535 : vector<8x384xf32>
    %537 = math.tanh %536 : vector<8x384xf32>
    %cst_165 = arith.constant 5.000000e-01 : f32
    %538 = vector.broadcast %cst_165 : f32 to vector<8x384xf32>
    %539 = arith.mulf %537, %538 : vector<8x384xf32>
    %cst_166 = arith.constant 5.000000e-01 : f32
    %540 = vector.broadcast %cst_166 : f32 to vector<8x384xf32>
    %541 = arith.addf %539, %540 : vector<8x384xf32>
    %542 = vector.extract_strided_slice %541 {offsets = [0, 0], sizes = [8, 128], strides = [1, 1]} : vector<8x384xf32> to vector<8x128xf32>
    %543 = vector.extract_strided_slice %541 {offsets = [0, 128], sizes = [8, 128], strides = [1, 1]} : vector<8x384xf32> to vector<8x128xf32>
    %544 = vector.extract_strided_slice %541 {offsets = [0, 256], sizes = [8, 128], strides = [1, 1]} : vector<8x384xf32> to vector<8x128xf32>
    %545 = vector.extract_strided_slice %533 {offsets = [0, 384], sizes = [8, 128], strides = [1, 1]} : vector<8x512xf32> to vector<8x128xf32>
    %546 = math.tanh %545 : vector<8x128xf32>
    %547 = arith.mulf %543, %522 : vector<8x128xf32>
    %548 = arith.mulf %542, %546 : vector<8x128xf32>
    %549 = arith.addf %547, %548 : vector<8x128xf32>
    %550 = math.tanh %549 : vector<8x128xf32>
    %551 = arith.mulf %544, %550 : vector<8x128xf32>
    %552 = arith.truncf %551 : vector<8x128xf32> to vector<8x128xbf16>
    %c2_167 = arith.constant 2 : index
    %c0_168 = arith.constant 0 : index
    %c0_169 = arith.constant 0 : index
    %553 = vector.load %arg8[%c2_167, %c0_168, %c0_169] : memref<8x8x128xbf16, #tpu.memory_space<vmem>>, vector<1x8x128xbf16>
    %554 = vector.shape_cast %553 : vector<1x8x128xbf16> to vector<8x128xbf16>
    %555 = vector.shape_cast %552 : vector<8x128xbf16> to vector<1x8x128xbf16>
    tpu.vector_store %arg8[%c2_167, %c0_168, %c0_169], %555 {strides = array<i32>} : memref<8x8x128xbf16, #tpu.memory_space<vmem>>, vector<1x8x128xbf16>,
    %556 = vector.extract_strided_slice %472 {offsets = [3, 0, 0], sizes = [1, 8, 512], strides = [1, 1, 1]} : vector<8x8x512xf32> to vector<1x8x512xf32>
    %557 = vector.shape_cast %556 : vector<1x8x512xf32> to vector<8x512xf32>
    %558 = arith.truncf %551 : vector<8x128xf32> to vector<8x128xbf16>
    %cst_170 = arith.constant dense<0.000000e+00> : vector<8x512xf32>
    %559 = tpu.matmul %558, %464, %cst_170 {dimension_numbers = #tpu.dot_dimension_numbers<[1], [0], [0], [1], [0, 0, 1, 1], [], []>} : vector<8x128xbf16>, vector<128x512xbf16>, vector<8x512xf32> -> vector<8x512xf32>
    %560 = arith.addf %557, %559 : vector<8x512xf32>
    %561 = vector.extract_strided_slice %560 {offsets = [0, 0], sizes = [8, 384], strides = [1, 1]} : vector<8x512xf32> to vector<8x384xf32>
    %cst_171 = arith.constant 5.000000e-01 : f32
    %562 = vector.broadcast %cst_171 : f32 to vector<8x384xf32>
    %563 = arith.mulf %561, %562 : vector<8x384xf32>
    %564 = math.tanh %563 : vector<8x384xf32>
    %cst_172 = arith.constant 5.000000e-01 : f32
    %565 = vector.broadcast %cst_172 : f32 to vector<8x384xf32>
    %566 = arith.mulf %564, %565 : vector<8x384xf32>
    %cst_173 = arith.constant 5.000000e-01 : f32
    %567 = vector.broadcast %cst_173 : f32 to vector<8x384xf32>
    %568 = arith.addf %566, %567 : vector<8x384xf32>
    %569 = vector.extract_strided_slice %568 {offsets = [0, 0], sizes = [8, 128], strides = [1, 1]} : vector<8x384xf32> to vector<8x128xf32>
    %570 = vector.extract_strided_slice %568 {offsets = [0, 128], sizes = [8, 128], strides = [1, 1]} : vector<8x384xf32> to vector<8x128xf32>
    %571 = vector.extract_strided_slice %568 {offsets = [0, 256], sizes = [8, 128], strides = [1, 1]} : vector<8x384xf32> to vector<8x128xf32>
    %572 = vector.extract_strided_slice %560 {offsets = [0, 384], sizes = [8, 128], strides = [1, 1]} : vector<8x512xf32> to vector<8x128xf32>
    %573 = math.tanh %572 : vector<8x128xf32>
    %574 = arith.mulf %570, %549 : vector<8x128xf32>
    %575 = arith.mulf %569, %573 : vector<8x128xf32>
    %576 = arith.addf %574, %575 : vector<8x128xf32>
    %577 = math.tanh %576 : vector<8x128xf32>
    %578 = arith.mulf %571, %577 : vector<8x128xf32>
    %579 = arith.truncf %578 : vector<8x128xf32> to vector<8x128xbf16>
    %c3_174 = arith.constant 3 : index
    %c0_175 = arith.constant 0 : index
    %c0_176 = arith.constant 0 : index
    %580 = vector.load %arg8[%c3_174, %c0_175, %c0_176] : memref<8x8x128xbf16, #tpu.memory_space<vmem>>, vector<1x8x128xbf16>
    %581 = vector.shape_cast %580 : vector<1x8x128xbf16> to vector<8x128xbf16>
    %582 = vector.shape_cast %579 : vector<8x128xbf16> to vector<1x8x128xbf16>
    tpu.vector_store %arg8[%c3_174, %c0_175, %c0_176], %582 {strides = array<i32>} : memref<8x8x128xbf16, #tpu.memory_space<vmem>>, vector<1x8x128xbf16>,
    %583 = vector.extract_strided_slice %472 {offsets = [4, 0, 0], sizes = [1, 8, 512], strides = [1, 1, 1]} : vector<8x8x512xf32> to vector<1x8x512xf32>
    %584 = vector.shape_cast %583 : vector<1x8x512xf32> to vector<8x512xf32>
    %585 = arith.truncf %578 : vector<8x128xf32> to vector<8x128xbf16>
    %cst_177 = arith.constant dense<0.000000e+00> : vector<8x512xf32>
    %586 = tpu.matmul %585, %464, %cst_177 {dimension_numbers = #tpu.dot_dimension_numbers<[1], [0], [0], [1], [0, 0, 1, 1], [], []>} : vector<8x128xbf16>, vector<128x512xbf16>, vector<8x512xf32> -> vector<8x512xf32>
    %587 = arith.addf %584, %586 : vector<8x512xf32>
    %588 = vector.extract_strided_slice %587 {offsets = [0, 0], sizes = [8, 384], strides = [1, 1]} : vector<8x512xf32> to vector<8x384xf32>
    %cst_178 = arith.constant 5.000000e-01 : f32
    %589 = vector.broadcast %cst_178 : f32 to vector<8x384xf32>
    %590 = arith.mulf %588, %589 : vector<8x384xf32>
    %591 = math.tanh %590 : vector<8x384xf32>
    %cst_179 = arith.constant 5.000000e-01 : f32
    %592 = vector.broadcast %cst_179 : f32 to vector<8x384xf32>
    %593 = arith.mulf %591, %592 : vector<8x384xf32>
    %cst_180 = arith.constant 5.000000e-01 : f32
    %594 = vector.broadcast %cst_180 : f32 to vector<8x384xf32>
    %595 = arith.addf %593, %594 : vector<8x384xf32>
    %596 = vector.extract_strided_slice %595 {offsets = [0, 0], sizes = [8, 128], strides = [1, 1]} : vector<8x384xf32> to vector<8x128xf32>
    %597 = vector.extract_strided_slice %595 {offsets = [0, 128], sizes = [8, 128], strides = [1, 1]} : vector<8x384xf32> to vector<8x128xf32>
    %598 = vector.extract_strided_slice %595 {offsets = [0, 256], sizes = [8, 128], strides = [1, 1]} : vector<8x384xf32> to vector<8x128xf32>
    %599 = vector.extract_strided_slice %587 {offsets = [0, 384], sizes = [8, 128], strides = [1, 1]} : vector<8x512xf32> to vector<8x128xf32>
    %600 = math.tanh %599 : vector<8x128xf32>
    %601 = arith.mulf %597, %576 : vector<8x128xf32>
    %602 = arith.mulf %596, %600 : vector<8x128xf32>
    %603 = arith.addf %601, %602 : vector<8x128xf32>
    %604 = math.tanh %603 : vector<8x128xf32>
    %605 = arith.mulf %598, %604 : vector<8x128xf32>
    %606 = arith.truncf %605 : vector<8x128xf32> to vector<8x128xbf16>
    %c4_181 = arith.constant 4 : index
    %c0_182 = arith.constant 0 : index
    %c0_183 = arith.constant 0 : index
    %607 = vector.load %arg8[%c4_181, %c0_182, %c0_183] : memref<8x8x128xbf16, #tpu.memory_space<vmem>>, vector<1x8x128xbf16>
    %608 = vector.shape_cast %607 : vector<1x8x128xbf16> to vector<8x128xbf16>
    %609 = vector.shape_cast %606 : vector<8x128xbf16> to vector<1x8x128xbf16>
    tpu.vector_store %arg8[%c4_181, %c0_182, %c0_183], %609 {strides = array<i32>} : memref<8x8x128xbf16, #tpu.memory_space<vmem>>, vector<1x8x128xbf16>,
    %610 = vector.extract_strided_slice %472 {offsets = [5, 0, 0], sizes = [1, 8, 512], strides = [1, 1, 1]} : vector<8x8x512xf32> to vector<1x8x512xf32>
    %611 = vector.shape_cast %610 : vector<1x8x512xf32> to vector<8x512xf32>
    %612 = arith.truncf %605 : vector<8x128xf32> to vector<8x128xbf16>
    %cst_184 = arith.constant dense<0.000000e+00> : vector<8x512xf32>
    %613 = tpu.matmul %612, %464, %cst_184 {dimension_numbers = #tpu.dot_dimension_numbers<[1], [0], [0], [1], [0, 0, 1, 1], [], []>} : vector<8x128xbf16>, vector<128x512xbf16>, vector<8x512xf32> -> vector<8x512xf32>
    %614 = arith.addf %611, %613 : vector<8x512xf32>
    %615 = vector.extract_strided_slice %614 {offsets = [0, 0], sizes = [8, 384], strides = [1, 1]} : vector<8x512xf32> to vector<8x384xf32>
    %cst_185 = arith.constant 5.000000e-01 : f32
    %616 = vector.broadcast %cst_185 : f32 to vector<8x384xf32>
    %617 = arith.mulf %615, %616 : vector<8x384xf32>
    %618 = math.tanh %617 : vector<8x384xf32>
    %cst_186 = arith.constant 5.000000e-01 : f32
    %619 = vector.broadcast %cst_186 : f32 to vector<8x384xf32>
    %620 = arith.mulf %618, %619 : vector<8x384xf32>
    %cst_187 = arith.constant 5.000000e-01 : f32
    %621 = vector.broadcast %cst_187 : f32 to vector<8x384xf32>
    %622 = arith.addf %620, %621 : vector<8x384xf32>
    %623 = vector.extract_strided_slice %622 {offsets = [0, 0], sizes = [8, 128], strides = [1, 1]} : vector<8x384xf32> to vector<8x128xf32>
    %624 = vector.extract_strided_slice %622 {offsets = [0, 128], sizes = [8, 128], strides = [1, 1]} : vector<8x384xf32> to vector<8x128xf32>
    %625 = vector.extract_strided_slice %622 {offsets = [0, 256], sizes = [8, 128], strides = [1, 1]} : vector<8x384xf32> to vector<8x128xf32>
    %626 = vector.extract_strided_slice %614 {offsets = [0, 384], sizes = [8, 128], strides = [1, 1]} : vector<8x512xf32> to vector<8x128xf32>
    %627 = math.tanh %626 : vector<8x128xf32>
    %628 = arith.mulf %624, %603 : vector<8x128xf32>
    %629 = arith.mulf %623, %627 : vector<8x128xf32>
    %630 = arith.addf %628, %629 : vector<8x128xf32>
    %631 = math.tanh %630 : vector<8x128xf32>
    %632 = arith.mulf %625, %631 : vector<8x128xf32>
    %633 = arith.truncf %632 : vector<8x128xf32> to vector<8x128xbf16>
    %c5_188 = arith.constant 5 : index
    %c0_189 = arith.constant 0 : index
    %c0_190 = arith.constant 0 : index
    %634 = vector.load %arg8[%c5_188, %c0_189, %c0_190] : memref<8x8x128xbf16, #tpu.memory_space<vmem>>, vector<1x8x128xbf16>
    %635 = vector.shape_cast %634 : vector<1x8x128xbf16> to vector<8x128xbf16>
    %636 = vector.shape_cast %633 : vector<8x128xbf16> to vector<1x8x128xbf16>
    tpu.vector_store %arg8[%c5_188, %c0_189, %c0_190], %636 {strides = array<i32>} : memref<8x8x128xbf16, #tpu.memory_space<vmem>>, vector<1x8x128xbf16>,
    %637 = vector.extract_strided_slice %472 {offsets = [6, 0, 0], sizes = [1, 8, 512], strides = [1, 1, 1]} : vector<8x8x512xf32> to vector<1x8x512xf32>
    %638 = vector.shape_cast %637 : vector<1x8x512xf32> to vector<8x512xf32>
    %639 = arith.truncf %632 : vector<8x128xf32> to vector<8x128xbf16>
    %cst_191 = arith.constant dense<0.000000e+00> : vector<8x512xf32>
    %640 = tpu.matmul %639, %464, %cst_191 {dimension_numbers = #tpu.dot_dimension_numbers<[1], [0], [0], [1], [0, 0, 1, 1], [], []>} : vector<8x128xbf16>, vector<128x512xbf16>, vector<8x512xf32> -> vector<8x512xf32>
    %641 = arith.addf %638, %640 : vector<8x512xf32>
    %642 = vector.extract_strided_slice %641 {offsets = [0, 0], sizes = [8, 384], strides = [1, 1]} : vector<8x512xf32> to vector<8x384xf32>
    %cst_192 = arith.constant 5.000000e-01 : f32
    %643 = vector.broadcast %cst_192 : f32 to vector<8x384xf32>
    %644 = arith.mulf %642, %643 : vector<8x384xf32>
    %645 = math.tanh %644 : vector<8x384xf32>
    %cst_193 = arith.constant 5.000000e-01 : f32
    %646 = vector.broadcast %cst_193 : f32 to vector<8x384xf32>
    %647 = arith.mulf %645, %646 : vector<8x384xf32>
    %cst_194 = arith.constant 5.000000e-01 : f32
    %648 = vector.broadcast %cst_194 : f32 to vector<8x384xf32>
    %649 = arith.addf %647, %648 : vector<8x384xf32>
    %650 = vector.extract_strided_slice %649 {offsets = [0, 0], sizes = [8, 128], strides = [1, 1]} : vector<8x384xf32> to vector<8x128xf32>
    %651 = vector.extract_strided_slice %649 {offsets = [0, 128], sizes = [8, 128], strides = [1, 1]} : vector<8x384xf32> to vector<8x128xf32>
    %652 = vector.extract_strided_slice %649 {offsets = [0, 256], sizes = [8, 128], strides = [1, 1]} : vector<8x384xf32> to vector<8x128xf32>
    %653 = vector.extract_strided_slice %641 {offsets = [0, 384], sizes = [8, 128], strides = [1, 1]} : vector<8x512xf32> to vector<8x128xf32>
    %654 = math.tanh %653 : vector<8x128xf32>
    %655 = arith.mulf %651, %630 : vector<8x128xf32>
    %656 = arith.mulf %650, %654 : vector<8x128xf32>
    %657 = arith.addf %655, %656 : vector<8x128xf32>
    %658 = math.tanh %657 : vector<8x128xf32>
    %659 = arith.mulf %652, %658 : vector<8x128xf32>
    %660 = arith.truncf %659 : vector<8x128xf32> to vector<8x128xbf16>
    %c6_195 = arith.constant 6 : index
    %c0_196 = arith.constant 0 : index
    %c0_197 = arith.constant 0 : index
    %661 = vector.load %arg8[%c6_195, %c0_196, %c0_197] : memref<8x8x128xbf16, #tpu.memory_space<vmem>>, vector<1x8x128xbf16>
    %662 = vector.shape_cast %661 : vector<1x8x128xbf16> to vector<8x128xbf16>
    %663 = vector.shape_cast %660 : vector<8x128xbf16> to vector<1x8x128xbf16>
    tpu.vector_store %arg8[%c6_195, %c0_196, %c0_197], %663 {strides = array<i32>} : memref<8x8x128xbf16, #tpu.memory_space<vmem>>, vector<1x8x128xbf16>,
    %664 = vector.extract_strided_slice %472 {offsets = [7, 0, 0], sizes = [1, 8, 512], strides = [1, 1, 1]} : vector<8x8x512xf32> to vector<1x8x512xf32>
    %665 = vector.shape_cast %664 : vector<1x8x512xf32> to vector<8x512xf32>
    %666 = arith.truncf %659 : vector<8x128xf32> to vector<8x128xbf16>
    %cst_198 = arith.constant dense<0.000000e+00> : vector<8x512xf32>
    %667 = tpu.matmul %666, %464, %cst_198 {dimension_numbers = #tpu.dot_dimension_numbers<[1], [0], [0], [1], [0, 0, 1, 1], [], []>} : vector<8x128xbf16>, vector<128x512xbf16>, vector<8x512xf32> -> vector<8x512xf32>
    %668 = arith.addf %665, %667 : vector<8x512xf32>
    %669 = vector.extract_strided_slice %668 {offsets = [0, 0], sizes = [8, 384], strides = [1, 1]} : vector<8x512xf32> to vector<8x384xf32>
    %cst_199 = arith.constant 5.000000e-01 : f32
    %670 = vector.broadcast %cst_199 : f32 to vector<8x384xf32>
    %671 = arith.mulf %669, %670 : vector<8x384xf32>
    %672 = math.tanh %671 : vector<8x384xf32>
    %cst_200 = arith.constant 5.000000e-01 : f32
    %673 = vector.broadcast %cst_200 : f32 to vector<8x384xf32>
    %674 = arith.mulf %672, %673 : vector<8x384xf32>
    %cst_201 = arith.constant 5.000000e-01 : f32
    %675 = vector.broadcast %cst_201 : f32 to vector<8x384xf32>
    %676 = arith.addf %674, %675 : vector<8x384xf32>
    %677 = vector.extract_strided_slice %676 {offsets = [0, 0], sizes = [8, 128], strides = [1, 1]} : vector<8x384xf32> to vector<8x128xf32>
    %678 = vector.extract_strided_slice %676 {offsets = [0, 128], sizes = [8, 128], strides = [1, 1]} : vector<8x384xf32> to vector<8x128xf32>
    %679 = vector.extract_strided_slice %676 {offsets = [0, 256], sizes = [8, 128], strides = [1, 1]} : vector<8x384xf32> to vector<8x128xf32>
    %680 = vector.extract_strided_slice %668 {offsets = [0, 384], sizes = [8, 128], strides = [1, 1]} : vector<8x512xf32> to vector<8x128xf32>
    %681 = math.tanh %680 : vector<8x128xf32>
    %682 = arith.mulf %678, %657 : vector<8x128xf32>
    %683 = arith.mulf %677, %681 : vector<8x128xf32>
    %684 = arith.addf %682, %683 : vector<8x128xf32>
    %685 = math.tanh %684 : vector<8x128xf32>
    %686 = arith.mulf %679, %685 : vector<8x128xf32>
    %687 = arith.truncf %686 : vector<8x128xf32> to vector<8x128xbf16>
    %c7_202 = arith.constant 7 : index
    %c0_203 = arith.constant 0 : index
    %c0_204 = arith.constant 0 : index
    %688 = vector.load %arg8[%c7_202, %c0_203, %c0_204] : memref<8x8x128xbf16, #tpu.memory_space<vmem>>, vector<1x8x128xbf16>
    %689 = vector.shape_cast %688 : vector<1x8x128xbf16> to vector<8x128xbf16>
    %690 = vector.shape_cast %687 : vector<8x128xbf16> to vector<1x8x128xbf16>
    tpu.vector_store %arg8[%c7_202, %c0_203, %c0_204], %690 {strides = array<i32>} : memref<8x8x128xbf16, #tpu.memory_space<vmem>>, vector<1x8x128xbf16>,
    %c3_205 = arith.constant 3 : index
    %c0_206 = arith.constant 0 : index
    %c0_207 = arith.constant 0 : index
    %691 = vector.load %arg2[%c3_205, %c0_206, %c0_207] : memref<4x128x512xbf16, #tpu.memory_space<vmem>>, vector<1x128x512xbf16>
    %692 = vector.shape_cast %691 : vector<1x128x512xbf16> to vector<128x512xbf16>
    %c3_208 = arith.constant 3 : index
    %c0_209 = arith.constant 0 : index
    %c0_210 = arith.constant 0 : index
    %693 = vector.load %arg3[%c3_208, %c0_209, %c0_210] : memref<4x128x512xbf16, #tpu.memory_space<vmem>>, vector<1x128x512xbf16>
    %694 = vector.shape_cast %693 : vector<1x128x512xbf16> to vector<128x512xbf16>
    %c3_211 = arith.constant 3 : index
    %c0_212 = arith.constant 0 : index
    %c0_213 = arith.constant 0 : index
    %695 = vector.load %arg4[%c3_211, %c0_212, %c0_213] : memref<4x1x512xf32, #tpu.memory_space<vmem>>, vector<1x1x512xf32>
    %696 = vector.shape_cast %695 : vector<1x1x512xf32> to vector<1x512xf32>
    %c0_214 = arith.constant 0 : index
    %c0_215 = arith.constant 0 : index
    %c0_216 = arith.constant 0 : index
    %697 = vector.load %arg8[%c0_214, %c0_215, %c0_216] : memref<8x8x128xbf16, #tpu.memory_space<vmem>>, vector<8x8x128xbf16>
    %698 = vector.shape_cast %697 : vector<8x8x128xbf16> to vector<64x128xbf16>
    %cst_217 = arith.constant dense<0.000000e+00> : vector<64x512xf32>
    %699 = tpu.matmul %698, %692, %cst_217 {dimension_numbers = #tpu.dot_dimension_numbers<[1], [0], [0], [1], [0, 0, 1, 1], [], []>} : vector<64x128xbf16>, vector<128x512xbf16>, vector<64x512xf32> -> vector<64x512xf32>
    %700 = vector.broadcast %696 : vector<1x512xf32> to vector<64x512xf32>
    %701 = arith.addf %699, %700 : vector<64x512xf32>
    %702 = vector.shape_cast %701 : vector<64x512xf32> to vector<8x8x512xf32>
    %cst_218 = arith.constant 0.000000e+00 : f32
    %703 = vector.broadcast %cst_218 : f32 to vector<8x128xf32>
    %cst_219 = arith.constant 0.000000e+00 : f32
    %704 = vector.broadcast %cst_219 : f32 to vector<8x128xf32>
    %705 = vector.extract_strided_slice %702 {offsets = [0, 0, 0], sizes = [1, 8, 512], strides = [1, 1, 1]} : vector<8x8x512xf32> to vector<1x8x512xf32>
    %706 = vector.shape_cast %705 : vector<1x8x512xf32> to vector<8x512xf32>
    %707 = arith.truncf %703 : vector<8x128xf32> to vector<8x128xbf16>
    %cst_220 = arith.constant dense<0.000000e+00> : vector<8x512xf32>
    %708 = tpu.matmul %707, %694, %cst_220 {dimension_numbers = #tpu.dot_dimension_numbers<[1], [0], [0], [1], [0, 0, 1, 1], [], []>} : vector<8x128xbf16>, vector<128x512xbf16>, vector<8x512xf32> -> vector<8x512xf32>
    %709 = arith.addf %706, %708 : vector<8x512xf32>
    %710 = vector.extract_strided_slice %709 {offsets = [0, 0], sizes = [8, 384], strides = [1, 1]} : vector<8x512xf32> to vector<8x384xf32>
    %cst_221 = arith.constant 5.000000e-01 : f32
    %711 = vector.broadcast %cst_221 : f32 to vector<8x384xf32>
    %712 = arith.mulf %710, %711 : vector<8x384xf32>
    %713 = math.tanh %712 : vector<8x384xf32>
    %cst_222 = arith.constant 5.000000e-01 : f32
    %714 = vector.broadcast %cst_222 : f32 to vector<8x384xf32>
    %715 = arith.mulf %713, %714 : vector<8x384xf32>
    %cst_223 = arith.constant 5.000000e-01 : f32
    %716 = vector.broadcast %cst_223 : f32 to vector<8x384xf32>
    %717 = arith.addf %715, %716 : vector<8x384xf32>
    %718 = vector.extract_strided_slice %717 {offsets = [0, 0], sizes = [8, 128], strides = [1, 1]} : vector<8x384xf32> to vector<8x128xf32>
    %719 = vector.extract_strided_slice %717 {offsets = [0, 128], sizes = [8, 128], strides = [1, 1]} : vector<8x384xf32> to vector<8x128xf32>
    %720 = vector.extract_strided_slice %717 {offsets = [0, 256], sizes = [8, 128], strides = [1, 1]} : vector<8x384xf32> to vector<8x128xf32>
    %721 = vector.extract_strided_slice %709 {offsets = [0, 384], sizes = [8, 128], strides = [1, 1]} : vector<8x512xf32> to vector<8x128xf32>
    %722 = math.tanh %721 : vector<8x128xf32>
    %723 = arith.mulf %719, %704 : vector<8x128xf32>
    %724 = arith.mulf %718, %722 : vector<8x128xf32>
    %725 = arith.addf %723, %724 : vector<8x128xf32>
    %726 = math.tanh %725 : vector<8x128xf32>
    %727 = arith.mulf %720, %726 : vector<8x128xf32>
    %728 = arith.addf %0, %727 : vector<8x128xf32>
    %729 = vector.extract_strided_slice %702 {offsets = [1, 0, 0], sizes = [1, 8, 512], strides = [1, 1, 1]} : vector<8x8x512xf32> to vector<1x8x512xf32>
    %730 = vector.shape_cast %729 : vector<1x8x512xf32> to vector<8x512xf32>
    %731 = arith.truncf %727 : vector<8x128xf32> to vector<8x128xbf16>
    %cst_224 = arith.constant dense<0.000000e+00> : vector<8x512xf32>
    %732 = tpu.matmul %731, %694, %cst_224 {dimension_numbers = #tpu.dot_dimension_numbers<[1], [0], [0], [1], [0, 0, 1, 1], [], []>} : vector<8x128xbf16>, vector<128x512xbf16>, vector<8x512xf32> -> vector<8x512xf32>
    %733 = arith.addf %730, %732 : vector<8x512xf32>
    %734 = vector.extract_strided_slice %733 {offsets = [0, 0], sizes = [8, 384], strides = [1, 1]} : vector<8x512xf32> to vector<8x384xf32>
    %cst_225 = arith.constant 5.000000e-01 : f32
    %735 = vector.broadcast %cst_225 : f32 to vector<8x384xf32>
    %736 = arith.mulf %734, %735 : vector<8x384xf32>
    %737 = math.tanh %736 : vector<8x384xf32>
    %cst_226 = arith.constant 5.000000e-01 : f32
    %738 = vector.broadcast %cst_226 : f32 to vector<8x384xf32>
    %739 = arith.mulf %737, %738 : vector<8x384xf32>
    %cst_227 = arith.constant 5.000000e-01 : f32
    %740 = vector.broadcast %cst_227 : f32 to vector<8x384xf32>
    %741 = arith.addf %739, %740 : vector<8x384xf32>
    %742 = vector.extract_strided_slice %741 {offsets = [0, 0], sizes = [8, 128], strides = [1, 1]} : vector<8x384xf32> to vector<8x128xf32>
    %743 = vector.extract_strided_slice %741 {offsets = [0, 128], sizes = [8, 128], strides = [1, 1]} : vector<8x384xf32> to vector<8x128xf32>
    %744 = vector.extract_strided_slice %741 {offsets = [0, 256], sizes = [8, 128], strides = [1, 1]} : vector<8x384xf32> to vector<8x128xf32>
    %745 = vector.extract_strided_slice %733 {offsets = [0, 384], sizes = [8, 128], strides = [1, 1]} : vector<8x512xf32> to vector<8x128xf32>
    %746 = math.tanh %745 : vector<8x128xf32>
    %747 = arith.mulf %743, %725 : vector<8x128xf32>
    %748 = arith.mulf %742, %746 : vector<8x128xf32>
    %749 = arith.addf %747, %748 : vector<8x128xf32>
    %750 = math.tanh %749 : vector<8x128xf32>
    %751 = arith.mulf %744, %750 : vector<8x128xf32>
    %752 = arith.addf %728, %751 : vector<8x128xf32>
    %753 = vector.extract_strided_slice %702 {offsets = [2, 0, 0], sizes = [1, 8, 512], strides = [1, 1, 1]} : vector<8x8x512xf32> to vector<1x8x512xf32>
    %754 = vector.shape_cast %753 : vector<1x8x512xf32> to vector<8x512xf32>
    %755 = arith.truncf %751 : vector<8x128xf32> to vector<8x128xbf16>
    %cst_228 = arith.constant dense<0.000000e+00> : vector<8x512xf32>
    %756 = tpu.matmul %755, %694, %cst_228 {dimension_numbers = #tpu.dot_dimension_numbers<[1], [0], [0], [1], [0, 0, 1, 1], [], []>} : vector<8x128xbf16>, vector<128x512xbf16>, vector<8x512xf32> -> vector<8x512xf32>
    %757 = arith.addf %754, %756 : vector<8x512xf32>
    %758 = vector.extract_strided_slice %757 {offsets = [0, 0], sizes = [8, 384], strides = [1, 1]} : vector<8x512xf32> to vector<8x384xf32>
    %cst_229 = arith.constant 5.000000e-01 : f32
    %759 = vector.broadcast %cst_229 : f32 to vector<8x384xf32>
    %760 = arith.mulf %758, %759 : vector<8x384xf32>
    %761 = math.tanh %760 : vector<8x384xf32>
    %cst_230 = arith.constant 5.000000e-01 : f32
    %762 = vector.broadcast %cst_230 : f32 to vector<8x384xf32>
    %763 = arith.mulf %761, %762 : vector<8x384xf32>
    %cst_231 = arith.constant 5.000000e-01 : f32
    %764 = vector.broadcast %cst_231 : f32 to vector<8x384xf32>
    %765 = arith.addf %763, %764 : vector<8x384xf32>
    %766 = vector.extract_strided_slice %765 {offsets = [0, 0], sizes = [8, 128], strides = [1, 1]} : vector<8x384xf32> to vector<8x128xf32>
    %767 = vector.extract_strided_slice %765 {offsets = [0, 128], sizes = [8, 128], strides = [1, 1]} : vector<8x384xf32> to vector<8x128xf32>
    %768 = vector.extract_strided_slice %765 {offsets = [0, 256], sizes = [8, 128], strides = [1, 1]} : vector<8x384xf32> to vector<8x128xf32>
    %769 = vector.extract_strided_slice %757 {offsets = [0, 384], sizes = [8, 128], strides = [1, 1]} : vector<8x512xf32> to vector<8x128xf32>
    %770 = math.tanh %769 : vector<8x128xf32>
    %771 = arith.mulf %767, %749 : vector<8x128xf32>
    %772 = arith.mulf %766, %770 : vector<8x128xf32>
    %773 = arith.addf %771, %772 : vector<8x128xf32>
    %774 = math.tanh %773 : vector<8x128xf32>
    %775 = arith.mulf %768, %774 : vector<8x128xf32>
    %776 = arith.addf %752, %775 : vector<8x128xf32>
    %777 = vector.extract_strided_slice %702 {offsets = [3, 0, 0], sizes = [1, 8, 512], strides = [1, 1, 1]} : vector<8x8x512xf32> to vector<1x8x512xf32>
    %778 = vector.shape_cast %777 : vector<1x8x512xf32> to vector<8x512xf32>
    %779 = arith.truncf %775 : vector<8x128xf32> to vector<8x128xbf16>
    %cst_232 = arith.constant dense<0.000000e+00> : vector<8x512xf32>
    %780 = tpu.matmul %779, %694, %cst_232 {dimension_numbers = #tpu.dot_dimension_numbers<[1], [0], [0], [1], [0, 0, 1, 1], [], []>} : vector<8x128xbf16>, vector<128x512xbf16>, vector<8x512xf32> -> vector<8x512xf32>
    %781 = arith.addf %778, %780 : vector<8x512xf32>
    %782 = vector.extract_strided_slice %781 {offsets = [0, 0], sizes = [8, 384], strides = [1, 1]} : vector<8x512xf32> to vector<8x384xf32>
    %cst_233 = arith.constant 5.000000e-01 : f32
    %783 = vector.broadcast %cst_233 : f32 to vector<8x384xf32>
    %784 = arith.mulf %782, %783 : vector<8x384xf32>
    %785 = math.tanh %784 : vector<8x384xf32>
    %cst_234 = arith.constant 5.000000e-01 : f32
    %786 = vector.broadcast %cst_234 : f32 to vector<8x384xf32>
    %787 = arith.mulf %785, %786 : vector<8x384xf32>
    %cst_235 = arith.constant 5.000000e-01 : f32
    %788 = vector.broadcast %cst_235 : f32 to vector<8x384xf32>
    %789 = arith.addf %787, %788 : vector<8x384xf32>
    %790 = vector.extract_strided_slice %789 {offsets = [0, 0], sizes = [8, 128], strides = [1, 1]} : vector<8x384xf32> to vector<8x128xf32>
    %791 = vector.extract_strided_slice %789 {offsets = [0, 128], sizes = [8, 128], strides = [1, 1]} : vector<8x384xf32> to vector<8x128xf32>
    %792 = vector.extract_strided_slice %789 {offsets = [0, 256], sizes = [8, 128], strides = [1, 1]} : vector<8x384xf32> to vector<8x128xf32>
    %793 = vector.extract_strided_slice %781 {offsets = [0, 384], sizes = [8, 128], strides = [1, 1]} : vector<8x512xf32> to vector<8x128xf32>
    %794 = math.tanh %793 : vector<8x128xf32>
    %795 = arith.mulf %791, %773 : vector<8x128xf32>
    %796 = arith.mulf %790, %794 : vector<8x128xf32>
    %797 = arith.addf %795, %796 : vector<8x128xf32>
    %798 = math.tanh %797 : vector<8x128xf32>
    %799 = arith.mulf %792, %798 : vector<8x128xf32>
    %800 = arith.addf %776, %799 : vector<8x128xf32>
    %801 = vector.extract_strided_slice %702 {offsets = [4, 0, 0], sizes = [1, 8, 512], strides = [1, 1, 1]} : vector<8x8x512xf32> to vector<1x8x512xf32>
    %802 = vector.shape_cast %801 : vector<1x8x512xf32> to vector<8x512xf32>
    %803 = arith.truncf %799 : vector<8x128xf32> to vector<8x128xbf16>
    %cst_236 = arith.constant dense<0.000000e+00> : vector<8x512xf32>
    %804 = tpu.matmul %803, %694, %cst_236 {dimension_numbers = #tpu.dot_dimension_numbers<[1], [0], [0], [1], [0, 0, 1, 1], [], []>} : vector<8x128xbf16>, vector<128x512xbf16>, vector<8x512xf32> -> vector<8x512xf32>
    %805 = arith.addf %802, %804 : vector<8x512xf32>
    %806 = vector.extract_strided_slice %805 {offsets = [0, 0], sizes = [8, 384], strides = [1, 1]} : vector<8x512xf32> to vector<8x384xf32>
    %cst_237 = arith.constant 5.000000e-01 : f32
    %807 = vector.broadcast %cst_237 : f32 to vector<8x384xf32>
    %808 = arith.mulf %806, %807 : vector<8x384xf32>
    %809 = math.tanh %808 : vector<8x384xf32>
    %cst_238 = arith.constant 5.000000e-01 : f32
    %810 = vector.broadcast %cst_238 : f32 to vector<8x384xf32>
    %811 = arith.mulf %809, %810 : vector<8x384xf32>
    %cst_239 = arith.constant 5.000000e-01 : f32
    %812 = vector.broadcast %cst_239 : f32 to vector<8x384xf32>
    %813 = arith.addf %811, %812 : vector<8x384xf32>
    %814 = vector.extract_strided_slice %813 {offsets = [0, 0], sizes = [8, 128], strides = [1, 1]} : vector<8x384xf32> to vector<8x128xf32>
    %815 = vector.extract_strided_slice %813 {offsets = [0, 128], sizes = [8, 128], strides = [1, 1]} : vector<8x384xf32> to vector<8x128xf32>
    %816 = vector.extract_strided_slice %813 {offsets = [0, 256], sizes = [8, 128], strides = [1, 1]} : vector<8x384xf32> to vector<8x128xf32>
    %817 = vector.extract_strided_slice %805 {offsets = [0, 384], sizes = [8, 128], strides = [1, 1]} : vector<8x512xf32> to vector<8x128xf32>
    %818 = math.tanh %817 : vector<8x128xf32>
    %819 = arith.mulf %815, %797 : vector<8x128xf32>
    %820 = arith.mulf %814, %818 : vector<8x128xf32>
    %821 = arith.addf %819, %820 : vector<8x128xf32>
    %822 = math.tanh %821 : vector<8x128xf32>
    %823 = arith.mulf %816, %822 : vector<8x128xf32>
    %824 = arith.addf %800, %823 : vector<8x128xf32>
    %825 = vector.extract_strided_slice %702 {offsets = [5, 0, 0], sizes = [1, 8, 512], strides = [1, 1, 1]} : vector<8x8x512xf32> to vector<1x8x512xf32>
    %826 = vector.shape_cast %825 : vector<1x8x512xf32> to vector<8x512xf32>
    %827 = arith.truncf %823 : vector<8x128xf32> to vector<8x128xbf16>
    %cst_240 = arith.constant dense<0.000000e+00> : vector<8x512xf32>
    %828 = tpu.matmul %827, %694, %cst_240 {dimension_numbers = #tpu.dot_dimension_numbers<[1], [0], [0], [1], [0, 0, 1, 1], [], []>} : vector<8x128xbf16>, vector<128x512xbf16>, vector<8x512xf32> -> vector<8x512xf32>
    %829 = arith.addf %826, %828 : vector<8x512xf32>
    %830 = vector.extract_strided_slice %829 {offsets = [0, 0], sizes = [8, 384], strides = [1, 1]} : vector<8x512xf32> to vector<8x384xf32>
    %cst_241 = arith.constant 5.000000e-01 : f32
    %831 = vector.broadcast %cst_241 : f32 to vector<8x384xf32>
    %832 = arith.mulf %830, %831 : vector<8x384xf32>
    %833 = math.tanh %832 : vector<8x384xf32>
    %cst_242 = arith.constant 5.000000e-01 : f32
    %834 = vector.broadcast %cst_242 : f32 to vector<8x384xf32>
    %835 = arith.mulf %833, %834 : vector<8x384xf32>
    %cst_243 = arith.constant 5.000000e-01 : f32
    %836 = vector.broadcast %cst_243 : f32 to vector<8x384xf32>
    %837 = arith.addf %835, %836 : vector<8x384xf32>
    %838 = vector.extract_strided_slice %837 {offsets = [0, 0], sizes = [8, 128], strides = [1, 1]} : vector<8x384xf32> to vector<8x128xf32>
    %839 = vector.extract_strided_slice %837 {offsets = [0, 128], sizes = [8, 128], strides = [1, 1]} : vector<8x384xf32> to vector<8x128xf32>
    %840 = vector.extract_strided_slice %837 {offsets = [0, 256], sizes = [8, 128], strides = [1, 1]} : vector<8x384xf32> to vector<8x128xf32>
    %841 = vector.extract_strided_slice %829 {offsets = [0, 384], sizes = [8, 128], strides = [1, 1]} : vector<8x512xf32> to vector<8x128xf32>
    %842 = math.tanh %841 : vector<8x128xf32>
    %843 = arith.mulf %839, %821 : vector<8x128xf32>
    %844 = arith.mulf %838, %842 : vector<8x128xf32>
    %845 = arith.addf %843, %844 : vector<8x128xf32>
    %846 = math.tanh %845 : vector<8x128xf32>
    %847 = arith.mulf %840, %846 : vector<8x128xf32>
    %848 = arith.addf %824, %847 : vector<8x128xf32>
    %849 = vector.extract_strided_slice %702 {offsets = [6, 0, 0], sizes = [1, 8, 512], strides = [1, 1, 1]} : vector<8x8x512xf32> to vector<1x8x512xf32>
    %850 = vector.shape_cast %849 : vector<1x8x512xf32> to vector<8x512xf32>
    %851 = arith.truncf %847 : vector<8x128xf32> to vector<8x128xbf16>
    %cst_244 = arith.constant dense<0.000000e+00> : vector<8x512xf32>
    %852 = tpu.matmul %851, %694, %cst_244 {dimension_numbers = #tpu.dot_dimension_numbers<[1], [0], [0], [1], [0, 0, 1, 1], [], []>} : vector<8x128xbf16>, vector<128x512xbf16>, vector<8x512xf32> -> vector<8x512xf32>
    %853 = arith.addf %850, %852 : vector<8x512xf32>
    %854 = vector.extract_strided_slice %853 {offsets = [0, 0], sizes = [8, 384], strides = [1, 1]} : vector<8x512xf32> to vector<8x384xf32>
    %cst_245 = arith.constant 5.000000e-01 : f32
    %855 = vector.broadcast %cst_245 : f32 to vector<8x384xf32>
    %856 = arith.mulf %854, %855 : vector<8x384xf32>
    %857 = math.tanh %856 : vector<8x384xf32>
    %cst_246 = arith.constant 5.000000e-01 : f32
    %858 = vector.broadcast %cst_246 : f32 to vector<8x384xf32>
    %859 = arith.mulf %857, %858 : vector<8x384xf32>
    %cst_247 = arith.constant 5.000000e-01 : f32
    %860 = vector.broadcast %cst_247 : f32 to vector<8x384xf32>
    %861 = arith.addf %859, %860 : vector<8x384xf32>
    %862 = vector.extract_strided_slice %861 {offsets = [0, 0], sizes = [8, 128], strides = [1, 1]} : vector<8x384xf32> to vector<8x128xf32>
    %863 = vector.extract_strided_slice %861 {offsets = [0, 128], sizes = [8, 128], strides = [1, 1]} : vector<8x384xf32> to vector<8x128xf32>
    %864 = vector.extract_strided_slice %861 {offsets = [0, 256], sizes = [8, 128], strides = [1, 1]} : vector<8x384xf32> to vector<8x128xf32>
    %865 = vector.extract_strided_slice %853 {offsets = [0, 384], sizes = [8, 128], strides = [1, 1]} : vector<8x512xf32> to vector<8x128xf32>
    %866 = math.tanh %865 : vector<8x128xf32>
    %867 = arith.mulf %863, %845 : vector<8x128xf32>
    %868 = arith.mulf %862, %866 : vector<8x128xf32>
    %869 = arith.addf %867, %868 : vector<8x128xf32>
    %870 = math.tanh %869 : vector<8x128xf32>
    %871 = arith.mulf %864, %870 : vector<8x128xf32>
    %872 = arith.addf %848, %871 : vector<8x128xf32>
    %873 = vector.extract_strided_slice %702 {offsets = [7, 0, 0], sizes = [1, 8, 512], strides = [1, 1, 1]} : vector<8x8x512xf32> to vector<1x8x512xf32>
    %874 = vector.shape_cast %873 : vector<1x8x512xf32> to vector<8x512xf32>
    %875 = arith.truncf %871 : vector<8x128xf32> to vector<8x128xbf16>
    %cst_248 = arith.constant dense<0.000000e+00> : vector<8x512xf32>
    %876 = tpu.matmul %875, %694, %cst_248 {dimension_numbers = #tpu.dot_dimension_numbers<[1], [0], [0], [1], [0, 0, 1, 1], [], []>} : vector<8x128xbf16>, vector<128x512xbf16>, vector<8x512xf32> -> vector<8x512xf32>
    %877 = arith.addf %874, %876 : vector<8x512xf32>
    %878 = vector.extract_strided_slice %877 {offsets = [0, 0], sizes = [8, 384], strides = [1, 1]} : vector<8x512xf32> to vector<8x384xf32>
    %cst_249 = arith.constant 5.000000e-01 : f32
    %879 = vector.broadcast %cst_249 : f32 to vector<8x384xf32>
    %880 = arith.mulf %878, %879 : vector<8x384xf32>
    %881 = math.tanh %880 : vector<8x384xf32>
    %cst_250 = arith.constant 5.000000e-01 : f32
    %882 = vector.broadcast %cst_250 : f32 to vector<8x384xf32>
    %883 = arith.mulf %881, %882 : vector<8x384xf32>
    %cst_251 = arith.constant 5.000000e-01 : f32
    %884 = vector.broadcast %cst_251 : f32 to vector<8x384xf32>
    %885 = arith.addf %883, %884 : vector<8x384xf32>
    %886 = vector.extract_strided_slice %885 {offsets = [0, 0], sizes = [8, 128], strides = [1, 1]} : vector<8x384xf32> to vector<8x128xf32>
    %887 = vector.extract_strided_slice %885 {offsets = [0, 128], sizes = [8, 128], strides = [1, 1]} : vector<8x384xf32> to vector<8x128xf32>
    %888 = vector.extract_strided_slice %885 {offsets = [0, 256], sizes = [8, 128], strides = [1, 1]} : vector<8x384xf32> to vector<8x128xf32>
    %889 = vector.extract_strided_slice %877 {offsets = [0, 384], sizes = [8, 128], strides = [1, 1]} : vector<8x512xf32> to vector<8x128xf32>
    %890 = math.tanh %889 : vector<8x128xf32>
    %891 = arith.mulf %887, %869 : vector<8x128xf32>
    %892 = arith.mulf %886, %890 : vector<8x128xf32>
    %893 = arith.addf %891, %892 : vector<8x128xf32>
    %894 = math.tanh %893 : vector<8x128xf32>
    %895 = arith.mulf %888, %894 : vector<8x128xf32>
    %896 = arith.addf %872, %895 : vector<8x128xf32>
    %cst_252 = arith.constant 1.250000e-01 : f32
    %897 = vector.broadcast %cst_252 : f32 to vector<8x128xf32>
    %898 = arith.mulf %896, %897 : vector<8x128xf32>
    %c0_253 = arith.constant 0 : index
    %c0_254 = arith.constant 0 : index
    %899 = vector.load %arg5[%c0_253, %c0_254] : memref<128x128xf32, #tpu.memory_space<vmem>>, vector<128x128xf32>
    %cst_255 = arith.constant dense<0.000000e+00> : vector<8x128xf32>
    %900 = tpu.matmul %898, %899, %cst_255 {dimension_numbers = #tpu.dot_dimension_numbers<[1], [0], [0], [1], [0, 0, 1, 1], [], []>} : vector<8x128xf32>, vector<128x128xf32>, vector<8x128xf32> -> vector<8x128xf32>
    %c0_256 = arith.constant 0 : index
    %c0_257 = arith.constant 0 : index
    %901 = vector.load %arg6[%c0_256, %c0_257] : memref<1x128xf32, #tpu.memory_space<vmem>>, vector<1x128xf32>
    %902 = vector.broadcast %901 : vector<1x128xf32> to vector<8x128xf32>
    %903 = arith.addf %900, %902 : vector<8x128xf32>
    %cst_258 = arith.constant 5.000000e-01 : f32
    %904 = vector.broadcast %cst_258 : f32 to vector<8x128xf32>
    %905 = arith.mulf %903, %904 : vector<8x128xf32>
    %906 = math.tanh %905 : vector<8x128xf32>
    %cst_259 = arith.constant 5.000000e-01 : f32
    %907 = vector.broadcast %cst_259 : f32 to vector<8x128xf32>
    %908 = arith.mulf %906, %907 : vector<8x128xf32>
    %cst_260 = arith.constant 5.000000e-01 : f32
    %909 = vector.broadcast %cst_260 : f32 to vector<8x128xf32>
    %910 = arith.addf %908, %909 : vector<8x128xf32>
    %c0_261 = arith.constant 0 : index
    %c0_262 = arith.constant 0 : index
    %911 = vector.load %arg7[%c0_261, %c0_262] : memref<8x128xf32, #tpu.memory_space<vmem>>, vector<8x128xf32>
    tpu.vector_store %arg7[%c0_261, %c0_262], %910 {strides = array<i32>} : memref<8x128xf32, #tpu.memory_space<vmem>>, vector<8x128xf32>,
    return
  }
  func.func @transform_0(%arg0: i32) -> (i32, i32, i32) {
    %c0_i32 = arith.constant 0 : i32
    %c0_i32_0 = arith.constant 0 : i32
    %c0_i32_1 = arith.constant 0 : i32
    return %c0_i32, %arg0, %c0_i32_0 : i32, i32, i32
  }
  func.func @transform_1(%arg0: i32) -> (i32, i32, i32) {
    %c0_i32 = arith.constant 0 : i32
    %c0_i32_0 = arith.constant 0 : i32
    %c0_i32_1 = arith.constant 0 : i32
    %c0_i32_2 = arith.constant 0 : i32
    return %c0_i32, %c0_i32_0, %c0_i32_1 : i32, i32, i32
  }
  func.func @transform_2(%arg0: i32) -> (i32, i32, i32) {
    %c0_i32 = arith.constant 0 : i32
    %c0_i32_0 = arith.constant 0 : i32
    %c0_i32_1 = arith.constant 0 : i32
    %c0_i32_2 = arith.constant 0 : i32
    return %c0_i32, %c0_i32_0, %c0_i32_1 : i32, i32, i32
  }
  func.func @transform_3(%arg0: i32) -> (i32, i32, i32) {
    %c0_i32 = arith.constant 0 : i32
    %c0_i32_0 = arith.constant 0 : i32
    %c0_i32_1 = arith.constant 0 : i32
    %c0_i32_2 = arith.constant 0 : i32
    return %c0_i32, %c0_i32_0, %c0_i32_1 : i32, i32, i32
  }
  func.func @transform_4(%arg0: i32) -> (i32, i32) {
    %c0_i32 = arith.constant 0 : i32
    %c0_i32_0 = arith.constant 0 : i32
    %c0_i32_1 = arith.constant 0 : i32
    return %c0_i32, %c0_i32_0 : i32, i32
  }
  func.func @transform_5(%arg0: i32) -> (i32, i32) {
    %c0_i32 = arith.constant 0 : i32
    %c0_i32_0 = arith.constant 0 : i32
    %c0_i32_1 = arith.constant 0 : i32
    return %c0_i32, %c0_i32_0 : i32, i32
  }
  func.func @transform_6(%arg0: i32) -> (i32, i32) {
    %c0_i32 = arith.constant 0 : i32
    %c0_i32_0 = arith.constant 0 : i32
    return %arg0, %c0_i32 : i32, i32
  }
}

</mosaic_0001>

<llo_original>
// kernel: rnn_forward.1
$region0: #{rnn_forward.1}
  #allocation0 [shape = 'u32[]', space=smem, size = 0x4, offset = 0x4, fixed_abs, tag = 'smem constant byte address 0x4 - core index']
  #allocation1 [shape = 'u32[144,128]{1,0:T(1,128)}', space=vmem, size = 0x12000, scoped, tag = 'internal scratch']
  #allocation2 [shape = 'bf16[8,8,128]{2,1,0:T(8,128)(2,1)}', space=vmem, size = 0x4000, scoped, tag = 'scratch operand']
  %s0 = inlined_call_operand.vmem [shape: bf16[8,8,128], index: 0, kind: input, shape index: {}]
  %s1 = inlined_call_operand.hbm [shape: bf16[4,128,512], index: 1, kind: input, shape index: {}]
  %s2 = inlined_call_operand.hbm [shape: bf16[4,128,512], index: 2, kind: input, shape index: {}]
  %s3 = inlined_call_operand.vmem [shape: f32[4,1,512], index: 3, kind: input, shape index: {}]
  %s4 = inlined_call_operand.hbm [shape: f32[128,128], index: 4, kind: input, shape index: {}]
  %s5 = inlined_call_operand.vmem [shape: f32[1,128], index: 5, kind: input, shape index: {}]
  %s6 = inlined_call_operand.vmem [shape: f32[8,128], index: 6, kind: output, shape index: {}]
  %s7 = sld [smem:[#allocation0]]
  $region46: #{rnn_forward.1} parent=0
    _
  %s9 = ssub.s32 1, %s7
  %s10 = scalar_select 0, %s9, %s7
  $region1: #{rnn_forward.1} parent=0
    #allocation3 [shape = 'u8[524288]{0}', space=vmem, size = 0x80000, scoped, tag = 'input window, operand 1, single buffered']
    #allocation4 [shape = 's32[1]{0}', space=sflag, size = 0x4, scoped, tag = 'scoped memory for rnn_forward.1']
    #allocation5 [shape = 'u8[524288]{0}', space=vmem, size = 0x80000, scoped, tag = 'input window, operand 2, single buffered']
    #allocation6 [shape = 's32[1]{0}', space=sflag, size = 0x4, scoped, tag = 'scoped memory for rnn_forward.1']
    #allocation7 [shape = 'u8[65536]{0}', space=vmem, size = 0x10000, scoped, tag = 'input window, operand 4, single buffered']
    %11 = vsyncpa [#allocation4], 0
    %12 = vsyncpa [#allocation6], 0
    // Predicated region
    $region2: #{rnn_forward.1} parent=1 // pred_check
      _
    $region3: #{rnn_forward.1} parent=1 // pred_check_branch
      %14 = sbr.rel (0) target = $region5
    $region4: #{rnn_forward.1} parent=1 // pred_region
      _
    $region5: #{rnn_forward.1} parent=1 // pred_fallthru
      _
    // Predicated region
    $region6: #{rnn_forward.1} parent=1 // pred_check
      _
    $region7: #{rnn_forward.1} parent=1 // pred_check_branch
      %16 = sbr.rel (0) target = $region9
    $region8: #{rnn_forward.1} parent=1 // pred_region
      %s18 = ssub.s32 16384, 16384
      %19 = vsyncadd [#allocation4], %s18
      %s20 = sshll.u32 [#allocation3], 4
      %s21 = int_to_ptr.vmem [resolvable:$true] %s20
      %26 = dma.hbm_to_vmem [thread:$0]  %s1, 16384, %s21, [#allocation4], 256, 256, 16
    $region9: #{rnn_forward.1} parent=1 // pred_fallthru
      _
    // Predicated region
    $region10: #{rnn_forward.1} parent=1 // pred_check
      _
    $region11: #{rnn_forward.1} parent=1 // pred_check_branch
      %28 = sbr.rel (0) target = $region13
    $region12: #{rnn_forward.1} parent=1 // pred_region
      %s30 = ssub.s32 16384, 16384
      %31 = vsyncadd [#allocation6], %s30
      %s32 = sshll.u32 [#allocation5], 4
      %s33 = int_to_ptr.vmem [resolvable:$true] %s32
      %38 = dma.hbm_to_vmem [thread:$0]  %s2, 16384, %s33, [#allocation6], 256, 256, 16
    $region13: #{rnn_forward.1} parent=1 // pred_fallthru
      _
    // Predicated region
    $region14: #{rnn_forward.1} parent=1 // pred_check
      _
    $region15: #{rnn_forward.1} parent=1 // pred_check_branch
      %40 = sbr.rel (0) target = $region17
    $region16: #{rnn_forward.1} parent=1 // pred_region
      _
    $region17: #{rnn_forward.1} parent=1 // pred_fallthru
      _
    // Predicated region
    $region18: #{rnn_forward.1} parent=1 // pred_check
      _
    $region19: #{rnn_forward.1} parent=1 // pred_check_branch
      %42 = sbr.rel (0) target = $region21
    $region20: #{rnn_forward.1} parent=1 // pred_region
      %s44 = ssub.s32 2048, 2048
      %45 = vsyncadd [#allocation6], %s44
      %s46 = sshll.u32 [#allocation7], 4
      %s47 = int_to_ptr.vmem [resolvable:$true] %s46
      %52 = dma.hbm_to_vmem [thread:$0]  %s4, 2048, %s47, [#allocation6], 128, 128, 8
    $region21: #{rnn_forward.1} parent=1 // pred_fallthru
      _
    // Predicated region
    $region22: #{rnn_forward.1} parent=1 // pred_check
      _
    $region23: #{rnn_forward.1} parent=1 // pred_check_branch
      %54 = sbr.rel (0) target = $region25
    $region24: #{rnn_forward.1} parent=1 // pred_region
      _
    $region25: #{rnn_forward.1} parent=1 // pred_fallthru
      _
    // Predicated region
    $region26: #{rnn_forward.1} parent=1 // pred_check
      _
    $region27: #{rnn_forward.1} parent=1 // pred_check_branch
      %56 = sbr.rel (0) target = $region29
    $region28: #{rnn_forward.1} parent=1 // pred_region
      %57 = dma.done [#allocation4], 16384
    $region29: #{rnn_forward.1} parent=1 // pred_fallthru
      _
    // Predicated region
    $region30: #{rnn_forward.1} parent=1 // pred_check
      _
    $region31: #{rnn_forward.1} parent=1 // pred_check_branch
      %59 = sbr.rel (0) target = $region33
    $region32: #{rnn_forward.1} parent=1 // pred_region
      %60 = dma.done [#allocation6], 16384
    $region33: #{rnn_forward.1} parent=1 // pred_fallthru
      _
    // Predicated region
    $region34: #{rnn_forward.1} parent=1 // pred_check
      _
    $region35: #{rnn_forward.1} parent=1 // pred_check_branch
      %62 = sbr.rel (0) target = $region37
    $region36: #{rnn_forward.1} parent=1 // pred_region
      %63 = dma.done [#allocation6], 2048
    $region37: #{rnn_forward.1} parent=1 // pred_fallthru
      _
    %v65 = vld [vmem:[#allocation3] sm:$0xff]
    %v66 = vld [vmem:[#allocation3 + $0x8] sm:$0xff]
    %v67 = vld [vmem:[#allocation3 + $0x10] sm:$0xff]
    %v68 = vld [vmem:[#allocation3 + $0x18] sm:$0xff]
    %v69 = vld [vmem:[#allocation3 + $0x20] sm:$0xff]
    %v70 = vld [vmem:[#allocation3 + $0x28] sm:$0xff]
    %v71 = vld [vmem:[#allocation3 + $0x30] sm:$0xff]
    %v72 = vld [vmem:[#allocation3 + $0x38] sm:$0xff]
    %v73 = vld [vmem:[#allocation3 + $0x40] sm:$0xff]
    %v74 = vld [vmem:[#allocation3 + $0x48] sm:$0xff]
    %v75 = vld [vmem:[#allocation3 + $0x50] sm:$0xff]
    %v76 = vld [vmem:[#allocation3 + $0x58] sm:$0xff]
    %v77 = vld [vmem:[#allocation3 + $0x60] sm:$0xff]
    %v78 = vld [vmem:[#allocation3 + $0x68] sm:$0xff]
    %v79 = vld [vmem:[#allocation3 + $0x70] sm:$0xff]
    %v80 = vld [vmem:[#allocation3 + $0x78] sm:$0xff]
    %v81 = vld [vmem:[#allocation3 + $0x80] sm:$0xff]
    %v82 = vld [vmem:[#allocation3 + $0x88] sm:$0xff]
    %v83 = vld [vmem:[#allocation3 + $0x90] sm:$0xff]
    %v84 = vld [vmem:[#allocation3 + $0x98] sm:$0xff]
    %v85 = vld [vmem:[#allocation3 + $0xa0] sm:$0xff]
    %v86 = vld [vmem:[#allocation3 + $0xa8] sm:$0xff]
    %v87 = vld [vmem:[#allocation3 + $0xb0] sm:$0xff]
    %v88 = vld [vmem:[#allocation3 + $0xb8] sm:$0xff]
    %v89 = vld [vmem:[#allocation3 + $0xc0] sm:$0xff]
    %v90 = vld [vmem:[#allocation3 + $0xc8] sm:$0xff]
    %v91 = vld [vmem:[#allocation3 + $0xd0] sm:$0xff]
    %v92 = vld [vmem:[#allocation3 + $0xd8] sm:$0xff]
    %v93 = vld [vmem:[#allocation3 + $0xe0] sm:$0xff]
    %v94 = vld [vmem:[#allocation3 + $0xe8] sm:$0xff]
    %v95 = vld [vmem:[#allocation3 + $0xf0] sm:$0xff]
    %v96 = vld [vmem:[#allocation3 + $0xf8] sm:$0xff]
    %v97 = vld [vmem:[#allocation5] sm:$0xff]
    %v98 = vld [vmem:[#allocation5 + $0x8] sm:$0xff]
    %v99 = vld [vmem:[#allocation5 + $0x10] sm:$0xff]
    %v100 = vld [vmem:[#allocation5 + $0x18] sm:$0xff]
    %v101 = vld [vmem:[#allocation5 + $0x20] sm:$0xff]
    %v102 = vld [vmem:[#allocation5 + $0x28] sm:$0xff]
    %v103 = vld [vmem:[#allocation5 + $0x30] sm:$0xff]
    %v104 = vld [vmem:[#allocation5 + $0x38] sm:$0xff]
    %v105 = vld [vmem:[#allocation5 + $0x40] sm:$0xff]
    %v106 = vld [vmem:[#allocation5 + $0x48] sm:$0xff]
    %v107 = vld [vmem:[#allocation5 + $0x50] sm:$0xff]
    %v108 = vld [vmem:[#allocation5 + $0x58] sm:$0xff]
    %v109 = vld [vmem:[#allocation5 + $0x60] sm:$0xff]
    %v110 = vld [vmem:[#allocation5 + $0x68] sm:$0xff]
    %v111 = vld [vmem:[#allocation5 + $0x70] sm:$0xff]
    %v112 = vld [vmem:[#allocation5 + $0x78] sm:$0xff]
    %v113 = vld [vmem:[#allocation5 + $0x80] sm:$0xff]
    %v114 = vld [vmem:[#allocation5 + $0x88] sm:$0xff]
    %v115 = vld [vmem:[#allocation5 + $0x90] sm:$0xff]
    %v116 = vld [vmem:[#allocation5 + $0x98] sm:$0xff]
    %v117 = vld [vmem:[#allocation5 + $0xa0] sm:$0xff]
    %v118 = vld [vmem:[#allocation5 + $0xa8] sm:$0xff]
    %v119 = vld [vmem:[#allocation5 + $0xb0] sm:$0xff]
    %v120 = vld [vmem:[#allocation5 + $0xb8] sm:$0xff]
    %v121 = vld [vmem:[#allocation5 + $0xc0] sm:$0xff]
    %v122 = vld [vmem:[#allocation5 + $0xc8] sm:$0xff]
    %v123 = vld [vmem:[#allocation5 + $0xd0] sm:$0xff]
    %v124 = vld [vmem:[#allocation5 + $0xd8] sm:$0xff]
    %v125 = vld [vmem:[#allocation5 + $0xe0] sm:$0xff]
    %v126 = vld [vmem:[#allocation5 + $0xe8] sm:$0xff]
    %v127 = vld [vmem:[#allocation5 + $0xf0] sm:$0xff]
    %v128 = vld [vmem:[#allocation5 + $0xf8] sm:$0xff]
    %v129 = vld [vmem:[%s3] sm:$0xf]
    %v130 = vld [vmem:[%s0] sm:$0xf]
    %v131 = vld [vmem:[%s0 + $0x4] sm:$0xf]
    %v132 = vld [vmem:[%s0 + $0x8] sm:$0xf]
    %v133 = vld [vmem:[%s0 + $0xc] sm:$0xf]
    %v134 = vld [vmem:[%s0 + $0x10] sm:$0xf]
    %v135 = vld [vmem:[%s0 + $0x14] sm:$0xf]
    %v136 = vld [vmem:[%s0 + $0x18] sm:$0xf]
    %v137 = vld [vmem:[%s0 + $0x1c] sm:$0xf]
    %v139 = vlaneseq
    %v140 = vshrl.u32 %v139, 7
    %v141 = vsub.s32 0, %v140
    %v142 = vrot.slane %v129, %v141
    %v143 = vlaneseq
    %v144 = vshrl.u32 %v143, 7
    %v145 = vsub.s32 1, %v144
    %v146 = vrot.slane %v129, %v145
    %v147 = vlaneseq
    %v148 = vshrl.u32 %v147, 7
    %v149 = vsub.s32 2, %v148
    %v150 = vrot.slane %v129, %v149
    %v151 = vlaneseq
    %v152 = vshrl.u32 %v151, 7
    %v153 = vsub.s32 3, %v152
    %v154 = vrot.slane %v129, %v153
    %v167 = vunpack.c.l.b16 %v130
    %v168 = vunpack.c.l.b16 %v131
    %v169 = vunpack.c.l.b16 %v132
    %v170 = vunpack.c.l.b16 %v133
    %v171 = vunpack.c.l.b16 %v134
    %v172 = vunpack.c.l.b16 %v135
    %v173 = vunpack.c.l.b16 %v136
    %v174 = vunpack.c.l.b16 %v137
    %v175 = vpack.c.b16 %v168, %v167
    %v176 = vpack.c.b16 %v170, %v169
    %v177 = vpack.c.b16 %v172, %v171
    %v178 = vpack.c.b16 %v174, %v173
    %v215 = vunpack.c.l.b16 %v65
    %v216 = vunpack.c.h.b16 %v65
    %v217 = vunpack.c.l.b16 %v66
    %v218 = vunpack.c.h.b16 %v66
    %v219 = vunpack.c.l.b16 %v67
    %v220 = vunpack.c.h.b16 %v67
    %v221 = vunpack.c.l.b16 %v68
    %v222 = vunpack.c.h.b16 %v68
    %v223 = vunpack.c.l.b16 %v69
    %v224 = vunpack.c.h.b16 %v69
    %v225 = vunpack.c.l.b16 %v70
    %v226 = vunpack.c.h.b16 %v70
    %v227 = vunpack.c.l.b16 %v71
    %v228 = vunpack.c.h.b16 %v71
    %v229 = vunpack.c.l.b16 %v72
    %v230 = vunpack.c.h.b16 %v72
    %v231 = vunpack.c.l.b16 %v73
    %v232 = vunpack.c.h.b16 %v73
    %v233 = vunpack.c.l.b16 %v74
    %v234 = vunpack.c.h.b16 %v74
    %v235 = vunpack.c.l.b16 %v75
    %v236 = vunpack.c.h.b16 %v75
    %v237 = vunpack.c.l.b16 %v76
    %v238 = vunpack.c.h.b16 %v76
    %v239 = vunpack.c.l.b16 %v77
    %v240 = vunpack.c.h.b16 %v77
    %v241 = vunpack.c.l.b16 %v78
    %v242 = vunpack.c.h.b16 %v78
    %v243 = vunpack.c.l.b16 %v79
    %v244 = vunpack.c.h.b16 %v79
    %v245 = vunpack.c.l.b16 %v80
    %v246 = vunpack.c.h.b16 %v80
    %v247 = vunpack.c.l.b16 %v81
    %v248 = vunpack.c.h.b16 %v81
    %v249 = vunpack.c.l.b16 %v82
    %v250 = vunpack.c.h.b16 %v82
    %v251 = vunpack.c.l.b16 %v83
    %v252 = vunpack.c.h.b16 %v83
    %v253 = vunpack.c.l.b16 %v84
    %v254 = vunpack.c.h.b16 %v84
    %v255 = vunpack.c.l.b16 %v85
    %v256 = vunpack.c.h.b16 %v85
    %v257 = vunpack.c.l.b16 %v86
    %v258 = vunpack.c.h.b16 %v86
    %v259 = vunpack.c.l.b16 %v87
    %v260 = vunpack.c.h.b16 %v87
    %v261 = vunpack.c.l.b16 %v88
    %v262 = vunpack.c.h.b16 %v88
    %v263 = vunpack.c.l.b16 %v89
    %v264 = vunpack.c.h.b16 %v89
    %v265 = vunpack.c.l.b16 %v90
    %v266 = vunpack.c.h.b16 %v90
    %v267 = vunpack.c.l.b16 %v91
    %v268 = vunpack.c.h.b16 %v91
    %v269 = vunpack.c.l.b16 %v92
    %v270 = vunpack.c.h.b16 %v92
    %v271 = vunpack.c.l.b16 %v93
    %v272 = vunpack.c.h.b16 %v93
    %v273 = vunpack.c.l.b16 %v94
    %v274 = vunpack.c.h.b16 %v94
    %v275 = vunpack.c.l.b16 %v95
    %v276 = vunpack.c.h.b16 %v95
    %v277 = vunpack.c.l.b16 %v96
    %v278 = vunpack.c.h.b16 %v96
    %v279 = vpack.c.b16 %v219, %v215
    %v280 = vpack.c.b16 %v220, %v216
    %v281 = vpack.c.b16 %v221, %v217
    %v282 = vpack.c.b16 %v222, %v218
    %v283 = vpack.c.b16 %v227, %v223
    %v284 = vpack.c.b16 %v228, %v224
    %v285 = vpack.c.b16 %v229, %v225
    %v286 = vpack.c.b16 %v230, %v226
    %v287 = vpack.c.b16 %v235, %v231
    %v288 = vpack.c.b16 %v236, %v232
    %v289 = vpack.c.b16 %v237, %v233
    %v290 = vpack.c.b16 %v238, %v234
    %v291 = vpack.c.b16 %v243, %v239
    %v292 = vpack.c.b16 %v244, %v240
    %v293 = vpack.c.b16 %v245, %v241
    %v294 = vpack.c.b16 %v246, %v242
    %v295 = vpack.c.b16 %v251, %v247
    %v296 = vpack.c.b16 %v252, %v248
    %v297 = vpack.c.b16 %v253, %v249
    %v298 = vpack.c.b16 %v254, %v250
    %v299 = vpack.c.b16 %v259, %v255
    %v300 = vpack.c.b16 %v260, %v256
    %v301 = vpack.c.b16 %v261, %v257
    %v302 = vpack.c.b16 %v262, %v258
    %v303 = vpack.c.b16 %v267, %v263
    %v304 = vpack.c.b16 %v268, %v264
    %v305 = vpack.c.b16 %v269, %v265
    %v306 = vpack.c.b16 %v270, %v266
    %v307 = vpack.c.b16 %v275, %v271
    %v308 = vpack.c.b16 %v276, %v272
    %v309 = vpack.c.b16 %v277, %v273
    %v310 = vpack.c.b16 %v278, %v274
    %343 = vmatprep.subr.bf16.mxu0 %v280
    %344 = vmatpush1.bf16.msra.mxu0 %v279
    %345 = vmatprep.subr.bf16.mxu0 %v284
    %346 = vmatpush1.bf16.msra.mxu0 %v283
    %347 = vmatprep.subr.bf16.mxu0 %v288
    %348 = vmatpush1.bf16.msra.mxu0 %v287
    %349 = vmatprep.subr.bf16.mxu0 %v292
    %350 = vmatpush1.bf16.msra.mxu0 %v291
    %351 = vmatprep.subr.bf16.mxu0 %v296
    %352 = vmatpush1.bf16.msra.mxu0 %v295
    %353 = vmatprep.subr.bf16.mxu0 %v300
    %354 = vmatpush1.bf16.msra.mxu0 %v299
    %355 = vmatprep.subr.bf16.mxu0 %v304
    %356 = vmatpush1.bf16.msra.mxu0 %v303
    %357 = vmatprep.subr.bf16.mxu0 %v308
    %358 = vmatpush1.bf16.msra.mxu0 %v307
    %359 = vmatprep.subr.bf16.mxu0 0
    %360 = vmatpush1.bf16.msra.mxu0 0
    %361 = vmatprep.subr.bf16.mxu0 0
    %362 = vmatpush1.bf16.msra.mxu0 0
    %363 = vmatprep.subr.bf16.mxu0 0
    %364 = vmatpush1.bf16.msra.mxu0 0
    %365 = vmatprep.subr.bf16.mxu0 0
    %366 = vmatpush1.bf16.msra.mxu0 0
    %367 = vmatprep.subr.bf16.mxu0 0
    %368 = vmatpush1.bf16.msra.mxu0 0
    %369 = vmatprep.subr.bf16.mxu0 0
    %370 = vmatpush1.bf16.msra.mxu0 0
    %371 = vmatprep.subr.bf16.mxu0 0
    %372 = vmatpush1.bf16.msra.mxu0 0
    %373 = vmatprep.subr.bf16.mxu0 0
    %374 = vmatpush1.bf16.msra.mxu0 0
    %375 = vmatprep.mubr.bf16.mxu0 0
    %376 = vmatmul.mubr.bf16.gmra.mrb[0].mxu0 %v175
    %v377 = vpop.f32.mrb[0].mxu0
    %v378 = vadd.f32 %v142, %v377
    %v379 = vpop.f32.mrb[0].mxu0
    %v380 = vadd.f32 %v146, %v379
    %v381 = vpop.f32.mrb[0].mxu0
    %v382 = vadd.f32 %v142, %v381
    %v383 = vpop.f32.mrb[0].mxu0
    %v384 = vadd.f32 %v146, %v383
    %385 = vmatprep.mubr.bf16.mxu0 0
    %386 = vmatmul.mubr.bf16.gmra.mrb[0].mxu0 %v176
    %v387 = vpop.f32.mrb[0].mxu0
    %v388 = vadd.f32 %v142, %v387
    %v389 = vpop.f32.mrb[0].mxu0
    %v390 = vadd.f32 %v146, %v389
    %v391 = vpop.f32.mrb[0].mxu0
    %v392 = vadd.f32 %v142, %v391
    %v393 = vpop.f32.mrb[0].mxu0
    %v394 = vadd.f32 %v146, %v393
    %395 = vmatprep.mubr.bf16.mxu0 0
    %396 = vmatmul.mubr.bf16.gmra.mrb[0].mxu0 %v177
    %v397 = vpop.f32.mrb[0].mxu0
    %v398 = vadd.f32 %v142, %v397
    %v399 = vpop.f32.mrb[0].mxu0
    %v400 = vadd.f32 %v146, %v399
    %v401 = vpop.f32.mrb[0].mxu0
    %v402 = vadd.f32 %v142, %v401
    %v403 = vpop.f32.mrb[0].mxu0
    %v404 = vadd.f32 %v146, %v403
    %405 = vmatprep.mubr.bf16.mxu0 0
    %406 = vmatmul.mubr.bf16.gmra.mrb[0].mxu0 %v178
    %v407 = vpop.f32.mrb[0].mxu0
    %v408 = vadd.f32 %v142, %v407
    %v409 = vpop.f32.mrb[0].mxu0
    %v410 = vadd.f32 %v146, %v409
    %v411 = vpop.f32.mrb[0].mxu0
    %v412 = vadd.f32 %v142, %v411
    %v413 = vpop.f32.mrb[0].mxu0
    %v414 = vadd.f32 %v146, %v413
    %415 = vdwg.mxu0
    %416 = vmatprep.subr.bf16.mxu0 %v282
    %417 = vmatpush1.bf16.msra.mxu0 %v281
    %418 = vmatprep.subr.bf16.mxu0 %v286
    %419 = vmatpush1.bf16.msra.mxu0 %v285
    %420 = vmatprep.subr.bf16.mxu0 %v290
    %421 = vmatpush1.bf16.msra.mxu0 %v289
    %422 = vmatprep.subr.bf16.mxu0 %v294
    %423 = vmatpush1.bf16.msra.mxu0 %v293
    %424 = vmatprep.subr.bf16.mxu0 %v298
    %425 = vmatpush1.bf16.msra.mxu0 %v297
    %426 = vmatprep.subr.bf16.mxu0 %v302
    %427 = vmatpush1.bf16.msra.mxu0 %v301
    %428 = vmatprep.subr.bf16.mxu0 %v306
    %429 = vmatpush1.bf16.msra.mxu0 %v305
    %430 = vmatprep.subr.bf16.mxu0 %v310
    %431 = vmatpush1.bf16.msra.mxu0 %v309
    %432 = vmatprep.subr.bf16.mxu0 0
    %433 = vmatpush1.bf16.msra.mxu0 0
    %434 = vmatprep.subr.bf16.mxu0 0
    %435 = vmatpush1.bf16.msra.mxu0 0
    %436 = vmatprep.subr.bf16.mxu0 0
    %437 = vmatpush1.bf16.msra.mxu0 0
    %438 = vmatprep.subr.bf16.mxu0 0
    %439 = vmatpush1.bf16.msra.mxu0 0
    %440 = vmatprep.subr.bf16.mxu0 0
    %441 = vmatpush1.bf16.msra.mxu0 0
    %442 = vmatprep.subr.bf16.mxu0 0
    %443 = vmatpush1.bf16.msra.mxu0 0
    %444 = vmatprep.subr.bf16.mxu0 0
    %445 = vmatpush1.bf16.msra.mxu0 0
    %446 = vmatprep.subr.bf16.mxu0 0
    %447 = vmatpush1.bf16.msra.mxu0 0
    %448 = vmatprep.mubr.bf16.mxu0 0
    %449 = vmatmul.mubr.bf16.gmra.mrb[0].mxu0 %v175
    %v450 = vpop.f32.mrb[0].mxu0
    %v451 = vadd.f32 %v150, %v450
    %v452 = vpop.f32.mrb[0].mxu0
    %v453 = vadd.f32 %v154, %v452
    %v454 = vpop.f32.mrb[0].mxu0
    %v455 = vadd.f32 %v150, %v454
    %v456 = vpop.f32.mrb[0].mxu0
    %v457 = vadd.f32 %v154, %v456
    %458 = vmatprep.mubr.bf16.mxu0 0
    %459 = vmatmul.mubr.bf16.gmra.mrb[0].mxu0 %v176
    %v460 = vpop.f32.mrb[0].mxu0
    %v461 = vadd.f32 %v150, %v460
    %v462 = vpop.f32.mrb[0].mxu0
    %v463 = vadd.f32 %v154, %v462
    %v464 = vpop.f32.mrb[0].mxu0
    %v465 = vadd.f32 %v150, %v464
    %v466 = vpop.f32.mrb[0].mxu0
    %v467 = vadd.f32 %v154, %v466
    %468 = vmatprep.mubr.bf16.mxu0 0
    %469 = vmatmul.mubr.bf16.gmra.mrb[0].mxu0 %v177
    %v470 = vpop.f32.mrb[0].mxu0
    %v471 = vadd.f32 %v150, %v470
    %v472 = vpop.f32.mrb[0].mxu0
    %v473 = vadd.f32 %v154, %v472
    %v474 = vpop.f32.mrb[0].mxu0
    %v475 = vadd.f32 %v150, %v474
    %v476 = vpop.f32.mrb[0].mxu0
    %v477 = vadd.f32 %v154, %v476
    %478 = vmatprep.mubr.bf16.mxu0 0
    %479 = vmatmul.mubr.bf16.gmra.mrb[0].mxu0 %v178
    %v480 = vpop.f32.mrb[0].mxu0
    %v481 = vadd.f32 %v150, %v480
    %v482 = vpop.f32.mrb[0].mxu0
    %v483 = vadd.f32 %v154, %v482
    %v484 = vpop.f32.mrb[0].mxu0
    %v485 = vadd.f32 %v150, %v484
    %v486 = vpop.f32.mrb[0].mxu0
    %v487 = vadd.f32 %v154, %v486
    %488 = vdwg.mxu0
    %v521 = vunpack.c.l.b16 %v97
    %v522 = vunpack.c.h.b16 %v97
    %v523 = vunpack.c.l.b16 %v98
    %v524 = vunpack.c.h.b16 %v98
    %v525 = vunpack.c.l.b16 %v99
    %v526 = vunpack.c.h.b16 %v99
    %v527 = vunpack.c.l.b16 %v100
    %v528 = vunpack.c.h.b16 %v100
    %v529 = vunpack.c.l.b16 %v101
    %v530 = vunpack.c.h.b16 %v101
    %v531 = vunpack.c.l.b16 %v102
    %v532 = vunpack.c.h.b16 %v102
    %v533 = vunpack.c.l.b16 %v103
    %v534 = vunpack.c.h.b16 %v103
    %v535 = vunpack.c.l.b16 %v104
    %v536 = vunpack.c.h.b16 %v104
    %v537 = vunpack.c.l.b16 %v105
    %v538 = vunpack.c.h.b16 %v105
    %v539 = vunpack.c.l.b16 %v106
    %v540 = vunpack.c.h.b16 %v106
    %v541 = vunpack.c.l.b16 %v107
    %v542 = vunpack.c.h.b16 %v107
    %v543 = vunpack.c.l.b16 %v108
    %v544 = vunpack.c.h.b16 %v108
    %v545 = vunpack.c.l.b16 %v109
    %v546 = vunpack.c.h.b16 %v109
    %v547 = vunpack.c.l.b16 %v110
    %v548 = vunpack.c.h.b16 %v110
    %v549 = vunpack.c.l.b16 %v111
    %v550 = vunpack.c.h.b16 %v111
    %v551 = vunpack.c.l.b16 %v112
    %v552 = vunpack.c.h.b16 %v112
    %v553 = vunpack.c.l.b16 %v113
    %v554 = vunpack.c.h.b16 %v113
    %v555 = vunpack.c.l.b16 %v114
    %v556 = vunpack.c.h.b16 %v114
    %v557 = vunpack.c.l.b16 %v115
    %v558 = vunpack.c.h.b16 %v115
    %v559 = vunpack.c.l.b16 %v116
    %v560 = vunpack.c.h.b16 %v116
    %v561 = vunpack.c.l.b16 %v117
    %v562 = vunpack.c.h.b16 %v117
    %v563 = vunpack.c.l.b16 %v118
    %v564 = vunpack.c.h.b16 %v118
    %v565 = vunpack.c.l.b16 %v119
    %v566 = vunpack.c.h.b16 %v119
    %v567 = vunpack.c.l.b16 %v120
    %v568 = vunpack.c.h.b16 %v120
    %v569 = vunpack.c.l.b16 %v121
    %v570 = vunpack.c.h.b16 %v121
    %v571 = vunpack.c.l.b16 %v122
    %v572 = vunpack.c.h.b16 %v122
    %v573 = vunpack.c.l.b16 %v123
    %v574 = vunpack.c.h.b16 %v123
    %v575 = vunpack.c.l.b16 %v124
    %v576 = vunpack.c.h.b16 %v124
    %v577 = vunpack.c.l.b16 %v125
    %v578 = vunpack.c.h.b16 %v125
    %v579 = vunpack.c.l.b16 %v126
    %v580 = vunpack.c.h.b16 %v126
    %v581 = vunpack.c.l.b16 %v127
    %v582 = vunpack.c.h.b16 %v127
    %v583 = vunpack.c.l.b16 %v128
    %v584 = vunpack.c.h.b16 %v128
    %v585 = vpack.c.b16 %v525, %v521
    %v586 = vpack.c.b16 %v526, %v522
    %v587 = vpack.c.b16 %v527, %v523
    %v588 = vpack.c.b16 %v528, %v524
    %v589 = vpack.c.b16 %v533, %v529
    %v590 = vpack.c.b16 %v534, %v530
    %v591 = vpack.c.b16 %v535, %v531
    %v592 = vpack.c.b16 %v536, %v532
    %v593 = vpack.c.b16 %v541, %v537
    %v594 = vpack.c.b16 %v542, %v538
    %v595 = vpack.c.b16 %v543, %v539
    %v596 = vpack.c.b16 %v544, %v540
    %v597 = vpack.c.b16 %v549, %v545
    %v598 = vpack.c.b16 %v550, %v546
    %v599 = vpack.c.b16 %v551, %v547
    %v600 = vpack.c.b16 %v552, %v548
    %v601 = vpack.c.b16 %v557, %v553
    %v602 = vpack.c.b16 %v558, %v554
    %v603 = vpack.c.b16 %v559, %v555
    %v604 = vpack.c.b16 %v560, %v556
    %v605 = vpack.c.b16 %v565, %v561
    %v606 = vpack.c.b16 %v566, %v562
    %v607 = vpack.c.b16 %v567, %v563
    %v608 = vpack.c.b16 %v568, %v564
    %v609 = vpack.c.b16 %v573, %v569
    %v610 = vpack.c.b16 %v574, %v570
    %v611 = vpack.c.b16 %v575, %v571
    %v612 = vpack.c.b16 %v576, %v572
    %v613 = vpack.c.b16 %v581, %v577
    %v614 = vpack.c.b16 %v582, %v578
    %v615 = vpack.c.b16 %v583, %v579
    %v616 = vpack.c.b16 %v584, %v580
    %649 = vmatprep.subr.bf16.mxu0 %v586
    %650 = vmatpush1.bf16.msra.mxu0 %v585
    %651 = vmatprep.subr.bf16.mxu0 %v590
    %652 = vmatpush1.bf16.msra.mxu0 %v589
    %653 = vmatprep.subr.bf16.mxu0 %v594
    %654 = vmatpush1.bf16.msra.mxu0 %v593
    %655 = vmatprep.subr.bf16.mxu0 %v598
    %656 = vmatpush1.bf16.msra.mxu0 %v597
    %657 = vmatprep.subr.bf16.mxu0 %v602
    %658 = vmatpush1.bf16.msra.mxu0 %v601
    %659 = vmatprep.subr.bf16.mxu0 %v606
    %660 = vmatpush1.bf16.msra.mxu0 %v605
    %661 = vmatprep.subr.bf16.mxu0 %v610
    %662 = vmatpush1.bf16.msra.mxu0 %v609
    %663 = vmatprep.subr.bf16.mxu0 %v614
    %664 = vmatpush1.bf16.msra.mxu0 %v613
    %665 = vmatprep.subr.bf16.mxu0 0
    %666 = vmatpush1.bf16.msra.mxu0 0
    %667 = vmatprep.subr.bf16.mxu0 0
    %668 = vmatpush1.bf16.msra.mxu0 0
    %669 = vmatprep.subr.bf16.mxu0 0
    %670 = vmatpush1.bf16.msra.mxu0 0
    %671 = vmatprep.subr.bf16.mxu0 0
    %672 = vmatpush1.bf16.msra.mxu0 0
    %673 = vmatprep.subr.bf16.mxu0 0
    %674 = vmatpush1.bf16.msra.mxu0 0
    %675 = vmatprep.subr.bf16.mxu0 0
    %676 = vmatpush1.bf16.msra.mxu0 0
    %677 = vmatprep.subr.bf16.mxu0 0
    %678 = vmatpush1.bf16.msra.mxu0 0
    %679 = vmatprep.subr.bf16.mxu0 0
    %680 = vmatpush1.bf16.msra.mxu0 0
    %681 = vmatprep.mubr.bf16.mxu0 0
    %682 = vmatmul.mubr.bf16.gmra.mrb[0].mxu0 0
    %v683 = vpop.f32.mrb[0].mxu0
    %v684 = vadd.f32 0.0, %v683
    %v685 = vpop.f32.mrb[0].mxu0
    %v686 = vadd.f32 0.0, %v685
    %v687 = vpop.f32.mrb[0].mxu0
    %v688 = vpop.f32.mrb[0].mxu0
    %689 = vdwg.mxu0
    %690 = vmatprep.subr.bf16.mxu0 %v588
    %691 = vmatpush1.bf16.msra.mxu0 %v587
    %692 = vmatprep.subr.bf16.mxu0 %v592
    %693 = vmatpush1.bf16.msra.mxu0 %v591
    %694 = vmatprep.subr.bf16.mxu0 %v596
    %695 = vmatpush1.bf16.msra.mxu0 %v595
    %696 = vmatprep.subr.bf16.mxu0 %v600
    %697 = vmatpush1.bf16.msra.mxu0 %v599
    %698 = vmatprep.subr.bf16.mxu0 %v604
    %699 = vmatpush1.bf16.msra.mxu0 %v603
    %700 = vmatprep.subr.bf16.mxu0 %v608
    %701 = vmatpush1.bf16.msra.mxu0 %v607
    %702 = vmatprep.subr.bf16.mxu0 %v612
    %703 = vmatpush1.bf16.msra.mxu0 %v611
    %704 = vmatprep.subr.bf16.mxu0 %v616
    %705 = vmatpush1.bf16.msra.mxu0 %v615
    %706 = vmatprep.subr.bf16.mxu0 0
    %707 = vmatpush1.bf16.msra.mxu0 0
    %708 = vmatprep.subr.bf16.mxu0 0
    %709 = vmatpush1.bf16.msra.mxu0 0
    %710 = vmatprep.subr.bf16.mxu0 0
    %711 = vmatpush1.bf16.msra.mxu0 0
    %712 = vmatprep.subr.bf16.mxu0 0
    %713 = vmatpush1.bf16.msra.mxu0 0
    %714 = vmatprep.subr.bf16.mxu0 0
    %715 = vmatpush1.bf16.msra.mxu0 0
    %716 = vmatprep.subr.bf16.mxu0 0
    %717 = vmatpush1.bf16.msra.mxu0 0
    %718 = vmatprep.subr.bf16.mxu0 0
    %719 = vmatpush1.bf16.msra.mxu0 0
    %720 = vmatprep.subr.bf16.mxu0 0
    %721 = vmatpush1.bf16.msra.mxu0 0
    %722 = vmatprep.mubr.bf16.mxu0 0
    %723 = vmatmul.mubr.bf16.gmra.mrb[0].mxu0 0
    %v724 = vpop.f32.mrb[0].mxu0
    %v725 = vadd.f32 0.0, %v724
    %v726 = vpop.f32.mrb[0].mxu0
    %v727 = vadd.f32 0.0, %v726
    %v728 = vpop.f32.mrb[0].mxu0
    %v729 = vpop.f32.mrb[0].mxu0
    %730 = vdwg.mxu0
    %v731 = vadd.f32 %v378, %v684
    %v732 = vadd.f32 %v380, %v686
    %v733 = vadd.f32 %v451, %v725
    %v734 = vadd.f32 %v453, %v727
    %v735 = vmul.f32 %v731, 0.5
    %v736 = vmul.f32 %v732, 0.5
    %v737 = vmul.f32 %v733, 0.5
    %v738 = vtanh.pop %v735
    %v739 = vtanh.pop %v736
    %v740 = vtanh.pop %v737
    %v741 = vmul.f32 %v738, 0.5
    %v742 = vmul.f32 %v739, 0.5
    %v743 = vmul.f32 %v740, 0.5
    %v744 = vadd.f32 %v741, 0.5
    %v745 = vadd.f32 %v742, 0.5
    %v746 = vadd.f32 %v743, 0.5
    %v747 = vtanh.pop %v734
    %v748 = vmul.f32 %v745, 0.0
    %v749 = vmul.f32 %v744, %v747
    %v750 = vadd.f32 %v748, %v749
    %v751 = vtanh.pop %v750
    %v752 = vmul.f32 %v746, %v751
    %v753 = vpack.c.bf16 %v752, %v752
    %754 = vst [vmem:[#allocation2] sm:$0xf] %v753
    %755 = vmatprep.subr.bf16.mxu0 %v586
    %756 = vmatpush1.bf16.msra.mxu0 %v585
    %757 = vmatprep.subr.bf16.mxu0 %v590
    %758 = vmatpush1.bf16.msra.mxu0 %v589
    %759 = vmatprep.subr.bf16.mxu0 %v594
    %760 = vmatpush1.bf16.msra.mxu0 %v593
    %761 = vmatprep.subr.bf16.mxu0 %v598
    %762 = vmatpush1.bf16.msra.mxu0 %v597
    %763 = vmatprep.subr.bf16.mxu0 %v602
    %764 = vmatpush1.bf16.msra.mxu0 %v601
    %765 = vmatprep.subr.bf16.mxu0 %v606
    %766 = vmatpush1.bf16.msra.mxu0 %v605
    %767 = vmatprep.subr.bf16.mxu0 %v610
    %768 = vmatpush1.bf16.msra.mxu0 %v609
    %769 = vmatprep.subr.bf16.mxu0 %v614
    %770 = vmatpush1.bf16.msra.mxu0 %v613
    %771 = vmatprep.subr.bf16.mxu0 0
    %772 = vmatpush1.bf16.msra.mxu0 0
    %773 = vmatprep.subr.bf16.mxu0 0
    %774 = vmatpush1.bf16.msra.mxu0 0
    %775 = vmatprep.subr.bf16.mxu0 0
    %776 = vmatpush1.bf16.msra.mxu0 0
    %777 = vmatprep.subr.bf16.mxu0 0
    %778 = vmatpush1.bf16.msra.mxu0 0
    %779 = vmatprep.subr.bf16.mxu0 0
    %780 = vmatpush1.bf16.msra.mxu0 0
    %781 = vmatprep.subr.bf16.mxu0 0
    %782 = vmatpush1.bf16.msra.mxu0 0
    %783 = vmatprep.subr.bf16.mxu0 0
    %784 = vmatpush1.bf16.msra.mxu0 0
    %785 = vmatprep.subr.bf16.mxu0 0
    %786 = vmatpush1.bf16.msra.mxu0 0
    %787 = vmatprep.mubr.bf16.mxu0 0
    %788 = vmatmul.mubr.bf16.gmra.mrb[0].mxu0 %v753
    %v789 = vpop.f32.mrb[0].mxu0
    %v790 = vadd.f32 0.0, %v789
    %v791 = vpop.f32.mrb[0].mxu0
    %v792 = vadd.f32 0.0, %v791
    %v793 = vpop.f32.mrb[0].mxu0
    %v794 = vpop.f32.mrb[0].mxu0
    %795 = vdwg.mxu0
    %796 = vmatprep.subr.bf16.mxu0 %v588
    %797 = vmatpush1.bf16.msra.mxu0 %v587
    %798 = vmatprep.subr.bf16.mxu0 %v592
    %799 = vmatpush1.bf16.msra.mxu0 %v591
    %800 = vmatprep.subr.bf16.mxu0 %v596
    %801 = vmatpush1.bf16.msra.mxu0 %v595
    %802 = vmatprep.subr.bf16.mxu0 %v600
    %803 = vmatpush1.bf16.msra.mxu0 %v599
    %804 = vmatprep.subr.bf16.mxu0 %v604
    %805 = vmatpush1.bf16.msra.mxu0 %v603
    %806 = vmatprep.subr.bf16.mxu0 %v608
    %807 = vmatpush1.bf16.msra.mxu0 %v607
    %808 = vmatprep.subr.bf16.mxu0 %v612
    %809 = vmatpush1.bf16.msra.mxu0 %v611
    %810 = vmatprep.subr.bf16.mxu0 %v616
    %811 = vmatpush1.bf16.msra.mxu0 %v615
    %812 = vmatprep.subr.bf16.mxu0 0
    %813 = vmatpush1.bf16.msra.mxu0 0
    %814 = vmatprep.subr.bf16.mxu0 0
    %815 = vmatpush1.bf16.msra.mxu0 0
    %816 = vmatprep.subr.bf16.mxu0 0
    %817 = vmatpush1.bf16.msra.mxu0 0
    %818 = vmatprep.subr.bf16.mxu0 0
    %819 = vmatpush1.bf16.msra.mxu0 0
    %820 = vmatprep.subr.bf16.mxu0 0
    %821 = vmatpush1.bf16.msra.mxu0 0
    %822 = vmatprep.subr.bf16.mxu0 0
    %823 = vmatpush1.bf16.msra.mxu0 0
    %824 = vmatprep.subr.bf16.mxu0 0
    %825 = vmatpush1.bf16.msra.mxu0 0
    %826 = vmatprep.subr.bf16.mxu0 0
    %827 = vmatpush1.bf16.msra.mxu0 0
    %828 = vmatprep.mubr.bf16.mxu0 0
    %829 = vmatmul.mubr.bf16.gmra.mrb[0].mxu0 %v753
    %v830 = vpop.f32.mrb[0].mxu0
    %v831 = vadd.f32 0.0, %v830
    %v832 = vpop.f32.mrb[0].mxu0
    %v833 = vadd.f32 0.0, %v832
    %v834 = vpop.f32.mrb[0].mxu0
    %v835 = vpop.f32.mrb[0].mxu0
    %836 = vdwg.mxu0
    %v837 = vadd.f32 %v382, %v790
    %v838 = vadd.f32 %v384, %v792
    %v839 = vadd.f32 %v455, %v831
    %v840 = vadd.f32 %v457, %v833
    %v841 = vmul.f32 %v837, 0.5
    %v842 = vmul.f32 %v838, 0.5
    %v843 = vmul.f32 %v839, 0.5
    %v844 = vtanh.pop %v841
    %v845 = vtanh.pop %v842
    %v846 = vtanh.pop %v843
    %v847 = vmul.f32 %v844, 0.5
    %v848 = vmul.f32 %v845, 0.5
    %v849 = vmul.f32 %v846, 0.5
    %v850 = vadd.f32 %v847, 0.5
    %v851 = vadd.f32 %v848, 0.5
    %v852 = vadd.f32 %v849, 0.5
    %v853 = vtanh.pop %v840
    %v854 = vmul.f32 %v851, %v750
    %v855 = vmul.f32 %v850, %v853
    %v856 = vadd.f32 %v854, %v855
    %v857 = vtanh.pop %v856
    %v858 = vmul.f32 %v852, %v857
    %v859 = vpack.c.bf16 %v858, %v858
    %s860 = scalar_lea.vmem [#allocation2], 4
    %861 = vst [vmem:[%s860] sm:$0xf] %v859
    %862 = vmatprep.subr.bf16.mxu0 %v586
    %863 = vmatpush1.bf16.msra.mxu0 %v585
    %864 = vmatprep.subr.bf16.mxu0 %v590
    %865 = vmatpush1.bf16.msra.mxu0 %v589
    %866 = vmatprep.subr.bf16.mxu0 %v594
    %867 = vmatpush1.bf16.msra.mxu0 %v593
    %868 = vmatprep.subr.bf16.mxu0 %v598
    %869 = vmatpush1.bf16.msra.mxu0 %v597
    %870 = vmatprep.subr.bf16.mxu0 %v602
    %871 = vmatpush1.bf16.msra.mxu0 %v601
    %872 = vmatprep.subr.bf16.mxu0 %v606
    %873 = vmatpush1.bf16.msra.mxu0 %v605
    %874 = vmatprep.subr.bf16.mxu0 %v610
    %875 = vmatpush1.bf16.msra.mxu0 %v609
    %876 = vmatprep.subr.bf16.mxu0 %v614
    %877 = vmatpush1.bf16.msra.mxu0 %v613
    %878 = vmatprep.subr.bf16.mxu0 0
    %879 = vmatpush1.bf16.msra.mxu0 0
    %880 = vmatprep.subr.bf16.mxu0 0
    %881 = vmatpush1.bf16.msra.mxu0 0
    %882 = vmatprep.subr.bf16.mxu0 0
    %883 = vmatpush1.bf16.msra.mxu0 0
    %884 = vmatprep.subr.bf16.mxu0 0
    %885 = vmatpush1.bf16.msra.mxu0 0
    %886 = vmatprep.subr.bf16.mxu0 0
    %887 = vmatpush1.bf16.msra.mxu0 0
    %888 = vmatprep.subr.bf16.mxu0 0
    %889 = vmatpush1.bf16.msra.mxu0 0
    %890 = vmatprep.subr.bf16.mxu0 0
    %891 = vmatpush1.bf16.msra.mxu0 0
    %892 = vmatprep.subr.bf16.mxu0 0
    %893 = vmatpush1.bf16.msra.mxu0 0
    %894 = vmatprep.mubr.bf16.mxu0 0
    %895 = vmatmul.mubr.bf16.gmra.mrb[0].mxu0 %v859
    %v896 = vpop.f32.mrb[0].mxu0
    %v897 = vadd.f32 0.0, %v896
    %v898 = vpop.f32.mrb[0].mxu0
    %v899 = vadd.f32 0.0, %v898
    %v900 = vpop.f32.mrb[0].mxu0
    %v901 = vpop.f32.mrb[0].mxu0
    %902 = vdwg.mxu0
    %903 = vmatprep.subr.bf16.mxu0 %v588
    %904 = vmatpush1.bf16.msra.mxu0 %v587
    %905 = vmatprep.subr.bf16.mxu0 %v592
    %906 = vmatpush1.bf16.msra.mxu0 %v591
    %907 = vmatprep.subr.bf16.mxu0 %v596
    %908 = vmatpush1.bf16.msra.mxu0 %v595
    %909 = vmatprep.subr.bf16.mxu0 %v600
    %910 = vmatpush1.bf16.msra.mxu0 %v599
    %911 = vmatprep.subr.bf16.mxu0 %v604
    %912 = vmatpush1.bf16.msra.mxu0 %v603
    %913 = vmatprep.subr.bf16.mxu0 %v608
    %914 = vmatpush1.bf16.msra.mxu0 %v607
    %915 = vmatprep.subr.bf16.mxu0 %v612
    %916 = vmatpush1.bf16.msra.mxu0 %v611
    %917 = vmatprep.subr.bf16.mxu0 %v616
    %918 = vmatpush1.bf16.msra.mxu0 %v615
    %919 = vmatprep.subr.bf16.mxu0 0
    %920 = vmatpush1.bf16.msra.mxu0 0
    %921 = vmatprep.subr.bf16.mxu0 0
    %922 = vmatpush1.bf16.msra.mxu0 0
    %923 = vmatprep.subr.bf16.mxu0 0
    %924 = vmatpush1.bf16.msra.mxu0 0
    %925 = vmatprep.subr.bf16.mxu0 0
    %926 = vmatpush1.bf16.msra.mxu0 0
    %927 = vmatprep.subr.bf16.mxu0 0
    %928 = vmatpush1.bf16.msra.mxu0 0
    %929 = vmatprep.subr.bf16.mxu0 0
    %930 = vmatpush1.bf16.msra.mxu0 0
    %931 = vmatprep.subr.bf16.mxu0 0
    %932 = vmatpush1.bf16.msra.mxu0 0
    %933 = vmatprep.subr.bf16.mxu0 0
    %934 = vmatpush1.bf16.msra.mxu0 0
    %935 = vmatprep.mubr.bf16.mxu0 0
    %936 = vmatmul.mubr.bf16.gmra.mrb[0].mxu0 %v859
    %v937 = vpop.f32.mrb[0].mxu0
    %v938 = vadd.f32 0.0, %v937
    %v939 = vpop.f32.mrb[0].mxu0
    %v940 = vadd.f32 0.0, %v939
    %v941 = vpop.f32.mrb[0].mxu0
    %v942 = vpop.f32.mrb[0].mxu0
    %943 = vdwg.mxu0
    %v944 = vadd.f32 %v388, %v897
    %v945 = vadd.f32 %v390, %v899
    %v946 = vadd.f32 %v461, %v938
    %v947 = vadd.f32 %v463, %v940
    %v948 = vmul.f32 %v944, 0.5
    %v949 = vmul.f32 %v945, 0.5
    %v950 = vmul.f32 %v946, 0.5
    %v951 = vtanh.pop %v948
    %v952 = vtanh.pop %v949
    %v953 = vtanh.pop %v950
    %v954 = vmul.f32 %v951, 0.5
    %v955 = vmul.f32 %v952, 0.5
    %v956 = vmul.f32 %v953, 0.5
    %v957 = vadd.f32 %v954, 0.5
    %v958 = vadd.f32 %v955, 0.5
    %v959 = vadd.f32 %v956, 0.5
    %v960 = vtanh.pop %v947
    %v961 = vmul.f32 %v958, %v856
    %v962 = vmul.f32 %v957, %v960
    %v963 = vadd.f32 %v961, %v962
    %v964 = vtanh.pop %v963
    %v965 = vmul.f32 %v959, %v964
    %v966 = vpack.c.bf16 %v965, %v965
    %s967 = scalar_lea.vmem [#allocation2], 8
    %968 = vst [vmem:[%s967] sm:$0xf] %v966
    %969 = vmatprep.subr.bf16.mxu0 %v586
    %970 = vmatpush1.bf16.msra.mxu0 %v585
    %971 = vmatprep.subr.bf16.mxu0 %v590
    %972 = vmatpush1.bf16.msra.mxu0 %v589
    %973 = vmatprep.subr.bf16.mxu0 %v594
    %974 = vmatpush1.bf16.msra.mxu0 %v593
    %975 = vmatprep.subr.bf16.mxu0 %v598
    %976 = vmatpush1.bf16.msra.mxu0 %v597
    %977 = vmatprep.subr.bf16.mxu0 %v602
    %978 = vmatpush1.bf16.msra.mxu0 %v601
    %979 = vmatprep.subr.bf16.mxu0 %v606
    %980 = vmatpush1.bf16.msra.mxu0 %v605
    %981 = vmatprep.subr.bf16.mxu0 %v610
    %982 = vmatpush1.bf16.msra.mxu0 %v609
    %983 = vmatprep.subr.bf16.mxu0 %v614
    %984 = vmatpush1.bf16.msra.mxu0 %v613
    %985 = vmatprep.subr.bf16.mxu0 0
    %986 = vmatpush1.bf16.msra.mxu0 0
    %987 = vmatprep.subr.bf16.mxu0 0
    %988 = vmatpush1.bf16.msra.mxu0 0
    %989 = vmatprep.subr.bf16.mxu0 0
    %990 = vmatpush1.bf16.msra.mxu0 0
    %991 = vmatprep.subr.bf16.mxu0 0
    %992 = vmatpush1.bf16.msra.mxu0 0
    %993 = vmatprep.subr.bf16.mxu0 0
    %994 = vmatpush1.bf16.msra.mxu0 0
    %995 = vmatprep.subr.bf16.mxu0 0
    %996 = vmatpush1.bf16.msra.mxu0 0
    %997 = vmatprep.subr.bf16.mxu0 0
    %998 = vmatpush1.bf16.msra.mxu0 0
    %999 = vmatprep.subr.bf16.mxu0 0
    %1000 = vmatpush1.bf16.msra.mxu0 0
    %1001 = vmatprep.mubr.bf16.mxu0 0
    %1002 = vmatmul.mubr.bf16.gmra.mrb[0].mxu0 %v966
    %v1003 = vpop.f32.mrb[0].mxu0
    %v1004 = vadd.f32 0.0, %v1003
    %v1005 = vpop.f32.mrb[0].mxu0
    %v1006 = vadd.f32 0.0, %v1005
    %v1007 = vpop.f32.mrb[0].mxu0
    %v1008 = vpop.f32.mrb[0].mxu0
    %1009 = vdwg.mxu0
    %1010 = vmatprep.subr.bf16.mxu0 %v588
    %1011 = vmatpush1.bf16.msra.mxu0 %v587
    %1012 = vmatprep.subr.bf16.mxu0 %v592
    %1013 = vmatpush1.bf16.msra.mxu0 %v591
    %1014 = vmatprep.subr.bf16.mxu0 %v596
    %1015 = vmatpush1.bf16.msra.mxu0 %v595
    %1016 = vmatprep.subr.bf16.mxu0 %v600
    %1017 = vmatpush1.bf16.msra.mxu0 %v599
    %1018 = vmatprep.subr.bf16.mxu0 %v604
    %1019 = vmatpush1.bf16.msra.mxu0 %v603
    %1020 = vmatprep.subr.bf16.mxu0 %v608
    %1021 = vmatpush1.bf16.msra.mxu0 %v607
    %1022 = vmatprep.subr.bf16.mxu0 %v612
    %1023 = vmatpush1.bf16.msra.mxu0 %v611
    %1024 = vmatprep.subr.bf16.mxu0 %v616
    %1025 = vmatpush1.bf16.msra.mxu0 %v615
    %1026 = vmatprep.subr.bf16.mxu0 0
    %1027 = vmatpush1.bf16.msra.mxu0 0
    %1028 = vmatprep.subr.bf16.mxu0 0
    %1029 = vmatpush1.bf16.msra.mxu0 0
    %1030 = vmatprep.subr.bf16.mxu0 0
    %1031 = vmatpush1.bf16.msra.mxu0 0
    %1032 = vmatprep.subr.bf16.mxu0 0
    %1033 = vmatpush1.bf16.msra.mxu0 0
    %1034 = vmatprep.subr.bf16.mxu0 0
    %1035 = vmatpush1.bf16.msra.mxu0 0
    %1036 = vmatprep.subr.bf16.mxu0 0
    %1037 = vmatpush1.bf16.msra.mxu0 0
    %1038 = vmatprep.subr.bf16.mxu0 0
    %1039 = vmatpush1.bf16.msra.mxu0 0
    %1040 = vmatprep.subr.bf16.mxu0 0
    %1041 = vmatpush1.bf16.msra.mxu0 0
    %1042 = vmatprep.mubr.bf16.mxu0 0
    %1043 = vmatmul.mubr.bf16.gmra.mrb[0].mxu0 %v966
    %v1044 = vpop.f32.mrb[0].mxu0
    %v1045 = vadd.f32 0.0, %v1044
    %v1046 = vpop.f32.mrb[0].mxu0
    %v1047 = vadd.f32 0.0, %v1046
    %v1048 = vpop.f32.mrb[0].mxu0
    %v1049 = vpop.f32.mrb[0].mxu0
    %1050 = vdwg.mxu0
    %v1051 = vadd.f32 %v392, %v1004
    %v1052 = vadd.f32 %v394, %v1006
    %v1053 = vadd.f32 %v465, %v1045
    %v1054 = vadd.f32 %v467, %v1047
    %v1055 = vmul.f32 %v1051, 0.5
    %v1056 = vmul.f32 %v1052, 0.5
    %v1057 = vmul.f32 %v1053, 0.5
    %v1058 = vtanh.pop %v1055
    %v1059 = vtanh.pop %v1056
    %v1060 = vtanh.pop %v1057
    %v1061 = vmul.f32 %v1058, 0.5
    %v1062 = vmul.f32 %v1059, 0.5
    %v1063 = vmul.f32 %v1060, 0.5
    %v1064 = vadd.f32 %v1061, 0.5
    %v1065 = vadd.f32 %v1062, 0.5
    %v1066 = vadd.f32 %v1063, 0.5
    %v1067 = vtanh.pop %v1054
    %v1068 = vmul.f32 %v1065, %v963
    %v1069 = vmul.f32 %v1064, %v1067
    %v1070 = vadd.f32 %v1068, %v1069
    %v1071 = vtanh.pop %v1070
    %v1072 = vmul.f32 %v1066, %v1071
    %v1073 = vpack.c.bf16 %v1072, %v1072
    %s1074 = scalar_lea.vmem [#allocation2], 12
    %1075 = vst [vmem:[%s1074] sm:$0xf] %v1073
    %1076 = vmatprep.subr.bf16.mxu0 %v586
    %1077 = vmatpush1.bf16.msra.mxu0 %v585
    %1078 = vmatprep.subr.bf16.mxu0 %v590
    %1079 = vmatpush1.bf16.msra.mxu0 %v589
    %1080 = vmatprep.subr.bf16.mxu0 %v594
    %1081 = vmatpush1.bf16.msra.mxu0 %v593
    %1082 = vmatprep.subr.bf16.mxu0 %v598
    %1083 = vmatpush1.bf16.msra.mxu0 %v597
    %1084 = vmatprep.subr.bf16.mxu0 %v602
    %1085 = vmatpush1.bf16.msra.mxu0 %v601
    %1086 = vmatprep.subr.bf16.mxu0 %v606
    %1087 = vmatpush1.bf16.msra.mxu0 %v605
    %1088 = vmatprep.subr.bf16.mxu0 %v610
    %1089 = vmatpush1.bf16.msra.mxu0 %v609
    %1090 = vmatprep.subr.bf16.mxu0 %v614
    %1091 = vmatpush1.bf16.msra.mxu0 %v613
    %1092 = vmatprep.subr.bf16.mxu0 0
    %1093 = vmatpush1.bf16.msra.mxu0 0
    %1094 = vmatprep.subr.bf16.mxu0 0
    %1095 = vmatpush1.bf16.msra.mxu0 0
    %1096 = vmatprep.subr.bf16.mxu0 0
    %1097 = vmatpush1.bf16.msra.mxu0 0
    %1098 = vmatprep.subr.bf16.mxu0 0
    %1099 = vmatpush1.bf16.msra.mxu0 0
    %1100 = vmatprep.subr.bf16.mxu0 0
    %1101 = vmatpush1.bf16.msra.mxu0 0
    %1102 = vmatprep.subr.bf16.mxu0 0
    %1103 = vmatpush1.bf16.msra.mxu0 0
    %1104 = vmatprep.subr.bf16.mxu0 0
    %1105 = vmatpush1.bf16.msra.mxu0 0
    %1106 = vmatprep.subr.bf16.mxu0 0
    %1107 = vmatpush1.bf16.msra.mxu0 0
    %1108 = vmatprep.mubr.bf16.mxu0 0
    %1109 = vmatmul.mubr.bf16.gmra.mrb[0].mxu0 %v1073
    %v1110 = vpop.f32.mrb[0].mxu0
    %v1111 = vadd.f32 0.0, %v1110
    %v1112 = vpop.f32.mrb[0].mxu0
    %v1113 = vadd.f32 0.0, %v1112
    %v1114 = vpop.f32.mrb[0].mxu0
    %v1115 = vpop.f32.mrb[0].mxu0
    %1116 = vdwg.mxu0
    %1117 = vmatprep.subr.bf16.mxu0 %v588
    %1118 = vmatpush1.bf16.msra.mxu0 %v587
    %1119 = vmatprep.subr.bf16.mxu0 %v592
    %1120 = vmatpush1.bf16.msra.mxu0 %v591
    %1121 = vmatprep.subr.bf16.mxu0 %v596
    %1122 = vmatpush1.bf16.msra.mxu0 %v595
    %1123 = vmatprep.subr.bf16.mxu0 %v600
    %1124 = vmatpush1.bf16.msra.mxu0 %v599
    %1125 = vmatprep.subr.bf16.mxu0 %v604
    %1126 = vmatpush1.bf16.msra.mxu0 %v603
    %1127 = vmatprep.subr.bf16.mxu0 %v608
    %1128 = vmatpush1.bf16.msra.mxu0 %v607
    %1129 = vmatprep.subr.bf16.mxu0 %v612
    %1130 = vmatpush1.bf16.msra.mxu0 %v611
    %1131 = vmatprep.subr.bf16.mxu0 %v616
    %1132 = vmatpush1.bf16.msra.mxu0 %v615
    %1133 = vmatprep.subr.bf16.mxu0 0
    %1134 = vmatpush1.bf16.msra.mxu0 0
    %1135 = vmatprep.subr.bf16.mxu0 0
    %1136 = vmatpush1.bf16.msra.mxu0 0
    %1137 = vmatprep.subr.bf16.mxu0 0
    %1138 = vmatpush1.bf16.msra.mxu0 0
    %1139 = vmatprep.subr.bf16.mxu0 0
    %1140 = vmatpush1.bf16.msra.mxu0 0
    %1141 = vmatprep.subr.bf16.mxu0 0
    %1142 = vmatpush1.bf16.msra.mxu0 0
    %1143 = vmatprep.subr.bf16.mxu0 0
    %1144 = vmatpush1.bf16.msra.mxu0 0
    %1145 = vmatprep.subr.bf16.mxu0 0
    %1146 = vmatpush1.bf16.msra.mxu0 0
    %1147 = vmatprep.subr.bf16.mxu0 0
    %1148 = vmatpush1.bf16.msra.mxu0 0
    %1149 = vmatprep.mubr.bf16.mxu0 0
    %1150 = vmatmul.mubr.bf16.gmra.mrb[0].mxu0 %v1073
    %v1151 = vpop.f32.mrb[0].mxu0
    %v1152 = vadd.f32 0.0, %v1151
    %v1153 = vpop.f32.mrb[0].mxu0
    %v1154 = vadd.f32 0.0, %v1153
    %v1155 = vpop.f32.mrb[0].mxu0
    %v1156 = vpop.f32.mrb[0].mxu0
    %1157 = vdwg.mxu0
    %v1158 = vadd.f32 %v398, %v1111
    %v1159 = vadd.f32 %v400, %v1113
    %v1160 = vadd.f32 %v471, %v1152
    %v1161 = vadd.f32 %v473, %v1154
    %v1162 = vmul.f32 %v1158, 0.5
    %v1163 = vmul.f32 %v1159, 0.5
    %v1164 = vmul.f32 %v1160, 0.5
    %v1165 = vtanh.pop %v1162
    %v1166 = vtanh.pop %v1163
    %v1167 = vtanh.pop %v1164
    %v1168 = vmul.f32 %v1165, 0.5
    %v1169 = vmul.f32 %v1166, 0.5
    %v1170 = vmul.f32 %v1167, 0.5
    %v1171 = vadd.f32 %v1168, 0.5
    %v1172 = vadd.f32 %v1169, 0.5
    %v1173 = vadd.f32 %v1170, 0.5
    %v1174 = vtanh.pop %v1161
    %v1175 = vmul.f32 %v1172, %v1070
    %v1176 = vmul.f32 %v1171, %v1174
    %v1177 = vadd.f32 %v1175, %v1176
    %v1178 = vtanh.pop %v1177
    %v1179 = vmul.f32 %v1173, %v1178
    %v1180 = vpack.c.bf16 %v1179, %v1179
    %s1181 = scalar_lea.vmem [#allocation2], 16
    %1182 = vst [vmem:[%s1181] sm:$0xf] %v1180
    %1183 = vmatprep.subr.bf16.mxu0 %v586
    %1184 = vmatpush1.bf16.msra.mxu0 %v585
    %1185 = vmatprep.subr.bf16.mxu0 %v590
    %1186 = vmatpush1.bf16.msra.mxu0 %v589
    %1187 = vmatprep.subr.bf16.mxu0 %v594
    %1188 = vmatpush1.bf16.msra.mxu0 %v593
    %1189 = vmatprep.subr.bf16.mxu0 %v598
    %1190 = vmatpush1.bf16.msra.mxu0 %v597
    %1191 = vmatprep.subr.bf16.mxu0 %v602
    %1192 = vmatpush1.bf16.msra.mxu0 %v601
    %1193 = vmatprep.subr.bf16.mxu0 %v606
    %1194 = vmatpush1.bf16.msra.mxu0 %v605
    %1195 = vmatprep.subr.bf16.mxu0 %v610
    %1196 = vmatpush1.bf16.msra.mxu0 %v609
    %1197 = vmatprep.subr.bf16.mxu0 %v614
    %1198 = vmatpush1.bf16.msra.mxu0 %v613
    %1199 = vmatprep.subr.bf16.mxu0 0
    %1200 = vmatpush1.bf16.msra.mxu0 0
    %1201 = vmatprep.subr.bf16.mxu0 0
    %1202 = vmatpush1.bf16.msra.mxu0 0
    %1203 = vmatprep.subr.bf16.mxu0 0
    %1204 = vmatpush1.bf16.msra.mxu0 0
    %1205 = vmatprep.subr.bf16.mxu0 0
    %1206 = vmatpush1.bf16.msra.mxu0 0
    %1207 = vmatprep.subr.bf16.mxu0 0
    %1208 = vmatpush1.bf16.msra.mxu0 0
    %1209 = vmatprep.subr.bf16.mxu0 0
    %1210 = vmatpush1.bf16.msra.mxu0 0
    %1211 = vmatprep.subr.bf16.mxu0 0
    %1212 = vmatpush1.bf16.msra.mxu0 0
    %1213 = vmatprep.subr.bf16.mxu0 0
    %1214 = vmatpush1.bf16.msra.mxu0 0
    %1215 = vmatprep.mubr.bf16.mxu0 0
    %1216 = vmatmul.mubr.bf16.gmra.mrb[0].mxu0 %v1180
    %v1217 = vpop.f32.mrb[0].mxu0
    %v1218 = vadd.f32 0.0, %v1217
    %v1219 = vpop.f32.mrb[0].mxu0
    %v1220 = vadd.f32 0.0, %v1219
    %v1221 = vpop.f32.mrb[0].mxu0
    %v1222 = vpop.f32.mrb[0].mxu0
    %1223 = vdwg.mxu0
    %1224 = vmatprep.subr.bf16.mxu0 %v588
    %1225 = vmatpush1.bf16.msra.mxu0 %v587
    %1226 = vmatprep.subr.bf16.mxu0 %v592
    %1227 = vmatpush1.bf16.msra.mxu0 %v591
    %1228 = vmatprep.subr.bf16.mxu0 %v596
    %1229 = vmatpush1.bf16.msra.mxu0 %v595
    %1230 = vmatprep.subr.bf16.mxu0 %v600
    %1231 = vmatpush1.bf16.msra.mxu0 %v599
    %1232 = vmatprep.subr.bf16.mxu0 %v604
    %1233 = vmatpush1.bf16.msra.mxu0 %v603
    %1234 = vmatprep.subr.bf16.mxu0 %v608
    %1235 = vmatpush1.bf16.msra.mxu0 %v607
    %1236 = vmatprep.subr.bf16.mxu0 %v612
    %1237 = vmatpush1.bf16.msra.mxu0 %v611
    %1238 = vmatprep.subr.bf16.mxu0 %v616
    %1239 = vmatpush1.bf16.msra.mxu0 %v615
    %1240 = vmatprep.subr.bf16.mxu0 0
    %1241 = vmatpush1.bf16.msra.mxu0 0
    %1242 = vmatprep.subr.bf16.mxu0 0
    %1243 = vmatpush1.bf16.msra.mxu0 0
    %1244 = vmatprep.subr.bf16.mxu0 0
    %1245 = vmatpush1.bf16.msra.mxu0 0
    %1246 = vmatprep.subr.bf16.mxu0 0
    %1247 = vmatpush1.bf16.msra.mxu0 0
    %1248 = vmatprep.subr.bf16.mxu0 0
    %1249 = vmatpush1.bf16.msra.mxu0 0
    %1250 = vmatprep.subr.bf16.mxu0 0
    %1251 = vmatpush1.bf16.msra.mxu0 0
    %1252 = vmatprep.subr.bf16.mxu0 0
    %1253 = vmatpush1.bf16.msra.mxu0 0
    %1254 = vmatprep.subr.bf16.mxu0 0
    %1255 = vmatpush1.bf16.msra.mxu0 0
    %1256 = vmatprep.mubr.bf16.mxu0 0
    %1257 = vmatmul.mubr.bf16.gmra.mrb[0].mxu0 %v1180
    %v1258 = vpop.f32.mrb[0].mxu0
    %v1259 = vadd.f32 0.0, %v1258
    %v1260 = vpop.f32.mrb[0].mxu0
    %v1261 = vadd.f32 0.0, %v1260
    %v1262 = vpop.f32.mrb[0].mxu0
    %v1263 = vpop.f32.mrb[0].mxu0
    %1264 = vdwg.mxu0
    %v1265 = vadd.f32 %v402, %v1218
    %v1266 = vadd.f32 %v404, %v1220
    %v1267 = vadd.f32 %v475, %v1259
    %v1268 = vadd.f32 %v477, %v1261
    %v1269 = vmul.f32 %v1265, 0.5
    %v1270 = vmul.f32 %v1266, 0.5
    %v1271 = vmul.f32 %v1267, 0.5
    %v1272 = vtanh.pop %v1269
    %v1273 = vtanh.pop %v1270
    %v1274 = vtanh.pop %v1271
    %v1275 = vmul.f32 %v1272, 0.5
    %v1276 = vmul.f32 %v1273, 0.5
    %v1277 = vmul.f32 %v1274, 0.5
    %v1278 = vadd.f32 %v1275, 0.5
    %v1279 = vadd.f32 %v1276, 0.5
    %v1280 = vadd.f32 %v1277, 0.5
    %v1281 = vtanh.pop %v1268
    %v1282 = vmul.f32 %v1279, %v1177
    %v1283 = vmul.f32 %v1278, %v1281
    %v1284 = vadd.f32 %v1282, %v1283
    %v1285 = vtanh.pop %v1284
    %v1286 = vmul.f32 %v1280, %v1285
    %v1287 = vpack.c.bf16 %v1286, %v1286
    %s1288 = scalar_lea.vmem [#allocation2], 20
    %1289 = vst [vmem:[%s1288] sm:$0xf] %v1287
    %1290 = vmatprep.subr.bf16.mxu0 %v586
    %1291 = vmatpush1.bf16.msra.mxu0 %v585
    %1292 = vmatprep.subr.bf16.mxu0 %v590
    %1293 = vmatpush1.bf16.msra.mxu0 %v589
    %1294 = vmatprep.subr.bf16.mxu0 %v594
    %1295 = vmatpush1.bf16.msra.mxu0 %v593
    %1296 = vmatprep.subr.bf16.mxu0 %v598
    %1297 = vmatpush1.bf16.msra.mxu0 %v597
    %1298 = vmatprep.subr.bf16.mxu0 %v602
    %1299 = vmatpush1.bf16.msra.mxu0 %v601
    %1300 = vmatprep.subr.bf16.mxu0 %v606
    %1301 = vmatpush1.bf16.msra.mxu0 %v605
    %1302 = vmatprep.subr.bf16.mxu0 %v610
    %1303 = vmatpush1.bf16.msra.mxu0 %v609
    %1304 = vmatprep.subr.bf16.mxu0 %v614
    %1305 = vmatpush1.bf16.msra.mxu0 %v613
    %1306 = vmatprep.subr.bf16.mxu0 0
    %1307 = vmatpush1.bf16.msra.mxu0 0
    %1308 = vmatprep.subr.bf16.mxu0 0
    %1309 = vmatpush1.bf16.msra.mxu0 0
    %1310 = vmatprep.subr.bf16.mxu0 0
    %1311 = vmatpush1.bf16.msra.mxu0 0
    %1312 = vmatprep.subr.bf16.mxu0 0
    %1313 = vmatpush1.bf16.msra.mxu0 0
    %1314 = vmatprep.subr.bf16.mxu0 0
    %1315 = vmatpush1.bf16.msra.mxu0 0
    %1316 = vmatprep.subr.bf16.mxu0 0
    %1317 = vmatpush1.bf16.msra.mxu0 0
    %1318 = vmatprep.subr.bf16.mxu0 0
    %1319 = vmatpush1.bf16.msra.mxu0 0
    %1320 = vmatprep.subr.bf16.mxu0 0
    %1321 = vmatpush1.bf16.msra.mxu0 0
    %1322 = vmatprep.mubr.bf16.mxu0 0
    %1323 = vmatmul.mubr.bf16.gmra.mrb[0].mxu0 %v1287
    %v1324 = vpop.f32.mrb[0].mxu0
    %v1325 = vadd.f32 0.0, %v1324
    %v1326 = vpop.f32.mrb[0].mxu0
    %v1327 = vadd.f32 0.0, %v1326
    %v1328 = vpop.f32.mrb[0].mxu0
    %v1329 = vpop.f32.mrb[0].mxu0
    %1330 = vdwg.mxu0
    %1331 = vmatprep.subr.bf16.mxu0 %v588
    %1332 = vmatpush1.bf16.msra.mxu0 %v587
    %1333 = vmatprep.subr.bf16.mxu0 %v592
    %1334 = vmatpush1.bf16.msra.mxu0 %v591
    %1335 = vmatprep.subr.bf16.mxu0 %v596
    %1336 = vmatpush1.bf16.msra.mxu0 %v595
    %1337 = vmatprep.subr.bf16.mxu0 %v600
    %1338 = vmatpush1.bf16.msra.mxu0 %v599
    %1339 = vmatprep.subr.bf16.mxu0 %v604
    %1340 = vmatpush1.bf16.msra.mxu0 %v603
    %1341 = vmatprep.subr.bf16.mxu0 %v608
    %1342 = vmatpush1.bf16.msra.mxu0 %v607
    %1343 = vmatprep.subr.bf16.mxu0 %v612
    %1344 = vmatpush1.bf16.msra.mxu0 %v611
    %1345 = vmatprep.subr.bf16.mxu0 %v616
    %1346 = vmatpush1.bf16.msra.mxu0 %v615
    %1347 = vmatprep.subr.bf16.mxu0 0
    %1348 = vmatpush1.bf16.msra.mxu0 0
    %1349 = vmatprep.subr.bf16.mxu0 0
    %1350 = vmatpush1.bf16.msra.mxu0 0
    %1351 = vmatprep.subr.bf16.mxu0 0
    %1352 = vmatpush1.bf16.msra.mxu0 0
    %1353 = vmatprep.subr.bf16.mxu0 0
    %1354 = vmatpush1.bf16.msra.mxu0 0
    %1355 = vmatprep.subr.bf16.mxu0 0
    %1356 = vmatpush1.bf16.msra.mxu0 0
    %1357 = vmatprep.subr.bf16.mxu0 0
    %1358 = vmatpush1.bf16.msra.mxu0 0
    %1359 = vmatprep.subr.bf16.mxu0 0
    %1360 = vmatpush1.bf16.msra.mxu0 0
    %1361 = vmatprep.subr.bf16.mxu0 0
    %1362 = vmatpush1.bf16.msra.mxu0 0
    %1363 = vmatprep.mubr.bf16.mxu0 0
    %1364 = vmatmul.mubr.bf16.gmra.mrb[0].mxu0 %v1287
    %v1365 = vpop.f32.mrb[0].mxu0
    %v1366 = vadd.f32 0.0, %v1365
    %v1367 = vpop.f32.mrb[0].mxu0
    %v1368 = vadd.f32 0.0, %v1367
    %v1369 = vpop.f32.mrb[0].mxu0
    %v1370 = vpop.f32.mrb[0].mxu0
    %1371 = vdwg.mxu0
    %v1372 = vadd.f32 %v408, %v1325
    %v1373 = vadd.f32 %v410, %v1327
    %v1374 = vadd.f32 %v481, %v1366
    %v1375 = vadd.f32 %v483, %v1368
    %v1376 = vmul.f32 %v1372, 0.5
    %v1377 = vmul.f32 %v1373, 0.5
    %v1378 = vmul.f32 %v1374, 0.5
    %v1379 = vtanh.pop %v1376
    %v1380 = vtanh.pop %v1377
    %v1381 = vtanh.pop %v1378
    %v1382 = vmul.f32 %v1379, 0.5
    %v1383 = vmul.f32 %v1380, 0.5
    %v1384 = vmul.f32 %v1381, 0.5
    %v1385 = vadd.f32 %v1382, 0.5
    %v1386 = vadd.f32 %v1383, 0.5
    %v1387 = vadd.f32 %v1384, 0.5
    %v1388 = vtanh.pop %v1375
    %v1389 = vmul.f32 %v1386, %v1284
    %v1390 = vmul.f32 %v1385, %v1388
    %v1391 = vadd.f32 %v1389, %v1390
    %v1392 = vtanh.pop %v1391
    %v1393 = vmul.f32 %v1387, %v1392
    %v1394 = vpack.c.bf16 %v1393, %v1393
    %s1395 = scalar_lea.vmem [#allocation2], 24
    %1396 = vst [vmem:[%s1395] sm:$0xf] %v1394
    %1397 = vmatprep.subr.bf16.mxu0 %v586
    %1398 = vmatpush1.bf16.msra.mxu0 %v585
    %1399 = vmatprep.subr.bf16.mxu0 %v590
    %1400 = vmatpush1.bf16.msra.mxu0 %v589
    %1401 = vmatprep.subr.bf16.mxu0 %v594
    %1402 = vmatpush1.bf16.msra.mxu0 %v593
    %1403 = vmatprep.subr.bf16.mxu0 %v598
    %1404 = vmatpush1.bf16.msra.mxu0 %v597
    %1405 = vmatprep.subr.bf16.mxu0 %v602
    %1406 = vmatpush1.bf16.msra.mxu0 %v601
    %1407 = vmatprep.subr.bf16.mxu0 %v606
    %1408 = vmatpush1.bf16.msra.mxu0 %v605
    %1409 = vmatprep.subr.bf16.mxu0 %v610
    %1410 = vmatpush1.bf16.msra.mxu0 %v609
    %1411 = vmatprep.subr.bf16.mxu0 %v614
    %1412 = vmatpush1.bf16.msra.mxu0 %v613
    %1413 = vmatprep.subr.bf16.mxu0 0
    %1414 = vmatpush1.bf16.msra.mxu0 0
    %1415 = vmatprep.subr.bf16.mxu0 0
    %1416 = vmatpush1.bf16.msra.mxu0 0
    %1417 = vmatprep.subr.bf16.mxu0 0
    %1418 = vmatpush1.bf16.msra.mxu0 0
    %1419 = vmatprep.subr.bf16.mxu0 0
    %1420 = vmatpush1.bf16.msra.mxu0 0
    %1421 = vmatprep.subr.bf16.mxu0 0
    %1422 = vmatpush1.bf16.msra.mxu0 0
    %1423 = vmatprep.subr.bf16.mxu0 0
    %1424 = vmatpush1.bf16.msra.mxu0 0
    %1425 = vmatprep.subr.bf16.mxu0 0
    %1426 = vmatpush1.bf16.msra.mxu0 0
    %1427 = vmatprep.subr.bf16.mxu0 0
    %1428 = vmatpush1.bf16.msra.mxu0 0
    %1429 = vmatprep.mubr.bf16.mxu0 0
    %1430 = vmatmul.mubr.bf16.gmra.mrb[0].mxu0 %v1394
    %v1431 = vpop.f32.mrb[0].mxu0
    %v1432 = vadd.f32 0.0, %v1431
    %v1433 = vpop.f32.mrb[0].mxu0
    %v1434 = vadd.f32 0.0, %v1433
    %v1435 = vpop.f32.mrb[0].mxu0
    %v1436 = vpop.f32.mrb[0].mxu0
    %1437 = vdwg.mxu0
    %1438 = vmatprep.subr.bf16.mxu0 %v588
    %1439 = vmatpush1.bf16.msra.mxu0 %v587
    %1440 = vmatprep.subr.bf16.mxu0 %v592
    %1441 = vmatpush1.bf16.msra.mxu0 %v591
    %1442 = vmatprep.subr.bf16.mxu0 %v596
    %1443 = vmatpush1.bf16.msra.mxu0 %v595
    %1444 = vmatprep.subr.bf16.mxu0 %v600
    %1445 = vmatpush1.bf16.msra.mxu0 %v599
    %1446 = vmatprep.subr.bf16.mxu0 %v604
    %1447 = vmatpush1.bf16.msra.mxu0 %v603
    %1448 = vmatprep.subr.bf16.mxu0 %v608
    %1449 = vmatpush1.bf16.msra.mxu0 %v607
    %1450 = vmatprep.subr.bf16.mxu0 %v612
    %1451 = vmatpush1.bf16.msra.mxu0 %v611
    %1452 = vmatprep.subr.bf16.mxu0 %v616
    %1453 = vmatpush1.bf16.msra.mxu0 %v615
    %1454 = vmatprep.subr.bf16.mxu0 0
    %1455 = vmatpush1.bf16.msra.mxu0 0
    %1456 = vmatprep.subr.bf16.mxu0 0
    %1457 = vmatpush1.bf16.msra.mxu0 0
    %1458 = vmatprep.subr.bf16.mxu0 0
    %1459 = vmatpush1.bf16.msra.mxu0 0
    %1460 = vmatprep.subr.bf16.mxu0 0
    %1461 = vmatpush1.bf16.msra.mxu0 0
    %1462 = vmatprep.subr.bf16.mxu0 0
    %1463 = vmatpush1.bf16.msra.mxu0 0
    %1464 = vmatprep.subr.bf16.mxu0 0
    %1465 = vmatpush1.bf16.msra.mxu0 0
    %1466 = vmatprep.subr.bf16.mxu0 0
    %1467 = vmatpush1.bf16.msra.mxu0 0
    %1468 = vmatprep.subr.bf16.mxu0 0
    %1469 = vmatpush1.bf16.msra.mxu0 0
    %1470 = vmatprep.mubr.bf16.mxu0 0
    %1471 = vmatmul.mubr.bf16.gmra.mrb[0].mxu0 %v1394
    %v1472 = vpop.f32.mrb[0].mxu0
    %v1473 = vadd.f32 0.0, %v1472
    %v1474 = vpop.f32.mrb[0].mxu0
    %v1475 = vadd.f32 0.0, %v1474
    %v1476 = vpop.f32.mrb[0].mxu0
    %v1477 = vpop.f32.mrb[0].mxu0
    %1478 = vdwg.mxu0
    %v1479 = vadd.f32 %v412, %v1432
    %v1480 = vadd.f32 %v414, %v1434
    %v1481 = vadd.f32 %v485, %v1473
    %v1482 = vadd.f32 %v487, %v1475
    %v1483 = vmul.f32 %v1479, 0.5
    %v1484 = vmul.f32 %v1480, 0.5
    %v1485 = vmul.f32 %v1481, 0.5
    %v1486 = vtanh.pop %v1483
    %v1487 = vtanh.pop %v1484
    %v1488 = vtanh.pop %v1485
    %v1489 = vmul.f32 %v1486, 0.5
    %v1490 = vmul.f32 %v1487, 0.5
    %v1491 = vmul.f32 %v1488, 0.5
    %v1492 = vadd.f32 %v1489, 0.5
    %v1493 = vadd.f32 %v1490, 0.5
    %v1494 = vadd.f32 %v1491, 0.5
    %v1495 = vtanh.pop %v1482
    %v1496 = vmul.f32 %v1493, %v1391
    %v1497 = vmul.f32 %v1492, %v1495
    %v1498 = vadd.f32 %v1496, %v1497
    %v1499 = vtanh.pop %v1498
    %v1500 = vmul.f32 %v1494, %v1499
    %v1501 = vpack.c.bf16 %v1500, %v1500
    %s1502 = scalar_lea.vmem [#allocation2], 28
    %1503 = vst [vmem:[%s1502] sm:$0xf] %v1501
    %s1504 = scalar_lea.vmem [#allocation3], 256
    %v1505 = vld [vmem:[%s1504] sm:$0xff]
    %v1506 = vld [vmem:[%s1504 + $0x8] sm:$0xff]
    %v1507 = vld [vmem:[%s1504 + $0x10] sm:$0xff]
    %v1508 = vld [vmem:[%s1504 + $0x18] sm:$0xff]
    %v1509 = vld [vmem:[%s1504 + $0x20] sm:$0xff]
    %v1510 = vld [vmem:[%s1504 + $0x28] sm:$0xff]
    %v1511 = vld [vmem:[%s1504 + $0x30] sm:$0xff]
    %v1512 = vld [vmem:[%s1504 + $0x38] sm:$0xff]
    %v1513 = vld [vmem:[%s1504 + $0x40] sm:$0xff]
    %v1514 = vld [vmem:[%s1504 + $0x48] sm:$0xff]
    %v1515 = vld [vmem:[%s1504 + $0x50] sm:$0xff]
    %v1516 = vld [vmem:[%s1504 + $0x58] sm:$0xff]
    %v1517 = vld [vmem:[%s1504 + $0x60] sm:$0xff]
    %v1518 = vld [vmem:[%s1504 + $0x68] sm:$0xff]
    %v1519 = vld [vmem:[%s1504 + $0x70] sm:$0xff]
    %v1520 = vld [vmem:[%s1504 + $0x78] sm:$0xff]
    %v1521 = vld [vmem:[%s1504 + $0x80] sm:$0xff]
    %v1522 = vld [vmem:[%s1504 + $0x88] sm:$0xff]
    %v1523 = vld [vmem:[%s1504 + $0x90] sm:$0xff]
    %v1524 = vld [vmem:[%s1504 + $0x98] sm:$0xff]
    %v1525 = vld [vmem:[%s1504 + $0xa0] sm:$0xff]
    %v1526 = vld [vmem:[%s1504 + $0xa8] sm:$0xff]
    %v1527 = vld [vmem:[%s1504 + $0xb0] sm:$0xff]
    %v1528 = vld [vmem:[%s1504 + $0xb8] sm:$0xff]
    %v1529 = vld [vmem:[%s1504 + $0xc0] sm:$0xff]
    %v1530 = vld [vmem:[%s1504 + $0xc8] sm:$0xff]
    %v1531 = vld [vmem:[%s1504 + $0xd0] sm:$0xff]
    %v1532 = vld [vmem:[%s1504 + $0xd8] sm:$0xff]
    %v1533 = vld [vmem:[%s1504 + $0xe0] sm:$0xff]
    %v1534 = vld [vmem:[%s1504 + $0xe8] sm:$0xff]
    %v1535 = vld [vmem:[%s1504 + $0xf0] sm:$0xff]
    %v1536 = vld [vmem:[%s1504 + $0xf8] sm:$0xff]
    %s1537 = scalar_lea.vmem [#allocation5], 256
    %v1538 = vld [vmem:[%s1537] sm:$0xff]
    %v1539 = vld [vmem:[%s1537 + $0x8] sm:$0xff]
    %v1540 = vld [vmem:[%s1537 + $0x10] sm:$0xff]
    %v1541 = vld [vmem:[%s1537 + $0x18] sm:$0xff]
    %v1542 = vld [vmem:[%s1537 + $0x20] sm:$0xff]
    %v1543 = vld [vmem:[%s1537 + $0x28] sm:$0xff]
    %v1544 = vld [vmem:[%s1537 + $0x30] sm:$0xff]
    %v1545 = vld [vmem:[%s1537 + $0x38] sm:$0xff]
    %v1546 = vld [vmem:[%s1537 + $0x40] sm:$0xff]
    %v1547 = vld [vmem:[%s1537 + $0x48] sm:$0xff]
    %v1548 = vld [vmem:[%s1537 + $0x50] sm:$0xff]
    %v1549 = vld [vmem:[%s1537 + $0x58] sm:$0xff]
    %v1550 = vld [vmem:[%s1537 + $0x60] sm:$0xff]
    %v1551 = vld [vmem:[%s1537 + $0x68] sm:$0xff]
    %v1552 = vld [vmem:[%s1537 + $0x70] sm:$0xff]
    %v1553 = vld [vmem:[%s1537 + $0x78] sm:$0xff]
    %v1554 = vld [vmem:[%s1537 + $0x80] sm:$0xff]
    %v1555 = vld [vmem:[%s1537 + $0x88] sm:$0xff]
    %v1556 = vld [vmem:[%s1537 + $0x90] sm:$0xff]
    %v1557 = vld [vmem:[%s1537 + $0x98] sm:$0xff]
    %v1558 = vld [vmem:[%s1537 + $0xa0] sm:$0xff]
    %v1559 = vld [vmem:[%s1537 + $0xa8] sm:$0xff]
    %v1560 = vld [vmem:[%s1537 + $0xb0] sm:$0xff]
    %v1561 = vld [vmem:[%s1537 + $0xb8] sm:$0xff]
    %v1562 = vld [vmem:[%s1537 + $0xc0] sm:$0xff]
    %v1563 = vld [vmem:[%s1537 + $0xc8] sm:$0xff]
    %v1564 = vld [vmem:[%s1537 + $0xd0] sm:$0xff]
    %v1565 = vld [vmem:[%s1537 + $0xd8] sm:$0xff]
    %v1566 = vld [vmem:[%s1537 + $0xe0] sm:$0xff]
    %v1567 = vld [vmem:[%s1537 + $0xe8] sm:$0xff]
    %v1568 = vld [vmem:[%s1537 + $0xf0] sm:$0xff]
    %v1569 = vld [vmem:[%s1537 + $0xf8] sm:$0xff]
    %s1570 = scalar_lea.vmem %s3, 4
    %v1571 = vld [vmem:[%s1570] sm:$0xf]
    %v1572 = vld [vmem:[#allocation2] sm:$0xf]
    %v1573 = vld [vmem:[#allocation2 + $0x4] sm:$0xf]
    %v1574 = vld [vmem:[#allocation2 + $0x8] sm:$0xf]
    %v1575 = vld [vmem:[#allocation2 + $0xc] sm:$0xf]
    %v1576 = vld [vmem:[#allocation2 + $0x10] sm:$0xf]
    %v1577 = vld [vmem:[#allocation2 + $0x14] sm:$0xf]
    %v1578 = vld [vmem:[#allocation2 + $0x18] sm:$0xf]
    %v1579 = vld [vmem:[#allocation2 + $0x1c] sm:$0xf]
    %v1581 = vlaneseq
    %v1582 = vshrl.u32 %v1581, 7
    %v1583 = vsub.s32 0, %v1582
    %v1584 = vrot.slane %v1571, %v1583
    %v1585 = vlaneseq
    %v1586 = vshrl.u32 %v1585, 7
    %v1587 = vsub.s32 1, %v1586
    %v1588 = vrot.slane %v1571, %v1587
    %v1589 = vlaneseq
    %v1590 = vshrl.u32 %v1589, 7
    %v1591 = vsub.s32 2, %v1590
    %v1592 = vrot.slane %v1571, %v1591
    %v1593 = vlaneseq
    %v1594 = vshrl.u32 %v1593, 7
    %v1595 = vsub.s32 3, %v1594
    %v1596 = vrot.slane %v1571, %v1595
    %v1609 = vunpack.c.l.b16 %v1572
    %v1610 = vunpack.c.l.b16 %v1573
    %v1611 = vunpack.c.l.b16 %v1574
    %v1612 = vunpack.c.l.b16 %v1575
    %v1613 = vunpack.c.l.b16 %v1576
    %v1614 = vunpack.c.l.b16 %v1577
    %v1615 = vunpack.c.l.b16 %v1578
    %v1616 = vunpack.c.l.b16 %v1579
    %v1617 = vpack.c.b16 %v1610, %v1609
    %v1618 = vpack.c.b16 %v1612, %v1611
    %v1619 = vpack.c.b16 %v1614, %v1613
    %v1620 = vpack.c.b16 %v1616, %v1615
    %v1657 = vunpack.c.l.b16 %v1505
    %v1658 = vunpack.c.h.b16 %v1505
    %v1659 = vunpack.c.l.b16 %v1506
    %v1660 = vunpack.c.h.b16 %v1506
    %v1661 = vunpack.c.l.b16 %v1507
    %v1662 = vunpack.c.h.b16 %v1507
    %v1663 = vunpack.c.l.b16 %v1508
    %v1664 = vunpack.c.h.b16 %v1508
    %v1665 = vunpack.c.l.b16 %v1509
    %v1666 = vunpack.c.h.b16 %v1509
    %v1667 = vunpack.c.l.b16 %v1510
    %v1668 = vunpack.c.h.b16 %v1510
    %v1669 = vunpack.c.l.b16 %v1511
    %v1670 = vunpack.c.h.b16 %v1511
    %v1671 = vunpack.c.l.b16 %v1512
    %v1672 = vunpack.c.h.b16 %v1512
    %v1673 = vunpack.c.l.b16 %v1513
    %v1674 = vunpack.c.h.b16 %v1513
    %v1675 = vunpack.c.l.b16 %v1514
    %v1676 = vunpack.c.h.b16 %v1514
    %v1677 = vunpack.c.l.b16 %v1515
    %v1678 = vunpack.c.h.b16 %v1515
    %v1679 = vunpack.c.l.b16 %v1516
    %v1680 = vunpack.c.h.b16 %v1516
    %v1681 = vunpack.c.l.b16 %v1517
    %v1682 = vunpack.c.h.b16 %v1517
    %v1683 = vunpack.c.l.b16 %v1518
    %v1684 = vunpack.c.h.b16 %v1518
    %v1685 = vunpack.c.l.b16 %v1519
    %v1686 = vunpack.c.h.b16 %v1519
    %v1687 = vunpack.c.l.b16 %v1520
    %v1688 = vunpack.c.h.b16 %v1520
    %v1689 = vunpack.c.l.b16 %v1521
    %v1690 = vunpack.c.h.b16 %v1521
    %v1691 = vunpack.c.l.b16 %v1522
    %v1692 = vunpack.c.h.b16 %v1522
    %v1693 = vunpack.c.l.b16 %v1523
    %v1694 = vunpack.c.h.b16 %v1523
    %v1695 = vunpack.c.l.b16 %v1524
    %v1696 = vunpack.c.h.b16 %v1524
    %v1697 = vunpack.c.l.b16 %v1525
    %v1698 = vunpack.c.h.b16 %v1525
    %v1699 = vunpack.c.l.b16 %v1526
    %v1700 = vunpack.c.h.b16 %v1526
    %v1701 = vunpack.c.l.b16 %v1527
    %v1702 = vunpack.c.h.b16 %v1527
    %v1703 = vunpack.c.l.b16 %v1528
    %v1704 = vunpack.c.h.b16 %v1528
    %v1705 = vunpack.c.l.b16 %v1529
    %v1706 = vunpack.c.h.b16 %v1529
    %v1707 = vunpack.c.l.b16 %v1530
    %v1708 = vunpack.c.h.b16 %v1530
    %v1709 = vunpack.c.l.b16 %v1531
    %v1710 = vunpack.c.h.b16 %v1531
    %v1711 = vunpack.c.l.b16 %v1532
    %v1712 = vunpack.c.h.b16 %v1532
    %v1713 = vunpack.c.l.b16 %v1533
    %v1714 = vunpack.c.h.b16 %v1533
    %v1715 = vunpack.c.l.b16 %v1534
    %v1716 = vunpack.c.h.b16 %v1534
    %v1717 = vunpack.c.l.b16 %v1535
    %v1718 = vunpack.c.h.b16 %v1535
    %v1719 = vunpack.c.l.b16 %v1536
    %v1720 = vunpack.c.h.b16 %v1536
    %v1721 = vpack.c.b16 %v1661, %v1657
    %v1722 = vpack.c.b16 %v1662, %v1658
    %v1723 = vpack.c.b16 %v1663, %v1659
    %v1724 = vpack.c.b16 %v1664, %v1660
    %v1725 = vpack.c.b16 %v1669, %v1665
    %v1726 = vpack.c.b16 %v1670, %v1666
    %v1727 = vpack.c.b16 %v1671, %v1667
    %v1728 = vpack.c.b16 %v1672, %v1668
    %v1729 = vpack.c.b16 %v1677, %v1673
    %v1730 = vpack.c.b16 %v1678, %v1674
    %v1731 = vpack.c.b16 %v1679, %v1675
    %v1732 = vpack.c.b16 %v1680, %v1676
    %v1733 = vpack.c.b16 %v1685, %v1681
    %v1734 = vpack.c.b16 %v1686, %v1682
    %v1735 = vpack.c.b16 %v1687, %v1683
    %v1736 = vpack.c.b16 %v1688, %v1684
    %v1737 = vpack.c.b16 %v1693, %v1689
    %v1738 = vpack.c.b16 %v1694, %v1690
    %v1739 = vpack.c.b16 %v1695, %v1691
    %v1740 = vpack.c.b16 %v1696, %v1692
    %v1741 = vpack.c.b16 %v1701, %v1697
    %v1742 = vpack.c.b16 %v1702, %v1698
    %v1743 = vpack.c.b16 %v1703, %v1699
    %v1744 = vpack.c.b16 %v1704, %v1700
    %v1745 = vpack.c.b16 %v1709, %v1705
    %v1746 = vpack.c.b16 %v1710, %v1706
    %v1747 = vpack.c.b16 %v1711, %v1707
    %v1748 = vpack.c.b16 %v1712, %v1708
    %v1749 = vpack.c.b16 %v1717, %v1713
    %v1750 = vpack.c.b16 %v1718, %v1714
    %v1751 = vpack.c.b16 %v1719, %v1715
    %v1752 = vpack.c.b16 %v1720, %v1716
    %1785 = vmatprep.subr.bf16.mxu0 %v1722
    %1786 = vmatpush1.bf16.msra.mxu0 %v1721
    %1787 = vmatprep.subr.bf16.mxu0 %v1726
    %1788 = vmatpush1.bf16.msra.mxu0 %v1725
    %1789 = vmatprep.subr.bf16.mxu0 %v1730
    %1790 = vmatpush1.bf16.msra.mxu0 %v1729
    %1791 = vmatprep.subr.bf16.mxu0 %v1734
    %1792 = vmatpush1.bf16.msra.mxu0 %v1733
    %1793 = vmatprep.subr.bf16.mxu0 %v1738
    %1794 = vmatpush1.bf16.msra.mxu0 %v1737
    %1795 = vmatprep.subr.bf16.mxu0 %v1742
    %1796 = vmatpush1.bf16.msra.mxu0 %v1741
    %1797 = vmatprep.subr.bf16.mxu0 %v1746
    %1798 = vmatpush1.bf16.msra.mxu0 %v1745
    %1799 = vmatprep.subr.bf16.mxu0 %v1750
    %1800 = vmatpush1.bf16.msra.mxu0 %v1749
    %1801 = vmatprep.subr.bf16.mxu0 0
    %1802 = vmatpush1.bf16.msra.mxu0 0
    %1803 = vmatprep.subr.bf16.mxu0 0
    %1804 = vmatpush1.bf16.msra.mxu0 0
    %1805 = vmatprep.subr.bf16.mxu0 0
    %1806 = vmatpush1.bf16.msra.mxu0 0
    %1807 = vmatprep.subr.bf16.mxu0 0
    %1808 = vmatpush1.bf16.msra.mxu0 0
    %1809 = vmatprep.subr.bf16.mxu0 0
    %1810 = vmatpush1.bf16.msra.mxu0 0
    %1811 = vmatprep.subr.bf16.mxu0 0
    %1812 = vmatpush1.bf16.msra.mxu0 0
    %1813 = vmatprep.subr.bf16.mxu0 0
    %1814 = vmatpush1.bf16.msra.mxu0 0
    %1815 = vmatprep.subr.bf16.mxu0 0
    %1816 = vmatpush1.bf16.msra.mxu0 0
    %1817 = vmatprep.mubr.bf16.mxu0 0
    %1818 = vmatmul.mubr.bf16.gmra.mrb[0].mxu0 %v1617
    %v1819 = vpop.f32.mrb[0].mxu0
    %v1820 = vadd.f32 %v1584, %v1819
    %v1821 = vpop.f32.mrb[0].mxu0
    %v1822 = vadd.f32 %v1588, %v1821
    %v1823 = vpop.f32.mrb[0].mxu0
    %v1824 = vadd.f32 %v1584, %v1823
    %v1825 = vpop.f32.mrb[0].mxu0
    %v1826 = vadd.f32 %v1588, %v1825
    %1827 = vmatprep.mubr.bf16.mxu0 0
    %1828 = vmatmul.mubr.bf16.gmra.mrb[0].mxu0 %v1618
    %v1829 = vpop.f32.mrb[0].mxu0
    %v1830 = vadd.f32 %v1584, %v1829
    %v1831 = vpop.f32.mrb[0].mxu0
    %v1832 = vadd.f32 %v1588, %v1831
    %v1833 = vpop.f32.mrb[0].mxu0
    %v1834 = vadd.f32 %v1584, %v1833
    %v1835 = vpop.f32.mrb[0].mxu0
    %v1836 = vadd.f32 %v1588, %v1835
    %1837 = vmatprep.mubr.bf16.mxu0 0
    %1838 = vmatmul.mubr.bf16.gmra.mrb[0].mxu0 %v1619
    %v1839 = vpop.f32.mrb[0].mxu0
    %v1840 = vadd.f32 %v1584, %v1839
    %v1841 = vpop.f32.mrb[0].mxu0
    %v1842 = vadd.f32 %v1588, %v1841
    %v1843 = vpop.f32.mrb[0].mxu0
    %v1844 = vadd.f32 %v1584, %v1843
    %v1845 = vpop.f32.mrb[0].mxu0
    %v1846 = vadd.f32 %v1588, %v1845
    %1847 = vmatprep.mubr.bf16.mxu0 0
    %1848 = vmatmul.mubr.bf16.gmra.mrb[0].mxu0 %v1620
    %v1849 = vpop.f32.mrb[0].mxu0
    %v1850 = vadd.f32 %v1584, %v1849
    %v1851 = vpop.f32.mrb[0].mxu0
    %v1852 = vadd.f32 %v1588, %v1851
    %v1853 = vpop.f32.mrb[0].mxu0
    %v1854 = vadd.f32 %v1584, %v1853
    %v1855 = vpop.f32.mrb[0].mxu0
    %v1856 = vadd.f32 %v1588, %v1855
    %1857 = vdwg.mxu0
    %1858 = vmatprep.subr.bf16.mxu0 %v1724
    %1859 = vmatpush1.bf16.msra.mxu0 %v1723
    %1860 = vmatprep.subr.bf16.mxu0 %v1728
    %1861 = vmatpush1.bf16.msra.mxu0 %v1727
    %1862 = vmatprep.subr.bf16.mxu0 %v1732
    %1863 = vmatpush1.bf16.msra.mxu0 %v1731
    %1864 = vmatprep.subr.bf16.mxu0 %v1736
    %1865 = vmatpush1.bf16.msra.mxu0 %v1735
    %1866 = vmatprep.subr.bf16.mxu0 %v1740
    %1867 = vmatpush1.bf16.msra.mxu0 %v1739
    %1868 = vmatprep.subr.bf16.mxu0 %v1744
    %1869 = vmatpush1.bf16.msra.mxu0 %v1743
    %1870 = vmatprep.subr.bf16.mxu0 %v1748
    %1871 = vmatpush1.bf16.msra.mxu0 %v1747
    %1872 = vmatprep.subr.bf16.mxu0 %v1752
    %1873 = vmatpush1.bf16.msra.mxu0 %v1751
    %1874 = vmatprep.subr.bf16.mxu0 0
    %1875 = vmatpush1.bf16.msra.mxu0 0
    %1876 = vmatprep.subr.bf16.mxu0 0
    %1877 = vmatpush1.bf16.msra.mxu0 0
    %1878 = vmatprep.subr.bf16.mxu0 0
    %1879 = vmatpush1.bf16.msra.mxu0 0
    %1880 = vmatprep.subr.bf16.mxu0 0
    %1881 = vmatpush1.bf16.msra.mxu0 0
    %1882 = vmatprep.subr.bf16.mxu0 0
    %1883 = vmatpush1.bf16.msra.mxu0 0
    %1884 = vmatprep.subr.bf16.mxu0 0
    %1885 = vmatpush1.bf16.msra.mxu0 0
    %1886 = vmatprep.subr.bf16.mxu0 0
    %1887 = vmatpush1.bf16.msra.mxu0 0
    %1888 = vmatprep.subr.bf16.mxu0 0
    %1889 = vmatpush1.bf16.msra.mxu0 0
    %1890 = vmatprep.mubr.bf16.mxu0 0
    %1891 = vmatmul.mubr.bf16.gmra.mrb[0].mxu0 %v1617
    %v1892 = vpop.f32.mrb[0].mxu0
    %v1893 = vadd.f32 %v1592, %v1892
    %v1894 = vpop.f32.mrb[0].mxu0
    %v1895 = vadd.f32 %v1596, %v1894
    %v1896 = vpop.f32.mrb[0].mxu0
    %v1897 = vadd.f32 %v1592, %v1896
    %v1898 = vpop.f32.mrb[0].mxu0
    %v1899 = vadd.f32 %v1596, %v1898
    %1900 = vmatprep.mubr.bf16.mxu0 0
    %1901 = vmatmul.mubr.bf16.gmra.mrb[0].mxu0 %v1618
    %v1902 = vpop.f32.mrb[0].mxu0
    %v1903 = vadd.f32 %v1592, %v1902
    %v1904 = vpop.f32.mrb[0].mxu0
    %v1905 = vadd.f32 %v1596, %v1904
    %v1906 = vpop.f32.mrb[0].mxu0
    %v1907 = vadd.f32 %v1592, %v1906
    %v1908 = vpop.f32.mrb[0].mxu0
    %v1909 = vadd.f32 %v1596, %v1908
    %1910 = vmatprep.mubr.bf16.mxu0 0
    %1911 = vmatmul.mubr.bf16.gmra.mrb[0].mxu0 %v1619
    %v1912 = vpop.f32.mrb[0].mxu0
    %v1913 = vadd.f32 %v1592, %v1912
    %v1914 = vpop.f32.mrb[0].mxu0
    %v1915 = vadd.f32 %v1596, %v1914
    %v1916 = vpop.f32.mrb[0].mxu0
    %v1917 = vadd.f32 %v1592, %v1916
    %v1918 = vpop.f32.mrb[0].mxu0
    %v1919 = vadd.f32 %v1596, %v1918
    %1920 = vmatprep.mubr.bf16.mxu0 0
    %1921 = vmatmul.mubr.bf16.gmra.mrb[0].mxu0 %v1620
    %v1922 = vpop.f32.mrb[0].mxu0
    %v1923 = vadd.f32 %v1592, %v1922
    %v1924 = vpop.f32.mrb[0].mxu0
    %v1925 = vadd.f32 %v1596, %v1924
    %v1926 = vpop.f32.mrb[0].mxu0
    %v1927 = vadd.f32 %v1592, %v1926
    %v1928 = vpop.f32.mrb[0].mxu0
    %v1929 = vadd.f32 %v1596, %v1928
    %1930 = vdwg.mxu0
    %v1963 = vunpack.c.l.b16 %v1538
    %v1964 = vunpack.c.h.b16 %v1538
    %v1965 = vunpack.c.l.b16 %v1539
    %v1966 = vunpack.c.h.b16 %v1539
    %v1967 = vunpack.c.l.b16 %v1540
    %v1968 = vunpack.c.h.b16 %v1540
    %v1969 = vunpack.c.l.b16 %v1541
    %v1970 = vunpack.c.h.b16 %v1541
    %v1971 = vunpack.c.l.b16 %v1542
    %v1972 = vunpack.c.h.b16 %v1542
    %v1973 = vunpack.c.l.b16 %v1543
    %v1974 = vunpack.c.h.b16 %v1543
    %v1975 = vunpack.c.l.b16 %v1544
    %v1976 = vunpack.c.h.b16 %v1544
    %v1977 = vunpack.c.l.b16 %v1545
    %v1978 = vunpack.c.h.b16 %v1545
    %v1979 = vunpack.c.l.b16 %v1546
    %v1980 = vunpack.c.h.b16 %v1546
    %v1981 = vunpack.c.l.b16 %v1547
    %v1982 = vunpack.c.h.b16 %v1547
    %v1983 = vunpack.c.l.b16 %v1548
    %v1984 = vunpack.c.h.b16 %v1548
    %v1985 = vunpack.c.l.b16 %v1549
    %v1986 = vunpack.c.h.b16 %v1549
    %v1987 = vunpack.c.l.b16 %v1550
    %v1988 = vunpack.c.h.b16 %v1550
    %v1989 = vunpack.c.l.b16 %v1551
    %v1990 = vunpack.c.h.b16 %v1551
    %v1991 = vunpack.c.l.b16 %v1552
    %v1992 = vunpack.c.h.b16 %v1552
    %v1993 = vunpack.c.l.b16 %v1553
    %v1994 = vunpack.c.h.b16 %v1553
    %v1995 = vunpack.c.l.b16 %v1554
    %v1996 = vunpack.c.h.b16 %v1554
    %v1997 = vunpack.c.l.b16 %v1555
    %v1998 = vunpack.c.h.b16 %v1555
    %v1999 = vunpack.c.l.b16 %v1556
    %v2000 = vunpack.c.h.b16 %v1556
    %v2001 = vunpack.c.l.b16 %v1557
    %v2002 = vunpack.c.h.b16 %v1557
    %v2003 = vunpack.c.l.b16 %v1558
    %v2004 = vunpack.c.h.b16 %v1558
    %v2005 = vunpack.c.l.b16 %v1559
    %v2006 = vunpack.c.h.b16 %v1559
    %v2007 = vunpack.c.l.b16 %v1560
    %v2008 = vunpack.c.h.b16 %v1560
    %v2009 = vunpack.c.l.b16 %v1561
    %v2010 = vunpack.c.h.b16 %v1561
    %v2011 = vunpack.c.l.b16 %v1562
    %v2012 = vunpack.c.h.b16 %v1562
    %v2013 = vunpack.c.l.b16 %v1563
    %v2014 = vunpack.c.h.b16 %v1563
    %v2015 = vunpack.c.l.b16 %v1564
    %v2016 = vunpack.c.h.b16 %v1564
    %v2017 = vunpack.c.l.b16 %v1565
    %v2018 = vunpack.c.h.b16 %v1565
    %v2019 = vunpack.c.l.b16 %v1566
    %v2020 = vunpack.c.h.b16 %v1566
    %v2021 = vunpack.c.l.b16 %v1567
    %v2022 = vunpack.c.h.b16 %v1567
    %v2023 = vunpack.c.l.b16 %v1568
    %v2024 = vunpack.c.h.b16 %v1568
    %v2025 = vunpack.c.l.b16 %v1569
    %v2026 = vunpack.c.h.b16 %v1569
    %v2027 = vpack.c.b16 %v1967, %v1963
    %v2028 = vpack.c.b16 %v1968, %v1964
    %v2029 = vpack.c.b16 %v1969, %v1965
    %v2030 = vpack.c.b16 %v1970, %v1966
    %v2031 = vpack.c.b16 %v1975, %v1971
    %v2032 = vpack.c.b16 %v1976, %v1972
    %v2033 = vpack.c.b16 %v1977, %v1973
    %v2034 = vpack.c.b16 %v1978, %v1974
    %v2035 = vpack.c.b16 %v1983, %v1979
    %v2036 = vpack.c.b16 %v1984, %v1980
    %v2037 = vpack.c.b16 %v1985, %v1981
    %v2038 = vpack.c.b16 %v1986, %v1982
    %v2039 = vpack.c.b16 %v1991, %v1987
    %v2040 = vpack.c.b16 %v1992, %v1988
    %v2041 = vpack.c.b16 %v1993, %v1989
    %v2042 = vpack.c.b16 %v1994, %v1990
    %v2043 = vpack.c.b16 %v1999, %v1995
    %v2044 = vpack.c.b16 %v2000, %v1996
    %v2045 = vpack.c.b16 %v2001, %v1997
    %v2046 = vpack.c.b16 %v2002, %v1998
    %v2047 = vpack.c.b16 %v2007, %v2003
    %v2048 = vpack.c.b16 %v2008, %v2004
    %v2049 = vpack.c.b16 %v2009, %v2005
    %v2050 = vpack.c.b16 %v2010, %v2006
    %v2051 = vpack.c.b16 %v2015, %v2011
    %v2052 = vpack.c.b16 %v2016, %v2012
    %v2053 = vpack.c.b16 %v2017, %v2013
    %v2054 = vpack.c.b16 %v2018, %v2014
    %v2055 = vpack.c.b16 %v2023, %v2019
    %v2056 = vpack.c.b16 %v2024, %v2020
    %v2057 = vpack.c.b16 %v2025, %v2021
    %v2058 = vpack.c.b16 %v2026, %v2022
    %2091 = vmatprep.subr.bf16.mxu0 %v2028
    %2092 = vmatpush1.bf16.msra.mxu0 %v2027
    %2093 = vmatprep.subr.bf16.mxu0 %v2032
    %2094 = vmatpush1.bf16.msra.mxu0 %v2031
    %2095 = vmatprep.subr.bf16.mxu0 %v2036
    %2096 = vmatpush1.bf16.msra.mxu0 %v2035
    %2097 = vmatprep.subr.bf16.mxu0 %v2040
    %2098 = vmatpush1.bf16.msra.mxu0 %v2039
    %2099 = vmatprep.subr.bf16.mxu0 %v2044
    %2100 = vmatpush1.bf16.msra.mxu0 %v2043
    %2101 = vmatprep.subr.bf16.mxu0 %v2048
    %2102 = vmatpush1.bf16.msra.mxu0 %v2047
    %2103 = vmatprep.subr.bf16.mxu0 %v2052
    %2104 = vmatpush1.bf16.msra.mxu0 %v2051
    %2105 = vmatprep.subr.bf16.mxu0 %v2056
    %2106 = vmatpush1.bf16.msra.mxu0 %v2055
    %2107 = vmatprep.subr.bf16.mxu0 0
    %2108 = vmatpush1.bf16.msra.mxu0 0
    %2109 = vmatprep.subr.bf16.mxu0 0
    %2110 = vmatpush1.bf16.msra.mxu0 0
    %2111 = vmatprep.subr.bf16.mxu0 0
    %2112 = vmatpush1.bf16.msra.mxu0 0
    %2113 = vmatprep.subr.bf16.mxu0 0
    %2114 = vmatpush1.bf16.msra.mxu0 0
    %2115 = vmatprep.subr.bf16.mxu0 0
    %2116 = vmatpush1.bf16.msra.mxu0 0
    %2117 = vmatprep.subr.bf16.mxu0 0
    %2118 = vmatpush1.bf16.msra.mxu0 0
    %2119 = vmatprep.subr.bf16.mxu0 0
    %2120 = vmatpush1.bf16.msra.mxu0 0
    %2121 = vmatprep.subr.bf16.mxu0 0
    %2122 = vmatpush1.bf16.msra.mxu0 0
    %2123 = vmatprep.mubr.bf16.mxu0 0
    %2124 = vmatmul.mubr.bf16.gmra.mrb[0].mxu0 0
    %v2125 = vpop.f32.mrb[0].mxu0
    %v2126 = vadd.f32 0.0, %v2125
    %v2127 = vpop.f32.mrb[0].mxu0
    %v2128 = vadd.f32 0.0, %v2127
    %v2129 = vpop.f32.mrb[0].mxu0
    %v2130 = vpop.f32.mrb[0].mxu0
    %2131 = vdwg.mxu0
    %2132 = vmatprep.subr.bf16.mxu0 %v2030
    %2133 = vmatpush1.bf16.msra.mxu0 %v2029
    %2134 = vmatprep.subr.bf16.mxu0 %v2034
    %2135 = vmatpush1.bf16.msra.mxu0 %v2033
    %2136 = vmatprep.subr.bf16.mxu0 %v2038
    %2137 = vmatpush1.bf16.msra.mxu0 %v2037
    %2138 = vmatprep.subr.bf16.mxu0 %v2042
    %2139 = vmatpush1.bf16.msra.mxu0 %v2041
    %2140 = vmatprep.subr.bf16.mxu0 %v2046
    %2141 = vmatpush1.bf16.msra.mxu0 %v2045
    %2142 = vmatprep.subr.bf16.mxu0 %v2050
    %2143 = vmatpush1.bf16.msra.mxu0 %v2049
    %2144 = vmatprep.subr.bf16.mxu0 %v2054
    %2145 = vmatpush1.bf16.msra.mxu0 %v2053
    %2146 = vmatprep.subr.bf16.mxu0 %v2058
    %2147 = vmatpush1.bf16.msra.mxu0 %v2057
    %2148 = vmatprep.subr.bf16.mxu0 0
    %2149 = vmatpush1.bf16.msra.mxu0 0
    %2150 = vmatprep.subr.bf16.mxu0 0
    %2151 = vmatpush1.bf16.msra.mxu0 0
    %2152 = vmatprep.subr.bf16.mxu0 0
    %2153 = vmatpush1.bf16.msra.mxu0 0
    %2154 = vmatprep.subr.bf16.mxu0 0
    %2155 = vmatpush1.bf16.msra.mxu0 0
    %2156 = vmatprep.subr.bf16.mxu0 0
    %2157 = vmatpush1.bf16.msra.mxu0 0
    %2158 = vmatprep.subr.bf16.mxu0 0
    %2159 = vmatpush1.bf16.msra.mxu0 0
    %2160 = vmatprep.subr.bf16.mxu0 0
    %2161 = vmatpush1.bf16.msra.mxu0 0
    %2162 = vmatprep.subr.bf16.mxu0 0
    %2163 = vmatpush1.bf16.msra.mxu0 0
    %2164 = vmatprep.mubr.bf16.mxu0 0
    %2165 = vmatmul.mubr.bf16.gmra.mrb[0].mxu0 0
    %v2166 = vpop.f32.mrb[0].mxu0
    %v2167 = vadd.f32 0.0, %v2166
    %v2168 = vpop.f32.mrb[0].mxu0
    %v2169 = vadd.f32 0.0, %v2168
    %v2170 = vpop.f32.mrb[0].mxu0
    %v2171 = vpop.f32.mrb[0].mxu0
    %2172 = vdwg.mxu0
    %v2173 = vadd.f32 %v1820, %v2126
    %v2174 = vadd.f32 %v1822, %v2128
    %v2175 = vadd.f32 %v1893, %v2167
    %v2176 = vadd.f32 %v1895, %v2169
    %v2177 = vmul.f32 %v2173, 0.5
    %v2178 = vmul.f32 %v2174, 0.5
    %v2179 = vmul.f32 %v2175, 0.5
    %v2180 = vtanh.pop %v2177
    %v2181 = vtanh.pop %v2178
    %v2182 = vtanh.pop %v2179
    %v2183 = vmul.f32 %v2180, 0.5
    %v2184 = vmul.f32 %v2181, 0.5
    %v2185 = vmul.f32 %v2182, 0.5
    %v2186 = vadd.f32 %v2183, 0.5
    %v2187 = vadd.f32 %v2184, 0.5
    %v2188 = vadd.f32 %v2185, 0.5
    %v2189 = vtanh.pop %v2176
    %v2190 = vmul.f32 %v2187, 0.0
    %v2191 = vmul.f32 %v2186, %v2189
    %v2192 = vadd.f32 %v2190, %v2191
    %v2193 = vtanh.pop %v2192
    %v2194 = vmul.f32 %v2188, %v2193
    %v2195 = vpack.c.bf16 %v2194, %v2194
    %2196 = vst [vmem:[#allocation2] sm:$0xf] %v2195
    %2197 = vmatprep.subr.bf16.mxu0 %v2028
    %2198 = vmatpush1.bf16.msra.mxu0 %v2027
    %2199 = vmatprep.subr.bf16.mxu0 %v2032
    %2200 = vmatpush1.bf16.msra.mxu0 %v2031
    %2201 = vmatprep.subr.bf16.mxu0 %v2036
    %2202 = vmatpush1.bf16.msra.mxu0 %v2035
    %2203 = vmatprep.subr.bf16.mxu0 %v2040
    %2204 = vmatpush1.bf16.msra.mxu0 %v2039
    %2205 = vmatprep.subr.bf16.mxu0 %v2044
    %2206 = vmatpush1.bf16.msra.mxu0 %v2043
    %2207 = vmatprep.subr.bf16.mxu0 %v2048
    %2208 = vmatpush1.bf16.msra.mxu0 %v2047
    %2209 = vmatprep.subr.bf16.mxu0 %v2052
    %2210 = vmatpush1.bf16.msra.mxu0 %v2051
    %2211 = vmatprep.subr.bf16.mxu0 %v2056
    %2212 = vmatpush1.bf16.msra.mxu0 %v2055
    %2213 = vmatprep.subr.bf16.mxu0 0
    %2214 = vmatpush1.bf16.msra.mxu0 0
    %2215 = vmatprep.subr.bf16.mxu0 0
    %2216 = vmatpush1.bf16.msra.mxu0 0
    %2217 = vmatprep.subr.bf16.mxu0 0
    %2218 = vmatpush1.bf16.msra.mxu0 0
    %2219 = vmatprep.subr.bf16.mxu0 0
    %2220 = vmatpush1.bf16.msra.mxu0 0
    %2221 = vmatprep.subr.bf16.mxu0 0
    %2222 = vmatpush1.bf16.msra.mxu0 0
    %2223 = vmatprep.subr.bf16.mxu0 0
    %2224 = vmatpush1.bf16.msra.mxu0 0
    %2225 = vmatprep.subr.bf16.mxu0 0
    %2226 = vmatpush1.bf16.msra.mxu0 0
    %2227 = vmatprep.subr.bf16.mxu0 0
    %2228 = vmatpush1.bf16.msra.mxu0 0
    %2229 = vmatprep.mubr.bf16.mxu0 0
    %2230 = vmatmul.mubr.bf16.gmra.mrb[0].mxu0 %v2195
    %v2231 = vpop.f32.mrb[0].mxu0
    %v2232 = vadd.f32 0.0, %v2231
    %v2233 = vpop.f32.mrb[0].mxu0
    %v2234 = vadd.f32 0.0, %v2233
    %v2235 = vpop.f32.mrb[0].mxu0
    %v2236 = vpop.f32.mrb[0].mxu0
    %2237 = vdwg.mxu0
    %2238 = vmatprep.subr.bf16.mxu0 %v2030
    %2239 = vmatpush1.bf16.msra.mxu0 %v2029
    %2240 = vmatprep.subr.bf16.mxu0 %v2034
    %2241 = vmatpush1.bf16.msra.mxu0 %v2033
    %2242 = vmatprep.subr.bf16.mxu0 %v2038
    %2243 = vmatpush1.bf16.msra.mxu0 %v2037
    %2244 = vmatprep.subr.bf16.mxu0 %v2042
    %2245 = vmatpush1.bf16.msra.mxu0 %v2041
    %2246 = vmatprep.subr.bf16.mxu0 %v2046
    %2247 = vmatpush1.bf16.msra.mxu0 %v2045
    %2248 = vmatprep.subr.bf16.mxu0 %v2050
    %2249 = vmatpush1.bf16.msra.mxu0 %v2049
    %2250 = vmatprep.subr.bf16.mxu0 %v2054
    %2251 = vmatpush1.bf16.msra.mxu0 %v2053
    %2252 = vmatprep.subr.bf16.mxu0 %v2058
    %2253 = vmatpush1.bf16.msra.mxu0 %v2057
    %2254 = vmatprep.subr.bf16.mxu0 0
    %2255 = vmatpush1.bf16.msra.mxu0 0
    %2256 = vmatprep.subr.bf16.mxu0 0
    %2257 = vmatpush1.bf16.msra.mxu0 0
    %2258 = vmatprep.subr.bf16.mxu0 0
    %2259 = vmatpush1.bf16.msra.mxu0 0
    %2260 = vmatprep.subr.bf16.mxu0 0
    %2261 = vmatpush1.bf16.msra.mxu0 0
    %2262 = vmatprep.subr.bf16.mxu0 0
    %2263 = vmatpush1.bf16.msra.mxu0 0
    %2264 = vmatprep.subr.bf16.mxu0 0
    %2265 = vmatpush1.bf16.msra.mxu0 0
    %2266 = vmatprep.subr.bf16.mxu0 0
    %2267 = vmatpush1.bf16.msra.mxu0 0
    %2268 = vmatprep.subr.bf16.mxu0 0
    %2269 = vmatpush1.bf16.msra.mxu0 0
    %2270 = vmatprep.mubr.bf16.mxu0 0
    %2271 = vmatmul.mubr.bf16.gmra.mrb[0].mxu0 %v2195
    %v2272 = vpop.f32.mrb[0].mxu0
    %v2273 = vadd.f32 0.0, %v2272
    %v2274 = vpop.f32.mrb[0].mxu0
    %v2275 = vadd.f32 0.0, %v2274
    %v2276 = vpop.f32.mrb[0].mxu0
    %v2277 = vpop.f32.mrb[0].mxu0
    %2278 = vdwg.mxu0
    %v2279 = vadd.f32 %v1824, %v2232
    %v2280 = vadd.f32 %v1826, %v2234
    %v2281 = vadd.f32 %v1897, %v2273
    %v2282 = vadd.f32 %v1899, %v2275
    %v2283 = vmul.f32 %v2279, 0.5
    %v2284 = vmul.f32 %v2280, 0.5
    %v2285 = vmul.f32 %v2281, 0.5
    %v2286 = vtanh.pop %v2283
    %v2287 = vtanh.pop %v2284
    %v2288 = vtanh.pop %v2285
    %v2289 = vmul.f32 %v2286, 0.5
    %v2290 = vmul.f32 %v2287, 0.5
    %v2291 = vmul.f32 %v2288, 0.5
    %v2292 = vadd.f32 %v2289, 0.5
    %v2293 = vadd.f32 %v2290, 0.5
    %v2294 = vadd.f32 %v2291, 0.5
    %v2295 = vtanh.pop %v2282
    %v2296 = vmul.f32 %v2293, %v2192
    %v2297 = vmul.f32 %v2292, %v2295
    %v2298 = vadd.f32 %v2296, %v2297
    %v2299 = vtanh.pop %v2298
    %v2300 = vmul.f32 %v2294, %v2299
    %v2301 = vpack.c.bf16 %v2300, %v2300
    %2302 = vst [vmem:[%s860] sm:$0xf] %v2301
    %2303 = vmatprep.subr.bf16.mxu0 %v2028
    %2304 = vmatpush1.bf16.msra.mxu0 %v2027
    %2305 = vmatprep.subr.bf16.mxu0 %v2032
    %2306 = vmatpush1.bf16.msra.mxu0 %v2031
    %2307 = vmatprep.subr.bf16.mxu0 %v2036
    %2308 = vmatpush1.bf16.msra.mxu0 %v2035
    %2309 = vmatprep.subr.bf16.mxu0 %v2040
    %2310 = vmatpush1.bf16.msra.mxu0 %v2039
    %2311 = vmatprep.subr.bf16.mxu0 %v2044
    %2312 = vmatpush1.bf16.msra.mxu0 %v2043
    %2313 = vmatprep.subr.bf16.mxu0 %v2048
    %2314 = vmatpush1.bf16.msra.mxu0 %v2047
    %2315 = vmatprep.subr.bf16.mxu0 %v2052
    %2316 = vmatpush1.bf16.msra.mxu0 %v2051
    %2317 = vmatprep.subr.bf16.mxu0 %v2056
    %2318 = vmatpush1.bf16.msra.mxu0 %v2055
    %2319 = vmatprep.subr.bf16.mxu0 0
    %2320 = vmatpush1.bf16.msra.mxu0 0
    %2321 = vmatprep.subr.bf16.mxu0 0
    %2322 = vmatpush1.bf16.msra.mxu0 0
    %2323 = vmatprep.subr.bf16.mxu0 0
    %2324 = vmatpush1.bf16.msra.mxu0 0
    %2325 = vmatprep.subr.bf16.mxu0 0
    %2326 = vmatpush1.bf16.msra.mxu0 0
    %2327 = vmatprep.subr.bf16.mxu0 0
    %2328 = vmatpush1.bf16.msra.mxu0 0
    %2329 = vmatprep.subr.bf16.mxu0 0
    %2330 = vmatpush1.bf16.msra.mxu0 0
    %2331 = vmatprep.subr.bf16.mxu0 0
    %2332 = vmatpush1.bf16.msra.mxu0 0
    %2333 = vmatprep.subr.bf16.mxu0 0
    %2334 = vmatpush1.bf16.msra.mxu0 0
    %2335 = vmatprep.mubr.bf16.mxu0 0
    %2336 = vmatmul.mubr.bf16.gmra.mrb[0].mxu0 %v2301
    %v2337 = vpop.f32.mrb[0].mxu0
    %v2338 = vadd.f32 0.0, %v2337
    %v2339 = vpop.f32.mrb[0].mxu0
    %v2340 = vadd.f32 0.0, %v2339
    %v2341 = vpop.f32.mrb[0].mxu0
    %v2342 = vpop.f32.mrb[0].mxu0
    %2343 = vdwg.mxu0
    %2344 = vmatprep.subr.bf16.mxu0 %v2030
    %2345 = vmatpush1.bf16.msra.mxu0 %v2029
    %2346 = vmatprep.subr.bf16.mxu0 %v2034
    %2347 = vmatpush1.bf16.msra.mxu0 %v2033
    %2348 = vmatprep.subr.bf16.mxu0 %v2038
    %2349 = vmatpush1.bf16.msra.mxu0 %v2037
    %2350 = vmatprep.subr.bf16.mxu0 %v2042
    %2351 = vmatpush1.bf16.msra.mxu0 %v2041
    %2352 = vmatprep.subr.bf16.mxu0 %v2046
    %2353 = vmatpush1.bf16.msra.mxu0 %v2045
    %2354 = vmatprep.subr.bf16.mxu0 %v2050
    %2355 = vmatpush1.bf16.msra.mxu0 %v2049
    %2356 = vmatprep.subr.bf16.mxu0 %v2054
    %2357 = vmatpush1.bf16.msra.mxu0 %v2053
    %2358 = vmatprep.subr.bf16.mxu0 %v2058
    %2359 = vmatpush1.bf16.msra.mxu0 %v2057
    %2360 = vmatprep.subr.bf16.mxu0 0
    %2361 = vmatpush1.bf16.msra.mxu0 0
    %2362 = vmatprep.subr.bf16.mxu0 0
    %2363 = vmatpush1.bf16.msra.mxu0 0
    %2364 = vmatprep.subr.bf16.mxu0 0
    %2365 = vmatpush1.bf16.msra.mxu0 0
    %2366 = vmatprep.subr.bf16.mxu0 0
    %2367 = vmatpush1.bf16.msra.mxu0 0
    %2368 = vmatprep.subr.bf16.mxu0 0
    %2369 = vmatpush1.bf16.msra.mxu0 0
    %2370 = vmatprep.subr.bf16.mxu0 0
    %2371 = vmatpush1.bf16.msra.mxu0 0
    %2372 = vmatprep.subr.bf16.mxu0 0
    %2373 = vmatpush1.bf16.msra.mxu0 0
    %2374 = vmatprep.subr.bf16.mxu0 0
    %2375 = vmatpush1.bf16.msra.mxu0 0
    %2376 = vmatprep.mubr.bf16.mxu0 0
    %2377 = vmatmul.mubr.bf16.gmra.mrb[0].mxu0 %v2301
    %v2378 = vpop.f32.mrb[0].mxu0
    %v2379 = vadd.f32 0.0, %v2378
    %v2380 = vpop.f32.mrb[0].mxu0
    %v2381 = vadd.f32 0.0, %v2380
    %v2382 = vpop.f32.mrb[0].mxu0
    %v2383 = vpop.f32.mrb[0].mxu0
    %2384 = vdwg.mxu0
    %v2385 = vadd.f32 %v1830, %v2338
    %v2386 = vadd.f32 %v1832, %v2340
    %v2387 = vadd.f32 %v1903, %v2379
    %v2388 = vadd.f32 %v1905, %v2381
    %v2389 = vmul.f32 %v2385, 0.5
    %v2390 = vmul.f32 %v2386, 0.5
    %v2391 = vmul.f32 %v2387, 0.5
    %v2392 = vtanh.pop %v2389
    %v2393 = vtanh.pop %v2390
    %v2394 = vtanh.pop %v2391
    %v2395 = vmul.f32 %v2392, 0.5
    %v2396 = vmul.f32 %v2393, 0.5
    %v2397 = vmul.f32 %v2394, 0.5
    %v2398 = vadd.f32 %v2395, 0.5
    %v2399 = vadd.f32 %v2396, 0.5
    %v2400 = vadd.f32 %v2397, 0.5
    %v2401 = vtanh.pop %v2388
    %v2402 = vmul.f32 %v2399, %v2298
    %v2403 = vmul.f32 %v2398, %v2401
    %v2404 = vadd.f32 %v2402, %v2403
    %v2405 = vtanh.pop %v2404
    %v2406 = vmul.f32 %v2400, %v2405
    %v2407 = vpack.c.bf16 %v2406, %v2406
    %2408 = vst [vmem:[%s967] sm:$0xf] %v2407
    %2409 = vmatprep.subr.bf16.mxu0 %v2028
    %2410 = vmatpush1.bf16.msra.mxu0 %v2027
    %2411 = vmatprep.subr.bf16.mxu0 %v2032
    %2412 = vmatpush1.bf16.msra.mxu0 %v2031
    %2413 = vmatprep.subr.bf16.mxu0 %v2036
    %2414 = vmatpush1.bf16.msra.mxu0 %v2035
    %2415 = vmatprep.subr.bf16.mxu0 %v2040
    %2416 = vmatpush1.bf16.msra.mxu0 %v2039
    %2417 = vmatprep.subr.bf16.mxu0 %v2044
    %2418 = vmatpush1.bf16.msra.mxu0 %v2043
    %2419 = vmatprep.subr.bf16.mxu0 %v2048
    %2420 = vmatpush1.bf16.msra.mxu0 %v2047
    %2421 = vmatprep.subr.bf16.mxu0 %v2052
    %2422 = vmatpush1.bf16.msra.mxu0 %v2051
    %2423 = vmatprep.subr.bf16.mxu0 %v2056
    %2424 = vmatpush1.bf16.msra.mxu0 %v2055
    %2425 = vmatprep.subr.bf16.mxu0 0
    %2426 = vmatpush1.bf16.msra.mxu0 0
    %2427 = vmatprep.subr.bf16.mxu0 0
    %2428 = vmatpush1.bf16.msra.mxu0 0
    %2429 = vmatprep.subr.bf16.mxu0 0
    %2430 = vmatpush1.bf16.msra.mxu0 0
    %2431 = vmatprep.subr.bf16.mxu0 0
    %2432 = vmatpush1.bf16.msra.mxu0 0
    %2433 = vmatprep.subr.bf16.mxu0 0
    %2434 = vmatpush1.bf16.msra.mxu0 0
    %2435 = vmatprep.subr.bf16.mxu0 0
    %2436 = vmatpush1.bf16.msra.mxu0 0
    %2437 = vmatprep.subr.bf16.mxu0 0
    %2438 = vmatpush1.bf16.msra.mxu0 0
    %2439 = vmatprep.subr.bf16.mxu0 0
    %2440 = vmatpush1.bf16.msra.mxu0 0
    %2441 = vmatprep.mubr.bf16.mxu0 0
    %2442 = vmatmul.mubr.bf16.gmra.mrb[0].mxu0 %v2407
    %v2443 = vpop.f32.mrb[0].mxu0
    %v2444 = vadd.f32 0.0, %v2443
    %v2445 = vpop.f32.mrb[0].mxu0
    %v2446 = vadd.f32 0.0, %v2445
    %v2447 = vpop.f32.mrb[0].mxu0
    %v2448 = vpop.f32.mrb[0].mxu0
    %2449 = vdwg.mxu0
    %2450 = vmatprep.subr.bf16.mxu0 %v2030
    %2451 = vmatpush1.bf16.msra.mxu0 %v2029
    %2452 = vmatprep.subr.bf16.mxu0 %v2034
    %2453 = vmatpush1.bf16.msra.mxu0 %v2033
    %2454 = vmatprep.subr.bf16.mxu0 %v2038
    %2455 = vmatpush1.bf16.msra.mxu0 %v2037
    %2456 = vmatprep.subr.bf16.mxu0 %v2042
    %2457 = vmatpush1.bf16.msra.mxu0 %v2041
    %2458 = vmatprep.subr.bf16.mxu0 %v2046
    %2459 = vmatpush1.bf16.msra.mxu0 %v2045
    %2460 = vmatprep.subr.bf16.mxu0 %v2050
    %2461 = vmatpush1.bf16.msra.mxu0 %v2049
    %2462 = vmatprep.subr.bf16.mxu0 %v2054
    %2463 = vmatpush1.bf16.msra.mxu0 %v2053
    %2464 = vmatprep.subr.bf16.mxu0 %v2058
    %2465 = vmatpush1.bf16.msra.mxu0 %v2057
    %2466 = vmatprep.subr.bf16.mxu0 0
    %2467 = vmatpush1.bf16.msra.mxu0 0
    %2468 = vmatprep.subr.bf16.mxu0 0
    %2469 = vmatpush1.bf16.msra.mxu0 0
    %2470 = vmatprep.subr.bf16.mxu0 0
    %2471 = vmatpush1.bf16.msra.mxu0 0
    %2472 = vmatprep.subr.bf16.mxu0 0
    %2473 = vmatpush1.bf16.msra.mxu0 0
    %2474 = vmatprep.subr.bf16.mxu0 0
    %2475 = vmatpush1.bf16.msra.mxu0 0
    %2476 = vmatprep.subr.bf16.mxu0 0
    %2477 = vmatpush1.bf16.msra.mxu0 0
    %2478 = vmatprep.subr.bf16.mxu0 0
    %2479 = vmatpush1.bf16.msra.mxu0 0
    %2480 = vmatprep.subr.bf16.mxu0 0
    %2481 = vmatpush1.bf16.msra.mxu0 0
    %2482 = vmatprep.mubr.bf16.mxu0 0
    %2483 = vmatmul.mubr.bf16.gmra.mrb[0].mxu0 %v2407
    %v2484 = vpop.f32.mrb[0].mxu0
    %v2485 = vadd.f32 0.0, %v2484
    %v2486 = vpop.f32.mrb[0].mxu0
    %v2487 = vadd.f32 0.0, %v2486
    %v2488 = vpop.f32.mrb[0].mxu0
    %v2489 = vpop.f32.mrb[0].mxu0
    %2490 = vdwg.mxu0
    %v2491 = vadd.f32 %v1834, %v2444
    %v2492 = vadd.f32 %v1836, %v2446
    %v2493 = vadd.f32 %v1907, %v2485
    %v2494 = vadd.f32 %v1909, %v2487
    %v2495 = vmul.f32 %v2491, 0.5
    %v2496 = vmul.f32 %v2492, 0.5
    %v2497 = vmul.f32 %v2493, 0.5
    %v2498 = vtanh.pop %v2495
    %v2499 = vtanh.pop %v2496
    %v2500 = vtanh.pop %v2497
    %v2501 = vmul.f32 %v2498, 0.5
    %v2502 = vmul.f32 %v2499, 0.5
    %v2503 = vmul.f32 %v2500, 0.5
    %v2504 = vadd.f32 %v2501, 0.5
    %v2505 = vadd.f32 %v2502, 0.5
    %v2506 = vadd.f32 %v2503, 0.5
    %v2507 = vtanh.pop %v2494
    %v2508 = vmul.f32 %v2505, %v2404
    %v2509 = vmul.f32 %v2504, %v2507
    %v2510 = vadd.f32 %v2508, %v2509
    %v2511 = vtanh.pop %v2510
    %v2512 = vmul.f32 %v2506, %v2511
    %v2513 = vpack.c.bf16 %v2512, %v2512
    %2514 = vst [vmem:[%s1074] sm:$0xf] %v2513
    %2515 = vmatprep.subr.bf16.mxu0 %v2028
    %2516 = vmatpush1.bf16.msra.mxu0 %v2027
    %2517 = vmatprep.subr.bf16.mxu0 %v2032
    %2518 = vmatpush1.bf16.msra.mxu0 %v2031
    %2519 = vmatprep.subr.bf16.mxu0 %v2036
    %2520 = vmatpush1.bf16.msra.mxu0 %v2035
    %2521 = vmatprep.subr.bf16.mxu0 %v2040
    %2522 = vmatpush1.bf16.msra.mxu0 %v2039
    %2523 = vmatprep.subr.bf16.mxu0 %v2044
    %2524 = vmatpush1.bf16.msra.mxu0 %v2043
    %2525 = vmatprep.subr.bf16.mxu0 %v2048
    %2526 = vmatpush1.bf16.msra.mxu0 %v2047
    %2527 = vmatprep.subr.bf16.mxu0 %v2052
    %2528 = vmatpush1.bf16.msra.mxu0 %v2051
    %2529 = vmatprep.subr.bf16.mxu0 %v2056
    %2530 = vmatpush1.bf16.msra.mxu0 %v2055
    %2531 = vmatprep.subr.bf16.mxu0 0
    %2532 = vmatpush1.bf16.msra.mxu0 0
    %2533 = vmatprep.subr.bf16.mxu0 0
    %2534 = vmatpush1.bf16.msra.mxu0 0
    %2535 = vmatprep.subr.bf16.mxu0 0
    %2536 = vmatpush1.bf16.msra.mxu0 0
    %2537 = vmatprep.subr.bf16.mxu0 0
    %2538 = vmatpush1.bf16.msra.mxu0 0
    %2539 = vmatprep.subr.bf16.mxu0 0
    %2540 = vmatpush1.bf16.msra.mxu0 0
    %2541 = vmatprep.subr.bf16.mxu0 0
    %2542 = vmatpush1.bf16.msra.mxu0 0
    %2543 = vmatprep.subr.bf16.mxu0 0
    %2544 = vmatpush1.bf16.msra.mxu0 0
    %2545 = vmatprep.subr.bf16.mxu0 0
    %2546 = vmatpush1.bf16.msra.mxu0 0
    %2547 = vmatprep.mubr.bf16.mxu0 0
    %2548 = vmatmul.mubr.bf16.gmra.mrb[0].mxu0 %v2513
    %v2549 = vpop.f32.mrb[0].mxu0
    %v2550 = vadd.f32 0.0, %v2549
    %v2551 = vpop.f32.mrb[0].mxu0
    %v2552 = vadd.f32 0.0, %v2551
    %v2553 = vpop.f32.mrb[0].mxu0
    %v2554 = vpop.f32.mrb[0].mxu0
    %2555 = vdwg.mxu0
    %2556 = vmatprep.subr.bf16.mxu0 %v2030
    %2557 = vmatpush1.bf16.msra.mxu0 %v2029
    %2558 = vmatprep.subr.bf16.mxu0 %v2034
    %2559 = vmatpush1.bf16.msra.mxu0 %v2033
    %2560 = vmatprep.subr.bf16.mxu0 %v2038
    %2561 = vmatpush1.bf16.msra.mxu0 %v2037
    %2562 = vmatprep.subr.bf16.mxu0 %v2042
    %2563 = vmatpush1.bf16.msra.mxu0 %v2041
    %2564 = vmatprep.subr.bf16.mxu0 %v2046
    %2565 = vmatpush1.bf16.msra.mxu0 %v2045
    %2566 = vmatprep.subr.bf16.mxu0 %v2050
    %2567 = vmatpush1.bf16.msra.mxu0 %v2049
    %2568 = vmatprep.subr.bf16.mxu0 %v2054
    %2569 = vmatpush1.bf16.msra.mxu0 %v2053
    %2570 = vmatprep.subr.bf16.mxu0 %v2058
    %2571 = vmatpush1.bf16.msra.mxu0 %v2057
    %2572 = vmatprep.subr.bf16.mxu0 0
    %2573 = vmatpush1.bf16.msra.mxu0 0
    %2574 = vmatprep.subr.bf16.mxu0 0
    %2575 = vmatpush1.bf16.msra.mxu0 0
    %2576 = vmatprep.subr.bf16.mxu0 0
    %2577 = vmatpush1.bf16.msra.mxu0 0
    %2578 = vmatprep.subr.bf16.mxu0 0
    %2579 = vmatpush1.bf16.msra.mxu0 0
    %2580 = vmatprep.subr.bf16.mxu0 0
    %2581 = vmatpush1.bf16.msra.mxu0 0
    %2582 = vmatprep.subr.bf16.mxu0 0
    %2583 = vmatpush1.bf16.msra.mxu0 0
    %2584 = vmatprep.subr.bf16.mxu0 0
    %2585 = vmatpush1.bf16.msra.mxu0 0
    %2586 = vmatprep.subr.bf16.mxu0 0
    %2587 = vmatpush1.bf16.msra.mxu0 0
    %2588 = vmatprep.mubr.bf16.mxu0 0
    %2589 = vmatmul.mubr.bf16.gmra.mrb[0].mxu0 %v2513
    %v2590 = vpop.f32.mrb[0].mxu0
    %v2591 = vadd.f32 0.0, %v2590
    %v2592 = vpop.f32.mrb[0].mxu0
    %v2593 = vadd.f32 0.0, %v2592
    %v2594 = vpop.f32.mrb[0].mxu0
    %v2595 = vpop.f32.mrb[0].mxu0
    %2596 = vdwg.mxu0
    %v2597 = vadd.f32 %v1840, %v2550
    %v2598 = vadd.f32 %v1842, %v2552
    %v2599 = vadd.f32 %v1913, %v2591
    %v2600 = vadd.f32 %v1915, %v2593
    %v2601 = vmul.f32 %v2597, 0.5
    %v2602 = vmul.f32 %v2598, 0.5
    %v2603 = vmul.f32 %v2599, 0.5
    %v2604 = vtanh.pop %v2601
    %v2605 = vtanh.pop %v2602
    %v2606 = vtanh.pop %v2603
    %v2607 = vmul.f32 %v2604, 0.5
    %v2608 = vmul.f32 %v2605, 0.5
    %v2609 = vmul.f32 %v2606, 0.5
    %v2610 = vadd.f32 %v2607, 0.5
    %v2611 = vadd.f32 %v2608, 0.5
    %v2612 = vadd.f32 %v2609, 0.5
    %v2613 = vtanh.pop %v2600
    %v2614 = vmul.f32 %v2611, %v2510
    %v2615 = vmul.f32 %v2610, %v2613
    %v2616 = vadd.f32 %v2614, %v2615
    %v2617 = vtanh.pop %v2616
    %v2618 = vmul.f32 %v2612, %v2617
    %v2619 = vpack.c.bf16 %v2618, %v2618
    %2620 = vst [vmem:[%s1181] sm:$0xf] %v2619
    %2621 = vmatprep.subr.bf16.mxu0 %v2028
    %2622 = vmatpush1.bf16.msra.mxu0 %v2027
    %2623 = vmatprep.subr.bf16.mxu0 %v2032
    %2624 = vmatpush1.bf16.msra.mxu0 %v2031
    %2625 = vmatprep.subr.bf16.mxu0 %v2036
    %2626 = vmatpush1.bf16.msra.mxu0 %v2035
    %2627 = vmatprep.subr.bf16.mxu0 %v2040
    %2628 = vmatpush1.bf16.msra.mxu0 %v2039
    %2629 = vmatprep.subr.bf16.mxu0 %v2044
    %2630 = vmatpush1.bf16.msra.mxu0 %v2043
    %2631 = vmatprep.subr.bf16.mxu0 %v2048
    %2632 = vmatpush1.bf16.msra.mxu0 %v2047
    %2633 = vmatprep.subr.bf16.mxu0 %v2052
    %2634 = vmatpush1.bf16.msra.mxu0 %v2051
    %2635 = vmatprep.subr.bf16.mxu0 %v2056
    %2636 = vmatpush1.bf16.msra.mxu0 %v2055
    %2637 = vmatprep.subr.bf16.mxu0 0
    %2638 = vmatpush1.bf16.msra.mxu0 0
    %2639 = vmatprep.subr.bf16.mxu0 0
    %2640 = vmatpush1.bf16.msra.mxu0 0
    %2641 = vmatprep.subr.bf16.mxu0 0
    %2642 = vmatpush1.bf16.msra.mxu0 0
    %2643 = vmatprep.subr.bf16.mxu0 0
    %2644 = vmatpush1.bf16.msra.mxu0 0
    %2645 = vmatprep.subr.bf16.mxu0 0
    %2646 = vmatpush1.bf16.msra.mxu0 0
    %2647 = vmatprep.subr.bf16.mxu0 0
    %2648 = vmatpush1.bf16.msra.mxu0 0
    %2649 = vmatprep.subr.bf16.mxu0 0
    %2650 = vmatpush1.bf16.msra.mxu0 0
    %2651 = vmatprep.subr.bf16.mxu0 0
    %2652 = vmatpush1.bf16.msra.mxu0 0
    %2653 = vmatprep.mubr.bf16.mxu0 0
    %2654 = vmatmul.mubr.bf16.gmra.mrb[0].mxu0 %v2619
    %v2655 = vpop.f32.mrb[0].mxu0
    %v2656 = vadd.f32 0.0, %v2655
    %v2657 = vpop.f32.mrb[0].mxu0
    %v2658 = vadd.f32 0.0, %v2657
    %v2659 = vpop.f32.mrb[0].mxu0
    %v2660 = vpop.f32.mrb[0].mxu0
    %2661 = vdwg.mxu0
    %2662 = vmatprep.subr.bf16.mxu0 %v2030
    %2663 = vmatpush1.bf16.msra.mxu0 %v2029
    %2664 = vmatprep.subr.bf16.mxu0 %v2034
    %2665 = vmatpush1.bf16.msra.mxu0 %v2033
    %2666 = vmatprep.subr.bf16.mxu0 %v2038
    %2667 = vmatpush1.bf16.msra.mxu0 %v2037
    %2668 = vmatprep.subr.bf16.mxu0 %v2042
    %2669 = vmatpush1.bf16.msra.mxu0 %v2041
    %2670 = vmatprep.subr.bf16.mxu0 %v2046
    %2671 = vmatpush1.bf16.msra.mxu0 %v2045
    %2672 = vmatprep.subr.bf16.mxu0 %v2050
    %2673 = vmatpush1.bf16.msra.mxu0 %v2049
    %2674 = vmatprep.subr.bf16.mxu0 %v2054
    %2675 = vmatpush1.bf16.msra.mxu0 %v2053
    %2676 = vmatprep.subr.bf16.mxu0 %v2058
    %2677 = vmatpush1.bf16.msra.mxu0 %v2057
    %2678 = vmatprep.subr.bf16.mxu0 0
    %2679 = vmatpush1.bf16.msra.mxu0 0
    %2680 = vmatprep.subr.bf16.mxu0 0
    %2681 = vmatpush1.bf16.msra.mxu0 0
    %2682 = vmatprep.subr.bf16.mxu0 0
    %2683 = vmatpush1.bf16.msra.mxu0 0
    %2684 = vmatprep.subr.bf16.mxu0 0
    %2685 = vmatpush1.bf16.msra.mxu0 0
    %2686 = vmatprep.subr.bf16.mxu0 0
    %2687 = vmatpush1.bf16.msra.mxu0 0
    %2688 = vmatprep.subr.bf16.mxu0 0
    %2689 = vmatpush1.bf16.msra.mxu0 0
    %2690 = vmatprep.subr.bf16.mxu0 0
    %2691 = vmatpush1.bf16.msra.mxu0 0
    %2692 = vmatprep.subr.bf16.mxu0 0
    %2693 = vmatpush1.bf16.msra.mxu0 0
    %2694 = vmatprep.mubr.bf16.mxu0 0
    %2695 = vmatmul.mubr.bf16.gmra.mrb[0].mxu0 %v2619
    %v2696 = vpop.f32.mrb[0].mxu0
    %v2697 = vadd.f32 0.0, %v2696
    %v2698 = vpop.f32.mrb[0].mxu0
    %v2699 = vadd.f32 0.0, %v2698
    %v2700 = vpop.f32.mrb[0].mxu0
    %v2701 = vpop.f32.mrb[0].mxu0
    %2702 = vdwg.mxu0
    %v2703 = vadd.f32 %v1844, %v2656
    %v2704 = vadd.f32 %v1846, %v2658
    %v2705 = vadd.f32 %v1917, %v2697
    %v2706 = vadd.f32 %v1919, %v2699
    %v2707 = vmul.f32 %v2703, 0.5
    %v2708 = vmul.f32 %v2704, 0.5
    %v2709 = vmul.f32 %v2705, 0.5
    %v2710 = vtanh.pop %v2707
    %v2711 = vtanh.pop %v2708
    %v2712 = vtanh.pop %v2709
    %v2713 = vmul.f32 %v2710, 0.5
    %v2714 = vmul.f32 %v2711, 0.5
    %v2715 = vmul.f32 %v2712, 0.5
    %v2716 = vadd.f32 %v2713, 0.5
    %v2717 = vadd.f32 %v2714, 0.5
    %v2718 = vadd.f32 %v2715, 0.5
    %v2719 = vtanh.pop %v2706
    %v2720 = vmul.f32 %v2717, %v2616
    %v2721 = vmul.f32 %v2716, %v2719
    %v2722 = vadd.f32 %v2720, %v2721
    %v2723 = vtanh.pop %v2722
    %v2724 = vmul.f32 %v2718, %v2723
    %v2725 = vpack.c.bf16 %v2724, %v2724
    %2726 = vst [vmem:[%s1288] sm:$0xf] %v2725
    %2727 = vmatprep.subr.bf16.mxu0 %v2028
    %2728 = vmatpush1.bf16.msra.mxu0 %v2027
    %2729 = vmatprep.subr.bf16.mxu0 %v2032
    %2730 = vmatpush1.bf16.msra.mxu0 %v2031
    %2731 = vmatprep.subr.bf16.mxu0 %v2036
    %2732 = vmatpush1.bf16.msra.mxu0 %v2035
    %2733 = vmatprep.subr.bf16.mxu0 %v2040
    %2734 = vmatpush1.bf16.msra.mxu0 %v2039
    %2735 = vmatprep.subr.bf16.mxu0 %v2044
    %2736 = vmatpush1.bf16.msra.mxu0 %v2043
    %2737 = vmatprep.subr.bf16.mxu0 %v2048
    %2738 = vmatpush1.bf16.msra.mxu0 %v2047
    %2739 = vmatprep.subr.bf16.mxu0 %v2052
    %2740 = vmatpush1.bf16.msra.mxu0 %v2051
    %2741 = vmatprep.subr.bf16.mxu0 %v2056
    %2742 = vmatpush1.bf16.msra.mxu0 %v2055
    %2743 = vmatprep.subr.bf16.mxu0 0
    %2744 = vmatpush1.bf16.msra.mxu0 0
    %2745 = vmatprep.subr.bf16.mxu0 0
    %2746 = vmatpush1.bf16.msra.mxu0 0
    %2747 = vmatprep.subr.bf16.mxu0 0
    %2748 = vmatpush1.bf16.msra.mxu0 0
    %2749 = vmatprep.subr.bf16.mxu0 0
    %2750 = vmatpush1.bf16.msra.mxu0 0
    %2751 = vmatprep.subr.bf16.mxu0 0
    %2752 = vmatpush1.bf16.msra.mxu0 0
    %2753 = vmatprep.subr.bf16.mxu0 0
    %2754 = vmatpush1.bf16.msra.mxu0 0
    %2755 = vmatprep.subr.bf16.mxu0 0
    %2756 = vmatpush1.bf16.msra.mxu0 0
    %2757 = vmatprep.subr.bf16.mxu0 0
    %2758 = vmatpush1.bf16.msra.mxu0 0
    %2759 = vmatprep.mubr.bf16.mxu0 0
    %2760 = vmatmul.mubr.bf16.gmra.mrb[0].mxu0 %v2725
    %v2761 = vpop.f32.mrb[0].mxu0
    %v2762 = vadd.f32 0.0, %v2761
    %v2763 = vpop.f32.mrb[0].mxu0
    %v2764 = vadd.f32 0.0, %v2763
    %v2765 = vpop.f32.mrb[0].mxu0
    %v2766 = vpop.f32.mrb[0].mxu0
    %2767 = vdwg.mxu0
    %2768 = vmatprep.subr.bf16.mxu0 %v2030
    %2769 = vmatpush1.bf16.msra.mxu0 %v2029
    %2770 = vmatprep.subr.bf16.mxu0 %v2034
    %2771 = vmatpush1.bf16.msra.mxu0 %v2033
    %2772 = vmatprep.subr.bf16.mxu0 %v2038
    %2773 = vmatpush1.bf16.msra.mxu0 %v2037
    %2774 = vmatprep.subr.bf16.mxu0 %v2042
    %2775 = vmatpush1.bf16.msra.mxu0 %v2041
    %2776 = vmatprep.subr.bf16.mxu0 %v2046
    %2777 = vmatpush1.bf16.msra.mxu0 %v2045
    %2778 = vmatprep.subr.bf16.mxu0 %v2050
    %2779 = vmatpush1.bf16.msra.mxu0 %v2049
    %2780 = vmatprep.subr.bf16.mxu0 %v2054
    %2781 = vmatpush1.bf16.msra.mxu0 %v2053
    %2782 = vmatprep.subr.bf16.mxu0 %v2058
    %2783 = vmatpush1.bf16.msra.mxu0 %v2057
    %2784 = vmatprep.subr.bf16.mxu0 0
    %2785 = vmatpush1.bf16.msra.mxu0 0
    %2786 = vmatprep.subr.bf16.mxu0 0
    %2787 = vmatpush1.bf16.msra.mxu0 0
    %2788 = vmatprep.subr.bf16.mxu0 0
    %2789 = vmatpush1.bf16.msra.mxu0 0
    %2790 = vmatprep.subr.bf16.mxu0 0
    %2791 = vmatpush1.bf16.msra.mxu0 0
    %2792 = vmatprep.subr.bf16.mxu0 0
    %2793 = vmatpush1.bf16.msra.mxu0 0
    %2794 = vmatprep.subr.bf16.mxu0 0
    %2795 = vmatpush1.bf16.msra.mxu0 0
    %2796 = vmatprep.subr.bf16.mxu0 0
    %2797 = vmatpush1.bf16.msra.mxu0 0
    %2798 = vmatprep.subr.bf16.mxu0 0
    %2799 = vmatpush1.bf16.msra.mxu0 0
    %2800 = vmatprep.mubr.bf16.mxu0 0
    %2801 = vmatmul.mubr.bf16.gmra.mrb[0].mxu0 %v2725
    %v2802 = vpop.f32.mrb[0].mxu0
    %v2803 = vadd.f32 0.0, %v2802
    %v2804 = vpop.f32.mrb[0].mxu0
    %v2805 = vadd.f32 0.0, %v2804
    %v2806 = vpop.f32.mrb[0].mxu0
    %v2807 = vpop.f32.mrb[0].mxu0
    %2808 = vdwg.mxu0
    %v2809 = vadd.f32 %v1850, %v2762
    %v2810 = vadd.f32 %v1852, %v2764
    %v2811 = vadd.f32 %v1923, %v2803
    %v2812 = vadd.f32 %v1925, %v2805
    %v2813 = vmul.f32 %v2809, 0.5
    %v2814 = vmul.f32 %v2810, 0.5
    %v2815 = vmul.f32 %v2811, 0.5
    %v2816 = vtanh.pop %v2813
    %v2817 = vtanh.pop %v2814
    %v2818 = vtanh.pop %v2815
    %v2819 = vmul.f32 %v2816, 0.5
    %v2820 = vmul.f32 %v2817, 0.5
    %v2821 = vmul.f32 %v2818, 0.5
    %v2822 = vadd.f32 %v2819, 0.5
    %v2823 = vadd.f32 %v2820, 0.5
    %v2824 = vadd.f32 %v2821, 0.5
    %v2825 = vtanh.pop %v2812
    %v2826 = vmul.f32 %v2823, %v2722
    %v2827 = vmul.f32 %v2822, %v2825
    %v2828 = vadd.f32 %v2826, %v2827
    %v2829 = vtanh.pop %v2828
    %v2830 = vmul.f32 %v2824, %v2829
    %v2831 = vpack.c.bf16 %v2830, %v2830
    %2832 = vst [vmem:[%s1395] sm:$0xf] %v2831
    %2833 = vmatprep.subr.bf16.mxu0 %v2028
    %2834 = vmatpush1.bf16.msra.mxu0 %v2027
    %2835 = vmatprep.subr.bf16.mxu0 %v2032
    %2836 = vmatpush1.bf16.msra.mxu0 %v2031
    %2837 = vmatprep.subr.bf16.mxu0 %v2036
    %2838 = vmatpush1.bf16.msra.mxu0 %v2035
    %2839 = vmatprep.subr.bf16.mxu0 %v2040
    %2840 = vmatpush1.bf16.msra.mxu0 %v2039
    %2841 = vmatprep.subr.bf16.mxu0 %v2044
    %2842 = vmatpush1.bf16.msra.mxu0 %v2043
    %2843 = vmatprep.subr.bf16.mxu0 %v2048
    %2844 = vmatpush1.bf16.msra.mxu0 %v2047
    %2845 = vmatprep.subr.bf16.mxu0 %v2052
    %2846 = vmatpush1.bf16.msra.mxu0 %v2051
    %2847 = vmatprep.subr.bf16.mxu0 %v2056
    %2848 = vmatpush1.bf16.msra.mxu0 %v2055
    %2849 = vmatprep.subr.bf16.mxu0 0
    %2850 = vmatpush1.bf16.msra.mxu0 0
    %2851 = vmatprep.subr.bf16.mxu0 0
    %2852 = vmatpush1.bf16.msra.mxu0 0
    %2853 = vmatprep.subr.bf16.mxu0 0
    %2854 = vmatpush1.bf16.msra.mxu0 0
    %2855 = vmatprep.subr.bf16.mxu0 0
    %2856 = vmatpush1.bf16.msra.mxu0 0
    %2857 = vmatprep.subr.bf16.mxu0 0
    %2858 = vmatpush1.bf16.msra.mxu0 0
    %2859 = vmatprep.subr.bf16.mxu0 0
    %2860 = vmatpush1.bf16.msra.mxu0 0
    %2861 = vmatprep.subr.bf16.mxu0 0
    %2862 = vmatpush1.bf16.msra.mxu0 0
    %2863 = vmatprep.subr.bf16.mxu0 0
    %2864 = vmatpush1.bf16.msra.mxu0 0
    %2865 = vmatprep.mubr.bf16.mxu0 0
    %2866 = vmatmul.mubr.bf16.gmra.mrb[0].mxu0 %v2831
    %v2867 = vpop.f32.mrb[0].mxu0
    %v2868 = vadd.f32 0.0, %v2867
    %v2869 = vpop.f32.mrb[0].mxu0
    %v2870 = vadd.f32 0.0, %v2869
    %v2871 = vpop.f32.mrb[0].mxu0
    %v2872 = vpop.f32.mrb[0].mxu0
    %2873 = vdwg.mxu0
    %2874 = vmatprep.subr.bf16.mxu0 %v2030
    %2875 = vmatpush1.bf16.msra.mxu0 %v2029
    %2876 = vmatprep.subr.bf16.mxu0 %v2034
    %2877 = vmatpush1.bf16.msra.mxu0 %v2033
    %2878 = vmatprep.subr.bf16.mxu0 %v2038
    %2879 = vmatpush1.bf16.msra.mxu0 %v2037
    %2880 = vmatprep.subr.bf16.mxu0 %v2042
    %2881 = vmatpush1.bf16.msra.mxu0 %v2041
    %2882 = vmatprep.subr.bf16.mxu0 %v2046
    %2883 = vmatpush1.bf16.msra.mxu0 %v2045
    %2884 = vmatprep.subr.bf16.mxu0 %v2050
    %2885 = vmatpush1.bf16.msra.mxu0 %v2049
    %2886 = vmatprep.subr.bf16.mxu0 %v2054
    %2887 = vmatpush1.bf16.msra.mxu0 %v2053
    %2888 = vmatprep.subr.bf16.mxu0 %v2058
    %2889 = vmatpush1.bf16.msra.mxu0 %v2057
    %2890 = vmatprep.subr.bf16.mxu0 0
    %2891 = vmatpush1.bf16.msra.mxu0 0
    %2892 = vmatprep.subr.bf16.mxu0 0
    %2893 = vmatpush1.bf16.msra.mxu0 0
    %2894 = vmatprep.subr.bf16.mxu0 0
    %2895 = vmatpush1.bf16.msra.mxu0 0
    %2896 = vmatprep.subr.bf16.mxu0 0
    %2897 = vmatpush1.bf16.msra.mxu0 0
    %2898 = vmatprep.subr.bf16.mxu0 0
    %2899 = vmatpush1.bf16.msra.mxu0 0
    %2900 = vmatprep.subr.bf16.mxu0 0
    %2901 = vmatpush1.bf16.msra.mxu0 0
    %2902 = vmatprep.subr.bf16.mxu0 0
    %2903 = vmatpush1.bf16.msra.mxu0 0
    %2904 = vmatprep.subr.bf16.mxu0 0
    %2905 = vmatpush1.bf16.msra.mxu0 0
    %2906 = vmatprep.mubr.bf16.mxu0 0
    %2907 = vmatmul.mubr.bf16.gmra.mrb[0].mxu0 %v2831
    %v2908 = vpop.f32.mrb[0].mxu0
    %v2909 = vadd.f32 0.0, %v2908
    %v2910 = vpop.f32.mrb[0].mxu0
    %v2911 = vadd.f32 0.0, %v2910
    %v2912 = vpop.f32.mrb[0].mxu0
    %v2913 = vpop.f32.mrb[0].mxu0
    %2914 = vdwg.mxu0
    %v2915 = vadd.f32 %v1854, %v2868
    %v2916 = vadd.f32 %v1856, %v2870
    %v2917 = vadd.f32 %v1927, %v2909
    %v2918 = vadd.f32 %v1929, %v2911
    %v2919 = vmul.f32 %v2915, 0.5
    %v2920 = vmul.f32 %v2916, 0.5
    %v2921 = vmul.f32 %v2917, 0.5
    %v2922 = vtanh.pop %v2919
    %v2923 = vtanh.pop %v2920
    %v2924 = vtanh.pop %v2921
    %v2925 = vmul.f32 %v2922, 0.5
    %v2926 = vmul.f32 %v2923, 0.5
    %v2927 = vmul.f32 %v2924, 0.5
    %v2928 = vadd.f32 %v2925, 0.5
    %v2929 = vadd.f32 %v2926, 0.5
    %v2930 = vadd.f32 %v2927, 0.5
    %v2931 = vtanh.pop %v2918
    %v2932 = vmul.f32 %v2929, %v2828
    %v2933 = vmul.f32 %v2928, %v2931
    %v2934 = vadd.f32 %v2932, %v2933
    %v2935 = vtanh.pop %v2934
    %v2936 = vmul.f32 %v2930, %v2935
    %v2937 = vpack.c.bf16 %v2936, %v2936
    %2938 = vst [vmem:[%s1502] sm:$0xf] %v2937
    %s2939 = scalar_lea.vmem [#allocation3], 512
    %v2940 = vld [vmem:[%s2939] sm:$0xff]
    %v2941 = vld [vmem:[%s2939 + $0x8] sm:$0xff]
    %v2942 = vld [vmem:[%s2939 + $0x10] sm:$0xff]
    %v2943 = vld [vmem:[%s2939 + $0x18] sm:$0xff]
    %v2944 = vld [vmem:[%s2939 + $0x20] sm:$0xff]
    %v2945 = vld [vmem:[%s2939 + $0x28] sm:$0xff]
    %v2946 = vld [vmem:[%s2939 + $0x30] sm:$0xff]
    %v2947 = vld [vmem:[%s2939 + $0x38] sm:$0xff]
    %v2948 = vld [vmem:[%s2939 + $0x40] sm:$0xff]
    %v2949 = vld [vmem:[%s2939 + $0x48] sm:$0xff]
    %v2950 = vld [vmem:[%s2939 + $0x50] sm:$0xff]
    %v2951 = vld [vmem:[%s2939 + $0x58] sm:$0xff]
    %v2952 = vld [vmem:[%s2939 + $0x60] sm:$0xff]
    %v2953 = vld [vmem:[%s2939 + $0x68] sm:$0xff]
    %v2954 = vld [vmem:[%s2939 + $0x70] sm:$0xff]
    %v2955 = vld [vmem:[%s2939 + $0x78] sm:$0xff]
    %v2956 = vld [vmem:[%s2939 + $0x80] sm:$0xff]
    %v2957 = vld [vmem:[%s2939 + $0x88] sm:$0xff]
    %v2958 = vld [vmem:[%s2939 + $0x90] sm:$0xff]
    %v2959 = vld [vmem:[%s2939 + $0x98] sm:$0xff]
    %v2960 = vld [vmem:[%s2939 + $0xa0] sm:$0xff]
    %v2961 = vld [vmem:[%s2939 + $0xa8] sm:$0xff]
    %v2962 = vld [vmem:[%s2939 + $0xb0] sm:$0xff]
    %v2963 = vld [vmem:[%s2939 + $0xb8] sm:$0xff]
    %v2964 = vld [vmem:[%s2939 + $0xc0] sm:$0xff]
    %v2965 = vld [vmem:[%s2939 + $0xc8] sm:$0xff]
    %v2966 = vld [vmem:[%s2939 + $0xd0] sm:$0xff]
    %v2967 = vld [vmem:[%s2939 + $0xd8] sm:$0xff]
    %v2968 = vld [vmem:[%s2939 + $0xe0] sm:$0xff]
    %v2969 = vld [vmem:[%s2939 + $0xe8] sm:$0xff]
    %v2970 = vld [vmem:[%s2939 + $0xf0] sm:$0xff]
    %v2971 = vld [vmem:[%s2939 + $0xf8] sm:$0xff]
    %s2972 = scalar_lea.vmem [#allocation5], 512
    %v2973 = vld [vmem:[%s2972] sm:$0xff]
    %v2974 = vld [vmem:[%s2972 + $0x8] sm:$0xff]
    %v2975 = vld [vmem:[%s2972 + $0x10] sm:$0xff]
    %v2976 = vld [vmem:[%s2972 + $0x18] sm:$0xff]
    %v2977 = vld [vmem:[%s2972 + $0x20] sm:$0xff]
    %v2978 = vld [vmem:[%s2972 + $0x28] sm:$0xff]
    %v2979 = vld [vmem:[%s2972 + $0x30] sm:$0xff]
    %v2980 = vld [vmem:[%s2972 + $0x38] sm:$0xff]
    %v2981 = vld [vmem:[%s2972 + $0x40] sm:$0xff]
    %v2982 = vld [vmem:[%s2972 + $0x48] sm:$0xff]
    %v2983 = vld [vmem:[%s2972 + $0x50] sm:$0xff]
    %v2984 = vld [vmem:[%s2972 + $0x58] sm:$0xff]
    %v2985 = vld [vmem:[%s2972 + $0x60] sm:$0xff]
    %v2986 = vld [vmem:[%s2972 + $0x68] sm:$0xff]
    %v2987 = vld [vmem:[%s2972 + $0x70] sm:$0xff]
    %v2988 = vld [vmem:[%s2972 + $0x78] sm:$0xff]
    %v2989 = vld [vmem:[%s2972 + $0x80] sm:$0xff]
    %v2990 = vld [vmem:[%s2972 + $0x88] sm:$0xff]
    %v2991 = vld [vmem:[%s2972 + $0x90] sm:$0xff]
    %v2992 = vld [vmem:[%s2972 + $0x98] sm:$0xff]
    %v2993 = vld [vmem:[%s2972 + $0xa0] sm:$0xff]
    %v2994 = vld [vmem:[%s2972 + $0xa8] sm:$0xff]
    %v2995 = vld [vmem:[%s2972 + $0xb0] sm:$0xff]
    %v2996 = vld [vmem:[%s2972 + $0xb8] sm:$0xff]
    %v2997 = vld [vmem:[%s2972 + $0xc0] sm:$0xff]
    %v2998 = vld [vmem:[%s2972 + $0xc8] sm:$0xff]
    %v2999 = vld [vmem:[%s2972 + $0xd0] sm:$0xff]
    %v3000 = vld [vmem:[%s2972 + $0xd8] sm:$0xff]
    %v3001 = vld [vmem:[%s2972 + $0xe0] sm:$0xff]
    %v3002 = vld [vmem:[%s2972 + $0xe8] sm:$0xff]
    %v3003 = vld [vmem:[%s2972 + $0xf0] sm:$0xff]
    %v3004 = vld [vmem:[%s2972 + $0xf8] sm:$0xff]
    %s3005 = scalar_lea.vmem %s3, 8
    %v3006 = vld [vmem:[%s3005] sm:$0xf]
    %v3007 = vld [vmem:[#allocation2] sm:$0xf]
    %v3008 = vld [vmem:[#allocation2 + $0x4] sm:$0xf]
    %v3009 = vld [vmem:[#allocation2 + $0x8] sm:$0xf]
    %v3010 = vld [vmem:[#allocation2 + $0xc] sm:$0xf]
    %v3011 = vld [vmem:[#allocation2 + $0x10] sm:$0xf]
    %v3012 = vld [vmem:[#allocation2 + $0x14] sm:$0xf]
    %v3013 = vld [vmem:[#allocation2 + $0x18] sm:$0xf]
    %v3014 = vld [vmem:[#allocation2 + $0x1c] sm:$0xf]
    %v3016 = vlaneseq
    %v3017 = vshrl.u32 %v3016, 7
    %v3018 = vsub.s32 0, %v3017
    %v3019 = vrot.slane %v3006, %v3018
    %v3020 = vlaneseq
    %v3021 = vshrl.u32 %v3020, 7
    %v3022 = vsub.s32 1, %v3021
    %v3023 = vrot.slane %v3006, %v3022
    %v3024 = vlaneseq
    %v3025 = vshrl.u32 %v3024, 7
    %v3026 = vsub.s32 2, %v3025
    %v3027 = vrot.slane %v3006, %v3026
    %v3028 = vlaneseq
    %v3029 = vshrl.u32 %v3028, 7
    %v3030 = vsub.s32 3, %v3029
    %v3031 = vrot.slane %v3006, %v3030
    %v3044 = vunpack.c.l.b16 %v3007
    %v3045 = vunpack.c.l.b16 %v3008
    %v3046 = vunpack.c.l.b16 %v3009
    %v3047 = vunpack.c.l.b16 %v3010
    %v3048 = vunpack.c.l.b16 %v3011
    %v3049 = vunpack.c.l.b16 %v3012
    %v3050 = vunpack.c.l.b16 %v3013
    %v3051 = vunpack.c.l.b16 %v3014
    %v3052 = vpack.c.b16 %v3045, %v3044
    %v3053 = vpack.c.b16 %v3047, %v3046
    %v3054 = vpack.c.b16 %v3049, %v3048
    %v3055 = vpack.c.b16 %v3051, %v3050
    %v3092 = vunpack.c.l.b16 %v2940
    %v3093 = vunpack.c.h.b16 %v2940
    %v3094 = vunpack.c.l.b16 %v2941
    %v3095 = vunpack.c.h.b16 %v2941
    %v3096 = vunpack.c.l.b16 %v2942
    %v3097 = vunpack.c.h.b16 %v2942
    %v3098 = vunpack.c.l.b16 %v2943
    %v3099 = vunpack.c.h.b16 %v2943
    %v3100 = vunpack.c.l.b16 %v2944
    %v3101 = vunpack.c.h.b16 %v2944
    %v3102 = vunpack.c.l.b16 %v2945
    %v3103 = vunpack.c.h.b16 %v2945
    %v3104 = vunpack.c.l.b16 %v2946
    %v3105 = vunpack.c.h.b16 %v2946
    %v3106 = vunpack.c.l.b16 %v2947
    %v3107 = vunpack.c.h.b16 %v2947
    %v3108 = vunpack.c.l.b16 %v2948
    %v3109 = vunpack.c.h.b16 %v2948
    %v3110 = vunpack.c.l.b16 %v2949
    %v3111 = vunpack.c.h.b16 %v2949
    %v3112 = vunpack.c.l.b16 %v2950
    %v3113 = vunpack.c.h.b16 %v2950
    %v3114 = vunpack.c.l.b16 %v2951
    %v3115 = vunpack.c.h.b16 %v2951
    %v3116 = vunpack.c.l.b16 %v2952
    %v3117 = vunpack.c.h.b16 %v2952
    %v3118 = vunpack.c.l.b16 %v2953
    %v3119 = vunpack.c.h.b16 %v2953
    %v3120 = vunpack.c.l.b16 %v2954
    %v3121 = vunpack.c.h.b16 %v2954
    %v3122 = vunpack.c.l.b16 %v2955
    %v3123 = vunpack.c.h.b16 %v2955
    %v3124 = vunpack.c.l.b16 %v2956
    %v3125 = vunpack.c.h.b16 %v2956
    %v3126 = vunpack.c.l.b16 %v2957
    %v3127 = vunpack.c.h.b16 %v2957
    %v3128 = vunpack.c.l.b16 %v2958
    %v3129 = vunpack.c.h.b16 %v2958
    %v3130 = vunpack.c.l.b16 %v2959
    %v3131 = vunpack.c.h.b16 %v2959
    %v3132 = vunpack.c.l.b16 %v2960
    %v3133 = vunpack.c.h.b16 %v2960
    %v3134 = vunpack.c.l.b16 %v2961
    %v3135 = vunpack.c.h.b16 %v2961
    %v3136 = vunpack.c.l.b16 %v2962
    %v3137 = vunpack.c.h.b16 %v2962
    %v3138 = vunpack.c.l.b16 %v2963
    %v3139 = vunpack.c.h.b16 %v2963
    %v3140 = vunpack.c.l.b16 %v2964
    %v3141 = vunpack.c.h.b16 %v2964
    %v3142 = vunpack.c.l.b16 %v2965
    %v3143 = vunpack.c.h.b16 %v2965
    %v3144 = vunpack.c.l.b16 %v2966
    %v3145 = vunpack.c.h.b16 %v2966
    %v3146 = vunpack.c.l.b16 %v2967
    %v3147 = vunpack.c.h.b16 %v2967
    %v3148 = vunpack.c.l.b16 %v2968
    %v3149 = vunpack.c.h.b16 %v2968
    %v3150 = vunpack.c.l.b16 %v2969
    %v3151 = vunpack.c.h.b16 %v2969
    %v3152 = vunpack.c.l.b16 %v2970
    %v3153 = vunpack.c.h.b16 %v2970
    %v3154 = vunpack.c.l.b16 %v2971
    %v3155 = vunpack.c.h.b16 %v2971
    %v3156 = vpack.c.b16 %v3096, %v3092
    %v3157 = vpack.c.b16 %v3097, %v3093
    %v3158 = vpack.c.b16 %v3098, %v3094
    %v3159 = vpack.c.b16 %v3099, %v3095
    %v3160 = vpack.c.b16 %v3104, %v3100
    %v3161 = vpack.c.b16 %v3105, %v3101
    %v3162 = vpack.c.b16 %v3106, %v3102
    %v3163 = vpack.c.b16 %v3107, %v3103
    %v3164 = vpack.c.b16 %v3112, %v3108
    %v3165 = vpack.c.b16 %v3113, %v3109
    %v3166 = vpack.c.b16 %v3114, %v3110
    %v3167 = vpack.c.b16 %v3115, %v3111
    %v3168 = vpack.c.b16 %v3120, %v3116
    %v3169 = vpack.c.b16 %v3121, %v3117
    %v3170 = vpack.c.b16 %v3122, %v3118
    %v3171 = vpack.c.b16 %v3123, %v3119
    %v3172 = vpack.c.b16 %v3128, %v3124
    %v3173 = vpack.c.b16 %v3129, %v3125
    %v3174 = vpack.c.b16 %v3130, %v3126
    %v3175 = vpack.c.b16 %v3131, %v3127
    %v3176 = vpack.c.b16 %v3136, %v3132
    %v3177 = vpack.c.b16 %v3137, %v3133
    %v3178 = vpack.c.b16 %v3138, %v3134
    %v3179 = vpack.c.b16 %v3139, %v3135
    %v3180 = vpack.c.b16 %v3144, %v3140
    %v3181 = vpack.c.b16 %v3145, %v3141
    %v3182 = vpack.c.b16 %v3146, %v3142
    %v3183 = vpack.c.b16 %v3147, %v3143
    %v3184 = vpack.c.b16 %v3152, %v3148
    %v3185 = vpack.c.b16 %v3153, %v3149
    %v3186 = vpack.c.b16 %v3154, %v3150
    %v3187 = vpack.c.b16 %v3155, %v3151
    %3220 = vmatprep.subr.bf16.mxu0 %v3157
    %3221 = vmatpush1.bf16.msra.mxu0 %v3156
    %3222 = vmatprep.subr.bf16.mxu0 %v3161
    %3223 = vmatpush1.bf16.msra.mxu0 %v3160
    %3224 = vmatprep.subr.bf16.mxu0 %v3165
    %3225 = vmatpush1.bf16.msra.mxu0 %v3164
    %3226 = vmatprep.subr.bf16.mxu0 %v3169
    %3227 = vmatpush1.bf16.msra.mxu0 %v3168
    %3228 = vmatprep.subr.bf16.mxu0 %v3173
    %3229 = vmatpush1.bf16.msra.mxu0 %v3172
    %3230 = vmatprep.subr.bf16.mxu0 %v3177
    %3231 = vmatpush1.bf16.msra.mxu0 %v3176
    %3232 = vmatprep.subr.bf16.mxu0 %v3181
    %3233 = vmatpush1.bf16.msra.mxu0 %v3180
    %3234 = vmatprep.subr.bf16.mxu0 %v3185
    %3235 = vmatpush1.bf16.msra.mxu0 %v3184
    %3236 = vmatprep.subr.bf16.mxu0 0
    %3237 = vmatpush1.bf16.msra.mxu0 0
    %3238 = vmatprep.subr.bf16.mxu0 0
    %3239 = vmatpush1.bf16.msra.mxu0 0
    %3240 = vmatprep.subr.bf16.mxu0 0
    %3241 = vmatpush1.bf16.msra.mxu0 0
    %3242 = vmatprep.subr.bf16.mxu0 0
    %3243 = vmatpush1.bf16.msra.mxu0 0
    %3244 = vmatprep.subr.bf16.mxu0 0
    %3245 = vmatpush1.bf16.msra.mxu0 0
    %3246 = vmatprep.subr.bf16.mxu0 0
    %3247 = vmatpush1.bf16.msra.mxu0 0
    %3248 = vmatprep.subr.bf16.mxu0 0
    %3249 = vmatpush1.bf16.msra.mxu0 0
    %3250 = vmatprep.subr.bf16.mxu0 0
    %3251 = vmatpush1.bf16.msra.mxu0 0
    %3252 = vmatprep.mubr.bf16.mxu0 0
    %3253 = vmatmul.mubr.bf16.gmra.mrb[0].mxu0 %v3052
    %v3254 = vpop.f32.mrb[0].mxu0
    %v3255 = vadd.f32 %v3019, %v3254
    %v3256 = vpop.f32.mrb[0].mxu0
    %v3257 = vadd.f32 %v3023, %v3256
    %v3258 = vpop.f32.mrb[0].mxu0
    %v3259 = vadd.f32 %v3019, %v3258
    %v3260 = vpop.f32.mrb[0].mxu0
    %v3261 = vadd.f32 %v3023, %v3260
    %3262 = vmatprep.mubr.bf16.mxu0 0
    %3263 = vmatmul.mubr.bf16.gmra.mrb[0].mxu0 %v3053
    %v3264 = vpop.f32.mrb[0].mxu0
    %v3265 = vadd.f32 %v3019, %v3264
    %v3266 = vpop.f32.mrb[0].mxu0
    %v3267 = vadd.f32 %v3023, %v3266
    %v3268 = vpop.f32.mrb[0].mxu0
    %v3269 = vadd.f32 %v3019, %v3268
    %v3270 = vpop.f32.mrb[0].mxu0
    %v3271 = vadd.f32 %v3023, %v3270
    %3272 = vmatprep.mubr.bf16.mxu0 0
    %3273 = vmatmul.mubr.bf16.gmra.mrb[0].mxu0 %v3054
    %v3274 = vpop.f32.mrb[0].mxu0
    %v3275 = vadd.f32 %v3019, %v3274
    %v3276 = vpop.f32.mrb[0].mxu0
    %v3277 = vadd.f32 %v3023, %v3276
    %v3278 = vpop.f32.mrb[0].mxu0
    %v3279 = vadd.f32 %v3019, %v3278
    %v3280 = vpop.f32.mrb[0].mxu0
    %v3281 = vadd.f32 %v3023, %v3280
    %3282 = vmatprep.mubr.bf16.mxu0 0
    %3283 = vmatmul.mubr.bf16.gmra.mrb[0].mxu0 %v3055
    %v3284 = vpop.f32.mrb[0].mxu0
    %v3285 = vadd.f32 %v3019, %v3284
    %v3286 = vpop.f32.mrb[0].mxu0
    %v3287 = vadd.f32 %v3023, %v3286
    %v3288 = vpop.f32.mrb[0].mxu0
    %v3289 = vadd.f32 %v3019, %v3288
    %v3290 = vpop.f32.mrb[0].mxu0
    %v3291 = vadd.f32 %v3023, %v3290
    %3292 = vdwg.mxu0
    %3293 = vmatprep.subr.bf16.mxu0 %v3159
    %3294 = vmatpush1.bf16.msra.mxu0 %v3158
    %3295 = vmatprep.subr.bf16.mxu0 %v3163
    %3296 = vmatpush1.bf16.msra.mxu0 %v3162
    %3297 = vmatprep.subr.bf16.mxu0 %v3167
    %3298 = vmatpush1.bf16.msra.mxu0 %v3166
    %3299 = vmatprep.subr.bf16.mxu0 %v3171
    %3300 = vmatpush1.bf16.msra.mxu0 %v3170
    %3301 = vmatprep.subr.bf16.mxu0 %v3175
    %3302 = vmatpush1.bf16.msra.mxu0 %v3174
    %3303 = vmatprep.subr.bf16.mxu0 %v3179
    %3304 = vmatpush1.bf16.msra.mxu0 %v3178
    %3305 = vmatprep.subr.bf16.mxu0 %v3183
    %3306 = vmatpush1.bf16.msra.mxu0 %v3182
    %3307 = vmatprep.subr.bf16.mxu0 %v3187
    %3308 = vmatpush1.bf16.msra.mxu0 %v3186
    %3309 = vmatprep.subr.bf16.mxu0 0
    %3310 = vmatpush1.bf16.msra.mxu0 0
    %3311 = vmatprep.subr.bf16.mxu0 0
    %3312 = vmatpush1.bf16.msra.mxu0 0
    %3313 = vmatprep.subr.bf16.mxu0 0
    %3314 = vmatpush1.bf16.msra.mxu0 0
    %3315 = vmatprep.subr.bf16.mxu0 0
    %3316 = vmatpush1.bf16.msra.mxu0 0
    %3317 = vmatprep.subr.bf16.mxu0 0
    %3318 = vmatpush1.bf16.msra.mxu0 0
    %3319 = vmatprep.subr.bf16.mxu0 0
    %3320 = vmatpush1.bf16.msra.mxu0 0
    %3321 = vmatprep.subr.bf16.mxu0 0
    %3322 = vmatpush1.bf16.msra.mxu0 0
    %3323 = vmatprep.subr.bf16.mxu0 0
    %3324 = vmatpush1.bf16.msra.mxu0 0
    %3325 = vmatprep.mubr.bf16.mxu0 0
    %3326 = vmatmul.mubr.bf16.gmra.mrb[0].mxu0 %v3052
    %v3327 = vpop.f32.mrb[0].mxu0
    %v3328 = vadd.f32 %v3027, %v3327
    %v3329 = vpop.f32.mrb[0].mxu0
    %v3330 = vadd.f32 %v3031, %v3329
    %v3331 = vpop.f32.mrb[0].mxu0
    %v3332 = vadd.f32 %v3027, %v3331
    %v3333 = vpop.f32.mrb[0].mxu0
    %v3334 = vadd.f32 %v3031, %v3333
    %3335 = vmatprep.mubr.bf16.mxu0 0
    %3336 = vmatmul.mubr.bf16.gmra.mrb[0].mxu0 %v3053
    %v3337 = vpop.f32.mrb[0].mxu0
    %v3338 = vadd.f32 %v3027, %v3337
    %v3339 = vpop.f32.mrb[0].mxu0
    %v3340 = vadd.f32 %v3031, %v3339
    %v3341 = vpop.f32.mrb[0].mxu0
    %v3342 = vadd.f32 %v3027, %v3341
    %v3343 = vpop.f32.mrb[0].mxu0
    %v3344 = vadd.f32 %v3031, %v3343
    %3345 = vmatprep.mubr.bf16.mxu0 0
    %3346 = vmatmul.mubr.bf16.gmra.mrb[0].mxu0 %v3054
    %v3347 = vpop.f32.mrb[0].mxu0
    %v3348 = vadd.f32 %v3027, %v3347
    %v3349 = vpop.f32.mrb[0].mxu0
    %v3350 = vadd.f32 %v3031, %v3349
    %v3351 = vpop.f32.mrb[0].mxu0
    %v3352 = vadd.f32 %v3027, %v3351
    %v3353 = vpop.f32.mrb[0].mxu0
    %v3354 = vadd.f32 %v3031, %v3353
    %3355 = vmatprep.mubr.bf16.mxu0 0
    %3356 = vmatmul.mubr.bf16.gmra.mrb[0].mxu0 %v3055
    %v3357 = vpop.f32.mrb[0].mxu0
    %v3358 = vadd.f32 %v3027, %v3357
    %v3359 = vpop.f32.mrb[0].mxu0
    %v3360 = vadd.f32 %v3031, %v3359
    %v3361 = vpop.f32.mrb[0].mxu0
    %v3362 = vadd.f32 %v3027, %v3361
    %v3363 = vpop.f32.mrb[0].mxu0
    %v3364 = vadd.f32 %v3031, %v3363
    %3365 = vdwg.mxu0
    %v3398 = vunpack.c.l.b16 %v2973
    %v3399 = vunpack.c.h.b16 %v2973
    %v3400 = vunpack.c.l.b16 %v2974
    %v3401 = vunpack.c.h.b16 %v2974
    %v3402 = vunpack.c.l.b16 %v2975
    %v3403 = vunpack.c.h.b16 %v2975
    %v3404 = vunpack.c.l.b16 %v2976
    %v3405 = vunpack.c.h.b16 %v2976
    %v3406 = vunpack.c.l.b16 %v2977
    %v3407 = vunpack.c.h.b16 %v2977
    %v3408 = vunpack.c.l.b16 %v2978
    %v3409 = vunpack.c.h.b16 %v2978
    %v3410 = vunpack.c.l.b16 %v2979
    %v3411 = vunpack.c.h.b16 %v2979
    %v3412 = vunpack.c.l.b16 %v2980
    %v3413 = vunpack.c.h.b16 %v2980
    %v3414 = vunpack.c.l.b16 %v2981
    %v3415 = vunpack.c.h.b16 %v2981
    %v3416 = vunpack.c.l.b16 %v2982
    %v3417 = vunpack.c.h.b16 %v2982
    %v3418 = vunpack.c.l.b16 %v2983
    %v3419 = vunpack.c.h.b16 %v2983
    %v3420 = vunpack.c.l.b16 %v2984
    %v3421 = vunpack.c.h.b16 %v2984
    %v3422 = vunpack.c.l.b16 %v2985
    %v3423 = vunpack.c.h.b16 %v2985
    %v3424 = vunpack.c.l.b16 %v2986
    %v3425 = vunpack.c.h.b16 %v2986
    %v3426 = vunpack.c.l.b16 %v2987
    %v3427 = vunpack.c.h.b16 %v2987
    %v3428 = vunpack.c.l.b16 %v2988
    %v3429 = vunpack.c.h.b16 %v2988
    %v3430 = vunpack.c.l.b16 %v2989
    %v3431 = vunpack.c.h.b16 %v2989
    %v3432 = vunpack.c.l.b16 %v2990
    %v3433 = vunpack.c.h.b16 %v2990
    %v3434 = vunpack.c.l.b16 %v2991
    %v3435 = vunpack.c.h.b16 %v2991
    %v3436 = vunpack.c.l.b16 %v2992
    %v3437 = vunpack.c.h.b16 %v2992
    %v3438 = vunpack.c.l.b16 %v2993
    %v3439 = vunpack.c.h.b16 %v2993
    %v3440 = vunpack.c.l.b16 %v2994
    %v3441 = vunpack.c.h.b16 %v2994
    %v3442 = vunpack.c.l.b16 %v2995
    %v3443 = vunpack.c.h.b16 %v2995
    %v3444 = vunpack.c.l.b16 %v2996
    %v3445 = vunpack.c.h.b16 %v2996
    %v3446 = vunpack.c.l.b16 %v2997
    %v3447 = vunpack.c.h.b16 %v2997
    %v3448 = vunpack.c.l.b16 %v2998
    %v3449 = vunpack.c.h.b16 %v2998
    %v3450 = vunpack.c.l.b16 %v2999
    %v3451 = vunpack.c.h.b16 %v2999
    %v3452 = vunpack.c.l.b16 %v3000
    %v3453 = vunpack.c.h.b16 %v3000
    %v3454 = vunpack.c.l.b16 %v3001
    %v3455 = vunpack.c.h.b16 %v3001
    %v3456 = vunpack.c.l.b16 %v3002
    %v3457 = vunpack.c.h.b16 %v3002
    %v3458 = vunpack.c.l.b16 %v3003
    %v3459 = vunpack.c.h.b16 %v3003
    %v3460 = vunpack.c.l.b16 %v3004
    %v3461 = vunpack.c.h.b16 %v3004
    %v3462 = vpack.c.b16 %v3402, %v3398
    %v3463 = vpack.c.b16 %v3403, %v3399
    %v3464 = vpack.c.b16 %v3404, %v3400
    %v3465 = vpack.c.b16 %v3405, %v3401
    %v3466 = vpack.c.b16 %v3410, %v3406
    %v3467 = vpack.c.b16 %v3411, %v3407
    %v3468 = vpack.c.b16 %v3412, %v3408
    %v3469 = vpack.c.b16 %v3413, %v3409
    %v3470 = vpack.c.b16 %v3418, %v3414
    %v3471 = vpack.c.b16 %v3419, %v3415
    %v3472 = vpack.c.b16 %v3420, %v3416
    %v3473 = vpack.c.b16 %v3421, %v3417
    %v3474 = vpack.c.b16 %v3426, %v3422
    %v3475 = vpack.c.b16 %v3427, %v3423
    %v3476 = vpack.c.b16 %v3428, %v3424
    %v3477 = vpack.c.b16 %v3429, %v3425
    %v3478 = vpack.c.b16 %v3434, %v3430
    %v3479 = vpack.c.b16 %v3435, %v3431
    %v3480 = vpack.c.b16 %v3436, %v3432
    %v3481 = vpack.c.b16 %v3437, %v3433
    %v3482 = vpack.c.b16 %v3442, %v3438
    %v3483 = vpack.c.b16 %v3443, %v3439
    %v3484 = vpack.c.b16 %v3444, %v3440
    %v3485 = vpack.c.b16 %v3445, %v3441
    %v3486 = vpack.c.b16 %v3450, %v3446
    %v3487 = vpack.c.b16 %v3451, %v3447
    %v3488 = vpack.c.b16 %v3452, %v3448
    %v3489 = vpack.c.b16 %v3453, %v3449
    %v3490 = vpack.c.b16 %v3458, %v3454
    %v3491 = vpack.c.b16 %v3459, %v3455
    %v3492 = vpack.c.b16 %v3460, %v3456
    %v3493 = vpack.c.b16 %v3461, %v3457
    %3526 = vmatprep.subr.bf16.mxu0 %v3463
    %3527 = vmatpush1.bf16.msra.mxu0 %v3462
    %3528 = vmatprep.subr.bf16.mxu0 %v3467
    %3529 = vmatpush1.bf16.msra.mxu0 %v3466
    %3530 = vmatprep.subr.bf16.mxu0 %v3471
    %3531 = vmatpush1.bf16.msra.mxu0 %v3470
    %3532 = vmatprep.subr.bf16.mxu0 %v3475
    %3533 = vmatpush1.bf16.msra.mxu0 %v3474
    %3534 = vmatprep.subr.bf16.mxu0 %v3479
    %3535 = vmatpush1.bf16.msra.mxu0 %v3478
    %3536 = vmatprep.subr.bf16.mxu0 %v3483
    %3537 = vmatpush1.bf16.msra.mxu0 %v3482
    %3538 = vmatprep.subr.bf16.mxu0 %v3487
    %3539 = vmatpush1.bf16.msra.mxu0 %v3486
    %3540 = vmatprep.subr.bf16.mxu0 %v3491
    %3541 = vmatpush1.bf16.msra.mxu0 %v3490
    %3542 = vmatprep.subr.bf16.mxu0 0
    %3543 = vmatpush1.bf16.msra.mxu0 0
    %3544 = vmatprep.subr.bf16.mxu0 0
    %3545 = vmatpush1.bf16.msra.mxu0 0
    %3546 = vmatprep.subr.bf16.mxu0 0
    %3547 = vmatpush1.bf16.msra.mxu0 0
    %3548 = vmatprep.subr.bf16.mxu0 0
    %3549 = vmatpush1.bf16.msra.mxu0 0
    %3550 = vmatprep.subr.bf16.mxu0 0
    %3551 = vmatpush1.bf16.msra.mxu0 0
    %3552 = vmatprep.subr.bf16.mxu0 0
    %3553 = vmatpush1.bf16.msra.mxu0 0
    %3554 = vmatprep.subr.bf16.mxu0 0
    %3555 = vmatpush1.bf16.msra.mxu0 0
    %3556 = vmatprep.subr.bf16.mxu0 0
    %3557 = vmatpush1.bf16.msra.mxu0 0
    %3558 = vmatprep.mubr.bf16.mxu0 0
    %3559 = vmatmul.mubr.bf16.gmra.mrb[0].mxu0 0
    %v3560 = vpop.f32.mrb[0].mxu0
    %v3561 = vadd.f32 0.0, %v3560
    %v3562 = vpop.f32.mrb[0].mxu0
    %v3563 = vadd.f32 0.0, %v3562
    %v3564 = vpop.f32.mrb[0].mxu0
    %v3565 = vpop.f32.mrb[0].mxu0
    %3566 = vdwg.mxu0
    %3567 = vmatprep.subr.bf16.mxu0 %v3465
    %3568 = vmatpush1.bf16.msra.mxu0 %v3464
    %3569 = vmatprep.subr.bf16.mxu0 %v3469
    %3570 = vmatpush1.bf16.msra.mxu0 %v3468
    %3571 = vmatprep.subr.bf16.mxu0 %v3473
    %3572 = vmatpush1.bf16.msra.mxu0 %v3472
    %3573 = vmatprep.subr.bf16.mxu0 %v3477
    %3574 = vmatpush1.bf16.msra.mxu0 %v3476
    %3575 = vmatprep.subr.bf16.mxu0 %v3481
    %3576 = vmatpush1.bf16.msra.mxu0 %v3480
    %3577 = vmatprep.subr.bf16.mxu0 %v3485
    %3578 = vmatpush1.bf16.msra.mxu0 %v3484
    %3579 = vmatprep.subr.bf16.mxu0 %v3489
    %3580 = vmatpush1.bf16.msra.mxu0 %v3488
    %3581 = vmatprep.subr.bf16.mxu0 %v3493
    %3582 = vmatpush1.bf16.msra.mxu0 %v3492
    %3583 = vmatprep.subr.bf16.mxu0 0
    %3584 = vmatpush1.bf16.msra.mxu0 0
    %3585 = vmatprep.subr.bf16.mxu0 0
    %3586 = vmatpush1.bf16.msra.mxu0 0
    %3587 = vmatprep.subr.bf16.mxu0 0
    %3588 = vmatpush1.bf16.msra.mxu0 0
    %3589 = vmatprep.subr.bf16.mxu0 0
    %3590 = vmatpush1.bf16.msra.mxu0 0
    %3591 = vmatprep.subr.bf16.mxu0 0
    %3592 = vmatpush1.bf16.msra.mxu0 0
    %3593 = vmatprep.subr.bf16.mxu0 0
    %3594 = vmatpush1.bf16.msra.mxu0 0
    %3595 = vmatprep.subr.bf16.mxu0 0
    %3596 = vmatpush1.bf16.msra.mxu0 0
    %3597 = vmatprep.subr.bf16.mxu0 0
    %3598 = vmatpush1.bf16.msra.mxu0 0
    %3599 = vmatprep.mubr.bf16.mxu0 0
    %3600 = vmatmul.mubr.bf16.gmra.mrb[0].mxu0 0
    %v3601 = vpop.f32.mrb[0].mxu0
    %v3602 = vadd.f32 0.0, %v3601
    %v3603 = vpop.f32.mrb[0].mxu0
    %v3604 = vadd.f32 0.0, %v3603
    %v3605 = vpop.f32.mrb[0].mxu0
    %v3606 = vpop.f32.mrb[0].mxu0
    %3607 = vdwg.mxu0
    %v3608 = vadd.f32 %v3255, %v3561
    %v3609 = vadd.f32 %v3257, %v3563
    %v3610 = vadd.f32 %v3328, %v3602
    %v3611 = vadd.f32 %v3330, %v3604
    %v3612 = vmul.f32 %v3608, 0.5
    %v3613 = vmul.f32 %v3609, 0.5
    %v3614 = vmul.f32 %v3610, 0.5
    %v3615 = vtanh.pop %v3612
    %v3616 = vtanh.pop %v3613
    %v3617 = vtanh.pop %v3614
    %v3618 = vmul.f32 %v3615, 0.5
    %v3619 = vmul.f32 %v3616, 0.5
    %v3620 = vmul.f32 %v3617, 0.5
    %v3621 = vadd.f32 %v3618, 0.5
    %v3622 = vadd.f32 %v3619, 0.5
    %v3623 = vadd.f32 %v3620, 0.5
    %v3624 = vtanh.pop %v3611
    %v3625 = vmul.f32 %v3622, 0.0
    %v3626 = vmul.f32 %v3621, %v3624
    %v3627 = vadd.f32 %v3625, %v3626
    %v3628 = vtanh.pop %v3627
    %v3629 = vmul.f32 %v3623, %v3628
    %v3630 = vpack.c.bf16 %v3629, %v3629
    %3631 = vst [vmem:[#allocation2] sm:$0xf] %v3630
    %3632 = vmatprep.subr.bf16.mxu0 %v3463
    %3633 = vmatpush1.bf16.msra.mxu0 %v3462
    %3634 = vmatprep.subr.bf16.mxu0 %v3467
    %3635 = vmatpush1.bf16.msra.mxu0 %v3466
    %3636 = vmatprep.subr.bf16.mxu0 %v3471
    %3637 = vmatpush1.bf16.msra.mxu0 %v3470
    %3638 = vmatprep.subr.bf16.mxu0 %v3475
    %3639 = vmatpush1.bf16.msra.mxu0 %v3474
    %3640 = vmatprep.subr.bf16.mxu0 %v3479
    %3641 = vmatpush1.bf16.msra.mxu0 %v3478
    %3642 = vmatprep.subr.bf16.mxu0 %v3483
    %3643 = vmatpush1.bf16.msra.mxu0 %v3482
    %3644 = vmatprep.subr.bf16.mxu0 %v3487
    %3645 = vmatpush1.bf16.msra.mxu0 %v3486
    %3646 = vmatprep.subr.bf16.mxu0 %v3491
    %3647 = vmatpush1.bf16.msra.mxu0 %v3490
    %3648 = vmatprep.subr.bf16.mxu0 0
    %3649 = vmatpush1.bf16.msra.mxu0 0
    %3650 = vmatprep.subr.bf16.mxu0 0
    %3651 = vmatpush1.bf16.msra.mxu0 0
    %3652 = vmatprep.subr.bf16.mxu0 0
    %3653 = vmatpush1.bf16.msra.mxu0 0
    %3654 = vmatprep.subr.bf16.mxu0 0
    %3655 = vmatpush1.bf16.msra.mxu0 0
    %3656 = vmatprep.subr.bf16.mxu0 0
    %3657 = vmatpush1.bf16.msra.mxu0 0
    %3658 = vmatprep.subr.bf16.mxu0 0
    %3659 = vmatpush1.bf16.msra.mxu0 0
    %3660 = vmatprep.subr.bf16.mxu0 0
    %3661 = vmatpush1.bf16.msra.mxu0 0
    %3662 = vmatprep.subr.bf16.mxu0 0
    %3663 = vmatpush1.bf16.msra.mxu0 0
    %3664 = vmatprep.mubr.bf16.mxu0 0
    %3665 = vmatmul.mubr.bf16.gmra.mrb[0].mxu0 %v3630
    %v3666 = vpop.f32.mrb[0].mxu0
    %v3667 = vadd.f32 0.0, %v3666
    %v3668 = vpop.f32.mrb[0].mxu0
    %v3669 = vadd.f32 0.0, %v3668
    %v3670 = vpop.f32.mrb[0].mxu0
    %v3671 = vpop.f32.mrb[0].mxu0
    %3672 = vdwg.mxu0
    %3673 = vmatprep.subr.bf16.mxu0 %v3465
    %3674 = vmatpush1.bf16.msra.mxu0 %v3464
    %3675 = vmatprep.subr.bf16.mxu0 %v3469
    %3676 = vmatpush1.bf16.msra.mxu0 %v3468
    %3677 = vmatprep.subr.bf16.mxu0 %v3473
    %3678 = vmatpush1.bf16.msra.mxu0 %v3472
    %3679 = vmatprep.subr.bf16.mxu0 %v3477
    %3680 = vmatpush1.bf16.msra.mxu0 %v3476
    %3681 = vmatprep.subr.bf16.mxu0 %v3481
    %3682 = vmatpush1.bf16.msra.mxu0 %v3480
    %3683 = vmatprep.subr.bf16.mxu0 %v3485
    %3684 = vmatpush1.bf16.msra.mxu0 %v3484
    %3685 = vmatprep.subr.bf16.mxu0 %v3489
    %3686 = vmatpush1.bf16.msra.mxu0 %v3488
    %3687 = vmatprep.subr.bf16.mxu0 %v3493
    %3688 = vmatpush1.bf16.msra.mxu0 %v3492
    %3689 = vmatprep.subr.bf16.mxu0 0
    %3690 = vmatpush1.bf16.msra.mxu0 0
    %3691 = vmatprep.subr.bf16.mxu0 0
    %3692 = vmatpush1.bf16.msra.mxu0 0
    %3693 = vmatprep.subr.bf16.mxu0 0
    %3694 = vmatpush1.bf16.msra.mxu0 0
    %3695 = vmatprep.subr.bf16.mxu0 0
    %3696 = vmatpush1.bf16.msra.mxu0 0
    %3697 = vmatprep.subr.bf16.mxu0 0
    %3698 = vmatpush1.bf16.msra.mxu0 0
    %3699 = vmatprep.subr.bf16.mxu0 0
    %3700 = vmatpush1.bf16.msra.mxu0 0
    %3701 = vmatprep.subr.bf16.mxu0 0
    %3702 = vmatpush1.bf16.msra.mxu0 0
    %3703 = vmatprep.subr.bf16.mxu0 0
    %3704 = vmatpush1.bf16.msra.mxu0 0
    %3705 = vmatprep.mubr.bf16.mxu0 0
    %3706 = vmatmul.mubr.bf16.gmra.mrb[0].mxu0 %v3630
    %v3707 = vpop.f32.mrb[0].mxu0
    %v3708 = vadd.f32 0.0, %v3707
    %v3709 = vpop.f32.mrb[0].mxu0
    %v3710 = vadd.f32 0.0, %v3709
    %v3711 = vpop.f32.mrb[0].mxu0
    %v3712 = vpop.f32.mrb[0].mxu0
    %3713 = vdwg.mxu0
    %v3714 = vadd.f32 %v3259, %v3667
    %v3715 = vadd.f32 %v3261, %v3669
    %v3716 = vadd.f32 %v3332, %v3708
    %v3717 = vadd.f32 %v3334, %v3710
    %v3718 = vmul.f32 %v3714, 0.5
    %v3719 = vmul.f32 %v3715, 0.5
    %v3720 = vmul.f32 %v3716, 0.5
    %v3721 = vtanh.pop %v3718
    %v3722 = vtanh.pop %v3719
    %v3723 = vtanh.pop %v3720
    %v3724 = vmul.f32 %v3721, 0.5
    %v3725 = vmul.f32 %v3722, 0.5
    %v3726 = vmul.f32 %v3723, 0.5
    %v3727 = vadd.f32 %v3724, 0.5
    %v3728 = vadd.f32 %v3725, 0.5
    %v3729 = vadd.f32 %v3726, 0.5
    %v3730 = vtanh.pop %v3717
    %v3731 = vmul.f32 %v3728, %v3627
    %v3732 = vmul.f32 %v3727, %v3730
    %v3733 = vadd.f32 %v3731, %v3732
    %v3734 = vtanh.pop %v3733
    %v3735 = vmul.f32 %v3729, %v3734
    %v3736 = vpack.c.bf16 %v3735, %v3735
    %3737 = vst [vmem:[%s860] sm:$0xf] %v3736
    %3738 = vmatprep.subr.bf16.mxu0 %v3463
    %3739 = vmatpush1.bf16.msra.mxu0 %v3462
    %3740 = vmatprep.subr.bf16.mxu0 %v3467
    %3741 = vmatpush1.bf16.msra.mxu0 %v3466
    %3742 = vmatprep.subr.bf16.mxu0 %v3471
    %3743 = vmatpush1.bf16.msra.mxu0 %v3470
    %3744 = vmatprep.subr.bf16.mxu0 %v3475
    %3745 = vmatpush1.bf16.msra.mxu0 %v3474
    %3746 = vmatprep.subr.bf16.mxu0 %v3479
    %3747 = vmatpush1.bf16.msra.mxu0 %v3478
    %3748 = vmatprep.subr.bf16.mxu0 %v3483
    %3749 = vmatpush1.bf16.msra.mxu0 %v3482
    %3750 = vmatprep.subr.bf16.mxu0 %v3487
    %3751 = vmatpush1.bf16.msra.mxu0 %v3486
    %3752 = vmatprep.subr.bf16.mxu0 %v3491
    %3753 = vmatpush1.bf16.msra.mxu0 %v3490
    %3754 = vmatprep.subr.bf16.mxu0 0
    %3755 = vmatpush1.bf16.msra.mxu0 0
    %3756 = vmatprep.subr.bf16.mxu0 0
    %3757 = vmatpush1.bf16.msra.mxu0 0
    %3758 = vmatprep.subr.bf16.mxu0 0
    %3759 = vmatpush1.bf16.msra.mxu0 0
    %3760 = vmatprep.subr.bf16.mxu0 0
    %3761 = vmatpush1.bf16.msra.mxu0 0
    %3762 = vmatprep.subr.bf16.mxu0 0
    %3763 = vmatpush1.bf16.msra.mxu0 0
    %3764 = vmatprep.subr.bf16.mxu0 0
    %3765 = vmatpush1.bf16.msra.mxu0 0
    %3766 = vmatprep.subr.bf16.mxu0 0
    %3767 = vmatpush1.bf16.msra.mxu0 0
    %3768 = vmatprep.subr.bf16.mxu0 0
    %3769 = vmatpush1.bf16.msra.mxu0 0
    %3770 = vmatprep.mubr.bf16.mxu0 0
    %3771 = vmatmul.mubr.bf16.gmra.mrb[0].mxu0 %v3736
    %v3772 = vpop.f32.mrb[0].mxu0
    %v3773 = vadd.f32 0.0, %v3772
    %v3774 = vpop.f32.mrb[0].mxu0
    %v3775 = vadd.f32 0.0, %v3774
    %v3776 = vpop.f32.mrb[0].mxu0
    %v3777 = vpop.f32.mrb[0].mxu0
    %3778 = vdwg.mxu0
    %3779 = vmatprep.subr.bf16.mxu0 %v3465
    %3780 = vmatpush1.bf16.msra.mxu0 %v3464
    %3781 = vmatprep.subr.bf16.mxu0 %v3469
    %3782 = vmatpush1.bf16.msra.mxu0 %v3468
    %3783 = vmatprep.subr.bf16.mxu0 %v3473
    %3784 = vmatpush1.bf16.msra.mxu0 %v3472
    %3785 = vmatprep.subr.bf16.mxu0 %v3477
    %3786 = vmatpush1.bf16.msra.mxu0 %v3476
    %3787 = vmatprep.subr.bf16.mxu0 %v3481
    %3788 = vmatpush1.bf16.msra.mxu0 %v3480
    %3789 = vmatprep.subr.bf16.mxu0 %v3485
    %3790 = vmatpush1.bf16.msra.mxu0 %v3484
    %3791 = vmatprep.subr.bf16.mxu0 %v3489
    %3792 = vmatpush1.bf16.msra.mxu0 %v3488
    %3793 = vmatprep.subr.bf16.mxu0 %v3493
    %3794 = vmatpush1.bf16.msra.mxu0 %v3492
    %3795 = vmatprep.subr.bf16.mxu0 0
    %3796 = vmatpush1.bf16.msra.mxu0 0
    %3797 = vmatprep.subr.bf16.mxu0 0
    %3798 = vmatpush1.bf16.msra.mxu0 0
    %3799 = vmatprep.subr.bf16.mxu0 0
    %3800 = vmatpush1.bf16.msra.mxu0 0
    %3801 = vmatprep.subr.bf16.mxu0 0
    %3802 = vmatpush1.bf16.msra.mxu0 0
    %3803 = vmatprep.subr.bf16.mxu0 0
    %3804 = vmatpush1.bf16.msra.mxu0 0
    %3805 = vmatprep.subr.bf16.mxu0 0
    %3806 = vmatpush1.bf16.msra.mxu0 0
    %3807 = vmatprep.subr.bf16.mxu0 0
    %3808 = vmatpush1.bf16.msra.mxu0 0
    %3809 = vmatprep.subr.bf16.mxu0 0
    %3810 = vmatpush1.bf16.msra.mxu0 0
    %3811 = vmatprep.mubr.bf16.mxu0 0
    %3812 = vmatmul.mubr.bf16.gmra.mrb[0].mxu0 %v3736
    %v3813 = vpop.f32.mrb[0].mxu0
    %v3814 = vadd.f32 0.0, %v3813
    %v3815 = vpop.f32.mrb[0].mxu0
    %v3816 = vadd.f32 0.0, %v3815
    %v3817 = vpop.f32.mrb[0].mxu0
    %v3818 = vpop.f32.mrb[0].mxu0
    %3819 = vdwg.mxu0
    %v3820 = vadd.f32 %v3265, %v3773
    %v3821 = vadd.f32 %v3267, %v3775
    %v3822 = vadd.f32 %v3338, %v3814
    %v3823 = vadd.f32 %v3340, %v3816
    %v3824 = vmul.f32 %v3820, 0.5
    %v3825 = vmul.f32 %v3821, 0.5
    %v3826 = vmul.f32 %v3822, 0.5
    %v3827 = vtanh.pop %v3824
    %v3828 = vtanh.pop %v3825
    %v3829 = vtanh.pop %v3826
    %v3830 = vmul.f32 %v3827, 0.5
    %v3831 = vmul.f32 %v3828, 0.5
    %v3832 = vmul.f32 %v3829, 0.5
    %v3833 = vadd.f32 %v3830, 0.5
    %v3834 = vadd.f32 %v3831, 0.5
    %v3835 = vadd.f32 %v3832, 0.5
    %v3836 = vtanh.pop %v3823
    %v3837 = vmul.f32 %v3834, %v3733
    %v3838 = vmul.f32 %v3833, %v3836
    %v3839 = vadd.f32 %v3837, %v3838
    %v3840 = vtanh.pop %v3839
    %v3841 = vmul.f32 %v3835, %v3840
    %v3842 = vpack.c.bf16 %v3841, %v3841
    %3843 = vst [vmem:[%s967] sm:$0xf] %v3842
    %3844 = vmatprep.subr.bf16.mxu0 %v3463
    %3845 = vmatpush1.bf16.msra.mxu0 %v3462
    %3846 = vmatprep.subr.bf16.mxu0 %v3467
    %3847 = vmatpush1.bf16.msra.mxu0 %v3466
    %3848 = vmatprep.subr.bf16.mxu0 %v3471
    %3849 = vmatpush1.bf16.msra.mxu0 %v3470
    %3850 = vmatprep.subr.bf16.mxu0 %v3475
    %3851 = vmatpush1.bf16.msra.mxu0 %v3474
    %3852 = vmatprep.subr.bf16.mxu0 %v3479
    %3853 = vmatpush1.bf16.msra.mxu0 %v3478
    %3854 = vmatprep.subr.bf16.mxu0 %v3483
    %3855 = vmatpush1.bf16.msra.mxu0 %v3482
    %3856 = vmatprep.subr.bf16.mxu0 %v3487
    %3857 = vmatpush1.bf16.msra.mxu0 %v3486
    %3858 = vmatprep.subr.bf16.mxu0 %v3491
    %3859 = vmatpush1.bf16.msra.mxu0 %v3490
    %3860 = vmatprep.subr.bf16.mxu0 0
    %3861 = vmatpush1.bf16.msra.mxu0 0
    %3862 = vmatprep.subr.bf16.mxu0 0
    %3863 = vmatpush1.bf16.msra.mxu0 0
    %3864 = vmatprep.subr.bf16.mxu0 0
    %3865 = vmatpush1.bf16.msra.mxu0 0
    %3866 = vmatprep.subr.bf16.mxu0 0
    %3867 = vmatpush1.bf16.msra.mxu0 0
    %3868 = vmatprep.subr.bf16.mxu0 0
    %3869 = vmatpush1.bf16.msra.mxu0 0
    %3870 = vmatprep.subr.bf16.mxu0 0
    %3871 = vmatpush1.bf16.msra.mxu0 0
    %3872 = vmatprep.subr.bf16.mxu0 0
    %3873 = vmatpush1.bf16.msra.mxu0 0
    %3874 = vmatprep.subr.bf16.mxu0 0
    %3875 = vmatpush1.bf16.msra.mxu0 0
    %3876 = vmatprep.mubr.bf16.mxu0 0
    %3877 = vmatmul.mubr.bf16.gmra.mrb[0].mxu0 %v3842
    %v3878 = vpop.f32.mrb[0].mxu0
    %v3879 = vadd.f32 0.0, %v3878
    %v3880 = vpop.f32.mrb[0].mxu0
    %v3881 = vadd.f32 0.0, %v3880
    %v3882 = vpop.f32.mrb[0].mxu0
    %v3883 = vpop.f32.mrb[0].mxu0
    %3884 = vdwg.mxu0
    %3885 = vmatprep.subr.bf16.mxu0 %v3465
    %3886 = vmatpush1.bf16.msra.mxu0 %v3464
    %3887 = vmatprep.subr.bf16.mxu0 %v3469
    %3888 = vmatpush1.bf16.msra.mxu0 %v3468
    %3889 = vmatprep.subr.bf16.mxu0 %v3473
    %3890 = vmatpush1.bf16.msra.mxu0 %v3472
    %3891 = vmatprep.subr.bf16.mxu0 %v3477
    %3892 = vmatpush1.bf16.msra.mxu0 %v3476
    %3893 = vmatprep.subr.bf16.mxu0 %v3481
    %3894 = vmatpush1.bf16.msra.mxu0 %v3480
    %3895 = vmatprep.subr.bf16.mxu0 %v3485
    %3896 = vmatpush1.bf16.msra.mxu0 %v3484
    %3897 = vmatprep.subr.bf16.mxu0 %v3489
    %3898 = vmatpush1.bf16.msra.mxu0 %v3488
    %3899 = vmatprep.subr.bf16.mxu0 %v3493
    %3900 = vmatpush1.bf16.msra.mxu0 %v3492
    %3901 = vmatprep.subr.bf16.mxu0 0
    %3902 = vmatpush1.bf16.msra.mxu0 0
    %3903 = vmatprep.subr.bf16.mxu0 0
    %3904 = vmatpush1.bf16.msra.mxu0 0
    %3905 = vmatprep.subr.bf16.mxu0 0
    %3906 = vmatpush1.bf16.msra.mxu0 0
    %3907 = vmatprep.subr.bf16.mxu0 0
    %3908 = vmatpush1.bf16.msra.mxu0 0
    %3909 = vmatprep.subr.bf16.mxu0 0
    %3910 = vmatpush1.bf16.msra.mxu0 0
    %3911 = vmatprep.subr.bf16.mxu0 0
    %3912 = vmatpush1.bf16.msra.mxu0 0
    %3913 = vmatprep.subr.bf16.mxu0 0
    %3914 = vmatpush1.bf16.msra.mxu0 0
    %3915 = vmatprep.subr.bf16.mxu0 0
    %3916 = vmatpush1.bf16.msra.mxu0 0
    %3917 = vmatprep.mubr.bf16.mxu0 0
    %3918 = vmatmul.mubr.bf16.gmra.mrb[0].mxu0 %v3842
    %v3919 = vpop.f32.mrb[0].mxu0
    %v3920 = vadd.f32 0.0, %v3919
    %v3921 = vpop.f32.mrb[0].mxu0
    %v3922 = vadd.f32 0.0, %v3921
    %v3923 = vpop.f32.mrb[0].mxu0
    %v3924 = vpop.f32.mrb[0].mxu0
    %3925 = vdwg.mxu0
    %v3926 = vadd.f32 %v3269, %v3879
    %v3927 = vadd.f32 %v3271, %v3881
    %v3928 = vadd.f32 %v3342, %v3920
    %v3929 = vadd.f32 %v3344, %v3922
    %v3930 = vmul.f32 %v3926, 0.5
    %v3931 = vmul.f32 %v3927, 0.5
    %v3932 = vmul.f32 %v3928, 0.5
    %v3933 = vtanh.pop %v3930
    %v3934 = vtanh.pop %v3931
    %v3935 = vtanh.pop %v3932
    %v3936 = vmul.f32 %v3933, 0.5
    %v3937 = vmul.f32 %v3934, 0.5
    %v3938 = vmul.f32 %v3935, 0.5
    %v3939 = vadd.f32 %v3936, 0.5
    %v3940 = vadd.f32 %v3937, 0.5
    %v3941 = vadd.f32 %v3938, 0.5
    %v3942 = vtanh.pop %v3929
    %v3943 = vmul.f32 %v3940, %v3839
    %v3944 = vmul.f32 %v3939, %v3942
    %v3945 = vadd.f32 %v3943, %v3944
    %v3946 = vtanh.pop %v3945
    %v3947 = vmul.f32 %v3941, %v3946
    %v3948 = vpack.c.bf16 %v3947, %v3947
    %3949 = vst [vmem:[%s1074] sm:$0xf] %v3948
    %3950 = vmatprep.subr.bf16.mxu0 %v3463
    %3951 = vmatpush1.bf16.msra.mxu0 %v3462
    %3952 = vmatprep.subr.bf16.mxu0 %v3467
    %3953 = vmatpush1.bf16.msra.mxu0 %v3466
    %3954 = vmatprep.subr.bf16.mxu0 %v3471
    %3955 = vmatpush1.bf16.msra.mxu0 %v3470
    %3956 = vmatprep.subr.bf16.mxu0 %v3475
    %3957 = vmatpush1.bf16.msra.mxu0 %v3474
    %3958 = vmatprep.subr.bf16.mxu0 %v3479
    %3959 = vmatpush1.bf16.msra.mxu0 %v3478
    %3960 = vmatprep.subr.bf16.mxu0 %v3483
    %3961 = vmatpush1.bf16.msra.mxu0 %v3482
    %3962 = vmatprep.subr.bf16.mxu0 %v3487
    %3963 = vmatpush1.bf16.msra.mxu0 %v3486
    %3964 = vmatprep.subr.bf16.mxu0 %v3491
    %3965 = vmatpush1.bf16.msra.mxu0 %v3490
    %3966 = vmatprep.subr.bf16.mxu0 0
    %3967 = vmatpush1.bf16.msra.mxu0 0
    %3968 = vmatprep.subr.bf16.mxu0 0
    %3969 = vmatpush1.bf16.msra.mxu0 0
    %3970 = vmatprep.subr.bf16.mxu0 0
    %3971 = vmatpush1.bf16.msra.mxu0 0
    %3972 = vmatprep.subr.bf16.mxu0 0
    %3973 = vmatpush1.bf16.msra.mxu0 0
    %3974 = vmatprep.subr.bf16.mxu0 0
    %3975 = vmatpush1.bf16.msra.mxu0 0
    %3976 = vmatprep.subr.bf16.mxu0 0
    %3977 = vmatpush1.bf16.msra.mxu0 0
    %3978 = vmatprep.subr.bf16.mxu0 0
    %3979 = vmatpush1.bf16.msra.mxu0 0
    %3980 = vmatprep.subr.bf16.mxu0 0
    %3981 = vmatpush1.bf16.msra.mxu0 0
    %3982 = vmatprep.mubr.bf16.mxu0 0
    %3983 = vmatmul.mubr.bf16.gmra.mrb[0].mxu0 %v3948
    %v3984 = vpop.f32.mrb[0].mxu0
    %v3985 = vadd.f32 0.0, %v3984
    %v3986 = vpop.f32.mrb[0].mxu0
    %v3987 = vadd.f32 0.0, %v3986
    %v3988 = vpop.f32.mrb[0].mxu0
    %v3989 = vpop.f32.mrb[0].mxu0
    %3990 = vdwg.mxu0
    %3991 = vmatprep.subr.bf16.mxu0 %v3465
    %3992 = vmatpush1.bf16.msra.mxu0 %v3464
    %3993 = vmatprep.subr.bf16.mxu0 %v3469
    %3994 = vmatpush1.bf16.msra.mxu0 %v3468
    %3995 = vmatprep.subr.bf16.mxu0 %v3473
    %3996 = vmatpush1.bf16.msra.mxu0 %v3472
    %3997 = vmatprep.subr.bf16.mxu0 %v3477
    %3998 = vmatpush1.bf16.msra.mxu0 %v3476
    %3999 = vmatprep.subr.bf16.mxu0 %v3481
    %4000 = vmatpush1.bf16.msra.mxu0 %v3480
    %4001 = vmatprep.subr.bf16.mxu0 %v3485
    %4002 = vmatpush1.bf16.msra.mxu0 %v3484
    %4003 = vmatprep.subr.bf16.mxu0 %v3489
    %4004 = vmatpush1.bf16.msra.mxu0 %v3488
    %4005 = vmatprep.subr.bf16.mxu0 %v3493
    %4006 = vmatpush1.bf16.msra.mxu0 %v3492
    %4007 = vmatprep.subr.bf16.mxu0 0
    %4008 = vmatpush1.bf16.msra.mxu0 0
    %4009 = vmatprep.subr.bf16.mxu0 0
    %4010 = vmatpush1.bf16.msra.mxu0 0
    %4011 = vmatprep.subr.bf16.mxu0 0
    %4012 = vmatpush1.bf16.msra.mxu0 0
    %4013 = vmatprep.subr.bf16.mxu0 0
    %4014 = vmatpush1.bf16.msra.mxu0 0
    %4015 = vmatprep.subr.bf16.mxu0 0
    %4016 = vmatpush1.bf16.msra.mxu0 0
    %4017 = vmatprep.subr.bf16.mxu0 0
    %4018 = vmatpush1.bf16.msra.mxu0 0
    %4019 = vmatprep.subr.bf16.mxu0 0
    %4020 = vmatpush1.bf16.msra.mxu0 0
    %4021 = vmatprep.subr.bf16.mxu0 0
    %4022 = vmatpush1.bf16.msra.mxu0 0
    %4023 = vmatprep.mubr.bf16.mxu0 0
    %4024 = vmatmul.mubr.bf16.gmra.mrb[0].mxu0 %v3948
    %v4025 = vpop.f32.mrb[0].mxu0
    %v4026 = vadd.f32 0.0, %v4025
    %v4027 = vpop.f32.mrb[0].mxu0
    %v4028 = vadd.f32 0.0, %v4027
    %v4029 = vpop.f32.mrb[0].mxu0
    %v4030 = vpop.f32.mrb[0].mxu0
    %4031 = vdwg.mxu0
    %v4032 = vadd.f32 %v3275, %v3985
    %v4033 = vadd.f32 %v3277, %v3987
    %v4034 = vadd.f32 %v3348, %v4026
    %v4035 = vadd.f32 %v3350, %v4028
    %v4036 = vmul.f32 %v4032, 0.5
    %v4037 = vmul.f32 %v4033, 0.5
    %v4038 = vmul.f32 %v4034, 0.5
    %v4039 = vtanh.pop %v4036
    %v4040 = vtanh.pop %v4037
    %v4041 = vtanh.pop %v4038
    %v4042 = vmul.f32 %v4039, 0.5
    %v4043 = vmul.f32 %v4040, 0.5
    %v4044 = vmul.f32 %v4041, 0.5
    %v4045 = vadd.f32 %v4042, 0.5
    %v4046 = vadd.f32 %v4043, 0.5
    %v4047 = vadd.f32 %v4044, 0.5
    %v4048 = vtanh.pop %v4035
    %v4049 = vmul.f32 %v4046, %v3945
    %v4050 = vmul.f32 %v4045, %v4048
    %v4051 = vadd.f32 %v4049, %v4050
    %v4052 = vtanh.pop %v4051
    %v4053 = vmul.f32 %v4047, %v4052
    %v4054 = vpack.c.bf16 %v4053, %v4053
    %4055 = vst [vmem:[%s1181] sm:$0xf] %v4054
    %4056 = vmatprep.subr.bf16.mxu0 %v3463
    %4057 = vmatpush1.bf16.msra.mxu0 %v3462
    %4058 = vmatprep.subr.bf16.mxu0 %v3467
    %4059 = vmatpush1.bf16.msra.mxu0 %v3466
    %4060 = vmatprep.subr.bf16.mxu0 %v3471
    %4061 = vmatpush1.bf16.msra.mxu0 %v3470
    %4062 = vmatprep.subr.bf16.mxu0 %v3475
    %4063 = vmatpush1.bf16.msra.mxu0 %v3474
    %4064 = vmatprep.subr.bf16.mxu0 %v3479
    %4065 = vmatpush1.bf16.msra.mxu0 %v3478
    %4066 = vmatprep.subr.bf16.mxu0 %v3483
    %4067 = vmatpush1.bf16.msra.mxu0 %v3482
    %4068 = vmatprep.subr.bf16.mxu0 %v3487
    %4069 = vmatpush1.bf16.msra.mxu0 %v3486
    %4070 = vmatprep.subr.bf16.mxu0 %v3491
    %4071 = vmatpush1.bf16.msra.mxu0 %v3490
    %4072 = vmatprep.subr.bf16.mxu0 0
    %4073 = vmatpush1.bf16.msra.mxu0 0
    %4074 = vmatprep.subr.bf16.mxu0 0
    %4075 = vmatpush1.bf16.msra.mxu0 0
    %4076 = vmatprep.subr.bf16.mxu0 0
    %4077 = vmatpush1.bf16.msra.mxu0 0
    %4078 = vmatprep.subr.bf16.mxu0 0
    %4079 = vmatpush1.bf16.msra.mxu0 0
    %4080 = vmatprep.subr.bf16.mxu0 0
    %4081 = vmatpush1.bf16.msra.mxu0 0
    %4082 = vmatprep.subr.bf16.mxu0 0
    %4083 = vmatpush1.bf16.msra.mxu0 0
    %4084 = vmatprep.subr.bf16.mxu0 0
    %4085 = vmatpush1.bf16.msra.mxu0 0
    %4086 = vmatprep.subr.bf16.mxu0 0
    %4087 = vmatpush1.bf16.msra.mxu0 0
    %4088 = vmatprep.mubr.bf16.mxu0 0
    %4089 = vmatmul.mubr.bf16.gmra.mrb[0].mxu0 %v4054
    %v4090 = vpop.f32.mrb[0].mxu0
    %v4091 = vadd.f32 0.0, %v4090
    %v4092 = vpop.f32.mrb[0].mxu0
    %v4093 = vadd.f32 0.0, %v4092
    %v4094 = vpop.f32.mrb[0].mxu0
    %v4095 = vpop.f32.mrb[0].mxu0
    %4096 = vdwg.mxu0
    %4097 = vmatprep.subr.bf16.mxu0 %v3465
    %4098 = vmatpush1.bf16.msra.mxu0 %v3464
    %4099 = vmatprep.subr.bf16.mxu0 %v3469
    %4100 = vmatpush1.bf16.msra.mxu0 %v3468
    %4101 = vmatprep.subr.bf16.mxu0 %v3473
    %4102 = vmatpush1.bf16.msra.mxu0 %v3472
    %4103 = vmatprep.subr.bf16.mxu0 %v3477
    %4104 = vmatpush1.bf16.msra.mxu0 %v3476
    %4105 = vmatprep.subr.bf16.mxu0 %v3481
    %4106 = vmatpush1.bf16.msra.mxu0 %v3480
    %4107 = vmatprep.subr.bf16.mxu0 %v3485
    %4108 = vmatpush1.bf16.msra.mxu0 %v3484
    %4109 = vmatprep.subr.bf16.mxu0 %v3489
    %4110 = vmatpush1.bf16.msra.mxu0 %v3488
    %4111 = vmatprep.subr.bf16.mxu0 %v3493
    %4112 = vmatpush1.bf16.msra.mxu0 %v3492
    %4113 = vmatprep.subr.bf16.mxu0 0
    %4114 = vmatpush1.bf16.msra.mxu0 0
    %4115 = vmatprep.subr.bf16.mxu0 0
    %4116 = vmatpush1.bf16.msra.mxu0 0
    %4117 = vmatprep.subr.bf16.mxu0 0
    %4118 = vmatpush1.bf16.msra.mxu0 0
    %4119 = vmatprep.subr.bf16.mxu0 0
    %4120 = vmatpush1.bf16.msra.mxu0 0
    %4121 = vmatprep.subr.bf16.mxu0 0
    %4122 = vmatpush1.bf16.msra.mxu0 0
    %4123 = vmatprep.subr.bf16.mxu0 0
    %4124 = vmatpush1.bf16.msra.mxu0 0
    %4125 = vmatprep.subr.bf16.mxu0 0
    %4126 = vmatpush1.bf16.msra.mxu0 0
    %4127 = vmatprep.subr.bf16.mxu0 0
    %4128 = vmatpush1.bf16.msra.mxu0 0
    %4129 = vmatprep.mubr.bf16.mxu0 0
    %4130 = vmatmul.mubr.bf16.gmra.mrb[0].mxu0 %v4054
    %v4131 = vpop.f32.mrb[0].mxu0
    %v4132 = vadd.f32 0.0, %v4131
    %v4133 = vpop.f32.mrb[0].mxu0
    %v4134 = vadd.f32 0.0, %v4133
    %v4135 = vpop.f32.mrb[0].mxu0
    %v4136 = vpop.f32.mrb[0].mxu0
    %4137 = vdwg.mxu0
    %v4138 = vadd.f32 %v3279, %v4091
    %v4139 = vadd.f32 %v3281, %v4093
    %v4140 = vadd.f32 %v3352, %v4132
    %v4141 = vadd.f32 %v3354, %v4134
    %v4142 = vmul.f32 %v4138, 0.5
    %v4143 = vmul.f32 %v4139, 0.5
    %v4144 = vmul.f32 %v4140, 0.5
    %v4145 = vtanh.pop %v4142
    %v4146 = vtanh.pop %v4143
    %v4147 = vtanh.pop %v4144
    %v4148 = vmul.f32 %v4145, 0.5
    %v4149 = vmul.f32 %v4146, 0.5
    %v4150 = vmul.f32 %v4147, 0.5
    %v4151 = vadd.f32 %v4148, 0.5
    %v4152 = vadd.f32 %v4149, 0.5
    %v4153 = vadd.f32 %v4150, 0.5
    %v4154 = vtanh.pop %v4141
    %v4155 = vmul.f32 %v4152, %v4051
    %v4156 = vmul.f32 %v4151, %v4154
    %v4157 = vadd.f32 %v4155, %v4156
    %v4158 = vtanh.pop %v4157
    %v4159 = vmul.f32 %v4153, %v4158
    %v4160 = vpack.c.bf16 %v4159, %v4159
    %4161 = vst [vmem:[%s1288] sm:$0xf] %v4160
    %4162 = vmatprep.subr.bf16.mxu0 %v3463
    %4163 = vmatpush1.bf16.msra.mxu0 %v3462
    %4164 = vmatprep.subr.bf16.mxu0 %v3467
    %4165 = vmatpush1.bf16.msra.mxu0 %v3466
    %4166 = vmatprep.subr.bf16.mxu0 %v3471
    %4167 = vmatpush1.bf16.msra.mxu0 %v3470
    %4168 = vmatprep.subr.bf16.mxu0 %v3475
    %4169 = vmatpush1.bf16.msra.mxu0 %v3474
    %4170 = vmatprep.subr.bf16.mxu0 %v3479
    %4171 = vmatpush1.bf16.msra.mxu0 %v3478
    %4172 = vmatprep.subr.bf16.mxu0 %v3483
    %4173 = vmatpush1.bf16.msra.mxu0 %v3482
    %4174 = vmatprep.subr.bf16.mxu0 %v3487
    %4175 = vmatpush1.bf16.msra.mxu0 %v3486
    %4176 = vmatprep.subr.bf16.mxu0 %v3491
    %4177 = vmatpush1.bf16.msra.mxu0 %v3490
    %4178 = vmatprep.subr.bf16.mxu0 0
    %4179 = vmatpush1.bf16.msra.mxu0 0
    %4180 = vmatprep.subr.bf16.mxu0 0
    %4181 = vmatpush1.bf16.msra.mxu0 0
    %4182 = vmatprep.subr.bf16.mxu0 0
    %4183 = vmatpush1.bf16.msra.mxu0 0
    %4184 = vmatprep.subr.bf16.mxu0 0
    %4185 = vmatpush1.bf16.msra.mxu0 0
    %4186 = vmatprep.subr.bf16.mxu0 0
    %4187 = vmatpush1.bf16.msra.mxu0 0
    %4188 = vmatprep.subr.bf16.mxu0 0
    %4189 = vmatpush1.bf16.msra.mxu0 0
    %4190 = vmatprep.subr.bf16.mxu0 0
    %4191 = vmatpush1.bf16.msra.mxu0 0
    %4192 = vmatprep.subr.bf16.mxu0 0
    %4193 = vmatpush1.bf16.msra.mxu0 0
    %4194 = vmatprep.mubr.bf16.mxu0 0
    %4195 = vmatmul.mubr.bf16.gmra.mrb[0].mxu0 %v4160
    %v4196 = vpop.f32.mrb[0].mxu0
    %v4197 = vadd.f32 0.0, %v4196
    %v4198 = vpop.f32.mrb[0].mxu0
    %v4199 = vadd.f32 0.0, %v4198
    %v4200 = vpop.f32.mrb[0].mxu0
    %v4201 = vpop.f32.mrb[0].mxu0
    %4202 = vdwg.mxu0
    %4203 = vmatprep.subr.bf16.mxu0 %v3465
    %4204 = vmatpush1.bf16.msra.mxu0 %v3464
    %4205 = vmatprep.subr.bf16.mxu0 %v3469
    %4206 = vmatpush1.bf16.msra.mxu0 %v3468
    %4207 = vmatprep.subr.bf16.mxu0 %v3473
    %4208 = vmatpush1.bf16.msra.mxu0 %v3472
    %4209 = vmatprep.subr.bf16.mxu0 %v3477
    %4210 = vmatpush1.bf16.msra.mxu0 %v3476
    %4211 = vmatprep.subr.bf16.mxu0 %v3481
    %4212 = vmatpush1.bf16.msra.mxu0 %v3480
    %4213 = vmatprep.subr.bf16.mxu0 %v3485
    %4214 = vmatpush1.bf16.msra.mxu0 %v3484
    %4215 = vmatprep.subr.bf16.mxu0 %v3489
    %4216 = vmatpush1.bf16.msra.mxu0 %v3488
    %4217 = vmatprep.subr.bf16.mxu0 %v3493
    %4218 = vmatpush1.bf16.msra.mxu0 %v3492
    %4219 = vmatprep.subr.bf16.mxu0 0
    %4220 = vmatpush1.bf16.msra.mxu0 0
    %4221 = vmatprep.subr.bf16.mxu0 0
    %4222 = vmatpush1.bf16.msra.mxu0 0
    %4223 = vmatprep.subr.bf16.mxu0 0
    %4224 = vmatpush1.bf16.msra.mxu0 0
    %4225 = vmatprep.subr.bf16.mxu0 0
    %4226 = vmatpush1.bf16.msra.mxu0 0
    %4227 = vmatprep.subr.bf16.mxu0 0
    %4228 = vmatpush1.bf16.msra.mxu0 0
    %4229 = vmatprep.subr.bf16.mxu0 0
    %4230 = vmatpush1.bf16.msra.mxu0 0
    %4231 = vmatprep.subr.bf16.mxu0 0
    %4232 = vmatpush1.bf16.msra.mxu0 0
    %4233 = vmatprep.subr.bf16.mxu0 0
    %4234 = vmatpush1.bf16.msra.mxu0 0
    %4235 = vmatprep.mubr.bf16.mxu0 0
    %4236 = vmatmul.mubr.bf16.gmra.mrb[0].mxu0 %v4160
    %v4237 = vpop.f32.mrb[0].mxu0
    %v4238 = vadd.f32 0.0, %v4237
    %v4239 = vpop.f32.mrb[0].mxu0
    %v4240 = vadd.f32 0.0, %v4239
    %v4241 = vpop.f32.mrb[0].mxu0
    %v4242 = vpop.f32.mrb[0].mxu0
    %4243 = vdwg.mxu0
    %v4244 = vadd.f32 %v3285, %v4197
    %v4245 = vadd.f32 %v3287, %v4199
    %v4246 = vadd.f32 %v3358, %v4238
    %v4247 = vadd.f32 %v3360, %v4240
    %v4248 = vmul.f32 %v4244, 0.5
    %v4249 = vmul.f32 %v4245, 0.5
    %v4250 = vmul.f32 %v4246, 0.5
    %v4251 = vtanh.pop %v4248
    %v4252 = vtanh.pop %v4249
    %v4253 = vtanh.pop %v4250
    %v4254 = vmul.f32 %v4251, 0.5
    %v4255 = vmul.f32 %v4252, 0.5
    %v4256 = vmul.f32 %v4253, 0.5
    %v4257 = vadd.f32 %v4254, 0.5
    %v4258 = vadd.f32 %v4255, 0.5
    %v4259 = vadd.f32 %v4256, 0.5
    %v4260 = vtanh.pop %v4247
    %v4261 = vmul.f32 %v4258, %v4157
    %v4262 = vmul.f32 %v4257, %v4260
    %v4263 = vadd.f32 %v4261, %v4262
    %v4264 = vtanh.pop %v4263
    %v4265 = vmul.f32 %v4259, %v4264
    %v4266 = vpack.c.bf16 %v4265, %v4265
    %4267 = vst [vmem:[%s1395] sm:$0xf] %v4266
    %4268 = vmatprep.subr.bf16.mxu0 %v3463
    %4269 = vmatpush1.bf16.msra.mxu0 %v3462
    %4270 = vmatprep.subr.bf16.mxu0 %v3467
    %4271 = vmatpush1.bf16.msra.mxu0 %v3466
    %4272 = vmatprep.subr.bf16.mxu0 %v3471
    %4273 = vmatpush1.bf16.msra.mxu0 %v3470
    %4274 = vmatprep.subr.bf16.mxu0 %v3475
    %4275 = vmatpush1.bf16.msra.mxu0 %v3474
    %4276 = vmatprep.subr.bf16.mxu0 %v3479
    %4277 = vmatpush1.bf16.msra.mxu0 %v3478
    %4278 = vmatprep.subr.bf16.mxu0 %v3483
    %4279 = vmatpush1.bf16.msra.mxu0 %v3482
    %4280 = vmatprep.subr.bf16.mxu0 %v3487
    %4281 = vmatpush1.bf16.msra.mxu0 %v3486
    %4282 = vmatprep.subr.bf16.mxu0 %v3491
    %4283 = vmatpush1.bf16.msra.mxu0 %v3490
    %4284 = vmatprep.subr.bf16.mxu0 0
    %4285 = vmatpush1.bf16.msra.mxu0 0
    %4286 = vmatprep.subr.bf16.mxu0 0
    %4287 = vmatpush1.bf16.msra.mxu0 0
    %4288 = vmatprep.subr.bf16.mxu0 0
    %4289 = vmatpush1.bf16.msra.mxu0 0
    %4290 = vmatprep.subr.bf16.mxu0 0
    %4291 = vmatpush1.bf16.msra.mxu0 0
    %4292 = vmatprep.subr.bf16.mxu0 0
    %4293 = vmatpush1.bf16.msra.mxu0 0
    %4294 = vmatprep.subr.bf16.mxu0 0
    %4295 = vmatpush1.bf16.msra.mxu0 0
    %4296 = vmatprep.subr.bf16.mxu0 0
    %4297 = vmatpush1.bf16.msra.mxu0 0
    %4298 = vmatprep.subr.bf16.mxu0 0
    %4299 = vmatpush1.bf16.msra.mxu0 0
    %4300 = vmatprep.mubr.bf16.mxu0 0
    %4301 = vmatmul.mubr.bf16.gmra.mrb[0].mxu0 %v4266
    %v4302 = vpop.f32.mrb[0].mxu0
    %v4303 = vadd.f32 0.0, %v4302
    %v4304 = vpop.f32.mrb[0].mxu0
    %v4305 = vadd.f32 0.0, %v4304
    %v4306 = vpop.f32.mrb[0].mxu0
    %v4307 = vpop.f32.mrb[0].mxu0
    %4308 = vdwg.mxu0
    %4309 = vmatprep.subr.bf16.mxu0 %v3465
    %4310 = vmatpush1.bf16.msra.mxu0 %v3464
    %4311 = vmatprep.subr.bf16.mxu0 %v3469
    %4312 = vmatpush1.bf16.msra.mxu0 %v3468
    %4313 = vmatprep.subr.bf16.mxu0 %v3473
    %4314 = vmatpush1.bf16.msra.mxu0 %v3472
    %4315 = vmatprep.subr.bf16.mxu0 %v3477
    %4316 = vmatpush1.bf16.msra.mxu0 %v3476
    %4317 = vmatprep.subr.bf16.mxu0 %v3481
    %4318 = vmatpush1.bf16.msra.mxu0 %v3480
    %4319 = vmatprep.subr.bf16.mxu0 %v3485
    %4320 = vmatpush1.bf16.msra.mxu0 %v3484
    %4321 = vmatprep.subr.bf16.mxu0 %v3489
    %4322 = vmatpush1.bf16.msra.mxu0 %v3488
    %4323 = vmatprep.subr.bf16.mxu0 %v3493
    %4324 = vmatpush1.bf16.msra.mxu0 %v3492
    %4325 = vmatprep.subr.bf16.mxu0 0
    %4326 = vmatpush1.bf16.msra.mxu0 0
    %4327 = vmatprep.subr.bf16.mxu0 0
    %4328 = vmatpush1.bf16.msra.mxu0 0
    %4329 = vmatprep.subr.bf16.mxu0 0
    %4330 = vmatpush1.bf16.msra.mxu0 0
    %4331 = vmatprep.subr.bf16.mxu0 0
    %4332 = vmatpush1.bf16.msra.mxu0 0
    %4333 = vmatprep.subr.bf16.mxu0 0
    %4334 = vmatpush1.bf16.msra.mxu0 0
    %4335 = vmatprep.subr.bf16.mxu0 0
    %4336 = vmatpush1.bf16.msra.mxu0 0
    %4337 = vmatprep.subr.bf16.mxu0 0
    %4338 = vmatpush1.bf16.msra.mxu0 0
    %4339 = vmatprep.subr.bf16.mxu0 0
    %4340 = vmatpush1.bf16.msra.mxu0 0
    %4341 = vmatprep.mubr.bf16.mxu0 0
    %4342 = vmatmul.mubr.bf16.gmra.mrb[0].mxu0 %v4266
    %v4343 = vpop.f32.mrb[0].mxu0
    %v4344 = vadd.f32 0.0, %v4343
    %v4345 = vpop.f32.mrb[0].mxu0
    %v4346 = vadd.f32 0.0, %v4345
    %v4347 = vpop.f32.mrb[0].mxu0
    %v4348 = vpop.f32.mrb[0].mxu0
    %4349 = vdwg.mxu0
    %v4350 = vadd.f32 %v3289, %v4303
    %v4351 = vadd.f32 %v3291, %v4305
    %v4352 = vadd.f32 %v3362, %v4344
    %v4353 = vadd.f32 %v3364, %v4346
    %v4354 = vmul.f32 %v4350, 0.5
    %v4355 = vmul.f32 %v4351, 0.5
    %v4356 = vmul.f32 %v4352, 0.5
    %v4357 = vtanh.pop %v4354
    %v4358 = vtanh.pop %v4355
    %v4359 = vtanh.pop %v4356
    %v4360 = vmul.f32 %v4357, 0.5
    %v4361 = vmul.f32 %v4358, 0.5
    %v4362 = vmul.f32 %v4359, 0.5
    %v4363 = vadd.f32 %v4360, 0.5
    %v4364 = vadd.f32 %v4361, 0.5
    %v4365 = vadd.f32 %v4362, 0.5
    %v4366 = vtanh.pop %v4353
    %v4367 = vmul.f32 %v4364, %v4263
    %v4368 = vmul.f32 %v4363, %v4366
    %v4369 = vadd.f32 %v4367, %v4368
    %v4370 = vtanh.pop %v4369
    %v4371 = vmul.f32 %v4365, %v4370
    %v4372 = vpack.c.bf16 %v4371, %v4371
    %4373 = vst [vmem:[%s1502] sm:$0xf] %v4372
    %s4374 = scalar_lea.vmem [#allocation3], 768
    %v4375 = vld [vmem:[%s4374] sm:$0xff]
    %v4376 = vld [vmem:[%s4374 + $0x8] sm:$0xff]
    %v4377 = vld [vmem:[%s4374 + $0x10] sm:$0xff]
    %v4378 = vld [vmem:[%s4374 + $0x18] sm:$0xff]
    %v4379 = vld [vmem:[%s4374 + $0x20] sm:$0xff]
    %v4380 = vld [vmem:[%s4374 + $0x28] sm:$0xff]
    %v4381 = vld [vmem:[%s4374 + $0x30] sm:$0xff]
    %v4382 = vld [vmem:[%s4374 + $0x38] sm:$0xff]
    %v4383 = vld [vmem:[%s4374 + $0x40] sm:$0xff]
    %v4384 = vld [vmem:[%s4374 + $0x48] sm:$0xff]
    %v4385 = vld [vmem:[%s4374 + $0x50] sm:$0xff]
    %v4386 = vld [vmem:[%s4374 + $0x58] sm:$0xff]
    %v4387 = vld [vmem:[%s4374 + $0x60] sm:$0xff]
    %v4388 = vld [vmem:[%s4374 + $0x68] sm:$0xff]
    %v4389 = vld [vmem:[%s4374 + $0x70] sm:$0xff]
    %v4390 = vld [vmem:[%s4374 + $0x78] sm:$0xff]
    %v4391 = vld [vmem:[%s4374 + $0x80] sm:$0xff]
    %v4392 = vld [vmem:[%s4374 + $0x88] sm:$0xff]
    %v4393 = vld [vmem:[%s4374 + $0x90] sm:$0xff]
    %v4394 = vld [vmem:[%s4374 + $0x98] sm:$0xff]
    %v4395 = vld [vmem:[%s4374 + $0xa0] sm:$0xff]
    %v4396 = vld [vmem:[%s4374 + $0xa8] sm:$0xff]
    %v4397 = vld [vmem:[%s4374 + $0xb0] sm:$0xff]
    %v4398 = vld [vmem:[%s4374 + $0xb8] sm:$0xff]
    %v4399 = vld [vmem:[%s4374 + $0xc0] sm:$0xff]
    %v4400 = vld [vmem:[%s4374 + $0xc8] sm:$0xff]
    %v4401 = vld [vmem:[%s4374 + $0xd0] sm:$0xff]
    %v4402 = vld [vmem:[%s4374 + $0xd8] sm:$0xff]
    %v4403 = vld [vmem:[%s4374 + $0xe0] sm:$0xff]
    %v4404 = vld [vmem:[%s4374 + $0xe8] sm:$0xff]
    %v4405 = vld [vmem:[%s4374 + $0xf0] sm:$0xff]
    %v4406 = vld [vmem:[%s4374 + $0xf8] sm:$0xff]
    %s4407 = scalar_lea.vmem [#allocation5], 768
    %v4408 = vld [vmem:[%s4407] sm:$0xff]
    %v4409 = vld [vmem:[%s4407 + $0x8] sm:$0xff]
    %v4410 = vld [vmem:[%s4407 + $0x10] sm:$0xff]
    %v4411 = vld [vmem:[%s4407 + $0x18] sm:$0xff]
    %v4412 = vld [vmem:[%s4407 + $0x20] sm:$0xff]
    %v4413 = vld [vmem:[%s4407 + $0x28] sm:$0xff]
    %v4414 = vld [vmem:[%s4407 + $0x30] sm:$0xff]
    %v4415 = vld [vmem:[%s4407 + $0x38] sm:$0xff]
    %v4416 = vld [vmem:[%s4407 + $0x40] sm:$0xff]
    %v4417 = vld [vmem:[%s4407 + $0x48] sm:$0xff]
    %v4418 = vld [vmem:[%s4407 + $0x50] sm:$0xff]
    %v4419 = vld [vmem:[%s4407 + $0x58] sm:$0xff]
    %v4420 = vld [vmem:[%s4407 + $0x60] sm:$0xff]
    %v4421 = vld [vmem:[%s4407 + $0x68] sm:$0xff]
    %v4422 = vld [vmem:[%s4407 + $0x70] sm:$0xff]
    %v4423 = vld [vmem:[%s4407 + $0x78] sm:$0xff]
    %v4424 = vld [vmem:[%s4407 + $0x80] sm:$0xff]
    %v4425 = vld [vmem:[%s4407 + $0x88] sm:$0xff]
    %v4426 = vld [vmem:[%s4407 + $0x90] sm:$0xff]
    %v4427 = vld [vmem:[%s4407 + $0x98] sm:$0xff]
    %v4428 = vld [vmem:[%s4407 + $0xa0] sm:$0xff]
    %v4429 = vld [vmem:[%s4407 + $0xa8] sm:$0xff]
    %v4430 = vld [vmem:[%s4407 + $0xb0] sm:$0xff]
    %v4431 = vld [vmem:[%s4407 + $0xb8] sm:$0xff]
    %v4432 = vld [vmem:[%s4407 + $0xc0] sm:$0xff]
    %v4433 = vld [vmem:[%s4407 + $0xc8] sm:$0xff]
    %v4434 = vld [vmem:[%s4407 + $0xd0] sm:$0xff]
    %v4435 = vld [vmem:[%s4407 + $0xd8] sm:$0xff]
    %v4436 = vld [vmem:[%s4407 + $0xe0] sm:$0xff]
    %v4437 = vld [vmem:[%s4407 + $0xe8] sm:$0xff]
    %v4438 = vld [vmem:[%s4407 + $0xf0] sm:$0xff]
    %v4439 = vld [vmem:[%s4407 + $0xf8] sm:$0xff]
    %s4440 = scalar_lea.vmem %s3, 12
    %v4441 = vld [vmem:[%s4440] sm:$0xf]
    %v4442 = vld [vmem:[#allocation2] sm:$0xf]
    %v4443 = vld [vmem:[#allocation2 + $0x4] sm:$0xf]
    %v4444 = vld [vmem:[#allocation2 + $0x8] sm:$0xf]
    %v4445 = vld [vmem:[#allocation2 + $0xc] sm:$0xf]
    %v4446 = vld [vmem:[#allocation2 + $0x10] sm:$0xf]
    %v4447 = vld [vmem:[#allocation2 + $0x14] sm:$0xf]
    %v4448 = vld [vmem:[#allocation2 + $0x18] sm:$0xf]
    %v4449 = vld [vmem:[#allocation2 + $0x1c] sm:$0xf]
    %v4451 = vlaneseq
    %v4452 = vshrl.u32 %v4451, 7
    %v4453 = vsub.s32 0, %v4452
    %v4454 = vrot.slane %v4441, %v4453
    %v4455 = vlaneseq
    %v4456 = vshrl.u32 %v4455, 7
    %v4457 = vsub.s32 1, %v4456
    %v4458 = vrot.slane %v4441, %v4457
    %v4459 = vlaneseq
    %v4460 = vshrl.u32 %v4459, 7
    %v4461 = vsub.s32 2, %v4460
    %v4462 = vrot.slane %v4441, %v4461
    %v4463 = vlaneseq
    %v4464 = vshrl.u32 %v4463, 7
    %v4465 = vsub.s32 3, %v4464
    %v4466 = vrot.slane %v4441, %v4465
    %v4479 = vunpack.c.l.b16 %v4442
    %v4480 = vunpack.c.l.b16 %v4443
    %v4481 = vunpack.c.l.b16 %v4444
    %v4482 = vunpack.c.l.b16 %v4445
    %v4483 = vunpack.c.l.b16 %v4446
    %v4484 = vunpack.c.l.b16 %v4447
    %v4485 = vunpack.c.l.b16 %v4448
    %v4486 = vunpack.c.l.b16 %v4449
    %v4487 = vpack.c.b16 %v4480, %v4479
    %v4488 = vpack.c.b16 %v4482, %v4481
    %v4489 = vpack.c.b16 %v4484, %v4483
    %v4490 = vpack.c.b16 %v4486, %v4485
    %v4527 = vunpack.c.l.b16 %v4375
    %v4528 = vunpack.c.h.b16 %v4375
    %v4529 = vunpack.c.l.b16 %v4376
    %v4530 = vunpack.c.h.b16 %v4376
    %v4531 = vunpack.c.l.b16 %v4377
    %v4532 = vunpack.c.h.b16 %v4377
    %v4533 = vunpack.c.l.b16 %v4378
    %v4534 = vunpack.c.h.b16 %v4378
    %v4535 = vunpack.c.l.b16 %v4379
    %v4536 = vunpack.c.h.b16 %v4379
    %v4537 = vunpack.c.l.b16 %v4380
    %v4538 = vunpack.c.h.b16 %v4380
    %v4539 = vunpack.c.l.b16 %v4381
    %v4540 = vunpack.c.h.b16 %v4381
    %v4541 = vunpack.c.l.b16 %v4382
    %v4542 = vunpack.c.h.b16 %v4382
    %v4543 = vunpack.c.l.b16 %v4383
    %v4544 = vunpack.c.h.b16 %v4383
    %v4545 = vunpack.c.l.b16 %v4384
    %v4546 = vunpack.c.h.b16 %v4384
    %v4547 = vunpack.c.l.b16 %v4385
    %v4548 = vunpack.c.h.b16 %v4385
    %v4549 = vunpack.c.l.b16 %v4386
    %v4550 = vunpack.c.h.b16 %v4386
    %v4551 = vunpack.c.l.b16 %v4387
    %v4552 = vunpack.c.h.b16 %v4387
    %v4553 = vunpack.c.l.b16 %v4388
    %v4554 = vunpack.c.h.b16 %v4388
    %v4555 = vunpack.c.l.b16 %v4389
    %v4556 = vunpack.c.h.b16 %v4389
    %v4557 = vunpack.c.l.b16 %v4390
    %v4558 = vunpack.c.h.b16 %v4390
    %v4559 = vunpack.c.l.b16 %v4391
    %v4560 = vunpack.c.h.b16 %v4391
    %v4561 = vunpack.c.l.b16 %v4392
    %v4562 = vunpack.c.h.b16 %v4392
    %v4563 = vunpack.c.l.b16 %v4393
    %v4564 = vunpack.c.h.b16 %v4393
    %v4565 = vunpack.c.l.b16 %v4394
    %v4566 = vunpack.c.h.b16 %v4394
    %v4567 = vunpack.c.l.b16 %v4395
    %v4568 = vunpack.c.h.b16 %v4395
    %v4569 = vunpack.c.l.b16 %v4396
    %v4570 = vunpack.c.h.b16 %v4396
    %v4571 = vunpack.c.l.b16 %v4397
    %v4572 = vunpack.c.h.b16 %v4397
    %v4573 = vunpack.c.l.b16 %v4398
    %v4574 = vunpack.c.h.b16 %v4398
    %v4575 = vunpack.c.l.b16 %v4399
    %v4576 = vunpack.c.h.b16 %v4399
    %v4577 = vunpack.c.l.b16 %v4400
    %v4578 = vunpack.c.h.b16 %v4400
    %v4579 = vunpack.c.l.b16 %v4401
    %v4580 = vunpack.c.h.b16 %v4401
    %v4581 = vunpack.c.l.b16 %v4402
    %v4582 = vunpack.c.h.b16 %v4402
    %v4583 = vunpack.c.l.b16 %v4403
    %v4584 = vunpack.c.h.b16 %v4403
    %v4585 = vunpack.c.l.b16 %v4404
    %v4586 = vunpack.c.h.b16 %v4404
    %v4587 = vunpack.c.l.b16 %v4405
    %v4588 = vunpack.c.h.b16 %v4405
    %v4589 = vunpack.c.l.b16 %v4406
    %v4590 = vunpack.c.h.b16 %v4406
    %v4591 = vpack.c.b16 %v4531, %v4527
    %v4592 = vpack.c.b16 %v4532, %v4528
    %v4593 = vpack.c.b16 %v4533, %v4529
    %v4594 = vpack.c.b16 %v4534, %v4530
    %v4595 = vpack.c.b16 %v4539, %v4535
    %v4596 = vpack.c.b16 %v4540, %v4536
    %v4597 = vpack.c.b16 %v4541, %v4537
    %v4598 = vpack.c.b16 %v4542, %v4538
    %v4599 = vpack.c.b16 %v4547, %v4543
    %v4600 = vpack.c.b16 %v4548, %v4544
    %v4601 = vpack.c.b16 %v4549, %v4545
    %v4602 = vpack.c.b16 %v4550, %v4546
    %v4603 = vpack.c.b16 %v4555, %v4551
    %v4604 = vpack.c.b16 %v4556, %v4552
    %v4605 = vpack.c.b16 %v4557, %v4553
    %v4606 = vpack.c.b16 %v4558, %v4554
    %v4607 = vpack.c.b16 %v4563, %v4559
    %v4608 = vpack.c.b16 %v4564, %v4560
    %v4609 = vpack.c.b16 %v4565, %v4561
    %v4610 = vpack.c.b16 %v4566, %v4562
    %v4611 = vpack.c.b16 %v4571, %v4567
    %v4612 = vpack.c.b16 %v4572, %v4568
    %v4613 = vpack.c.b16 %v4573, %v4569
    %v4614 = vpack.c.b16 %v4574, %v4570
    %v4615 = vpack.c.b16 %v4579, %v4575
    %v4616 = vpack.c.b16 %v4580, %v4576
    %v4617 = vpack.c.b16 %v4581, %v4577
    %v4618 = vpack.c.b16 %v4582, %v4578
    %v4619 = vpack.c.b16 %v4587, %v4583
    %v4620 = vpack.c.b16 %v4588, %v4584
    %v4621 = vpack.c.b16 %v4589, %v4585
    %v4622 = vpack.c.b16 %v4590, %v4586
    %4655 = vmatprep.subr.bf16.mxu0 %v4592
    %4656 = vmatpush1.bf16.msra.mxu0 %v4591
    %4657 = vmatprep.subr.bf16.mxu0 %v4596
    %4658 = vmatpush1.bf16.msra.mxu0 %v4595
    %4659 = vmatprep.subr.bf16.mxu0 %v4600
    %4660 = vmatpush1.bf16.msra.mxu0 %v4599
    %4661 = vmatprep.subr.bf16.mxu0 %v4604
    %4662 = vmatpush1.bf16.msra.mxu0 %v4603
    %4663 = vmatprep.subr.bf16.mxu0 %v4608
    %4664 = vmatpush1.bf16.msra.mxu0 %v4607
    %4665 = vmatprep.subr.bf16.mxu0 %v4612
    %4666 = vmatpush1.bf16.msra.mxu0 %v4611
    %4667 = vmatprep.subr.bf16.mxu0 %v4616
    %4668 = vmatpush1.bf16.msra.mxu0 %v4615
    %4669 = vmatprep.subr.bf16.mxu0 %v4620
    %4670 = vmatpush1.bf16.msra.mxu0 %v4619
    %4671 = vmatprep.subr.bf16.mxu0 0
    %4672 = vmatpush1.bf16.msra.mxu0 0
    %4673 = vmatprep.subr.bf16.mxu0 0
    %4674 = vmatpush1.bf16.msra.mxu0 0
    %4675 = vmatprep.subr.bf16.mxu0 0
    %4676 = vmatpush1.bf16.msra.mxu0 0
    %4677 = vmatprep.subr.bf16.mxu0 0
    %4678 = vmatpush1.bf16.msra.mxu0 0
    %4679 = vmatprep.subr.bf16.mxu0 0
    %4680 = vmatpush1.bf16.msra.mxu0 0
    %4681 = vmatprep.subr.bf16.mxu0 0
    %4682 = vmatpush1.bf16.msra.mxu0 0
    %4683 = vmatprep.subr.bf16.mxu0 0
    %4684 = vmatpush1.bf16.msra.mxu0 0
    %4685 = vmatprep.subr.bf16.mxu0 0
    %4686 = vmatpush1.bf16.msra.mxu0 0
    %4687 = vmatprep.mubr.bf16.mxu0 0
    %4688 = vmatmul.mubr.bf16.gmra.mrb[0].mxu0 %v4487
    %v4689 = vpop.f32.mrb[0].mxu0
    %v4690 = vadd.f32 %v4454, %v4689
    %v4691 = vpop.f32.mrb[0].mxu0
    %v4692 = vadd.f32 %v4458, %v4691
    %v4693 = vpop.f32.mrb[0].mxu0
    %v4694 = vadd.f32 %v4454, %v4693
    %v4695 = vpop.f32.mrb[0].mxu0
    %v4696 = vadd.f32 %v4458, %v4695
    %4697 = vmatprep.mubr.bf16.mxu0 0
    %4698 = vmatmul.mubr.bf16.gmra.mrb[0].mxu0 %v4488
    %v4699 = vpop.f32.mrb[0].mxu0
    %v4700 = vadd.f32 %v4454, %v4699
    %v4701 = vpop.f32.mrb[0].mxu0
    %v4702 = vadd.f32 %v4458, %v4701
    %v4703 = vpop.f32.mrb[0].mxu0
    %v4704 = vadd.f32 %v4454, %v4703
    %v4705 = vpop.f32.mrb[0].mxu0
    %v4706 = vadd.f32 %v4458, %v4705
    %4707 = vmatprep.mubr.bf16.mxu0 0
    %4708 = vmatmul.mubr.bf16.gmra.mrb[0].mxu0 %v4489
    %v4709 = vpop.f32.mrb[0].mxu0
    %v4710 = vadd.f32 %v4454, %v4709
    %v4711 = vpop.f32.mrb[0].mxu0
    %v4712 = vadd.f32 %v4458, %v4711
    %v4713 = vpop.f32.mrb[0].mxu0
    %v4714 = vadd.f32 %v4454, %v4713
    %v4715 = vpop.f32.mrb[0].mxu0
    %v4716 = vadd.f32 %v4458, %v4715
    %4717 = vmatprep.mubr.bf16.mxu0 0
    %4718 = vmatmul.mubr.bf16.gmra.mrb[0].mxu0 %v4490
    %v4719 = vpop.f32.mrb[0].mxu0
    %v4720 = vadd.f32 %v4454, %v4719
    %v4721 = vpop.f32.mrb[0].mxu0
    %v4722 = vadd.f32 %v4458, %v4721
    %v4723 = vpop.f32.mrb[0].mxu0
    %v4724 = vadd.f32 %v4454, %v4723
    %v4725 = vpop.f32.mrb[0].mxu0
    %v4726 = vadd.f32 %v4458, %v4725
    %4727 = vdwg.mxu0
    %4728 = vmatprep.subr.bf16.mxu0 %v4594
    %4729 = vmatpush1.bf16.msra.mxu0 %v4593
    %4730 = vmatprep.subr.bf16.mxu0 %v4598
    %4731 = vmatpush1.bf16.msra.mxu0 %v4597
    %4732 = vmatprep.subr.bf16.mxu0 %v4602
    %4733 = vmatpush1.bf16.msra.mxu0 %v4601
    %4734 = vmatprep.subr.bf16.mxu0 %v4606
    %4735 = vmatpush1.bf16.msra.mxu0 %v4605
    %4736 = vmatprep.subr.bf16.mxu0 %v4610
    %4737 = vmatpush1.bf16.msra.mxu0 %v4609
    %4738 = vmatprep.subr.bf16.mxu0 %v4614
    %4739 = vmatpush1.bf16.msra.mxu0 %v4613
    %4740 = vmatprep.subr.bf16.mxu0 %v4618
    %4741 = vmatpush1.bf16.msra.mxu0 %v4617
    %4742 = vmatprep.subr.bf16.mxu0 %v4622
    %4743 = vmatpush1.bf16.msra.mxu0 %v4621
    %4744 = vmatprep.subr.bf16.mxu0 0
    %4745 = vmatpush1.bf16.msra.mxu0 0
    %4746 = vmatprep.subr.bf16.mxu0 0
    %4747 = vmatpush1.bf16.msra.mxu0 0
    %4748 = vmatprep.subr.bf16.mxu0 0
    %4749 = vmatpush1.bf16.msra.mxu0 0
    %4750 = vmatprep.subr.bf16.mxu0 0
    %4751 = vmatpush1.bf16.msra.mxu0 0
    %4752 = vmatprep.subr.bf16.mxu0 0
    %4753 = vmatpush1.bf16.msra.mxu0 0
    %4754 = vmatprep.subr.bf16.mxu0 0
    %4755 = vmatpush1.bf16.msra.mxu0 0
    %4756 = vmatprep.subr.bf16.mxu0 0
    %4757 = vmatpush1.bf16.msra.mxu0 0
    %4758 = vmatprep.subr.bf16.mxu0 0
    %4759 = vmatpush1.bf16.msra.mxu0 0
    %4760 = vmatprep.mubr.bf16.mxu0 0
    %4761 = vmatmul.mubr.bf16.gmra.mrb[0].mxu0 %v4487
    %v4762 = vpop.f32.mrb[0].mxu0
    %v4763 = vadd.f32 %v4462, %v4762
    %v4764 = vpop.f32.mrb[0].mxu0
    %v4765 = vadd.f32 %v4466, %v4764
    %v4766 = vpop.f32.mrb[0].mxu0
    %v4767 = vadd.f32 %v4462, %v4766
    %v4768 = vpop.f32.mrb[0].mxu0
    %v4769 = vadd.f32 %v4466, %v4768
    %4770 = vmatprep.mubr.bf16.mxu0 0
    %4771 = vmatmul.mubr.bf16.gmra.mrb[0].mxu0 %v4488
    %v4772 = vpop.f32.mrb[0].mxu0
    %v4773 = vadd.f32 %v4462, %v4772
    %v4774 = vpop.f32.mrb[0].mxu0
    %v4775 = vadd.f32 %v4466, %v4774
    %v4776 = vpop.f32.mrb[0].mxu0
    %v4777 = vadd.f32 %v4462, %v4776
    %v4778 = vpop.f32.mrb[0].mxu0
    %v4779 = vadd.f32 %v4466, %v4778
    %4780 = vmatprep.mubr.bf16.mxu0 0
    %4781 = vmatmul.mubr.bf16.gmra.mrb[0].mxu0 %v4489
    %v4782 = vpop.f32.mrb[0].mxu0
    %v4783 = vadd.f32 %v4462, %v4782
    %v4784 = vpop.f32.mrb[0].mxu0
    %v4785 = vadd.f32 %v4466, %v4784
    %v4786 = vpop.f32.mrb[0].mxu0
    %v4787 = vadd.f32 %v4462, %v4786
    %v4788 = vpop.f32.mrb[0].mxu0
    %v4789 = vadd.f32 %v4466, %v4788
    %4790 = vmatprep.mubr.bf16.mxu0 0
    %4791 = vmatmul.mubr.bf16.gmra.mrb[0].mxu0 %v4490
    %v4792 = vpop.f32.mrb[0].mxu0
    %v4793 = vadd.f32 %v4462, %v4792
    %v4794 = vpop.f32.mrb[0].mxu0
    %v4795 = vadd.f32 %v4466, %v4794
    %v4796 = vpop.f32.mrb[0].mxu0
    %v4797 = vadd.f32 %v4462, %v4796
    %v4798 = vpop.f32.mrb[0].mxu0
    %v4799 = vadd.f32 %v4466, %v4798
    %4800 = vdwg.mxu0
    %v4833 = vunpack.c.l.b16 %v4408
    %v4834 = vunpack.c.h.b16 %v4408
    %v4835 = vunpack.c.l.b16 %v4409
    %v4836 = vunpack.c.h.b16 %v4409
    %v4837 = vunpack.c.l.b16 %v4410
    %v4838 = vunpack.c.h.b16 %v4410
    %v4839 = vunpack.c.l.b16 %v4411
    %v4840 = vunpack.c.h.b16 %v4411
    %v4841 = vunpack.c.l.b16 %v4412
    %v4842 = vunpack.c.h.b16 %v4412
    %v4843 = vunpack.c.l.b16 %v4413
    %v4844 = vunpack.c.h.b16 %v4413
    %v4845 = vunpack.c.l.b16 %v4414
    %v4846 = vunpack.c.h.b16 %v4414
    %v4847 = vunpack.c.l.b16 %v4415
    %v4848 = vunpack.c.h.b16 %v4415
    %v4849 = vunpack.c.l.b16 %v4416
    %v4850 = vunpack.c.h.b16 %v4416
    %v4851 = vunpack.c.l.b16 %v4417
    %v4852 = vunpack.c.h.b16 %v4417
    %v4853 = vunpack.c.l.b16 %v4418
    %v4854 = vunpack.c.h.b16 %v4418
    %v4855 = vunpack.c.l.b16 %v4419
    %v4856 = vunpack.c.h.b16 %v4419
    %v4857 = vunpack.c.l.b16 %v4420
    %v4858 = vunpack.c.h.b16 %v4420
    %v4859 = vunpack.c.l.b16 %v4421
    %v4860 = vunpack.c.h.b16 %v4421
    %v4861 = vunpack.c.l.b16 %v4422
    %v4862 = vunpack.c.h.b16 %v4422
    %v4863 = vunpack.c.l.b16 %v4423
    %v4864 = vunpack.c.h.b16 %v4423
    %v4865 = vunpack.c.l.b16 %v4424
    %v4866 = vunpack.c.h.b16 %v4424
    %v4867 = vunpack.c.l.b16 %v4425
    %v4868 = vunpack.c.h.b16 %v4425
    %v4869 = vunpack.c.l.b16 %v4426
    %v4870 = vunpack.c.h.b16 %v4426
    %v4871 = vunpack.c.l.b16 %v4427
    %v4872 = vunpack.c.h.b16 %v4427
    %v4873 = vunpack.c.l.b16 %v4428
    %v4874 = vunpack.c.h.b16 %v4428
    %v4875 = vunpack.c.l.b16 %v4429
    %v4876 = vunpack.c.h.b16 %v4429
    %v4877 = vunpack.c.l.b16 %v4430
    %v4878 = vunpack.c.h.b16 %v4430
    %v4879 = vunpack.c.l.b16 %v4431
    %v4880 = vunpack.c.h.b16 %v4431
    %v4881 = vunpack.c.l.b16 %v4432
    %v4882 = vunpack.c.h.b16 %v4432
    %v4883 = vunpack.c.l.b16 %v4433
    %v4884 = vunpack.c.h.b16 %v4433
    %v4885 = vunpack.c.l.b16 %v4434
    %v4886 = vunpack.c.h.b16 %v4434
    %v4887 = vunpack.c.l.b16 %v4435
    %v4888 = vunpack.c.h.b16 %v4435
    %v4889 = vunpack.c.l.b16 %v4436
    %v4890 = vunpack.c.h.b16 %v4436
    %v4891 = vunpack.c.l.b16 %v4437
    %v4892 = vunpack.c.h.b16 %v4437
    %v4893 = vunpack.c.l.b16 %v4438
    %v4894 = vunpack.c.h.b16 %v4438
    %v4895 = vunpack.c.l.b16 %v4439
    %v4896 = vunpack.c.h.b16 %v4439
    %v4897 = vpack.c.b16 %v4837, %v4833
    %v4898 = vpack.c.b16 %v4838, %v4834
    %v4899 = vpack.c.b16 %v4839, %v4835
    %v4900 = vpack.c.b16 %v4840, %v4836
    %v4901 = vpack.c.b16 %v4845, %v4841
    %v4902 = vpack.c.b16 %v4846, %v4842
    %v4903 = vpack.c.b16 %v4847, %v4843
    %v4904 = vpack.c.b16 %v4848, %v4844
    %v4905 = vpack.c.b16 %v4853, %v4849
    %v4906 = vpack.c.b16 %v4854, %v4850
    %v4907 = vpack.c.b16 %v4855, %v4851
    %v4908 = vpack.c.b16 %v4856, %v4852
    %v4909 = vpack.c.b16 %v4861, %v4857
    %v4910 = vpack.c.b16 %v4862, %v4858
    %v4911 = vpack.c.b16 %v4863, %v4859
    %v4912 = vpack.c.b16 %v4864, %v4860
    %v4913 = vpack.c.b16 %v4869, %v4865
    %v4914 = vpack.c.b16 %v4870, %v4866
    %v4915 = vpack.c.b16 %v4871, %v4867
    %v4916 = vpack.c.b16 %v4872, %v4868
    %v4917 = vpack.c.b16 %v4877, %v4873
    %v4918 = vpack.c.b16 %v4878, %v4874
    %v4919 = vpack.c.b16 %v4879, %v4875
    %v4920 = vpack.c.b16 %v4880, %v4876
    %v4921 = vpack.c.b16 %v4885, %v4881
    %v4922 = vpack.c.b16 %v4886, %v4882
    %v4923 = vpack.c.b16 %v4887, %v4883
    %v4924 = vpack.c.b16 %v4888, %v4884
    %v4925 = vpack.c.b16 %v4893, %v4889
    %v4926 = vpack.c.b16 %v4894, %v4890
    %v4927 = vpack.c.b16 %v4895, %v4891
    %v4928 = vpack.c.b16 %v4896, %v4892
    %4961 = vmatprep.subr.bf16.mxu0 %v4898
    %4962 = vmatpush1.bf16.msra.mxu0 %v4897
    %4963 = vmatprep.subr.bf16.mxu0 %v4902
    %4964 = vmatpush1.bf16.msra.mxu0 %v4901
    %4965 = vmatprep.subr.bf16.mxu0 %v4906
    %4966 = vmatpush1.bf16.msra.mxu0 %v4905
    %4967 = vmatprep.subr.bf16.mxu0 %v4910
    %4968 = vmatpush1.bf16.msra.mxu0 %v4909
    %4969 = vmatprep.subr.bf16.mxu0 %v4914
    %4970 = vmatpush1.bf16.msra.mxu0 %v4913
    %4971 = vmatprep.subr.bf16.mxu0 %v4918
    %4972 = vmatpush1.bf16.msra.mxu0 %v4917
    %4973 = vmatprep.subr.bf16.mxu0 %v4922
    %4974 = vmatpush1.bf16.msra.mxu0 %v4921
    %4975 = vmatprep.subr.bf16.mxu0 %v4926
    %4976 = vmatpush1.bf16.msra.mxu0 %v4925
    %4977 = vmatprep.subr.bf16.mxu0 0
    %4978 = vmatpush1.bf16.msra.mxu0 0
    %4979 = vmatprep.subr.bf16.mxu0 0
    %4980 = vmatpush1.bf16.msra.mxu0 0
    %4981 = vmatprep.subr.bf16.mxu0 0
    %4982 = vmatpush1.bf16.msra.mxu0 0
    %4983 = vmatprep.subr.bf16.mxu0 0
    %4984 = vmatpush1.bf16.msra.mxu0 0
    %4985 = vmatprep.subr.bf16.mxu0 0
    %4986 = vmatpush1.bf16.msra.mxu0 0
    %4987 = vmatprep.subr.bf16.mxu0 0
    %4988 = vmatpush1.bf16.msra.mxu0 0
    %4989 = vmatprep.subr.bf16.mxu0 0
    %4990 = vmatpush1.bf16.msra.mxu0 0
    %4991 = vmatprep.subr.bf16.mxu0 0
    %4992 = vmatpush1.bf16.msra.mxu0 0
    %4993 = vmatprep.mubr.bf16.mxu0 0
    %4994 = vmatmul.mubr.bf16.gmra.mrb[0].mxu0 0
    %v4995 = vpop.f32.mrb[0].mxu0
    %v4996 = vadd.f32 0.0, %v4995
    %v4997 = vpop.f32.mrb[0].mxu0
    %v4998 = vadd.f32 0.0, %v4997
    %v4999 = vpop.f32.mrb[0].mxu0
    %v5000 = vpop.f32.mrb[0].mxu0
    %5001 = vdwg.mxu0
    %5002 = vmatprep.subr.bf16.mxu0 %v4900
    %5003 = vmatpush1.bf16.msra.mxu0 %v4899
    %5004 = vmatprep.subr.bf16.mxu0 %v4904
    %5005 = vmatpush1.bf16.msra.mxu0 %v4903
    %5006 = vmatprep.subr.bf16.mxu0 %v4908
    %5007 = vmatpush1.bf16.msra.mxu0 %v4907
    %5008 = vmatprep.subr.bf16.mxu0 %v4912
    %5009 = vmatpush1.bf16.msra.mxu0 %v4911
    %5010 = vmatprep.subr.bf16.mxu0 %v4916
    %5011 = vmatpush1.bf16.msra.mxu0 %v4915
    %5012 = vmatprep.subr.bf16.mxu0 %v4920
    %5013 = vmatpush1.bf16.msra.mxu0 %v4919
    %5014 = vmatprep.subr.bf16.mxu0 %v4924
    %5015 = vmatpush1.bf16.msra.mxu0 %v4923
    %5016 = vmatprep.subr.bf16.mxu0 %v4928
    %5017 = vmatpush1.bf16.msra.mxu0 %v4927
    %5018 = vmatprep.subr.bf16.mxu0 0
    %5019 = vmatpush1.bf16.msra.mxu0 0
    %5020 = vmatprep.subr.bf16.mxu0 0
    %5021 = vmatpush1.bf16.msra.mxu0 0
    %5022 = vmatprep.subr.bf16.mxu0 0
    %5023 = vmatpush1.bf16.msra.mxu0 0
    %5024 = vmatprep.subr.bf16.mxu0 0
    %5025 = vmatpush1.bf16.msra.mxu0 0
    %5026 = vmatprep.subr.bf16.mxu0 0
    %5027 = vmatpush1.bf16.msra.mxu0 0
    %5028 = vmatprep.subr.bf16.mxu0 0
    %5029 = vmatpush1.bf16.msra.mxu0 0
    %5030 = vmatprep.subr.bf16.mxu0 0
    %5031 = vmatpush1.bf16.msra.mxu0 0
    %5032 = vmatprep.subr.bf16.mxu0 0
    %5033 = vmatpush1.bf16.msra.mxu0 0
    %5034 = vmatprep.mubr.bf16.mxu0 0
    %5035 = vmatmul.mubr.bf16.gmra.mrb[0].mxu0 0
    %v5036 = vpop.f32.mrb[0].mxu0
    %v5037 = vadd.f32 0.0, %v5036
    %v5038 = vpop.f32.mrb[0].mxu0
    %v5039 = vadd.f32 0.0, %v5038
    %v5040 = vpop.f32.mrb[0].mxu0
    %v5041 = vpop.f32.mrb[0].mxu0
    %5042 = vdwg.mxu0
    %v5043 = vadd.f32 %v4690, %v4996
    %v5044 = vadd.f32 %v4692, %v4998
    %v5045 = vadd.f32 %v4763, %v5037
    %v5046 = vadd.f32 %v4765, %v5039
    %v5047 = vmul.f32 %v5043, 0.5
    %v5048 = vmul.f32 %v5044, 0.5
    %v5049 = vmul.f32 %v5045, 0.5
    %v5050 = vtanh.pop %v5047
    %v5051 = vtanh.pop %v5048
    %v5052 = vtanh.pop %v5049
    %v5053 = vmul.f32 %v5050, 0.5
    %v5054 = vmul.f32 %v5051, 0.5
    %v5055 = vmul.f32 %v5052, 0.5
    %v5056 = vadd.f32 %v5053, 0.5
    %v5057 = vadd.f32 %v5054, 0.5
    %v5058 = vadd.f32 %v5055, 0.5
    %v5059 = vtanh.pop %v5046
    %v5060 = vmul.f32 %v5057, 0.0
    %v5061 = vmul.f32 %v5056, %v5059
    %v5062 = vadd.f32 %v5060, %v5061
    %v5063 = vtanh.pop %v5062
    %v5064 = vmul.f32 %v5058, %v5063
    %v5065 = vadd.f32 %v5064, 0.0
    %v5066 = vpack.c.bf16 %v5064, %v5064
    %5067 = vmatprep.subr.bf16.mxu0 %v4898
    %5068 = vmatpush1.bf16.msra.mxu0 %v4897
    %5069 = vmatprep.subr.bf16.mxu0 %v4902
    %5070 = vmatpush1.bf16.msra.mxu0 %v4901
    %5071 = vmatprep.subr.bf16.mxu0 %v4906
    %5072 = vmatpush1.bf16.msra.mxu0 %v4905
    %5073 = vmatprep.subr.bf16.mxu0 %v4910
    %5074 = vmatpush1.bf16.msra.mxu0 %v4909
    %5075 = vmatprep.subr.bf16.mxu0 %v4914
    %5076 = vmatpush1.bf16.msra.mxu0 %v4913
    %5077 = vmatprep.subr.bf16.mxu0 %v4918
    %5078 = vmatpush1.bf16.msra.mxu0 %v4917
    %5079 = vmatprep.subr.bf16.mxu0 %v4922
    %5080 = vmatpush1.bf16.msra.mxu0 %v4921
    %5081 = vmatprep.subr.bf16.mxu0 %v4926
    %5082 = vmatpush1.bf16.msra.mxu0 %v4925
    %5083 = vmatprep.subr.bf16.mxu0 0
    %5084 = vmatpush1.bf16.msra.mxu0 0
    %5085 = vmatprep.subr.bf16.mxu0 0
    %5086 = vmatpush1.bf16.msra.mxu0 0
    %5087 = vmatprep.subr.bf16.mxu0 0
    %5088 = vmatpush1.bf16.msra.mxu0 0
    %5089 = vmatprep.subr.bf16.mxu0 0
    %5090 = vmatpush1.bf16.msra.mxu0 0
    %5091 = vmatprep.subr.bf16.mxu0 0
    %5092 = vmatpush1.bf16.msra.mxu0 0
    %5093 = vmatprep.subr.bf16.mxu0 0
    %5094 = vmatpush1.bf16.msra.mxu0 0
    %5095 = vmatprep.subr.bf16.mxu0 0
    %5096 = vmatpush1.bf16.msra.mxu0 0
    %5097 = vmatprep.subr.bf16.mxu0 0
    %5098 = vmatpush1.bf16.msra.mxu0 0
    %5099 = vmatprep.mubr.bf16.mxu0 0
    %5100 = vmatmul.mubr.bf16.gmra.mrb[0].mxu0 %v5066
    %v5101 = vpop.f32.mrb[0].mxu0
    %v5102 = vadd.f32 0.0, %v5101
    %v5103 = vpop.f32.mrb[0].mxu0
    %v5104 = vadd.f32 0.0, %v5103
    %v5105 = vpop.f32.mrb[0].mxu0
    %v5106 = vpop.f32.mrb[0].mxu0
    %5107 = vdwg.mxu0
    %5108 = vmatprep.subr.bf16.mxu0 %v4900
    %5109 = vmatpush1.bf16.msra.mxu0 %v4899
    %5110 = vmatprep.subr.bf16.mxu0 %v4904
    %5111 = vmatpush1.bf16.msra.mxu0 %v4903
    %5112 = vmatprep.subr.bf16.mxu0 %v4908
    %5113 = vmatpush1.bf16.msra.mxu0 %v4907
    %5114 = vmatprep.subr.bf16.mxu0 %v4912
    %5115 = vmatpush1.bf16.msra.mxu0 %v4911
    %5116 = vmatprep.subr.bf16.mxu0 %v4916
    %5117 = vmatpush1.bf16.msra.mxu0 %v4915
    %5118 = vmatprep.subr.bf16.mxu0 %v4920
    %5119 = vmatpush1.bf16.msra.mxu0 %v4919
    %5120 = vmatprep.subr.bf16.mxu0 %v4924
    %5121 = vmatpush1.bf16.msra.mxu0 %v4923
    %5122 = vmatprep.subr.bf16.mxu0 %v4928
    %5123 = vmatpush1.bf16.msra.mxu0 %v4927
    %5124 = vmatprep.subr.bf16.mxu0 0
    %5125 = vmatpush1.bf16.msra.mxu0 0
    %5126 = vmatprep.subr.bf16.mxu0 0
    %5127 = vmatpush1.bf16.msra.mxu0 0
    %5128 = vmatprep.subr.bf16.mxu0 0
    %5129 = vmatpush1.bf16.msra.mxu0 0
    %5130 = vmatprep.subr.bf16.mxu0 0
    %5131 = vmatpush1.bf16.msra.mxu0 0
    %5132 = vmatprep.subr.bf16.mxu0 0
    %5133 = vmatpush1.bf16.msra.mxu0 0
    %5134 = vmatprep.subr.bf16.mxu0 0
    %5135 = vmatpush1.bf16.msra.mxu0 0
    %5136 = vmatprep.subr.bf16.mxu0 0
    %5137 = vmatpush1.bf16.msra.mxu0 0
    %5138 = vmatprep.subr.bf16.mxu0 0
    %5139 = vmatpush1.bf16.msra.mxu0 0
    %5140 = vmatprep.mubr.bf16.mxu0 0
    %5141 = vmatmul.mubr.bf16.gmra.mrb[0].mxu0 %v5066
    %v5142 = vpop.f32.mrb[0].mxu0
    %v5143 = vadd.f32 0.0, %v5142
    %v5144 = vpop.f32.mrb[0].mxu0
    %v5145 = vadd.f32 0.0, %v5144
    %v5146 = vpop.f32.mrb[0].mxu0
    %v5147 = vpop.f32.mrb[0].mxu0
    %5148 = vdwg.mxu0
    %v5149 = vadd.f32 %v4694, %v5102
    %v5150 = vadd.f32 %v4696, %v5104
    %v5151 = vadd.f32 %v4767, %v5143
    %v5152 = vadd.f32 %v4769, %v5145
    %v5153 = vmul.f32 %v5149, 0.5
    %v5154 = vmul.f32 %v5150, 0.5
    %v5155 = vmul.f32 %v5151, 0.5
    %v5156 = vtanh.pop %v5153
    %v5157 = vtanh.pop %v5154
    %v5158 = vtanh.pop %v5155
    %v5159 = vmul.f32 %v5156, 0.5
    %v5160 = vmul.f32 %v5157, 0.5
    %v5161 = vmul.f32 %v5158, 0.5
    %v5162 = vadd.f32 %v5159, 0.5
    %v5163 = vadd.f32 %v5160, 0.5
    %v5164 = vadd.f32 %v5161, 0.5
    %v5165 = vtanh.pop %v5152
    %v5166 = vmul.f32 %v5163, %v5062
    %v5167 = vmul.f32 %v5162, %v5165
    %v5168 = vadd.f32 %v5166, %v5167
    %v5169 = vtanh.pop %v5168
    %v5170 = vmul.f32 %v5164, %v5169
    %v5171 = vadd.f32 %v5065, %v5170
    %v5172 = vpack.c.bf16 %v5170, %v5170
    %5173 = vmatprep.subr.bf16.mxu0 %v4898
    %5174 = vmatpush1.bf16.msra.mxu0 %v4897
    %5175 = vmatprep.subr.bf16.mxu0 %v4902
    %5176 = vmatpush1.bf16.msra.mxu0 %v4901
    %5177 = vmatprep.subr.bf16.mxu0 %v4906
    %5178 = vmatpush1.bf16.msra.mxu0 %v4905
    %5179 = vmatprep.subr.bf16.mxu0 %v4910
    %5180 = vmatpush1.bf16.msra.mxu0 %v4909
    %5181 = vmatprep.subr.bf16.mxu0 %v4914
    %5182 = vmatpush1.bf16.msra.mxu0 %v4913
    %5183 = vmatprep.subr.bf16.mxu0 %v4918
    %5184 = vmatpush1.bf16.msra.mxu0 %v4917
    %5185 = vmatprep.subr.bf16.mxu0 %v4922
    %5186 = vmatpush1.bf16.msra.mxu0 %v4921
    %5187 = vmatprep.subr.bf16.mxu0 %v4926
    %5188 = vmatpush1.bf16.msra.mxu0 %v4925
    %5189 = vmatprep.subr.bf16.mxu0 0
    %5190 = vmatpush1.bf16.msra.mxu0 0
    %5191 = vmatprep.subr.bf16.mxu0 0
    %5192 = vmatpush1.bf16.msra.mxu0 0
    %5193 = vmatprep.subr.bf16.mxu0 0
    %5194 = vmatpush1.bf16.msra.mxu0 0
    %5195 = vmatprep.subr.bf16.mxu0 0
    %5196 = vmatpush1.bf16.msra.mxu0 0
    %5197 = vmatprep.subr.bf16.mxu0 0
    %5198 = vmatpush1.bf16.msra.mxu0 0
    %5199 = vmatprep.subr.bf16.mxu0 0
    %5200 = vmatpush1.bf16.msra.mxu0 0
    %5201 = vmatprep.subr.bf16.mxu0 0
    %5202 = vmatpush1.bf16.msra.mxu0 0
    %5203 = vmatprep.subr.bf16.mxu0 0
    %5204 = vmatpush1.bf16.msra.mxu0 0
    %5205 = vmatprep.mubr.bf16.mxu0 0
    %5206 = vmatmul.mubr.bf16.gmra.mrb[0].mxu0 %v5172
    %v5207 = vpop.f32.mrb[0].mxu0
    %v5208 = vadd.f32 0.0, %v5207
    %v5209 = vpop.f32.mrb[0].mxu0
    %v5210 = vadd.f32 0.0, %v5209
    %v5211 = vpop.f32.mrb[0].mxu0
    %v5212 = vpop.f32.mrb[0].mxu0
    %5213 = vdwg.mxu0
    %5214 = vmatprep.subr.bf16.mxu0 %v4900
    %5215 = vmatpush1.bf16.msra.mxu0 %v4899
    %5216 = vmatprep.subr.bf16.mxu0 %v4904
    %5217 = vmatpush1.bf16.msra.mxu0 %v4903
    %5218 = vmatprep.subr.bf16.mxu0 %v4908
    %5219 = vmatpush1.bf16.msra.mxu0 %v4907
    %5220 = vmatprep.subr.bf16.mxu0 %v4912
    %5221 = vmatpush1.bf16.msra.mxu0 %v4911
    %5222 = vmatprep.subr.bf16.mxu0 %v4916
    %5223 = vmatpush1.bf16.msra.mxu0 %v4915
    %5224 = vmatprep.subr.bf16.mxu0 %v4920
    %5225 = vmatpush1.bf16.msra.mxu0 %v4919
    %5226 = vmatprep.subr.bf16.mxu0 %v4924
    %5227 = vmatpush1.bf16.msra.mxu0 %v4923
    %5228 = vmatprep.subr.bf16.mxu0 %v4928
    %5229 = vmatpush1.bf16.msra.mxu0 %v4927
    %5230 = vmatprep.subr.bf16.mxu0 0
    %5231 = vmatpush1.bf16.msra.mxu0 0
    %5232 = vmatprep.subr.bf16.mxu0 0
    %5233 = vmatpush1.bf16.msra.mxu0 0
    %5234 = vmatprep.subr.bf16.mxu0 0
    %5235 = vmatpush1.bf16.msra.mxu0 0
    %5236 = vmatprep.subr.bf16.mxu0 0
    %5237 = vmatpush1.bf16.msra.mxu0 0
    %5238 = vmatprep.subr.bf16.mxu0 0
    %5239 = vmatpush1.bf16.msra.mxu0 0
    %5240 = vmatprep.subr.bf16.mxu0 0
    %5241 = vmatpush1.bf16.msra.mxu0 0
    %5242 = vmatprep.subr.bf16.mxu0 0
    %5243 = vmatpush1.bf16.msra.mxu0 0
    %5244 = vmatprep.subr.bf16.mxu0 0
    %5245 = vmatpush1.bf16.msra.mxu0 0
    %5246 = vmatprep.mubr.bf16.mxu0 0
    %5247 = vmatmul.mubr.bf16.gmra.mrb[0].mxu0 %v5172
    %v5248 = vpop.f32.mrb[0].mxu0
    %v5249 = vadd.f32 0.0, %v5248
    %v5250 = vpop.f32.mrb[0].mxu0
    %v5251 = vadd.f32 0.0, %v5250
    %v5252 = vpop.f32.mrb[0].mxu0
    %v5253 = vpop.f32.mrb[0].mxu0
    %5254 = vdwg.mxu0
    %v5255 = vadd.f32 %v4700, %v5208
    %v5256 = vadd.f32 %v4702, %v5210
    %v5257 = vadd.f32 %v4773, %v5249
    %v5258 = vadd.f32 %v4775, %v5251
    %v5259 = vmul.f32 %v5255, 0.5
    %v5260 = vmul.f32 %v5256, 0.5
    %v5261 = vmul.f32 %v5257, 0.5
    %v5262 = vtanh.pop %v5259
    %v5263 = vtanh.pop %v5260
    %v5264 = vtanh.pop %v5261
    %v5265 = vmul.f32 %v5262, 0.5
    %v5266 = vmul.f32 %v5263, 0.5
    %v5267 = vmul.f32 %v5264, 0.5
    %v5268 = vadd.f32 %v5265, 0.5
    %v5269 = vadd.f32 %v5266, 0.5
    %v5270 = vadd.f32 %v5267, 0.5
    %v5271 = vtanh.pop %v5258
    %v5272 = vmul.f32 %v5269, %v5168
    %v5273 = vmul.f32 %v5268, %v5271
    %v5274 = vadd.f32 %v5272, %v5273
    %v5275 = vtanh.pop %v5274
    %v5276 = vmul.f32 %v5270, %v5275
    %v5277 = vadd.f32 %v5171, %v5276
    %v5278 = vpack.c.bf16 %v5276, %v5276
    %5279 = vmatprep.subr.bf16.mxu0 %v4898
    %5280 = vmatpush1.bf16.msra.mxu0 %v4897
    %5281 = vmatprep.subr.bf16.mxu0 %v4902
    %5282 = vmatpush1.bf16.msra.mxu0 %v4901
    %5283 = vmatprep.subr.bf16.mxu0 %v4906
    %5284 = vmatpush1.bf16.msra.mxu0 %v4905
    %5285 = vmatprep.subr.bf16.mxu0 %v4910
    %5286 = vmatpush1.bf16.msra.mxu0 %v4909
    %5287 = vmatprep.subr.bf16.mxu0 %v4914
    %5288 = vmatpush1.bf16.msra.mxu0 %v4913
    %5289 = vmatprep.subr.bf16.mxu0 %v4918
    %5290 = vmatpush1.bf16.msra.mxu0 %v4917
    %5291 = vmatprep.subr.bf16.mxu0 %v4922
    %5292 = vmatpush1.bf16.msra.mxu0 %v4921
    %5293 = vmatprep.subr.bf16.mxu0 %v4926
    %5294 = vmatpush1.bf16.msra.mxu0 %v4925
    %5295 = vmatprep.subr.bf16.mxu0 0
    %5296 = vmatpush1.bf16.msra.mxu0 0
    %5297 = vmatprep.subr.bf16.mxu0 0
    %5298 = vmatpush1.bf16.msra.mxu0 0
    %5299 = vmatprep.subr.bf16.mxu0 0
    %5300 = vmatpush1.bf16.msra.mxu0 0
    %5301 = vmatprep.subr.bf16.mxu0 0
    %5302 = vmatpush1.bf16.msra.mxu0 0
    %5303 = vmatprep.subr.bf16.mxu0 0
    %5304 = vmatpush1.bf16.msra.mxu0 0
    %5305 = vmatprep.subr.bf16.mxu0 0
    %5306 = vmatpush1.bf16.msra.mxu0 0
    %5307 = vmatprep.subr.bf16.mxu0 0
    %5308 = vmatpush1.bf16.msra.mxu0 0
    %5309 = vmatprep.subr.bf16.mxu0 0
    %5310 = vmatpush1.bf16.msra.mxu0 0
    %5311 = vmatprep.mubr.bf16.mxu0 0
    %5312 = vmatmul.mubr.bf16.gmra.mrb[0].mxu0 %v5278
    %v5313 = vpop.f32.mrb[0].mxu0
    %v5314 = vadd.f32 0.0, %v5313
    %v5315 = vpop.f32.mrb[0].mxu0
    %v5316 = vadd.f32 0.0, %v5315
    %v5317 = vpop.f32.mrb[0].mxu0
    %v5318 = vpop.f32.mrb[0].mxu0
    %5319 = vdwg.mxu0
    %5320 = vmatprep.subr.bf16.mxu0 %v4900
    %5321 = vmatpush1.bf16.msra.mxu0 %v4899
    %5322 = vmatprep.subr.bf16.mxu0 %v4904
    %5323 = vmatpush1.bf16.msra.mxu0 %v4903
    %5324 = vmatprep.subr.bf16.mxu0 %v4908
    %5325 = vmatpush1.bf16.msra.mxu0 %v4907
    %5326 = vmatprep.subr.bf16.mxu0 %v4912
    %5327 = vmatpush1.bf16.msra.mxu0 %v4911
    %5328 = vmatprep.subr.bf16.mxu0 %v4916
    %5329 = vmatpush1.bf16.msra.mxu0 %v4915
    %5330 = vmatprep.subr.bf16.mxu0 %v4920
    %5331 = vmatpush1.bf16.msra.mxu0 %v4919
    %5332 = vmatprep.subr.bf16.mxu0 %v4924
    %5333 = vmatpush1.bf16.msra.mxu0 %v4923
    %5334 = vmatprep.subr.bf16.mxu0 %v4928
    %5335 = vmatpush1.bf16.msra.mxu0 %v4927
    %5336 = vmatprep.subr.bf16.mxu0 0
    %5337 = vmatpush1.bf16.msra.mxu0 0
    %5338 = vmatprep.subr.bf16.mxu0 0
    %5339 = vmatpush1.bf16.msra.mxu0 0
    %5340 = vmatprep.subr.bf16.mxu0 0
    %5341 = vmatpush1.bf16.msra.mxu0 0
    %5342 = vmatprep.subr.bf16.mxu0 0
    %5343 = vmatpush1.bf16.msra.mxu0 0
    %5344 = vmatprep.subr.bf16.mxu0 0
    %5345 = vmatpush1.bf16.msra.mxu0 0
    %5346 = vmatprep.subr.bf16.mxu0 0
    %5347 = vmatpush1.bf16.msra.mxu0 0
    %5348 = vmatprep.subr.bf16.mxu0 0
    %5349 = vmatpush1.bf16.msra.mxu0 0
    %5350 = vmatprep.subr.bf16.mxu0 0
    %5351 = vmatpush1.bf16.msra.mxu0 0
    %5352 = vmatprep.mubr.bf16.mxu0 0
    %5353 = vmatmul.mubr.bf16.gmra.mrb[0].mxu0 %v5278
    %v5354 = vpop.f32.mrb[0].mxu0
    %v5355 = vadd.f32 0.0, %v5354
    %v5356 = vpop.f32.mrb[0].mxu0
    %v5357 = vadd.f32 0.0, %v5356
    %v5358 = vpop.f32.mrb[0].mxu0
    %v5359 = vpop.f32.mrb[0].mxu0
    %5360 = vdwg.mxu0
    %v5361 = vadd.f32 %v4704, %v5314
    %v5362 = vadd.f32 %v4706, %v5316
    %v5363 = vadd.f32 %v4777, %v5355
    %v5364 = vadd.f32 %v4779, %v5357
    %v5365 = vmul.f32 %v5361, 0.5
    %v5366 = vmul.f32 %v5362, 0.5
    %v5367 = vmul.f32 %v5363, 0.5
    %v5368 = vtanh.pop %v5365
    %v5369 = vtanh.pop %v5366
    %v5370 = vtanh.pop %v5367
    %v5371 = vmul.f32 %v5368, 0.5
    %v5372 = vmul.f32 %v5369, 0.5
    %v5373 = vmul.f32 %v5370, 0.5
    %v5374 = vadd.f32 %v5371, 0.5
    %v5375 = vadd.f32 %v5372, 0.5
    %v5376 = vadd.f32 %v5373, 0.5
    %v5377 = vtanh.pop %v5364
    %v5378 = vmul.f32 %v5375, %v5274
    %v5379 = vmul.f32 %v5374, %v5377
    %v5380 = vadd.f32 %v5378, %v5379
    %v5381 = vtanh.pop %v5380
    %v5382 = vmul.f32 %v5376, %v5381
    %v5383 = vadd.f32 %v5277, %v5382
    %v5384 = vpack.c.bf16 %v5382, %v5382
    %5385 = vmatprep.subr.bf16.mxu0 %v4898
    %5386 = vmatpush1.bf16.msra.mxu0 %v4897
    %5387 = vmatprep.subr.bf16.mxu0 %v4902
    %5388 = vmatpush1.bf16.msra.mxu0 %v4901
    %5389 = vmatprep.subr.bf16.mxu0 %v4906
    %5390 = vmatpush1.bf16.msra.mxu0 %v4905
    %5391 = vmatprep.subr.bf16.mxu0 %v4910
    %5392 = vmatpush1.bf16.msra.mxu0 %v4909
    %5393 = vmatprep.subr.bf16.mxu0 %v4914
    %5394 = vmatpush1.bf16.msra.mxu0 %v4913
    %5395 = vmatprep.subr.bf16.mxu0 %v4918
    %5396 = vmatpush1.bf16.msra.mxu0 %v4917
    %5397 = vmatprep.subr.bf16.mxu0 %v4922
    %5398 = vmatpush1.bf16.msra.mxu0 %v4921
    %5399 = vmatprep.subr.bf16.mxu0 %v4926
    %5400 = vmatpush1.bf16.msra.mxu0 %v4925
    %5401 = vmatprep.subr.bf16.mxu0 0
    %5402 = vmatpush1.bf16.msra.mxu0 0
    %5403 = vmatprep.subr.bf16.mxu0 0
    %5404 = vmatpush1.bf16.msra.mxu0 0
    %5405 = vmatprep.subr.bf16.mxu0 0
    %5406 = vmatpush1.bf16.msra.mxu0 0
    %5407 = vmatprep.subr.bf16.mxu0 0
    %5408 = vmatpush1.bf16.msra.mxu0 0
    %5409 = vmatprep.subr.bf16.mxu0 0
    %5410 = vmatpush1.bf16.msra.mxu0 0
    %5411 = vmatprep.subr.bf16.mxu0 0
    %5412 = vmatpush1.bf16.msra.mxu0 0
    %5413 = vmatprep.subr.bf16.mxu0 0
    %5414 = vmatpush1.bf16.msra.mxu0 0
    %5415 = vmatprep.subr.bf16.mxu0 0
    %5416 = vmatpush1.bf16.msra.mxu0 0
    %5417 = vmatprep.mubr.bf16.mxu0 0
    %5418 = vmatmul.mubr.bf16.gmra.mrb[0].mxu0 %v5384
    %v5419 = vpop.f32.mrb[0].mxu0
    %v5420 = vadd.f32 0.0, %v5419
    %v5421 = vpop.f32.mrb[0].mxu0
    %v5422 = vadd.f32 0.0, %v5421
    %v5423 = vpop.f32.mrb[0].mxu0
    %v5424 = vpop.f32.mrb[0].mxu0
    %5425 = vdwg.mxu0
    %5426 = vmatprep.subr.bf16.mxu0 %v4900
    %5427 = vmatpush1.bf16.msra.mxu0 %v4899
    %5428 = vmatprep.subr.bf16.mxu0 %v4904
    %5429 = vmatpush1.bf16.msra.mxu0 %v4903
    %5430 = vmatprep.subr.bf16.mxu0 %v4908
    %5431 = vmatpush1.bf16.msra.mxu0 %v4907
    %5432 = vmatprep.subr.bf16.mxu0 %v4912
    %5433 = vmatpush1.bf16.msra.mxu0 %v4911
    %5434 = vmatprep.subr.bf16.mxu0 %v4916
    %5435 = vmatpush1.bf16.msra.mxu0 %v4915
    %5436 = vmatprep.subr.bf16.mxu0 %v4920
    %5437 = vmatpush1.bf16.msra.mxu0 %v4919
    %5438 = vmatprep.subr.bf16.mxu0 %v4924
    %5439 = vmatpush1.bf16.msra.mxu0 %v4923
    %5440 = vmatprep.subr.bf16.mxu0 %v4928
    %5441 = vmatpush1.bf16.msra.mxu0 %v4927
    %5442 = vmatprep.subr.bf16.mxu0 0
    %5443 = vmatpush1.bf16.msra.mxu0 0
    %5444 = vmatprep.subr.bf16.mxu0 0
    %5445 = vmatpush1.bf16.msra.mxu0 0
    %5446 = vmatprep.subr.bf16.mxu0 0
    %5447 = vmatpush1.bf16.msra.mxu0 0
    %5448 = vmatprep.subr.bf16.mxu0 0
    %5449 = vmatpush1.bf16.msra.mxu0 0
    %5450 = vmatprep.subr.bf16.mxu0 0
    %5451 = vmatpush1.bf16.msra.mxu0 0
    %5452 = vmatprep.subr.bf16.mxu0 0
    %5453 = vmatpush1.bf16.msra.mxu0 0
    %5454 = vmatprep.subr.bf16.mxu0 0
    %5455 = vmatpush1.bf16.msra.mxu0 0
    %5456 = vmatprep.subr.bf16.mxu0 0
    %5457 = vmatpush1.bf16.msra.mxu0 0
    %5458 = vmatprep.mubr.bf16.mxu0 0
    %5459 = vmatmul.mubr.bf16.gmra.mrb[0].mxu0 %v5384
    %v5460 = vpop.f32.mrb[0].mxu0
    %v5461 = vadd.f32 0.0, %v5460
    %v5462 = vpop.f32.mrb[0].mxu0
    %v5463 = vadd.f32 0.0, %v5462
    %v5464 = vpop.f32.mrb[0].mxu0
    %v5465 = vpop.f32.mrb[0].mxu0
    %5466 = vdwg.mxu0
    %v5467 = vadd.f32 %v4710, %v5420
    %v5468 = vadd.f32 %v4712, %v5422
    %v5469 = vadd.f32 %v4783, %v5461
    %v5470 = vadd.f32 %v4785, %v5463
    %v5471 = vmul.f32 %v5467, 0.5
    %v5472 = vmul.f32 %v5468, 0.5
    %v5473 = vmul.f32 %v5469, 0.5
    %v5474 = vtanh.pop %v5471
    %v5475 = vtanh.pop %v5472
    %v5476 = vtanh.pop %v5473
    %v5477 = vmul.f32 %v5474, 0.5
    %v5478 = vmul.f32 %v5475, 0.5
    %v5479 = vmul.f32 %v5476, 0.5
    %v5480 = vadd.f32 %v5477, 0.5
    %v5481 = vadd.f32 %v5478, 0.5
    %v5482 = vadd.f32 %v5479, 0.5
    %v5483 = vtanh.pop %v5470
    %v5484 = vmul.f32 %v5481, %v5380
    %v5485 = vmul.f32 %v5480, %v5483
    %v5486 = vadd.f32 %v5484, %v5485
    %v5487 = vtanh.pop %v5486
    %v5488 = vmul.f32 %v5482, %v5487
    %v5489 = vadd.f32 %v5383, %v5488
    %v5490 = vpack.c.bf16 %v5488, %v5488
    %5491 = vmatprep.subr.bf16.mxu0 %v4898
    %5492 = vmatpush1.bf16.msra.mxu0 %v4897
    %5493 = vmatprep.subr.bf16.mxu0 %v4902
    %5494 = vmatpush1.bf16.msra.mxu0 %v4901
    %5495 = vmatprep.subr.bf16.mxu0 %v4906
    %5496 = vmatpush1.bf16.msra.mxu0 %v4905
    %5497 = vmatprep.subr.bf16.mxu0 %v4910
    %5498 = vmatpush1.bf16.msra.mxu0 %v4909
    %5499 = vmatprep.subr.bf16.mxu0 %v4914
    %5500 = vmatpush1.bf16.msra.mxu0 %v4913
    %5501 = vmatprep.subr.bf16.mxu0 %v4918
    %5502 = vmatpush1.bf16.msra.mxu0 %v4917
    %5503 = vmatprep.subr.bf16.mxu0 %v4922
    %5504 = vmatpush1.bf16.msra.mxu0 %v4921
    %5505 = vmatprep.subr.bf16.mxu0 %v4926
    %5506 = vmatpush1.bf16.msra.mxu0 %v4925
    %5507 = vmatprep.subr.bf16.mxu0 0
    %5508 = vmatpush1.bf16.msra.mxu0 0
    %5509 = vmatprep.subr.bf16.mxu0 0
    %5510 = vmatpush1.bf16.msra.mxu0 0
    %5511 = vmatprep.subr.bf16.mxu0 0
    %5512 = vmatpush1.bf16.msra.mxu0 0
    %5513 = vmatprep.subr.bf16.mxu0 0
    %5514 = vmatpush1.bf16.msra.mxu0 0
    %5515 = vmatprep.subr.bf16.mxu0 0
    %5516 = vmatpush1.bf16.msra.mxu0 0
    %5517 = vmatprep.subr.bf16.mxu0 0
    %5518 = vmatpush1.bf16.msra.mxu0 0
    %5519 = vmatprep.subr.bf16.mxu0 0
    %5520 = vmatpush1.bf16.msra.mxu0 0
    %5521 = vmatprep.subr.bf16.mxu0 0
    %5522 = vmatpush1.bf16.msra.mxu0 0
    %5523 = vmatprep.mubr.bf16.mxu0 0
    %5524 = vmatmul.mubr.bf16.gmra.mrb[0].mxu0 %v5490
    %v5525 = vpop.f32.mrb[0].mxu0
    %v5526 = vadd.f32 0.0, %v5525
    %v5527 = vpop.f32.mrb[0].mxu0
    %v5528 = vadd.f32 0.0, %v5527
    %v5529 = vpop.f32.mrb[0].mxu0
    %v5530 = vpop.f32.mrb[0].mxu0
    %5531 = vdwg.mxu0
    %5532 = vmatprep.subr.bf16.mxu0 %v4900
    %5533 = vmatpush1.bf16.msra.mxu0 %v4899
    %5534 = vmatprep.subr.bf16.mxu0 %v4904
    %5535 = vmatpush1.bf16.msra.mxu0 %v4903
    %5536 = vmatprep.subr.bf16.mxu0 %v4908
    %5537 = vmatpush1.bf16.msra.mxu0 %v4907
    %5538 = vmatprep.subr.bf16.mxu0 %v4912
    %5539 = vmatpush1.bf16.msra.mxu0 %v4911
    %5540 = vmatprep.subr.bf16.mxu0 %v4916
    %5541 = vmatpush1.bf16.msra.mxu0 %v4915
    %5542 = vmatprep.subr.bf16.mxu0 %v4920
    %5543 = vmatpush1.bf16.msra.mxu0 %v4919
    %5544 = vmatprep.subr.bf16.mxu0 %v4924
    %5545 = vmatpush1.bf16.msra.mxu0 %v4923
    %5546 = vmatprep.subr.bf16.mxu0 %v4928
    %5547 = vmatpush1.bf16.msra.mxu0 %v4927
    %5548 = vmatprep.subr.bf16.mxu0 0
    %5549 = vmatpush1.bf16.msra.mxu0 0
    %5550 = vmatprep.subr.bf16.mxu0 0
    %5551 = vmatpush1.bf16.msra.mxu0 0
    %5552 = vmatprep.subr.bf16.mxu0 0
    %5553 = vmatpush1.bf16.msra.mxu0 0
    %5554 = vmatprep.subr.bf16.mxu0 0
    %5555 = vmatpush1.bf16.msra.mxu0 0
    %5556 = vmatprep.subr.bf16.mxu0 0
    %5557 = vmatpush1.bf16.msra.mxu0 0
    %5558 = vmatprep.subr.bf16.mxu0 0
    %5559 = vmatpush1.bf16.msra.mxu0 0
    %5560 = vmatprep.subr.bf16.mxu0 0
    %5561 = vmatpush1.bf16.msra.mxu0 0
    %5562 = vmatprep.subr.bf16.mxu0 0
    %5563 = vmatpush1.bf16.msra.mxu0 0
    %5564 = vmatprep.mubr.bf16.mxu0 0
    %5565 = vmatmul.mubr.bf16.gmra.mrb[0].mxu0 %v5490
    %v5566 = vpop.f32.mrb[0].mxu0
    %v5567 = vadd.f32 0.0, %v5566
    %v5568 = vpop.f32.mrb[0].mxu0
    %v5569 = vadd.f32 0.0, %v5568
    %v5570 = vpop.f32.mrb[0].mxu0
    %v5571 = vpop.f32.mrb[0].mxu0
    %5572 = vdwg.mxu0
    %v5573 = vadd.f32 %v4714, %v5526
    %v5574 = vadd.f32 %v4716, %v5528
    %v5575 = vadd.f32 %v4787, %v5567
    %v5576 = vadd.f32 %v4789, %v5569
    %v5577 = vmul.f32 %v5573, 0.5
    %v5578 = vmul.f32 %v5574, 0.5
    %v5579 = vmul.f32 %v5575, 0.5
    %v5580 = vtanh.pop %v5577
    %v5581 = vtanh.pop %v5578
    %v5582 = vtanh.pop %v5579
    %v5583 = vmul.f32 %v5580, 0.5
    %v5584 = vmul.f32 %v5581, 0.5
    %v5585 = vmul.f32 %v5582, 0.5
    %v5586 = vadd.f32 %v5583, 0.5
    %v5587 = vadd.f32 %v5584, 0.5
    %v5588 = vadd.f32 %v5585, 0.5
    %v5589 = vtanh.pop %v5576
    %v5590 = vmul.f32 %v5587, %v5486
    %v5591 = vmul.f32 %v5586, %v5589
    %v5592 = vadd.f32 %v5590, %v5591
    %v5593 = vtanh.pop %v5592
    %v5594 = vmul.f32 %v5588, %v5593
    %v5595 = vadd.f32 %v5489, %v5594
    %v5596 = vpack.c.bf16 %v5594, %v5594
    %5597 = vmatprep.subr.bf16.mxu0 %v4898
    %5598 = vmatpush1.bf16.msra.mxu0 %v4897
    %5599 = vmatprep.subr.bf16.mxu0 %v4902
    %5600 = vmatpush1.bf16.msra.mxu0 %v4901
    %5601 = vmatprep.subr.bf16.mxu0 %v4906
    %5602 = vmatpush1.bf16.msra.mxu0 %v4905
    %5603 = vmatprep.subr.bf16.mxu0 %v4910
    %5604 = vmatpush1.bf16.msra.mxu0 %v4909
    %5605 = vmatprep.subr.bf16.mxu0 %v4914
    %5606 = vmatpush1.bf16.msra.mxu0 %v4913
    %5607 = vmatprep.subr.bf16.mxu0 %v4918
    %5608 = vmatpush1.bf16.msra.mxu0 %v4917
    %5609 = vmatprep.subr.bf16.mxu0 %v4922
    %5610 = vmatpush1.bf16.msra.mxu0 %v4921
    %5611 = vmatprep.subr.bf16.mxu0 %v4926
    %5612 = vmatpush1.bf16.msra.mxu0 %v4925
    %5613 = vmatprep.subr.bf16.mxu0 0
    %5614 = vmatpush1.bf16.msra.mxu0 0
    %5615 = vmatprep.subr.bf16.mxu0 0
    %5616 = vmatpush1.bf16.msra.mxu0 0
    %5617 = vmatprep.subr.bf16.mxu0 0
    %5618 = vmatpush1.bf16.msra.mxu0 0
    %5619 = vmatprep.subr.bf16.mxu0 0
    %5620 = vmatpush1.bf16.msra.mxu0 0
    %5621 = vmatprep.subr.bf16.mxu0 0
    %5622 = vmatpush1.bf16.msra.mxu0 0
    %5623 = vmatprep.subr.bf16.mxu0 0
    %5624 = vmatpush1.bf16.msra.mxu0 0
    %5625 = vmatprep.subr.bf16.mxu0 0
    %5626 = vmatpush1.bf16.msra.mxu0 0
    %5627 = vmatprep.subr.bf16.mxu0 0
    %5628 = vmatpush1.bf16.msra.mxu0 0
    %5629 = vmatprep.mubr.bf16.mxu0 0
    %5630 = vmatmul.mubr.bf16.gmra.mrb[0].mxu0 %v5596
    %v5631 = vpop.f32.mrb[0].mxu0
    %v5632 = vadd.f32 0.0, %v5631
    %v5633 = vpop.f32.mrb[0].mxu0
    %v5634 = vadd.f32 0.0, %v5633
    %v5635 = vpop.f32.mrb[0].mxu0
    %v5636 = vpop.f32.mrb[0].mxu0
    %5637 = vdwg.mxu0
    %5638 = vmatprep.subr.bf16.mxu0 %v4900
    %5639 = vmatpush1.bf16.msra.mxu0 %v4899
    %5640 = vmatprep.subr.bf16.mxu0 %v4904
    %5641 = vmatpush1.bf16.msra.mxu0 %v4903
    %5642 = vmatprep.subr.bf16.mxu0 %v4908
    %5643 = vmatpush1.bf16.msra.mxu0 %v4907
    %5644 = vmatprep.subr.bf16.mxu0 %v4912
    %5645 = vmatpush1.bf16.msra.mxu0 %v4911
    %5646 = vmatprep.subr.bf16.mxu0 %v4916
    %5647 = vmatpush1.bf16.msra.mxu0 %v4915
    %5648 = vmatprep.subr.bf16.mxu0 %v4920
    %5649 = vmatpush1.bf16.msra.mxu0 %v4919
    %5650 = vmatprep.subr.bf16.mxu0 %v4924
    %5651 = vmatpush1.bf16.msra.mxu0 %v4923
    %5652 = vmatprep.subr.bf16.mxu0 %v4928
    %5653 = vmatpush1.bf16.msra.mxu0 %v4927
    %5654 = vmatprep.subr.bf16.mxu0 0
    %5655 = vmatpush1.bf16.msra.mxu0 0
    %5656 = vmatprep.subr.bf16.mxu0 0
    %5657 = vmatpush1.bf16.msra.mxu0 0
    %5658 = vmatprep.subr.bf16.mxu0 0
    %5659 = vmatpush1.bf16.msra.mxu0 0
    %5660 = vmatprep.subr.bf16.mxu0 0
    %5661 = vmatpush1.bf16.msra.mxu0 0
    %5662 = vmatprep.subr.bf16.mxu0 0
    %5663 = vmatpush1.bf16.msra.mxu0 0
    %5664 = vmatprep.subr.bf16.mxu0 0
    %5665 = vmatpush1.bf16.msra.mxu0 0
    %5666 = vmatprep.subr.bf16.mxu0 0
    %5667 = vmatpush1.bf16.msra.mxu0 0
    %5668 = vmatprep.subr.bf16.mxu0 0
    %5669 = vmatpush1.bf16.msra.mxu0 0
    %5670 = vmatprep.mubr.bf16.mxu0 0
    %5671 = vmatmul.mubr.bf16.gmra.mrb[0].mxu0 %v5596
    %v5672 = vpop.f32.mrb[0].mxu0
    %v5673 = vadd.f32 0.0, %v5672
    %v5674 = vpop.f32.mrb[0].mxu0
    %v5675 = vadd.f32 0.0, %v5674
    %v5676 = vpop.f32.mrb[0].mxu0
    %v5677 = vpop.f32.mrb[0].mxu0
    %5678 = vdwg.mxu0
    %v5679 = vadd.f32 %v4720, %v5632
    %v5680 = vadd.f32 %v4722, %v5634
    %v5681 = vadd.f32 %v4793, %v5673
    %v5682 = vadd.f32 %v4795, %v5675
    %v5683 = vmul.f32 %v5679, 0.5
    %v5684 = vmul.f32 %v5680, 0.5
    %v5685 = vmul.f32 %v5681, 0.5
    %v5686 = vtanh.pop %v5683
    %v5687 = vtanh.pop %v5684
    %v5688 = vtanh.pop %v5685
    %v5689 = vmul.f32 %v5686, 0.5
    %v5690 = vmul.f32 %v5687, 0.5
    %v5691 = vmul.f32 %v5688, 0.5
    %v5692 = vadd.f32 %v5689, 0.5
    %v5693 = vadd.f32 %v5690, 0.5
    %v5694 = vadd.f32 %v5691, 0.5
    %v5695 = vtanh.pop %v5682
    %v5696 = vmul.f32 %v5693, %v5592
    %v5697 = vmul.f32 %v5692, %v5695
    %v5698 = vadd.f32 %v5696, %v5697
    %v5699 = vtanh.pop %v5698
    %v5700 = vmul.f32 %v5694, %v5699
    %v5701 = vadd.f32 %v5595, %v5700
    %v5702 = vpack.c.bf16 %v5700, %v5700
    %5703 = vmatprep.subr.bf16.mxu0 %v4898
    %5704 = vmatpush1.bf16.msra.mxu0 %v4897
    %5705 = vmatprep.subr.bf16.mxu0 %v4902
    %5706 = vmatpush1.bf16.msra.mxu0 %v4901
    %5707 = vmatprep.subr.bf16.mxu0 %v4906
    %5708 = vmatpush1.bf16.msra.mxu0 %v4905
    %5709 = vmatprep.subr.bf16.mxu0 %v4910
    %5710 = vmatpush1.bf16.msra.mxu0 %v4909
    %5711 = vmatprep.subr.bf16.mxu0 %v4914
    %5712 = vmatpush1.bf16.msra.mxu0 %v4913
    %5713 = vmatprep.subr.bf16.mxu0 %v4918
    %5714 = vmatpush1.bf16.msra.mxu0 %v4917
    %5715 = vmatprep.subr.bf16.mxu0 %v4922
    %5716 = vmatpush1.bf16.msra.mxu0 %v4921
    %5717 = vmatprep.subr.bf16.mxu0 %v4926
    %5718 = vmatpush1.bf16.msra.mxu0 %v4925
    %5719 = vmatprep.subr.bf16.mxu0 0
    %5720 = vmatpush1.bf16.msra.mxu0 0
    %5721 = vmatprep.subr.bf16.mxu0 0
    %5722 = vmatpush1.bf16.msra.mxu0 0
    %5723 = vmatprep.subr.bf16.mxu0 0
    %5724 = vmatpush1.bf16.msra.mxu0 0
    %5725 = vmatprep.subr.bf16.mxu0 0
    %5726 = vmatpush1.bf16.msra.mxu0 0
    %5727 = vmatprep.subr.bf16.mxu0 0
    %5728 = vmatpush1.bf16.msra.mxu0 0
    %5729 = vmatprep.subr.bf16.mxu0 0
    %5730 = vmatpush1.bf16.msra.mxu0 0
    %5731 = vmatprep.subr.bf16.mxu0 0
    %5732 = vmatpush1.bf16.msra.mxu0 0
    %5733 = vmatprep.subr.bf16.mxu0 0
    %5734 = vmatpush1.bf16.msra.mxu0 0
    %5735 = vmatprep.mubr.bf16.mxu0 0
    %5736 = vmatmul.mubr.bf16.gmra.mrb[0].mxu0 %v5702
    %v5737 = vpop.f32.mrb[0].mxu0
    %v5738 = vadd.f32 0.0, %v5737
    %v5739 = vpop.f32.mrb[0].mxu0
    %v5740 = vadd.f32 0.0, %v5739
    %v5741 = vpop.f32.mrb[0].mxu0
    %v5742 = vpop.f32.mrb[0].mxu0
    %5743 = vdwg.mxu0
    %5744 = vmatprep.subr.bf16.mxu0 %v4900
    %5745 = vmatpush1.bf16.msra.mxu0 %v4899
    %5746 = vmatprep.subr.bf16.mxu0 %v4904
    %5747 = vmatpush1.bf16.msra.mxu0 %v4903
    %5748 = vmatprep.subr.bf16.mxu0 %v4908
    %5749 = vmatpush1.bf16.msra.mxu0 %v4907
    %5750 = vmatprep.subr.bf16.mxu0 %v4912
    %5751 = vmatpush1.bf16.msra.mxu0 %v4911
    %5752 = vmatprep.subr.bf16.mxu0 %v4916
    %5753 = vmatpush1.bf16.msra.mxu0 %v4915
    %5754 = vmatprep.subr.bf16.mxu0 %v4920
    %5755 = vmatpush1.bf16.msra.mxu0 %v4919
    %5756 = vmatprep.subr.bf16.mxu0 %v4924
    %5757 = vmatpush1.bf16.msra.mxu0 %v4923
    %5758 = vmatprep.subr.bf16.mxu0 %v4928
    %5759 = vmatpush1.bf16.msra.mxu0 %v4927
    %5760 = vmatprep.subr.bf16.mxu0 0
    %5761 = vmatpush1.bf16.msra.mxu0 0
    %5762 = vmatprep.subr.bf16.mxu0 0
    %5763 = vmatpush1.bf16.msra.mxu0 0
    %5764 = vmatprep.subr.bf16.mxu0 0
    %5765 = vmatpush1.bf16.msra.mxu0 0
    %5766 = vmatprep.subr.bf16.mxu0 0
    %5767 = vmatpush1.bf16.msra.mxu0 0
    %5768 = vmatprep.subr.bf16.mxu0 0
    %5769 = vmatpush1.bf16.msra.mxu0 0
    %5770 = vmatprep.subr.bf16.mxu0 0
    %5771 = vmatpush1.bf16.msra.mxu0 0
    %5772 = vmatprep.subr.bf16.mxu0 0
    %5773 = vmatpush1.bf16.msra.mxu0 0
    %5774 = vmatprep.subr.bf16.mxu0 0
    %5775 = vmatpush1.bf16.msra.mxu0 0
    %5776 = vmatprep.mubr.bf16.mxu0 0
    %5777 = vmatmul.mubr.bf16.gmra.mrb[0].mxu0 %v5702
    %v5778 = vpop.f32.mrb[0].mxu0
    %v5779 = vadd.f32 0.0, %v5778
    %v5780 = vpop.f32.mrb[0].mxu0
    %v5781 = vadd.f32 0.0, %v5780
    %v5782 = vpop.f32.mrb[0].mxu0
    %v5783 = vpop.f32.mrb[0].mxu0
    %5784 = vdwg.mxu0
    %v5785 = vadd.f32 %v4724, %v5738
    %v5786 = vadd.f32 %v4726, %v5740
    %v5787 = vadd.f32 %v4797, %v5779
    %v5788 = vadd.f32 %v4799, %v5781
    %v5789 = vmul.f32 %v5785, 0.5
    %v5790 = vmul.f32 %v5786, 0.5
    %v5791 = vmul.f32 %v5787, 0.5
    %v5792 = vtanh.pop %v5789
    %v5793 = vtanh.pop %v5790
    %v5794 = vtanh.pop %v5791
    %v5795 = vmul.f32 %v5792, 0.5
    %v5796 = vmul.f32 %v5793, 0.5
    %v5797 = vmul.f32 %v5794, 0.5
    %v5798 = vadd.f32 %v5795, 0.5
    %v5799 = vadd.f32 %v5796, 0.5
    %v5800 = vadd.f32 %v5797, 0.5
    %v5801 = vtanh.pop %v5788
    %v5802 = vmul.f32 %v5799, %v5698
    %v5803 = vmul.f32 %v5798, %v5801
    %v5804 = vadd.f32 %v5802, %v5803
    %v5805 = vtanh.pop %v5804
    %v5806 = vmul.f32 %v5800, %v5805
    %v5807 = vadd.f32 %v5701, %v5806
    %v5808 = vmul.f32 %v5807, 0.125
    %v5809 = vld [vmem:[#allocation7] sm:$0xff]
    %v5810 = vld [vmem:[#allocation7 + $0x8] sm:$0xff]
    %v5811 = vld [vmem:[#allocation7 + $0x10] sm:$0xff]
    %v5812 = vld [vmem:[#allocation7 + $0x18] sm:$0xff]
    %v5813 = vld [vmem:[#allocation7 + $0x20] sm:$0xff]
    %v5814 = vld [vmem:[#allocation7 + $0x28] sm:$0xff]
    %v5815 = vld [vmem:[#allocation7 + $0x30] sm:$0xff]
    %v5816 = vld [vmem:[#allocation7 + $0x38] sm:$0xff]
    %v5817 = vld [vmem:[#allocation7 + $0x40] sm:$0xff]
    %v5818 = vld [vmem:[#allocation7 + $0x48] sm:$0xff]
    %v5819 = vld [vmem:[#allocation7 + $0x50] sm:$0xff]
    %v5820 = vld [vmem:[#allocation7 + $0x58] sm:$0xff]
    %v5821 = vld [vmem:[#allocation7 + $0x60] sm:$0xff]
    %v5822 = vld [vmem:[#allocation7 + $0x68] sm:$0xff]
    %v5823 = vld [vmem:[#allocation7 + $0x70] sm:$0xff]
    %v5824 = vld [vmem:[#allocation7 + $0x78] sm:$0xff]
    %v5825 = vld [vmem:[%s5] sm:$0x1]
    %v5827 = vlaneseq
    %v5828 = vshrl.u32 %v5827, 7
    %v5829 = vsub.s32 0, %v5828
    %v5830 = vrot.slane %v5825, %v5829
    %5832 = vmatprep.subr.mxu0 0.0
    %5833 = vmatpush1.msra.mxu0 %v5809
    %5834 = vmatprep.subr.mxu0 0.0
    %5835 = vmatpush1.msra.mxu0 %v5810
    %5836 = vmatprep.subr.mxu0 0.0
    %5837 = vmatpush1.msra.mxu0 %v5811
    %5838 = vmatprep.subr.mxu0 0.0
    %5839 = vmatpush1.msra.mxu0 %v5812
    %5840 = vmatprep.subr.mxu0 0.0
    %5841 = vmatpush1.msra.mxu0 %v5813
    %5842 = vmatprep.subr.mxu0 0.0
    %5843 = vmatpush1.msra.mxu0 %v5814
    %5844 = vmatprep.subr.mxu0 0.0
    %5845 = vmatpush1.msra.mxu0 %v5815
    %5846 = vmatprep.subr.mxu0 0.0
    %5847 = vmatpush1.msra.mxu0 %v5816
    %5848 = vmatprep.subr.mxu0 0.0
    %5849 = vmatpush1.msra.mxu0 %v5817
    %5850 = vmatprep.subr.mxu0 0.0
    %5851 = vmatpush1.msra.mxu0 %v5818
    %5852 = vmatprep.subr.mxu0 0.0
    %5853 = vmatpush1.msra.mxu0 %v5819
    %5854 = vmatprep.subr.mxu0 0.0
    %5855 = vmatpush1.msra.mxu0 %v5820
    %5856 = vmatprep.subr.mxu0 0.0
    %5857 = vmatpush1.msra.mxu0 %v5821
    %5858 = vmatprep.subr.mxu0 0.0
    %5859 = vmatpush1.msra.mxu0 %v5822
    %5860 = vmatprep.subr.mxu0 0.0
    %5861 = vmatpush1.msra.mxu0 %v5823
    %5862 = vmatprep.subr.mxu0 0.0
    %5863 = vmatpush1.msra.mxu0 %v5824
    %5864 = vmatprep.subr.mxu0 0.0
    %5865 = vmatpush1.msra.mxu0 0.0
    %5866 = vmatprep.subr.mxu0 0.0
    %5867 = vmatpush1.msra.mxu0 0.0
    %5868 = vmatprep.subr.mxu0 0.0
    %5869 = vmatpush1.msra.mxu0 0.0
    %5870 = vmatprep.subr.mxu0 0.0
    %5871 = vmatpush1.msra.mxu0 0.0
    %5872 = vmatprep.subr.mxu0 0.0
    %5873 = vmatpush1.msra.mxu0 0.0
    %5874 = vmatprep.subr.mxu0 0.0
    %5875 = vmatpush1.msra.mxu0 0.0
    %5876 = vmatprep.subr.mxu0 0.0
    %5877 = vmatpush1.msra.mxu0 0.0
    %5878 = vmatprep.subr.mxu0 0.0
    %5879 = vmatpush1.msra.mxu0 0.0
    %5880 = vmatprep.subr.mxu0 0.0
    %5881 = vmatpush1.msra.mxu0 0.0
    %5882 = vmatprep.subr.mxu0 0.0
    %5883 = vmatpush1.msra.mxu0 0.0
    %5884 = vmatprep.subr.mxu0 0.0
    %5885 = vmatpush1.msra.mxu0 0.0
    %5886 = vmatprep.subr.mxu0 0.0
    %5887 = vmatpush1.msra.mxu0 0.0
    %5888 = vmatprep.subr.mxu0 0.0
    %5889 = vmatpush1.msra.mxu0 0.0
    %5890 = vmatprep.subr.mxu0 0.0
    %5891 = vmatpush1.msra.mxu0 0.0
    %5892 = vmatprep.subr.mxu0 0.0
    %5893 = vmatpush1.msra.mxu0 0.0
    %5894 = vmatprep.subr.mxu0 0.0
    %5895 = vmatpush1.msra.mxu0 0.0
    %5896 = vmatprep.mubr.f32.mxu0 0.0
    %5897 = vmatmul.mubr.f32.gmra.mrb[0].mxu0 %v5808
    %v5898 = vpop.f32.mrb[0].mxu0
    %v5899 = vadd.f32 %v5830, %v5898
    %v5900 = vpop.f32.mrb[0].mxu0
    %5901 = vdwg.mxu0
    %v5902 = vmul.f32 %v5899, 0.5
    %v5903 = vtanh.pop %v5902
    %v5904 = vmul.f32 %v5903, 0.5
    %v5905 = vadd.f32 %v5904, 0.5
    %5906 = vst [vmem:[%s6] sm:$0xff] %v5905
    // Predicated region
    $region38: #{rnn_forward.1} parent=1 // pred_check
      _
    $region39: #{rnn_forward.1} parent=1 // pred_check_branch
      %5908 = sbr.rel (0) target = $region41
    $region40: #{rnn_forward.1} parent=1 // pred_region
      _
    $region41: #{rnn_forward.1} parent=1 // pred_fallthru
      _
    // Predicated region
    $region42: #{rnn_forward.1} parent=1 // pred_check
      _
    $region43: #{rnn_forward.1} parent=1 // pred_check_branch
      %5910 = sbr.rel (0) target = $region45
    $region44: #{rnn_forward.1} parent=1 // pred_region
      _
    $region45: #{rnn_forward.1} parent=1 // pred_fallthru
      _
    %5911 = vsyncpa [#allocation4], 1
    %5912 = vsyncpa [#allocation6], 1

</llo_original>
